<compile_context>
chip_gen: v7x
topology: tpu7x:2x2x1
jax: 0.10.0
libtpu: 0.0.40
codegen_flags: <defaults>
</compile_context>

<pallas_src>
import functools

import numpy as np
import jax
import jax.numpy as jnp
from jax import lax
from jax.experimental import pallas as pl
from jax.experimental.pallas import tpu as pltpu

F32 = jnp.float32
_EPS = 1e-5
_HI = lax.Precision.HIGHEST


# ----------------------------------------------------------------------------
# Host-side 0/1 selection tensors describing the three convolutions
# (zero rows implement the conv zero-padding exactly).
# ----------------------------------------------------------------------------
def _build_selectors():
    sel1 = np.zeros((784, 196, 9), np.float32)            # conv1: 28x28 -> 14x14
    for oh in range(14):
        for ow in range(14):
            for di in range(3):
                for dj in range(3):
                    ih, iw = 2 * oh + di - 1, 2 * ow + dj - 1
                    if 0 <= ih < 28 and 0 <= iw < 28:
                        sel1[ih * 28 + iw, oh * 14 + ow, di * 3 + dj] = 1.0
    s2 = np.zeros((9, 49, 196), np.float32)                # conv2: 14x14 -> 7x7
    for oh in range(7):
        for ow in range(7):
            for di in range(3):
                for dj in range(3):
                    ih, iw = 2 * oh + di - 1, 2 * ow + dj - 1
                    if 0 <= ih < 14 and 0 <= iw < 14:
                        s2[di * 3 + dj, oh * 7 + ow, ih * 14 + iw] = 1.0
    s3 = np.zeros((9, 9, 49), np.float32)                  # conv3: 7x7 -> 3x3
    for oh in range(3):
        for ow in range(3):
            for di in range(3):
                for dj in range(3):
                    ih, iw = 2 * oh + di, 2 * ow + dj
                    s3[di * 3 + dj, oh * 3 + ow, ih * 7 + iw] = 1.0
    return sel1, s2, s3


_SEL1, _S2, _S3 = _build_selectors()

# Channel pick / spread matrices for BatchNorm over the flat (p2*16 + c) layout.
_GPICK = np.zeros((784, 16), np.float32)
for _p in range(49):
    for _c in range(16):
        _GPICK[_p * 16 + _c, _c] = 1.0
_GSPREAD = np.ascontiguousarray(_GPICK.T)


# ----------------------------------------------------------------------------
# Wrapper-side weight folding (exact 0/1 algebra, runs under jit).
# ----------------------------------------------------------------------------
def _fold_weights(params, mode):
    # conv1 as dense (784 -> 1568), output index = p1*8 + cout.
    w1 = params["conv1_w"][:, 0, :]                                      # (9, 8)
    w1d = jnp.einsum("xpt,tc->xpc", jnp.asarray(_SEL1), w1,
                     precision=_HI).reshape(784, 1568)
    b1d = jnp.tile(params["conv1_b"].reshape(1, 8), (1, 196))            # (1, 1568)

    # conv2 as dense (1568 -> 784), row = p1*8 + cin, col = p2*16 + cout.
    wc2 = jnp.einsum("tqp,tio->piqo", jnp.asarray(_S2), params["conv2_w"],
                     precision=_HI).reshape(1568, 784)
    b2d = jnp.tile(params["conv2_b"].reshape(1, 16), (1, 49))            # (1, 784)

    # conv3 as dense (784 -> 288); columns ordered cout*9 + p3 == torch NCHW
    # flatten order, so fc1 needs no in-kernel transpose.
    wc3 = jnp.einsum("trq,tio->qior", jnp.asarray(_S3), params["conv3_w"],
                     precision=_HI).reshape(784, 288)
    b3d = jnp.repeat(params["conv3_b"].reshape(1, 32), 9, axis=1)        # (1, 288)

    if mode == "Test":
        # Fold eval-mode BatchNorm (running stats) into the conv2 GEMM.
        scale_c = params["bn_gamma"] * lax.rsqrt(params["bn_var"] + _EPS)
        shift_c = params["bn_beta"] - params["bn_mean"] * scale_c
        scale_d = jnp.tile(scale_c.reshape(1, 16), (1, 49))
        shift_d = jnp.tile(shift_c.reshape(1, 16), (1, 49))
        wc2 = wc2 * scale_d
        b2d = b2d * scale_d + shift_d

    # Fold fc2 -> fine_tuner (no nonlinearity in between; exact algebra) and
    # pad the 10-wide head to 128 columns for unmasked full-lane stores.
    headw = jnp.dot(params["fc2_w"], params["tuner_w"], precision=_HI)   # (64, 10)
    headb = (jnp.dot(params["fc2_b"], params["tuner_w"], precision=_HI)
             + params["tuner_b"])                                        # (1, 10)
    headw = jnp.pad(headw, ((0, 0), (0, 128 - 10)))
    headb = jnp.pad(headb, ((0, 0), (0, 128 - 10)))

    front = [w1d, b1d, wc2, b2d]
    common = [wc3, b3d, params["fc1_w"], params["fc1_b"], headw, headb]
    return front, common


# ----------------------------------------------------------------------------
# Kernel helpers (whole tile in the M dimension of every GEMM).
# ----------------------------------------------------------------------------
def _gemm(a, w_ref, b_ref):
    return jnp.dot(a, w_ref[...], preferred_element_type=F32) + b_ref[...]


def _tail(y2, wc3_ref, b3d_ref, fc1w_ref, fc1b_ref, headw_ref, headb_ref):
    y3 = jnp.maximum(_gemm(y2, wc3_ref, b3d_ref), 0.0)        # (tb, 288) NCHW order
    h1 = jnp.maximum(_gemm(y3, fc1w_ref, fc1b_ref), 0.0)      # (tb, 64)
    return _gemm(h1, headw_ref, headb_ref)                    # (tb, 128) padded head


def _test_kernel(x_ref, w1d_ref, b1d_ref, wc2_ref, b2d_ref,
                 wc3_ref, b3d_ref, fc1w_ref, fc1b_ref, headw_ref, headb_ref,
                 out_ref):
    y1 = jnp.maximum(_gemm(x_ref[...], w1d_ref, b1d_ref), 0.0)   # (tb, 1568)
    y2 = jnp.maximum(_gemm(y1, wc2_ref, b2d_ref), 0.0)           # BN folded in wrapper
    out_ref[...] = _tail(y2, wc3_ref, b3d_ref, fc1w_ref, fc1b_ref,
                         headw_ref, headb_ref)


def _train_kernel(x_ref, mask_ref, w1d_ref, b1d_ref, wc2_ref, b2d_ref,
                  gpick_ref, gspread_ref, gamma_ref, beta_ref,
                  wc3_ref, b3d_ref, fc1w_ref, fc1b_ref, headw_ref, headb_ref,
                  out_ref, sums_scr, bn_scr, *, count):
    """Two-phase grid (phase, tile): phase 0 accumulates cross-tile BN channel
    statistics in persistent scratch; phase 1 normalizes and emits outputs."""
    phase = pl.program_id(0)
    tile = pl.program_id(1)

    @pl.when((phase == 0) & (tile == 0))
    def _zero():
        sums_scr[...] = jnp.zeros_like(sums_scr)

    # conv1 + conv2 pre-activations (recomputed in phase 1 — cheap GEMMs).
    y1 = jnp.maximum(_gemm(x_ref[...], w1d_ref, b1d_ref), 0.0)   # (tb, 1568)
    a2 = _gemm(y1, wc2_ref, b2d_ref)                             # (tb, 784) pre-BN

    @pl.when(phase == 0)
    def _accumulate():
        m = mask_ref[...]                                        # (tb, 1) valid rows
        a2m = a2 * m
        row_sum = jnp.sum(a2m, axis=0, keepdims=True)            # (1, 784)
        row_ssq = jnp.sum(a2m * a2, axis=0, keepdims=True)       # (1, 784)
        ch_sum = jnp.dot(row_sum, gpick_ref[...], preferred_element_type=F32)
        ch_ssq = jnp.dot(row_ssq, gpick_ref[...], preferred_element_type=F32)
        sums_scr[0:1, :] = sums_scr[0:1, :] + ch_sum
        sums_scr[1:2, :] = sums_scr[1:2, :] + ch_ssq

    @pl.when((phase == 1) & (tile == 0))
    def _finalize_stats():
        inv_n = 1.0 / count
        mean_c = sums_scr[0:1, :] * inv_n
        var_c = jnp.maximum(sums_scr[1:2, :] * inv_n - mean_c * mean_c, 0.0)
        scale_c = gamma_ref[...] * lax.rsqrt(var_c + _EPS)
        shift_c = beta_ref[...] - mean_c * scale_c
        bn_scr[0:1, :] = jnp.dot(scale_c, gspread_ref[...],
                                 preferred_element_type=F32)
        bn_scr[1:2, :] = jnp.dot(shift_c, gspread_ref[...],
                                 preferred_element_type=F32)

    @pl.when(phase == 1)
    def _emit():
        y2 = jnp.maximum(a2 * bn_scr[0:1, :] + bn_scr[1:2, :], 0.0)
        out_ref[...] = _tail(y2, wc3_ref, b3d_ref, fc1w_ref, fc1b_ref,
                             headw_ref, headb_ref)


# ----------------------------------------------------------------------------
# Wrapper.
# ----------------------------------------------------------------------------
def _resident(arr):
    """Full-array block mapped to block (0, 0) every grid step (VMEM-resident)."""
    nd = arr.ndim
    return pl.BlockSpec(arr.shape, lambda *_: (0,) * nd)


@functools.partial(jax.jit, static_argnames=("mode", "batch_tile"))
def fine_tuned_autoencoder_forward(params, x_nchw, mode, *, batch_tile=128):
    """x_nchw: (N, 1, 28, 28) float32; mode in {'Train', 'Test'} -> (N, 10)."""
    assert mode in ("Train", "Test")
    b = x_nchw.shape[0]
    x = x_nchw.reshape(b, 784).astype(F32)          # raw pixels, ih*28+iw order

    front, common = _fold_weights(params, mode)

    tile_cfg = max(8, min((int(batch_tile) // 8) * 8, 256))
    b8 = ((b + 7) // 8) * 8
    tile_b = min(tile_cfg, b8)
    n_tiles = (b8 + tile_b - 1) // tile_b
    b_pad = n_tiles * tile_b
    if b_pad != b:
        x = jnp.pad(x, ((0, b_pad - b), (0, 0)))

    vmem_bytes = 48 * 1024 * 1024

    if mode == "Test":
        operands = front + common
        in_specs = ([pl.BlockSpec((tile_b, 784), lambda i: (i, 0))]
                    + [_resident(a) for a in operands])
        out = pl.pallas_call(
            _test_kernel,
            out_shape=jax.ShapeDtypeStruct((b_pad, 128), F32),
            grid=(n_tiles,),
            in_specs=in_specs,
            out_specs=pl.BlockSpec((tile_b, 128), lambda i: (i, 0)),
            compiler_params=pltpu.CompilerParams(
                dimension_semantics=("parallel",),
                vmem_limit_bytes=vmem_bytes),
        )(x, *operands)
    else:
        # Row-validity mask so padded rows never pollute the batch statistics.
        rowmask = (jnp.arange(b_pad) < b).astype(F32).reshape(b_pad, 1)
        operands = (front
                    + [jnp.asarray(_GPICK), jnp.asarray(_GSPREAD),
                       params["bn_gamma"].reshape(1, 16),
                       params["bn_beta"].reshape(1, 16)]
                    + common)
        in_specs = ([pl.BlockSpec((tile_b, 784), lambda p, i: (i, 0)),
                     pl.BlockSpec((tile_b, 1), lambda p, i: (i, 0))]
                    + [_resident(a) for a in operands])
        kernel = functools.partial(_train_kernel, count=float(b * 49))
        # TODO(synk): Train mode idles the second TensorCore on multi-TC chips
        # (sequential two-phase grid needed for the cross-tile BN reduction).
        out = pl.pallas_call(
            kernel,
            out_shape=jax.ShapeDtypeStruct((b_pad, 128), F32),
            grid=(2, n_tiles),
            in_specs=in_specs,
            out_specs=pl.BlockSpec((tile_b, 128), lambda p, i: (i, 0)),
            scratch_shapes=[pltpu.VMEM((2, 16), F32),     # ch sum / sum-of-squares
                            pltpu.VMEM((2, 784), F32)],   # spread BN scale / shift
            compiler_params=pltpu.CompilerParams(
                dimension_semantics=("arbitrary", "arbitrary"),
                vmem_limit_bytes=vmem_bytes),
        )(x, rowmask, *operands)

    return out[:b, :10]


# ----------------------------------------------------------------------------
# Parameters (deterministic synthetic init; shapes follow the module __init__).
# ----------------------------------------------------------------------------
def init_params(key, encoded_space_dim):
    ks = jax.random.split(key, 12)
    s = 0.2
    return {
        # conv weights in im2col layout (kernel offset t = di*3+dj, cin, cout)
        "conv1_w": s * jax.random.normal(ks[0], (9, 1, 8), jnp.float32),
        "conv1_b": 0.1 * jax.random.normal(ks[1], (1, 8), jnp.float32),
        "conv2_w": s * jax.random.normal(ks[2], (9, 8, 16), jnp.float32),
        "conv2_b": 0.1 * jax.random.normal(ks[3], (1, 16), jnp.float32),
        "bn_gamma": jnp.ones((1, 16), jnp.float32),
        "bn_beta": jnp.zeros((1, 16), jnp.float32),
        "bn_mean": jnp.zeros((1, 16), jnp.float32),
        "bn_var": jnp.ones((1, 16), jnp.float32),
        "conv3_w": s * jax.random.normal(ks[4], (9, 16, 32), jnp.float32),
        "conv3_b": 0.1 * jax.random.normal(ks[5], (1, 32), jnp.float32),
        # linear weights stored as (in, out) == torch weight.T;
        # fc1 input index = torch NCHW flat index c*9 + hw.
        "fc1_w": s * jax.random.normal(ks[6], (288, 64), jnp.float32),
        "fc1_b": 0.1 * jax.random.normal(ks[7], (1, 64), jnp.float32),
        "fc2_w": s * jax.random.normal(ks[8], (64, encoded_space_dim), jnp.float32),
        "fc2_b": 0.1 * jax.random.normal(ks[9], (1, encoded_space_dim), jnp.float32),
        "tuner_w": s * jax.random.normal(ks[10], (encoded_space_dim, 10), jnp.float32),
        "tuner_b": 0.1 * jax.random.normal(ks[11], (1, 10), jnp.float32),
    }


# ----------------------------------------------------------------------------
# Pure-JAX reference (classic im2col + matmul) for numerical validation.
# ----------------------------------------------------------------------------
def reference_forward(params, x_nchw, mode, eps=1e-5):
    use_batch_stats = (mode == "Train")
    n = x_nchw.shape[0]
    x = jnp.transpose(x_nchw, (0, 2, 3, 1)).astype(jnp.float32)   # NHWC

    def im2col(xx, k, stride, pad):
        if pad:
            xx = jnp.pad(xx, ((0, 0), (pad, pad), (pad, pad), (0, 0)))
        _, hh, ww, _ = xx.shape
        oh = (hh - k) // stride + 1
        ow = (ww - k) // stride + 1
        cols = []
        for di in range(k):
            for dj in range(k):
                cols.append(xx[:, di:di + stride * oh:stride,
                               dj:dj + stride * ow:stride, :])
        return jnp.concatenate(cols, axis=-1), oh, ow

    def conv(xx, w3d, bias, stride, pad, relu):
        pat, oh, ow = im2col(xx, 3, stride, pad)
        kk, cin, cout = w3d.shape
        out = pat.reshape(n * oh * ow, kk * cin) @ w3d.reshape(kk * cin, cout) + bias
        if relu:
            out = jnp.maximum(out, 0.0)
        return out.reshape(n, oh, ow, cout)

    y = conv(x, params["conv1_w"], params["conv1_b"], 2, 1, True)       # (N,14,14,8)
    y = conv(y, params["conv2_w"], params["conv2_b"], 2, 1, False)      # (N,7,7,16)
    flat = y.reshape(n * 49, 16)
    if use_batch_stats:
        mean = jnp.mean(flat, axis=0, keepdims=True)
        var = jnp.mean((flat - mean) ** 2, axis=0, keepdims=True)
    else:
        mean, var = params["bn_mean"], params["bn_var"]
    flat = jnp.maximum((flat - mean) * jax.lax.rsqrt(var + eps)
                       * params["bn_gamma"] + params["bn_beta"], 0.0)
    y = flat.reshape(n, 7, 7, 16)
    y = conv(y, params["conv3_w"], params["conv3_b"], 2, 0, True)       # (N,3,3,32)
    y = jnp.transpose(y, (0, 3, 1, 2)).reshape(n, -1)                   # NCHW flatten
    y = jnp.maximum(y @ params["fc1_w"] + params["fc1_b"], 0.0)
    y = y @ params["fc2_w"] + params["fc2_b"]
    return y @ params["tuner_w"] + params["tuner_b"]


# ----------------------------------------------------------------------------
if __name__ == "__main__":
    encoded_space_dim = 8
    key = jax.random.PRNGKey(0)
    k_param, k_data = jax.random.split(key)

    params = init_params(k_param, encoded_space_dim)
    x = jax.random.normal(k_data, (2, 1, 28, 28), jnp.float32)

    out_test = jax.block_until_ready(fine_tuned_autoencoder_forward(params, x, "Test"))
    out_train = jax.block_until_ready(fine_tuned_autoencoder_forward(params, x, "Train"))

    ref_test = jax.block_until_ready(reference_forward(params, x, "Test"))
    ref_train = jax.block_until_ready(reference_forward(params, x, "Train"))

    assert out_test.shape == (2, 10) and out_train.shape == (2, 10)
    assert bool(jnp.all(jnp.isfinite(out_test)))
    assert bool(jnp.all(jnp.isfinite(out_train)))
    for got, ref in ((out_test, ref_test), (out_train, ref_train)):
        err = float(jnp.max(jnp.abs(got - ref)))
        scale = float(jnp.max(jnp.abs(ref)))
        assert err <= 1e-3 * max(scale, 1.0), (err, scale)
    print("KERNEL_OK")
</pallas_src>

<mosaic_0001>
module attributes {stable_mosaic.version = 11 : i64} {
  func.func @_test_kernel(%arg0: i32, %arg1: memref<8x784xf32, #tpu.memory_space<vmem>>, %arg2: memref<784x1568xf32, #tpu.memory_space<vmem>>, %arg3: memref<1x1568xf32, #tpu.memory_space<vmem>>, %arg4: memref<1568x784xf32, #tpu.memory_space<vmem>>, %arg5: memref<1x784xf32, #tpu.memory_space<vmem>>, %arg6: memref<784x288xf32, #tpu.memory_space<vmem>>, %arg7: memref<1x288xf32, #tpu.memory_space<vmem>>, %arg8: memref<288x64xf32, #tpu.memory_space<vmem>>, %arg9: memref<1x64xf32, #tpu.memory_space<vmem>>, %arg10: memref<64x128xf32, #tpu.memory_space<vmem>>, %arg11: memref<1x128xf32, #tpu.memory_space<vmem>>, %arg12: memref<8x128xf32, #tpu.memory_space<vmem>>) attributes {dimension_semantics = [#tpu.dimension_semantics<parallel>], iteration_bounds = array<i64: 1>, scalar_prefetch = 0 : i64, scratch_operands = 0 : i64, tpu.core_type = #tpu.core_type<tc>, window_params = [{transform_indices = @transform_0, window_bounds = array<i64: 8, 784>}, {pipeline_mode = #tpu.pipeline_mode<synchronous>, transform_indices = @transform_1, window_bounds = array<i64: 784, 1568>}, {pipeline_mode = #tpu.pipeline_mode<synchronous>, transform_indices = @transform_2, window_bounds = array<i64: 1, 1568>}, {pipeline_mode = #tpu.pipeline_mode<synchronous>, transform_indices = @transform_3, window_bounds = array<i64: 1568, 784>}, {pipeline_mode = #tpu.pipeline_mode<synchronous>, transform_indices = @transform_4, window_bounds = array<i64: 1, 784>}, {pipeline_mode = #tpu.pipeline_mode<synchronous>, transform_indices = @transform_5, window_bounds = array<i64: 784, 288>}, {pipeline_mode = #tpu.pipeline_mode<synchronous>, transform_indices = @transform_6, window_bounds = array<i64: 1, 288>}, {pipeline_mode = #tpu.pipeline_mode<synchronous>, transform_indices = @transform_7, window_bounds = array<i64: 288, 64>}, {pipeline_mode = #tpu.pipeline_mode<synchronous>, transform_indices = @transform_8, window_bounds = array<i64: 1, 64>}, {pipeline_mode = #tpu.pipeline_mode<synchronous>, transform_indices = @transform_9, window_bounds = array<i64: 64, 128>}, {pipeline_mode = #tpu.pipeline_mode<synchronous>, transform_indices = @transform_10, window_bounds = array<i64: 1, 128>}, {transform_indices = @transform_11, window_bounds = array<i64: 8, 128>}]} {
    %c0 = arith.constant 0 : index
    %c0_0 = arith.constant 0 : index
    %0 = vector.load %arg1[%c0, %c0_0] : memref<8x784xf32, #tpu.memory_space<vmem>>, vector<8x784xf32>
    %c0_1 = arith.constant 0 : index
    %c0_2 = arith.constant 0 : index
    %1 = vector.load %arg2[%c0_1, %c0_2] : memref<784x1568xf32, #tpu.memory_space<vmem>>, vector<784x1568xf32>
    %cst = arith.constant dense<0.000000e+00> : vector<8x1568xf32>
    %2 = tpu.matmul %0, %1, %cst {dimension_numbers = #tpu.dot_dimension_numbers<[1], [0], [0], [1], [0, 0, 1, 1], [], []>} : vector<8x784xf32>, vector<784x1568xf32>, vector<8x1568xf32> -> vector<8x1568xf32>
    %c0_3 = arith.constant 0 : index
    %c0_4 = arith.constant 0 : index
    %3 = vector.load %arg3[%c0_3, %c0_4] : memref<1x1568xf32, #tpu.memory_space<vmem>>, vector<1x1568xf32>
    %4 = vector.broadcast %3 : vector<1x1568xf32> to vector<8x1568xf32>
    %5 = arith.addf %2, %4 : vector<8x1568xf32>
    %cst_5 = arith.constant 0.000000e+00 : f32
    %6 = vector.broadcast %cst_5 : f32 to vector<8x1568xf32>
    %7 = arith.maximumf %5, %6 : vector<8x1568xf32>
    %c0_6 = arith.constant 0 : index
    %c0_7 = arith.constant 0 : index
    %8 = vector.load %arg4[%c0_6, %c0_7] : memref<1568x784xf32, #tpu.memory_space<vmem>>, vector<1568x784xf32>
    %cst_8 = arith.constant dense<0.000000e+00> : vector<8x784xf32>
    %9 = tpu.matmul %7, %8, %cst_8 {dimension_numbers = #tpu.dot_dimension_numbers<[1], [0], [0], [1], [0, 0, 1, 1], [], []>} : vector<8x1568xf32>, vector<1568x784xf32>, vector<8x784xf32> -> vector<8x784xf32>
    %c0_9 = arith.constant 0 : index
    %c0_10 = arith.constant 0 : index
    %10 = vector.load %arg5[%c0_9, %c0_10] : memref<1x784xf32, #tpu.memory_space<vmem>>, vector<1x784xf32>
    %11 = vector.broadcast %10 : vector<1x784xf32> to vector<8x784xf32>
    %12 = arith.addf %9, %11 : vector<8x784xf32>
    %cst_11 = arith.constant 0.000000e+00 : f32
    %13 = vector.broadcast %cst_11 : f32 to vector<8x784xf32>
    %14 = arith.maximumf %12, %13 : vector<8x784xf32>
    %c0_12 = arith.constant 0 : index
    %c0_13 = arith.constant 0 : index
    %15 = vector.load %arg6[%c0_12, %c0_13] : memref<784x288xf32, #tpu.memory_space<vmem>>, vector<784x288xf32>
    %cst_14 = arith.constant dense<0.000000e+00> : vector<8x288xf32>
    %16 = tpu.matmul %14, %15, %cst_14 {dimension_numbers = #tpu.dot_dimension_numbers<[1], [0], [0], [1], [0, 0, 1, 1], [], []>} : vector<8x784xf32>, vector<784x288xf32>, vector<8x288xf32> -> vector<8x288xf32>
    %c0_15 = arith.constant 0 : index
    %c0_16 = arith.constant 0 : index
    %17 = vector.load %arg7[%c0_15, %c0_16] : memref<1x288xf32, #tpu.memory_space<vmem>>, vector<1x288xf32>
    %18 = vector.broadcast %17 : vector<1x288xf32> to vector<8x288xf32>
    %19 = arith.addf %16, %18 : vector<8x288xf32>
    %cst_17 = arith.constant 0.000000e+00 : f32
    %20 = vector.broadcast %cst_17 : f32 to vector<8x288xf32>
    %21 = arith.maximumf %19, %20 : vector<8x288xf32>
    %c0_18 = arith.constant 0 : index
    %c0_19 = arith.constant 0 : index
    %22 = vector.load %arg8[%c0_18, %c0_19] : memref<288x64xf32, #tpu.memory_space<vmem>>, vector<288x64xf32>
    %cst_20 = arith.constant dense<0.000000e+00> : vector<8x64xf32>
    %23 = tpu.matmul %21, %22, %cst_20 {dimension_numbers = #tpu.dot_dimension_numbers<[1], [0], [0], [1], [0, 0, 1, 1], [], []>} : vector<8x288xf32>, vector<288x64xf32>, vector<8x64xf32> -> vector<8x64xf32>
    %c0_21 = arith.constant 0 : index
    %c0_22 = arith.constant 0 : index
    %24 = vector.load %arg9[%c0_21, %c0_22] : memref<1x64xf32, #tpu.memory_space<vmem>>, vector<1x64xf32>
    %25 = vector.broadcast %24 : vector<1x64xf32> to vector<8x64xf32>
    %26 = arith.addf %23, %25 : vector<8x64xf32>
    %cst_23 = arith.constant 0.000000e+00 : f32
    %27 = vector.broadcast %cst_23 : f32 to vector<8x64xf32>
    %28 = arith.maximumf %26, %27 : vector<8x64xf32>
    %c0_24 = arith.constant 0 : index
    %c0_25 = arith.constant 0 : index
    %29 = vector.load %arg10[%c0_24, %c0_25] : memref<64x128xf32, #tpu.memory_space<vmem>>, vector<64x128xf32>
    %cst_26 = arith.constant dense<0.000000e+00> : vector<8x128xf32>
    %30 = tpu.matmul %28, %29, %cst_26 {dimension_numbers = #tpu.dot_dimension_numbers<[1], [0], [0], [1], [0, 0, 1, 1], [], []>} : vector<8x64xf32>, vector<64x128xf32>, vector<8x128xf32> -> vector<8x128xf32>
    %c0_27 = arith.constant 0 : index
    %c0_28 = arith.constant 0 : index
    %31 = vector.load %arg11[%c0_27, %c0_28] : memref<1x128xf32, #tpu.memory_space<vmem>>, vector<1x128xf32>
    %32 = vector.broadcast %31 : vector<1x128xf32> to vector<8x128xf32>
    %33 = arith.addf %30, %32 : vector<8x128xf32>
    %c0_29 = arith.constant 0 : index
    %c0_30 = arith.constant 0 : index
    %34 = vector.load %arg12[%c0_29, %c0_30] : memref<8x128xf32, #tpu.memory_space<vmem>>, vector<8x128xf32>
    tpu.vector_store %arg12[%c0_29, %c0_30], %33 {strides = array<i32>} : memref<8x128xf32, #tpu.memory_space<vmem>>, vector<8x128xf32>,
    return
  }
  func.func @transform_0(%arg0: i32) -> (i32, i32) {
    %c0_i32 = arith.constant 0 : i32
    %c0_i32_0 = arith.constant 0 : i32
    return %arg0, %c0_i32 : i32, i32
  }
  func.func @transform_1(%arg0: i32) -> (i32, i32) {
    %c0_i32 = arith.constant 0 : i32
    %c0_i32_0 = arith.constant 0 : i32
    %c0_i32_1 = arith.constant 0 : i32
    return %c0_i32, %c0_i32_0 : i32, i32
  }
  func.func @transform_2(%arg0: i32) -> (i32, i32) {
    %c0_i32 = arith.constant 0 : i32
    %c0_i32_0 = arith.constant 0 : i32
    %c0_i32_1 = arith.constant 0 : i32
    return %c0_i32, %c0_i32_0 : i32, i32
  }
  func.func @transform_3(%arg0: i32) -> (i32, i32) {
    %c0_i32 = arith.constant 0 : i32
    %c0_i32_0 = arith.constant 0 : i32
    %c0_i32_1 = arith.constant 0 : i32
    return %c0_i32, %c0_i32_0 : i32, i32
  }
  func.func @transform_4(%arg0: i32) -> (i32, i32) {
    %c0_i32 = arith.constant 0 : i32
    %c0_i32_0 = arith.constant 0 : i32
    %c0_i32_1 = arith.constant 0 : i32
    return %c0_i32, %c0_i32_0 : i32, i32
  }
  func.func @transform_5(%arg0: i32) -> (i32, i32) {
    %c0_i32 = arith.constant 0 : i32
    %c0_i32_0 = arith.constant 0 : i32
    %c0_i32_1 = arith.constant 0 : i32
    return %c0_i32, %c0_i32_0 : i32, i32
  }
  func.func @transform_6(%arg0: i32) -> (i32, i32) {
    %c0_i32 = arith.constant 0 : i32
    %c0_i32_0 = arith.constant 0 : i32
    %c0_i32_1 = arith.constant 0 : i32
    return %c0_i32, %c0_i32_0 : i32, i32
  }
  func.func @transform_7(%arg0: i32) -> (i32, i32) {
    %c0_i32 = arith.constant 0 : i32
    %c0_i32_0 = arith.constant 0 : i32
    %c0_i32_1 = arith.constant 0 : i32
    return %c0_i32, %c0_i32_0 : i32, i32
  }
  func.func @transform_8(%arg0: i32) -> (i32, i32) {
    %c0_i32 = arith.constant 0 : i32
    %c0_i32_0 = arith.constant 0 : i32
    %c0_i32_1 = arith.constant 0 : i32
    return %c0_i32, %c0_i32_0 : i32, i32
  }
  func.func @transform_9(%arg0: i32) -> (i32, i32) {
    %c0_i32 = arith.constant 0 : i32
    %c0_i32_0 = arith.constant 0 : i32
    %c0_i32_1 = arith.constant 0 : i32
    return %c0_i32, %c0_i32_0 : i32, i32
  }
  func.func @transform_10(%arg0: i32) -> (i32, i32) {
    %c0_i32 = arith.constant 0 : i32
    %c0_i32_0 = arith.constant 0 : i32
    %c0_i32_1 = arith.constant 0 : i32
    return %c0_i32, %c0_i32_0 : i32, i32
  }
  func.func @transform_11(%arg0: i32) -> (i32, i32) {
    %c0_i32 = arith.constant 0 : i32
    %c0_i32_0 = arith.constant 0 : i32
    return %arg0, %c0_i32 : i32, i32
  }
}

</mosaic_0001>

<llo_original>
// kernel: fine_tuned_autoencoder_forward.1
$region0: #{fine_tuned_autoencoder_forward.1}
  #allocation0 [shape = 'u32[]', space=smem, size = 0x4, offset = 0x4, fixed_abs, tag = 'smem constant byte address 0x4 - core index']
  #allocation1 [shape = 'u32[144,128]{1,0:T(1,128)}', space=vmem, size = 0x12000, scoped, tag = 'internal scratch']
  %s0 = inlined_call_operand.vmem [shape: f32[8,784], index: 0, kind: input, shape index: {}]
  %s1 = inlined_call_operand.vmem [shape: f32[784,1568], index: 1, kind: input, shape index: {}]
  %s2 = inlined_call_operand.vmem [shape: f32[1,1568], index: 2, kind: input, shape index: {}]
  %s3 = inlined_call_operand.vmem [shape: f32[1568,784], index: 3, kind: input, shape index: {}]
  %s4 = inlined_call_operand.vmem [shape: f32[1,784], index: 4, kind: input, shape index: {}]
  %s5 = inlined_call_operand.vmem [shape: f32[784,288], index: 5, kind: input, shape index: {}]
  %s6 = inlined_call_operand.vmem [shape: f32[1,288], index: 6, kind: input, shape index: {}]
  %s7 = inlined_call_operand.vmem [shape: f32[288,64], index: 7, kind: input, shape index: {}]
  %s8 = inlined_call_operand.vmem [shape: f32[1,64], index: 8, kind: input, shape index: {}]
  %s9 = inlined_call_operand.vmem [shape: f32[64,128], index: 9, kind: input, shape index: {}]
  %s10 = inlined_call_operand.vmem [shape: f32[1,128], index: 10, kind: input, shape index: {}]
  %s11 = inlined_call_operand.vmem [shape: f32[8,128], index: 11, kind: output, shape index: {}]
  %s12 = sld [smem:[#allocation0]]
  $region54: #{fine_tuned_autoencoder_forward.1} parent=0
    _
  %s14 = ssub.s32 1, %s12
  %s15 = scalar_select 0, %s14, %s12
  // Predicated region
  $region2: #{fine_tuned_autoencoder_forward.1} parent=0 // pred_check
    _
  $region3: #{fine_tuned_autoencoder_forward.1} parent=0 // pred_check_branch
    %17 = sbr.rel (0) target = $region5
  $region4: #{fine_tuned_autoencoder_forward.1} parent=0 // pred_region
    _
  $region5: #{fine_tuned_autoencoder_forward.1} parent=0 // pred_fallthru
    _
  // Predicated region
  $region6: #{fine_tuned_autoencoder_forward.1} parent=0 // pred_check
    _
  $region7: #{fine_tuned_autoencoder_forward.1} parent=0 // pred_check_branch
    %19 = sbr.rel (0) target = $region9
  $region8: #{fine_tuned_autoencoder_forward.1} parent=0 // pred_region
    _
  $region9: #{fine_tuned_autoencoder_forward.1} parent=0 // pred_fallthru
    _
  // Predicated region
  $region10: #{fine_tuned_autoencoder_forward.1} parent=0 // pred_check
    _
  $region11: #{fine_tuned_autoencoder_forward.1} parent=0 // pred_check_branch
    %21 = sbr.rel (0) target = $region13
  $region12: #{fine_tuned_autoencoder_forward.1} parent=0 // pred_region
    _
  $region13: #{fine_tuned_autoencoder_forward.1} parent=0 // pred_fallthru
    _
  // Predicated region
  $region14: #{fine_tuned_autoencoder_forward.1} parent=0 // pred_check
    _
  $region15: #{fine_tuned_autoencoder_forward.1} parent=0 // pred_check_branch
    %23 = sbr.rel (0) target = $region17
  $region16: #{fine_tuned_autoencoder_forward.1} parent=0 // pred_region
    _
  $region17: #{fine_tuned_autoencoder_forward.1} parent=0 // pred_fallthru
    _
  // Predicated region
  $region18: #{fine_tuned_autoencoder_forward.1} parent=0 // pred_check
    _
  $region19: #{fine_tuned_autoencoder_forward.1} parent=0 // pred_check_branch
    %25 = sbr.rel (0) target = $region21
  $region20: #{fine_tuned_autoencoder_forward.1} parent=0 // pred_region
    _
  $region21: #{fine_tuned_autoencoder_forward.1} parent=0 // pred_fallthru
    _
  // Predicated region
  $region22: #{fine_tuned_autoencoder_forward.1} parent=0 // pred_check
    _
  $region23: #{fine_tuned_autoencoder_forward.1} parent=0 // pred_check_branch
    %27 = sbr.rel (0) target = $region25
  $region24: #{fine_tuned_autoencoder_forward.1} parent=0 // pred_region
    _
  $region25: #{fine_tuned_autoencoder_forward.1} parent=0 // pred_fallthru
    _
  // Predicated region
  $region26: #{fine_tuned_autoencoder_forward.1} parent=0 // pred_check
    _
  $region27: #{fine_tuned_autoencoder_forward.1} parent=0 // pred_check_branch
    %29 = sbr.rel (0) target = $region29
  $region28: #{fine_tuned_autoencoder_forward.1} parent=0 // pred_region
    _
  $region29: #{fine_tuned_autoencoder_forward.1} parent=0 // pred_fallthru
    _
  // Predicated region
  $region30: #{fine_tuned_autoencoder_forward.1} parent=0 // pred_check
    _
  $region31: #{fine_tuned_autoencoder_forward.1} parent=0 // pred_check_branch
    %31 = sbr.rel (0) target = $region33
  $region32: #{fine_tuned_autoencoder_forward.1} parent=0 // pred_region
    _
  $region33: #{fine_tuned_autoencoder_forward.1} parent=0 // pred_fallthru
    _
  // Predicated region
  $region34: #{fine_tuned_autoencoder_forward.1} parent=0 // pred_check
    _
  $region35: #{fine_tuned_autoencoder_forward.1} parent=0 // pred_check_branch
    %33 = sbr.rel (0) target = $region37
  $region36: #{fine_tuned_autoencoder_forward.1} parent=0 // pred_region
    _
  $region37: #{fine_tuned_autoencoder_forward.1} parent=0 // pred_fallthru
    _
  // Predicated region
  $region38: #{fine_tuned_autoencoder_forward.1} parent=0 // pred_check
    _
  $region39: #{fine_tuned_autoencoder_forward.1} parent=0 // pred_check_branch
    %35 = sbr.rel (0) target = $region41
  $region40: #{fine_tuned_autoencoder_forward.1} parent=0 // pred_region
    _
  $region41: #{fine_tuned_autoencoder_forward.1} parent=0 // pred_fallthru
    _
  // Predicated region
  $region42: #{fine_tuned_autoencoder_forward.1} parent=0 // pred_check
    _
  $region43: #{fine_tuned_autoencoder_forward.1} parent=0 // pred_check_branch
    %37 = sbr.rel (0) target = $region45
  $region44: #{fine_tuned_autoencoder_forward.1} parent=0 // pred_region
    _
  $region45: #{fine_tuned_autoencoder_forward.1} parent=0 // pred_fallthru
    _
  %v38 = vld [vmem:[%s0] sm:$0xff]
  %v39 = vld [vmem:[%s0 + $0x8] sm:$0xff]
  %v40 = vld [vmem:[%s0 + $0x10] sm:$0xff]
  %v41 = vld [vmem:[%s0 + $0x18] sm:$0xff]
  %v42 = vld [vmem:[%s0 + $0x20] sm:$0xff]
  %v43 = vld [vmem:[%s0 + $0x28] sm:$0xff]
  %v44 = vld [vmem:[%s0 + $0x30] sm:$0xff]
  %v45 = vld [vmem:[%s1] sm:$0xff]
  %v46 = vld [vmem:[%s1 + $0x8] sm:$0xff]
  %v47 = vld [vmem:[%s1 + $0x10] sm:$0xff]
  %v48 = vld [vmem:[%s1 + $0x18] sm:$0xff]
  %v49 = vld [vmem:[%s1 + $0x20] sm:$0xff]
  %v50 = vld [vmem:[%s1 + $0x28] sm:$0xff]
  %v51 = vld [vmem:[%s1 + $0x30] sm:$0xff]
  %v52 = vld [vmem:[%s1 + $0x38] sm:$0xff]
  %v53 = vld [vmem:[%s1 + $0x40] sm:$0xff]
  %v54 = vld [vmem:[%s1 + $0x48] sm:$0xff]
  %v55 = vld [vmem:[%s1 + $0x50] sm:$0xff]
  %v56 = vld [vmem:[%s1 + $0x58] sm:$0xff]
  %v57 = vld [vmem:[%s1 + $0x60] sm:$0xff]
  %v58 = vld [vmem:[%s1 + $0x68] sm:$0xff]
  %v59 = vld [vmem:[%s1 + $0x70] sm:$0xff]
  %v60 = vld [vmem:[%s1 + $0x78] sm:$0xff]
  %v61 = vld [vmem:[%s1 + $0x80] sm:$0xff]
  %v62 = vld [vmem:[%s1 + $0x88] sm:$0xff]
  %v63 = vld [vmem:[%s1 + $0x90] sm:$0xff]
  %v64 = vld [vmem:[%s1 + $0x98] sm:$0xff]
  %v65 = vld [vmem:[%s1 + $0xa0] sm:$0xff]
  %v66 = vld [vmem:[%s1 + $0xa8] sm:$0xff]
  %v67 = vld [vmem:[%s1 + $0xb0] sm:$0xff]
  %v68 = vld [vmem:[%s1 + $0xb8] sm:$0xff]
  %v69 = vld [vmem:[%s1 + $0xc0] sm:$0xff]
  %v70 = vld [vmem:[%s1 + $0xc8] sm:$0xff]
  %v71 = vld [vmem:[%s1 + $0xd0] sm:$0xff]
  %v72 = vld [vmem:[%s1 + $0xd8] sm:$0xff]
  %v73 = vld [vmem:[%s1 + $0xe0] sm:$0xff]
  %v74 = vld [vmem:[%s1 + $0xe8] sm:$0xff]
  %v75 = vld [vmem:[%s1 + $0xf0] sm:$0xff]
  %v76 = vld [vmem:[%s1 + $0xf8] sm:$0xff]
  %v77 = vld [vmem:[%s1 + $0x100] sm:$0xff]
  %v78 = vld [vmem:[%s1 + $0x108] sm:$0xff]
  %v79 = vld [vmem:[%s1 + $0x110] sm:$0xff]
  %v80 = vld [vmem:[%s1 + $0x118] sm:$0xff]
  %v81 = vld [vmem:[%s1 + $0x120] sm:$0xff]
  %v82 = vld [vmem:[%s1 + $0x128] sm:$0xff]
  %v83 = vld [vmem:[%s1 + $0x130] sm:$0xff]
  %v84 = vld [vmem:[%s1 + $0x138] sm:$0xff]
  %v85 = vld [vmem:[%s1 + $0x140] sm:$0xff]
  %v86 = vld [vmem:[%s1 + $0x148] sm:$0xff]
  %v87 = vld [vmem:[%s1 + $0x150] sm:$0xff]
  %v88 = vld [vmem:[%s1 + $0x158] sm:$0xff]
  %v89 = vld [vmem:[%s1 + $0x160] sm:$0xff]
  %v90 = vld [vmem:[%s1 + $0x168] sm:$0xff]
  %v91 = vld [vmem:[%s1 + $0x170] sm:$0xff]
  %v92 = vld [vmem:[%s1 + $0x178] sm:$0xff]
  %v93 = vld [vmem:[%s1 + $0x180] sm:$0xff]
  %v94 = vld [vmem:[%s1 + $0x188] sm:$0xff]
  %v95 = vld [vmem:[%s1 + $0x190] sm:$0xff]
  %v96 = vld [vmem:[%s1 + $0x198] sm:$0xff]
  %v97 = vld [vmem:[%s1 + $0x1a0] sm:$0xff]
  %v98 = vld [vmem:[%s1 + $0x1a8] sm:$0xff]
  %v99 = vld [vmem:[%s1 + $0x1b0] sm:$0xff]
  %v100 = vld [vmem:[%s1 + $0x1b8] sm:$0xff]
  %v101 = vld [vmem:[%s1 + $0x1c0] sm:$0xff]
  %v102 = vld [vmem:[%s1 + $0x1c8] sm:$0xff]
  %v103 = vld [vmem:[%s1 + $0x1d0] sm:$0xff]
  %v104 = vld [vmem:[%s1 + $0x1d8] sm:$0xff]
  %v105 = vld [vmem:[%s1 + $0x1e0] sm:$0xff]
  %v106 = vld [vmem:[%s1 + $0x1e8] sm:$0xff]
  %v107 = vld [vmem:[%s1 + $0x1f0] sm:$0xff]
  %v108 = vld [vmem:[%s1 + $0x1f8] sm:$0xff]
  %v109 = vld [vmem:[%s1 + $0x200] sm:$0xff]
  %v110 = vld [vmem:[%s1 + $0x208] sm:$0xff]
  %v111 = vld [vmem:[%s1 + $0x210] sm:$0xff]
  %v112 = vld [vmem:[%s1 + $0x218] sm:$0xff]
  %v113 = vld [vmem:[%s1 + $0x220] sm:$0xff]
  %v114 = vld [vmem:[%s1 + $0x228] sm:$0xff]
  %v115 = vld [vmem:[%s1 + $0x230] sm:$0xff]
  %v116 = vld [vmem:[%s1 + $0x238] sm:$0xff]
  %v117 = vld [vmem:[%s1 + $0x240] sm:$0xff]
  %v118 = vld [vmem:[%s1 + $0x248] sm:$0xff]
  %v119 = vld [vmem:[%s1 + $0x250] sm:$0xff]
  %v120 = vld [vmem:[%s1 + $0x258] sm:$0xff]
  %v121 = vld [vmem:[%s1 + $0x260] sm:$0xff]
  %v122 = vld [vmem:[%s1 + $0x268] sm:$0xff]
  %v123 = vld [vmem:[%s1 + $0x270] sm:$0xff]
  %v124 = vld [vmem:[%s1 + $0x278] sm:$0xff]
  %v125 = vld [vmem:[%s1 + $0x280] sm:$0xff]
  %v126 = vld [vmem:[%s1 + $0x288] sm:$0xff]
  %v127 = vld [vmem:[%s1 + $0x290] sm:$0xff]
  %v128 = vld [vmem:[%s1 + $0x298] sm:$0xff]
  %v129 = vld [vmem:[%s1 + $0x2a0] sm:$0xff]
  %v130 = vld [vmem:[%s1 + $0x2a8] sm:$0xff]
  %v131 = vld [vmem:[%s1 + $0x2b0] sm:$0xff]
  %v132 = vld [vmem:[%s1 + $0x2b8] sm:$0xff]
  %v133 = vld [vmem:[%s1 + $0x2c0] sm:$0xff]
  %v134 = vld [vmem:[%s1 + $0x2c8] sm:$0xff]
  %v135 = vld [vmem:[%s1 + $0x2d0] sm:$0xff]
  %v136 = vld [vmem:[%s1 + $0x2d8] sm:$0xff]
  %v137 = vld [vmem:[%s1 + $0x2e0] sm:$0xff]
  %v138 = vld [vmem:[%s1 + $0x2e8] sm:$0xff]
  %v139 = vld [vmem:[%s1 + $0x2f0] sm:$0xff]
  %v140 = vld [vmem:[%s1 + $0x2f8] sm:$0xff]
  %v141 = vld [vmem:[%s1 + $0x300] sm:$0xff]
  %v142 = vld [vmem:[%s1 + $0x308] sm:$0xff]
  %v143 = vld [vmem:[%s1 + $0x310] sm:$0xff]
  %v144 = vld [vmem:[%s1 + $0x318] sm:$0xff]
  %v145 = vld [vmem:[%s1 + $0x320] sm:$0xff]
  %v146 = vld [vmem:[%s1 + $0x328] sm:$0xff]
  %v147 = vld [vmem:[%s1 + $0x330] sm:$0xff]
  %v148 = vld [vmem:[%s1 + $0x338] sm:$0xff]
  %v149 = vld [vmem:[%s1 + $0x340] sm:$0xff]
  %v150 = vld [vmem:[%s1 + $0x348] sm:$0xff]
  %v151 = vld [vmem:[%s1 + $0x350] sm:$0xff]
  %v152 = vld [vmem:[%s1 + $0x358] sm:$0xff]
  %v153 = vld [vmem:[%s1 + $0x360] sm:$0xff]
  %v154 = vld [vmem:[%s1 + $0x368] sm:$0xff]
  %v155 = vld [vmem:[%s1 + $0x370] sm:$0xff]
  %v156 = vld [vmem:[%s1 + $0x378] sm:$0xff]
  %v157 = vld [vmem:[%s1 + $0x380] sm:$0xff]
  %v158 = vld [vmem:[%s1 + $0x388] sm:$0xff]
  %v159 = vld [vmem:[%s1 + $0x390] sm:$0xff]
  %v160 = vld [vmem:[%s1 + $0x398] sm:$0xff]
  %v161 = vld [vmem:[%s1 + $0x3a0] sm:$0xff]
  %v162 = vld [vmem:[%s1 + $0x3a8] sm:$0xff]
  %v163 = vld [vmem:[%s1 + $0x3b0] sm:$0xff]
  %v164 = vld [vmem:[%s1 + $0x3b8] sm:$0xff]
  %v165 = vld [vmem:[%s1 + $0x3c0] sm:$0xff]
  %v166 = vld [vmem:[%s1 + $0x3c8] sm:$0xff]
  %v167 = vld [vmem:[%s1 + $0x3d0] sm:$0xff]
  %v168 = vld [vmem:[%s1 + $0x3d8] sm:$0xff]
  %v169 = vld [vmem:[%s1 + $0x3e0] sm:$0xff]
  %v170 = vld [vmem:[%s1 + $0x3e8] sm:$0xff]
  %v171 = vld [vmem:[%s1 + $0x3f0] sm:$0xff]
  %v172 = vld [vmem:[%s1 + $0x3f8] sm:$0xff]
  %v173 = vld [vmem:[%s1 + $0x400] sm:$0xff]
  %v174 = vld [vmem:[%s1 + $0x408] sm:$0xff]
  %v175 = vld [vmem:[%s1 + $0x410] sm:$0xff]
  %v176 = vld [vmem:[%s1 + $0x418] sm:$0xff]
  %v177 = vld [vmem:[%s1 + $0x420] sm:$0xff]
  %v178 = vld [vmem:[%s1 + $0x428] sm:$0xff]
  %v179 = vld [vmem:[%s1 + $0x430] sm:$0xff]
  %v180 = vld [vmem:[%s1 + $0x438] sm:$0xff]
  %v181 = vld [vmem:[%s1 + $0x440] sm:$0xff]
  %v182 = vld [vmem:[%s1 + $0x448] sm:$0xff]
  %v183 = vld [vmem:[%s1 + $0x450] sm:$0xff]
  %v184 = vld [vmem:[%s1 + $0x458] sm:$0xff]
  %v185 = vld [vmem:[%s1 + $0x460] sm:$0xff]
  %v186 = vld [vmem:[%s1 + $0x468] sm:$0xff]
  %v187 = vld [vmem:[%s1 + $0x470] sm:$0xff]
  %v188 = vld [vmem:[%s1 + $0x478] sm:$0xff]
  %v189 = vld [vmem:[%s1 + $0x480] sm:$0xff]
  %v190 = vld [vmem:[%s1 + $0x488] sm:$0xff]
  %v191 = vld [vmem:[%s1 + $0x490] sm:$0xff]
  %v192 = vld [vmem:[%s1 + $0x498] sm:$0xff]
  %v193 = vld [vmem:[%s1 + $0x4a0] sm:$0xff]
  %v194 = vld [vmem:[%s1 + $0x4a8] sm:$0xff]
  %v195 = vld [vmem:[%s1 + $0x4b0] sm:$0xff]
  %v196 = vld [vmem:[%s1 + $0x4b8] sm:$0xff]
  %v197 = vld [vmem:[%s1 + $0x4c0] sm:$0xff]
  %v198 = vld [vmem:[%s1 + $0x4c8] sm:$0xff]
  %v199 = vld [vmem:[%s1 + $0x4d0] sm:$0xff]
  %v200 = vld [vmem:[%s1 + $0x4d8] sm:$0xff]
  %v201 = vld [vmem:[%s1 + $0x4e0] sm:$0xff]
  %v202 = vld [vmem:[%s1 + $0x4e8] sm:$0xff]
  %v203 = vld [vmem:[%s1 + $0x4f0] sm:$0xff]
  %v204 = vld [vmem:[%s1 + $0x4f8] sm:$0xff]
  %v205 = vld [vmem:[%s1 + $0x500] sm:$0xff]
  %v206 = vld [vmem:[%s1 + $0x508] sm:$0xff]
  %v207 = vld [vmem:[%s1 + $0x510] sm:$0xff]
  %v208 = vld [vmem:[%s1 + $0x518] sm:$0xff]
  %v209 = vld [vmem:[%s1 + $0x520] sm:$0xff]
  %v210 = vld [vmem:[%s1 + $0x528] sm:$0xff]
  %v211 = vld [vmem:[%s1 + $0x530] sm:$0xff]
  %v212 = vld [vmem:[%s1 + $0x538] sm:$0xff]
  %v213 = vld [vmem:[%s1 + $0x540] sm:$0xff]
  %v214 = vld [vmem:[%s1 + $0x548] sm:$0xff]
  %v215 = vld [vmem:[%s1 + $0x550] sm:$0xff]
  %v216 = vld [vmem:[%s1 + $0x558] sm:$0xff]
  %v217 = vld [vmem:[%s1 + $0x560] sm:$0xff]
  %v218 = vld [vmem:[%s1 + $0x568] sm:$0xff]
  %v219 = vld [vmem:[%s1 + $0x570] sm:$0xff]
  %v220 = vld [vmem:[%s1 + $0x578] sm:$0xff]
  %v221 = vld [vmem:[%s1 + $0x580] sm:$0xff]
  %v222 = vld [vmem:[%s1 + $0x588] sm:$0xff]
  %v223 = vld [vmem:[%s1 + $0x590] sm:$0xff]
  %v224 = vld [vmem:[%s1 + $0x598] sm:$0xff]
  %v225 = vld [vmem:[%s1 + $0x5a0] sm:$0xff]
  %v226 = vld [vmem:[%s1 + $0x5a8] sm:$0xff]
  %v227 = vld [vmem:[%s1 + $0x5b0] sm:$0xff]
  %v228 = vld [vmem:[%s1 + $0x5b8] sm:$0xff]
  %v229 = vld [vmem:[%s1 + $0x5c0] sm:$0xff]
  %v230 = vld [vmem:[%s1 + $0x5c8] sm:$0xff]
  %v231 = vld [vmem:[%s1 + $0x5d0] sm:$0xff]
  %v232 = vld [vmem:[%s1 + $0x5d8] sm:$0xff]
  %v233 = vld [vmem:[%s1 + $0x5e0] sm:$0xff]
  %v234 = vld [vmem:[%s1 + $0x5e8] sm:$0xff]
  %v235 = vld [vmem:[%s1 + $0x5f0] sm:$0xff]
  %v236 = vld [vmem:[%s1 + $0x5f8] sm:$0xff]
  %v237 = vld [vmem:[%s1 + $0x600] sm:$0xff]
  %v238 = vld [vmem:[%s1 + $0x608] sm:$0xff]
  %v239 = vld [vmem:[%s1 + $0x610] sm:$0xff]
  %v240 = vld [vmem:[%s1 + $0x618] sm:$0xff]
  %v241 = vld [vmem:[%s1 + $0x620] sm:$0xff]
  %v242 = vld [vmem:[%s1 + $0x628] sm:$0xff]
  %v243 = vld [vmem:[%s1 + $0x630] sm:$0xff]
  %v244 = vld [vmem:[%s1 + $0x638] sm:$0xff]
  %v245 = vld [vmem:[%s1 + $0x640] sm:$0xff]
  %v246 = vld [vmem:[%s1 + $0x648] sm:$0xff]
  %v247 = vld [vmem:[%s1 + $0x650] sm:$0xff]
  %v248 = vld [vmem:[%s1 + $0x658] sm:$0xff]
  %v249 = vld [vmem:[%s1 + $0x660] sm:$0xff]
  %v250 = vld [vmem:[%s1 + $0x668] sm:$0xff]
  %v251 = vld [vmem:[%s1 + $0x670] sm:$0xff]
  %v252 = vld [vmem:[%s1 + $0x678] sm:$0xff]
  %v253 = vld [vmem:[%s1 + $0x680] sm:$0xff]
  %v254 = vld [vmem:[%s1 + $0x688] sm:$0xff]
  %v255 = vld [vmem:[%s1 + $0x690] sm:$0xff]
  %v256 = vld [vmem:[%s1 + $0x698] sm:$0xff]
  %v257 = vld [vmem:[%s1 + $0x6a0] sm:$0xff]
  %v258 = vld [vmem:[%s1 + $0x6a8] sm:$0xff]
  %v259 = vld [vmem:[%s1 + $0x6b0] sm:$0xff]
  %v260 = vld [vmem:[%s1 + $0x6b8] sm:$0xff]
  %v261 = vld [vmem:[%s1 + $0x6c0] sm:$0xff]
  %v262 = vld [vmem:[%s1 + $0x6c8] sm:$0xff]
  %v263 = vld [vmem:[%s1 + $0x6d0] sm:$0xff]
  %v264 = vld [vmem:[%s1 + $0x6d8] sm:$0xff]
  %v265 = vld [vmem:[%s1 + $0x6e0] sm:$0xff]
  %v266 = vld [vmem:[%s1 + $0x6e8] sm:$0xff]
  %v267 = vld [vmem:[%s1 + $0x6f0] sm:$0xff]
  %v268 = vld [vmem:[%s1 + $0x6f8] sm:$0xff]
  %v269 = vld [vmem:[%s1 + $0x700] sm:$0xff]
  %v270 = vld [vmem:[%s1 + $0x708] sm:$0xff]
  %v271 = vld [vmem:[%s1 + $0x710] sm:$0xff]
  %v272 = vld [vmem:[%s1 + $0x718] sm:$0xff]
  %v273 = vld [vmem:[%s1 + $0x720] sm:$0xff]
  %v274 = vld [vmem:[%s1 + $0x728] sm:$0xff]
  %v275 = vld [vmem:[%s1 + $0x730] sm:$0xff]
  %v276 = vld [vmem:[%s1 + $0x738] sm:$0xff]
  %v277 = vld [vmem:[%s1 + $0x740] sm:$0xff]
  %v278 = vld [vmem:[%s1 + $0x748] sm:$0xff]
  %v279 = vld [vmem:[%s1 + $0x750] sm:$0xff]
  %v280 = vld [vmem:[%s1 + $0x758] sm:$0xff]
  %v281 = vld [vmem:[%s1 + $0x760] sm:$0xff]
  %v282 = vld [vmem:[%s1 + $0x768] sm:$0xff]
  %v283 = vld [vmem:[%s1 + $0x770] sm:$0xff]
  %v284 = vld [vmem:[%s1 + $0x778] sm:$0xff]
  %v285 = vld [vmem:[%s1 + $0x780] sm:$0xff]
  %v286 = vld [vmem:[%s1 + $0x788] sm:$0xff]
  %v287 = vld [vmem:[%s1 + $0x790] sm:$0xff]
  %v288 = vld [vmem:[%s1 + $0x798] sm:$0xff]
  %v289 = vld [vmem:[%s1 + $0x7a0] sm:$0xff]
  %v290 = vld [vmem:[%s1 + $0x7a8] sm:$0xff]
  %v291 = vld [vmem:[%s1 + $0x7b0] sm:$0xff]
  %v292 = vld [vmem:[%s1 + $0x7b8] sm:$0xff]
  %v293 = vld [vmem:[%s1 + $0x7c0] sm:$0xff]
  %v294 = vld [vmem:[%s1 + $0x7c8] sm:$0xff]
  %v295 = vld [vmem:[%s1 + $0x7d0] sm:$0xff]
  %v296 = vld [vmem:[%s1 + $0x7d8] sm:$0xff]
  %v297 = vld [vmem:[%s1 + $0x7e0] sm:$0xff]
  %v298 = vld [vmem:[%s1 + $0x7e8] sm:$0xff]
  %v299 = vld [vmem:[%s1 + $0x7f0] sm:$0xff]
  %v300 = vld [vmem:[%s1 + $0x7f8] sm:$0xff]
  %v301 = vld [vmem:[%s1 + $0x800] sm:$0xff]
  %v302 = vld [vmem:[%s1 + $0x808] sm:$0xff]
  %v303 = vld [vmem:[%s1 + $0x810] sm:$0xff]
  %v304 = vld [vmem:[%s1 + $0x818] sm:$0xff]
  %v305 = vld [vmem:[%s1 + $0x820] sm:$0xff]
  %v306 = vld [vmem:[%s1 + $0x828] sm:$0xff]
  %v307 = vld [vmem:[%s1 + $0x830] sm:$0xff]
  %v308 = vld [vmem:[%s1 + $0x838] sm:$0xff]
  %v309 = vld [vmem:[%s1 + $0x840] sm:$0xff]
  %v310 = vld [vmem:[%s1 + $0x848] sm:$0xff]
  %v311 = vld [vmem:[%s1 + $0x850] sm:$0xff]
  %v312 = vld [vmem:[%s1 + $0x858] sm:$0xff]
  %v313 = vld [vmem:[%s1 + $0x860] sm:$0xff]
  %v314 = vld [vmem:[%s1 + $0x868] sm:$0xff]
  %v315 = vld [vmem:[%s1 + $0x870] sm:$0xff]
  %v316 = vld [vmem:[%s1 + $0x878] sm:$0xff]
  %v317 = vld [vmem:[%s1 + $0x880] sm:$0xff]
  %v318 = vld [vmem:[%s1 + $0x888] sm:$0xff]
  %v319 = vld [vmem:[%s1 + $0x890] sm:$0xff]
  %v320 = vld [vmem:[%s1 + $0x898] sm:$0xff]
  %v321 = vld [vmem:[%s1 + $0x8a0] sm:$0xff]
  %v322 = vld [vmem:[%s1 + $0x8a8] sm:$0xff]
  %v323 = vld [vmem:[%s1 + $0x8b0] sm:$0xff]
  %v324 = vld [vmem:[%s1 + $0x8b8] sm:$0xff]
  %v325 = vld [vmem:[%s1 + $0x8c0] sm:$0xff]
  %v326 = vld [vmem:[%s1 + $0x8c8] sm:$0xff]
  %v327 = vld [vmem:[%s1 + $0x8d0] sm:$0xff]
  %v328 = vld [vmem:[%s1 + $0x8d8] sm:$0xff]
  %v329 = vld [vmem:[%s1 + $0x8e0] sm:$0xff]
  %v330 = vld [vmem:[%s1 + $0x8e8] sm:$0xff]
  %v331 = vld [vmem:[%s1 + $0x8f0] sm:$0xff]
  %v332 = vld [vmem:[%s1 + $0x8f8] sm:$0xff]
  %v333 = vld [vmem:[%s1 + $0x900] sm:$0xff]
  %v334 = vld [vmem:[%s1 + $0x908] sm:$0xff]
  %v335 = vld [vmem:[%s1 + $0x910] sm:$0xff]
  %v336 = vld [vmem:[%s1 + $0x918] sm:$0xff]
  %v337 = vld [vmem:[%s1 + $0x920] sm:$0xff]
  %v338 = vld [vmem:[%s1 + $0x928] sm:$0xff]
  %v339 = vld [vmem:[%s1 + $0x930] sm:$0xff]
  %v340 = vld [vmem:[%s1 + $0x938] sm:$0xff]
  %v341 = vld [vmem:[%s1 + $0x940] sm:$0xff]
  %v342 = vld [vmem:[%s1 + $0x948] sm:$0xff]
  %v343 = vld [vmem:[%s1 + $0x950] sm:$0xff]
  %v344 = vld [vmem:[%s1 + $0x958] sm:$0xff]
  %v345 = vld [vmem:[%s1 + $0x960] sm:$0xff]
  %v346 = vld [vmem:[%s1 + $0x968] sm:$0xff]
  %v347 = vld [vmem:[%s1 + $0x970] sm:$0xff]
  %v348 = vld [vmem:[%s1 + $0x978] sm:$0xff]
  %v349 = vld [vmem:[%s1 + $0x980] sm:$0xff]
  %v350 = vld [vmem:[%s1 + $0x988] sm:$0xff]
  %v351 = vld [vmem:[%s1 + $0x990] sm:$0xff]
  %v352 = vld [vmem:[%s1 + $0x998] sm:$0xff]
  %v353 = vld [vmem:[%s1 + $0x9a0] sm:$0xff]
  %v354 = vld [vmem:[%s1 + $0x9a8] sm:$0xff]
  %v355 = vld [vmem:[%s1 + $0x9b0] sm:$0xff]
  %v356 = vld [vmem:[%s1 + $0x9b8] sm:$0xff]
  %v357 = vld [vmem:[%s1 + $0x9c0] sm:$0xff]
  %v358 = vld [vmem:[%s1 + $0x9c8] sm:$0xff]
  %v359 = vld [vmem:[%s1 + $0x9d0] sm:$0xff]
  %v360 = vld [vmem:[%s1 + $0x9d8] sm:$0xff]
  %v361 = vld [vmem:[%s1 + $0x9e0] sm:$0xff]
  %v362 = vld [vmem:[%s1 + $0x9e8] sm:$0xff]
  %v363 = vld [vmem:[%s1 + $0x9f0] sm:$0xff]
  %v364 = vld [vmem:[%s1 + $0x9f8] sm:$0xff]
  %v365 = vld [vmem:[%s1 + $0xa00] sm:$0xff]
  %v366 = vld [vmem:[%s1 + $0xa08] sm:$0xff]
  %v367 = vld [vmem:[%s1 + $0xa10] sm:$0xff]
  %v368 = vld [vmem:[%s1 + $0xa18] sm:$0xff]
  %v369 = vld [vmem:[%s1 + $0xa20] sm:$0xff]
  %v370 = vld [vmem:[%s1 + $0xa28] sm:$0xff]
  %v371 = vld [vmem:[%s1 + $0xa30] sm:$0xff]
  %v372 = vld [vmem:[%s1 + $0xa38] sm:$0xff]
  %v373 = vld [vmem:[%s1 + $0xa40] sm:$0xff]
  %v374 = vld [vmem:[%s1 + $0xa48] sm:$0xff]
  %v375 = vld [vmem:[%s1 + $0xa50] sm:$0xff]
  %v376 = vld [vmem:[%s1 + $0xa58] sm:$0xff]
  %v377 = vld [vmem:[%s1 + $0xa60] sm:$0xff]
  %v378 = vld [vmem:[%s1 + $0xa68] sm:$0xff]
  %v379 = vld [vmem:[%s1 + $0xa70] sm:$0xff]
  %v380 = vld [vmem:[%s1 + $0xa78] sm:$0xff]
  %v381 = vld [vmem:[%s1 + $0xa80] sm:$0xff]
  %v382 = vld [vmem:[%s1 + $0xa88] sm:$0xff]
  %v383 = vld [vmem:[%s1 + $0xa90] sm:$0xff]
  %v384 = vld [vmem:[%s1 + $0xa98] sm:$0xff]
  %v385 = vld [vmem:[%s1 + $0xaa0] sm:$0xff]
  %v386 = vld [vmem:[%s1 + $0xaa8] sm:$0xff]
  %v387 = vld [vmem:[%s1 + $0xab0] sm:$0xff]
  %v388 = vld [vmem:[%s1 + $0xab8] sm:$0xff]
  %v389 = vld [vmem:[%s1 + $0xac0] sm:$0xff]
  %v390 = vld [vmem:[%s1 + $0xac8] sm:$0xff]
  %v391 = vld [vmem:[%s1 + $0xad0] sm:$0xff]
  %v392 = vld [vmem:[%s1 + $0xad8] sm:$0xff]
  %v393 = vld [vmem:[%s1 + $0xae0] sm:$0xff]
  %v394 = vld [vmem:[%s1 + $0xae8] sm:$0xff]
  %v395 = vld [vmem:[%s1 + $0xaf0] sm:$0xff]
  %v396 = vld [vmem:[%s1 + $0xaf8] sm:$0xff]
  %v397 = vld [vmem:[%s1 + $0xb00] sm:$0xff]
  %v398 = vld [vmem:[%s1 + $0xb08] sm:$0xff]
  %v399 = vld [vmem:[%s1 + $0xb10] sm:$0xff]
  %v400 = vld [vmem:[%s1 + $0xb18] sm:$0xff]
  %v401 = vld [vmem:[%s1 + $0xb20] sm:$0xff]
  %v402 = vld [vmem:[%s1 + $0xb28] sm:$0xff]
  %v403 = vld [vmem:[%s1 + $0xb30] sm:$0xff]
  %v404 = vld [vmem:[%s1 + $0xb38] sm:$0xff]
  %v405 = vld [vmem:[%s1 + $0xb40] sm:$0xff]
  %v406 = vld [vmem:[%s1 + $0xb48] sm:$0xff]
  %v407 = vld [vmem:[%s1 + $0xb50] sm:$0xff]
  %v408 = vld [vmem:[%s1 + $0xb58] sm:$0xff]
  %v409 = vld [vmem:[%s1 + $0xb60] sm:$0xff]
  %v410 = vld [vmem:[%s1 + $0xb68] sm:$0xff]
  %v411 = vld [vmem:[%s1 + $0xb70] sm:$0xff]
  %v412 = vld [vmem:[%s1 + $0xb78] sm:$0xff]
  %v413 = vld [vmem:[%s1 + $0xb80] sm:$0xff]
  %v414 = vld [vmem:[%s1 + $0xb88] sm:$0xff]
  %v415 = vld [vmem:[%s1 + $0xb90] sm:$0xff]
  %v416 = vld [vmem:[%s1 + $0xb98] sm:$0xff]
  %v417 = vld [vmem:[%s1 + $0xba0] sm:$0xff]
  %v418 = vld [vmem:[%s1 + $0xba8] sm:$0xff]
  %v419 = vld [vmem:[%s1 + $0xbb0] sm:$0xff]
  %v420 = vld [vmem:[%s1 + $0xbb8] sm:$0xff]
  %v421 = vld [vmem:[%s1 + $0xbc0] sm:$0xff]
  %v422 = vld [vmem:[%s1 + $0xbc8] sm:$0xff]
  %v423 = vld [vmem:[%s1 + $0xbd0] sm:$0xff]
  %v424 = vld [vmem:[%s1 + $0xbd8] sm:$0xff]
  %v425 = vld [vmem:[%s1 + $0xbe0] sm:$0xff]
  %v426 = vld [vmem:[%s1 + $0xbe8] sm:$0xff]
  %v427 = vld [vmem:[%s1 + $0xbf0] sm:$0xff]
  %v428 = vld [vmem:[%s1 + $0xbf8] sm:$0xff]
  %v429 = vld [vmem:[%s1 + $0xc00] sm:$0xff]
  %v430 = vld [vmem:[%s1 + $0xc08] sm:$0xff]
  %v431 = vld [vmem:[%s1 + $0xc10] sm:$0xff]
  %v432 = vld [vmem:[%s1 + $0xc18] sm:$0xff]
  %v433 = vld [vmem:[%s1 + $0xc20] sm:$0xff]
  %v434 = vld [vmem:[%s1 + $0xc28] sm:$0xff]
  %v435 = vld [vmem:[%s1 + $0xc30] sm:$0xff]
  %v436 = vld [vmem:[%s1 + $0xc38] sm:$0xff]
  %v437 = vld [vmem:[%s1 + $0xc40] sm:$0xff]
  %v438 = vld [vmem:[%s1 + $0xc48] sm:$0xff]
  %v439 = vld [vmem:[%s1 + $0xc50] sm:$0xff]
  %v440 = vld [vmem:[%s1 + $0xc58] sm:$0xff]
  %v441 = vld [vmem:[%s1 + $0xc60] sm:$0xff]
  %v442 = vld [vmem:[%s1 + $0xc68] sm:$0xff]
  %v443 = vld [vmem:[%s1 + $0xc70] sm:$0xff]
  %v444 = vld [vmem:[%s1 + $0xc78] sm:$0xff]
  %v445 = vld [vmem:[%s1 + $0xc80] sm:$0xff]
  %v446 = vld [vmem:[%s1 + $0xc88] sm:$0xff]
  %v447 = vld [vmem:[%s1 + $0xc90] sm:$0xff]
  %v448 = vld [vmem:[%s1 + $0xc98] sm:$0xff]
  %v449 = vld [vmem:[%s1 + $0xca0] sm:$0xff]
  %v450 = vld [vmem:[%s1 + $0xca8] sm:$0xff]
  %v451 = vld [vmem:[%s1 + $0xcb0] sm:$0xff]
  %v452 = vld [vmem:[%s1 + $0xcb8] sm:$0xff]
  %v453 = vld [vmem:[%s1 + $0xcc0] sm:$0xff]
  %v454 = vld [vmem:[%s1 + $0xcc8] sm:$0xff]
  %v455 = vld [vmem:[%s1 + $0xcd0] sm:$0xff]
  %v456 = vld [vmem:[%s1 + $0xcd8] sm:$0xff]
  %v457 = vld [vmem:[%s1 + $0xce0] sm:$0xff]
  %v458 = vld [vmem:[%s1 + $0xce8] sm:$0xff]
  %v459 = vld [vmem:[%s1 + $0xcf0] sm:$0xff]
  %v460 = vld [vmem:[%s1 + $0xcf8] sm:$0xff]
  %v461 = vld [vmem:[%s1 + $0xd00] sm:$0xff]
  %v462 = vld [vmem:[%s1 + $0xd08] sm:$0xff]
  %v463 = vld [vmem:[%s1 + $0xd10] sm:$0xff]
  %v464 = vld [vmem:[%s1 + $0xd18] sm:$0xff]
  %v465 = vld [vmem:[%s1 + $0xd20] sm:$0xff]
  %v466 = vld [vmem:[%s1 + $0xd28] sm:$0xff]
  %v467 = vld [vmem:[%s1 + $0xd30] sm:$0xff]
  %v468 = vld [vmem:[%s1 + $0xd38] sm:$0xff]
  %v469 = vld [vmem:[%s1 + $0xd40] sm:$0xff]
  %v470 = vld [vmem:[%s1 + $0xd48] sm:$0xff]
  %v471 = vld [vmem:[%s1 + $0xd50] sm:$0xff]
  %v472 = vld [vmem:[%s1 + $0xd58] sm:$0xff]
  %v473 = vld [vmem:[%s1 + $0xd60] sm:$0xff]
  %v474 = vld [vmem:[%s1 + $0xd68] sm:$0xff]
  %v475 = vld [vmem:[%s1 + $0xd70] sm:$0xff]
  %v476 = vld [vmem:[%s1 + $0xd78] sm:$0xff]
  %v477 = vld [vmem:[%s1 + $0xd80] sm:$0xff]
  %v478 = vld [vmem:[%s1 + $0xd88] sm:$0xff]
  %v479 = vld [vmem:[%s1 + $0xd90] sm:$0xff]
  %v480 = vld [vmem:[%s1 + $0xd98] sm:$0xff]
  %v481 = vld [vmem:[%s1 + $0xda0] sm:$0xff]
  %v482 = vld [vmem:[%s1 + $0xda8] sm:$0xff]
  %v483 = vld [vmem:[%s1 + $0xdb0] sm:$0xff]
  %v484 = vld [vmem:[%s1 + $0xdb8] sm:$0xff]
  %v485 = vld [vmem:[%s1 + $0xdc0] sm:$0xff]
  %v486 = vld [vmem:[%s1 + $0xdc8] sm:$0xff]
  %v487 = vld [vmem:[%s1 + $0xdd0] sm:$0xff]
  %v488 = vld [vmem:[%s1 + $0xdd8] sm:$0xff]
  %v489 = vld [vmem:[%s1 + $0xde0] sm:$0xff]
  %v490 = vld [vmem:[%s1 + $0xde8] sm:$0xff]
  %v491 = vld [vmem:[%s1 + $0xdf0] sm:$0xff]
  %v492 = vld [vmem:[%s1 + $0xdf8] sm:$0xff]
  %v493 = vld [vmem:[%s1 + $0xe00] sm:$0xff]
  %v494 = vld [vmem:[%s1 + $0xe08] sm:$0xff]
  %v495 = vld [vmem:[%s1 + $0xe10] sm:$0xff]
  %v496 = vld [vmem:[%s1 + $0xe18] sm:$0xff]
  %v497 = vld [vmem:[%s1 + $0xe20] sm:$0xff]
  %v498 = vld [vmem:[%s1 + $0xe28] sm:$0xff]
  %v499 = vld [vmem:[%s1 + $0xe30] sm:$0xff]
  %v500 = vld [vmem:[%s1 + $0xe38] sm:$0xff]
  %v501 = vld [vmem:[%s1 + $0xe40] sm:$0xff]
  %v502 = vld [vmem:[%s1 + $0xe48] sm:$0xff]
  %v503 = vld [vmem:[%s1 + $0xe50] sm:$0xff]
  %v504 = vld [vmem:[%s1 + $0xe58] sm:$0xff]
  %v505 = vld [vmem:[%s1 + $0xe60] sm:$0xff]
  %v506 = vld [vmem:[%s1 + $0xe68] sm:$0xff]
  %v507 = vld [vmem:[%s1 + $0xe70] sm:$0xff]
  %v508 = vld [vmem:[%s1 + $0xe78] sm:$0xff]
  %v509 = vld [vmem:[%s1 + $0xe80] sm:$0xff]
  %v510 = vld [vmem:[%s1 + $0xe88] sm:$0xff]
  %v511 = vld [vmem:[%s1 + $0xe90] sm:$0xff]
  %v512 = vld [vmem:[%s1 + $0xe98] sm:$0xff]
  %v513 = vld [vmem:[%s1 + $0xea0] sm:$0xff]
  %v514 = vld [vmem:[%s1 + $0xea8] sm:$0xff]
  %v515 = vld [vmem:[%s1 + $0xeb0] sm:$0xff]
  %v516 = vld [vmem:[%s1 + $0xeb8] sm:$0xff]
  %v517 = vld [vmem:[%s1 + $0xec0] sm:$0xff]
  %v518 = vld [vmem:[%s1 + $0xec8] sm:$0xff]
  %v519 = vld [vmem:[%s1 + $0xed0] sm:$0xff]
  %v520 = vld [vmem:[%s1 + $0xed8] sm:$0xff]
  %v521 = vld [vmem:[%s1 + $0xee0] sm:$0xff]
  %v522 = vld [vmem:[%s1 + $0xee8] sm:$0xff]
  %v523 = vld [vmem:[%s1 + $0xef0] sm:$0xff]
  %v524 = vld [vmem:[%s1 + $0xef8] sm:$0xff]
  %v525 = vld [vmem:[%s1 + $0xf00] sm:$0xff]
  %v526 = vld [vmem:[%s1 + $0xf08] sm:$0xff]
  %v527 = vld [vmem:[%s1 + $0xf10] sm:$0xff]
  %v528 = vld [vmem:[%s1 + $0xf18] sm:$0xff]
  %v529 = vld [vmem:[%s1 + $0xf20] sm:$0xff]
  %v530 = vld [vmem:[%s1 + $0xf28] sm:$0xff]
  %v531 = vld [vmem:[%s1 + $0xf30] sm:$0xff]
  %v532 = vld [vmem:[%s1 + $0xf38] sm:$0xff]
  %v533 = vld [vmem:[%s1 + $0xf40] sm:$0xff]
  %v534 = vld [vmem:[%s1 + $0xf48] sm:$0xff]
  %v535 = vld [vmem:[%s1 + $0xf50] sm:$0xff]
  %v536 = vld [vmem:[%s1 + $0xf58] sm:$0xff]
  %v537 = vld [vmem:[%s1 + $0xf60] sm:$0xff]
  %v538 = vld [vmem:[%s1 + $0xf68] sm:$0xff]
  %v539 = vld [vmem:[%s1 + $0xf70] sm:$0xff]
  %v540 = vld [vmem:[%s1 + $0xf78] sm:$0xff]
  %v541 = vld [vmem:[%s1 + $0xf80] sm:$0xff]
  %v542 = vld [vmem:[%s1 + $0xf88] sm:$0xff]
  %v543 = vld [vmem:[%s1 + $0xf90] sm:$0xff]
  %v544 = vld [vmem:[%s1 + $0xf98] sm:$0xff]
  %v545 = vld [vmem:[%s1 + $0xfa0] sm:$0xff]
  %v546 = vld [vmem:[%s1 + $0xfa8] sm:$0xff]
  %v547 = vld [vmem:[%s1 + $0xfb0] sm:$0xff]
  %v548 = vld [vmem:[%s1 + $0xfb8] sm:$0xff]
  %v549 = vld [vmem:[%s1 + $0xfc0] sm:$0xff]
  %v550 = vld [vmem:[%s1 + $0xfc8] sm:$0xff]
  %v551 = vld [vmem:[%s1 + $0xfd0] sm:$0xff]
  %v552 = vld [vmem:[%s1 + $0xfd8] sm:$0xff]
  %v553 = vld [vmem:[%s1 + $0xfe0] sm:$0xff]
  %v554 = vld [vmem:[%s1 + $0xfe8] sm:$0xff]
  %v555 = vld [vmem:[%s1 + $0xff0] sm:$0xff]
  %v556 = vld [vmem:[%s1 + $0xff8] sm:$0xff]
  %v557 = vld [vmem:[%s1 + $0x1000] sm:$0xff]
  %v558 = vld [vmem:[%s1 + $0x1008] sm:$0xff]
  %v559 = vld [vmem:[%s1 + $0x1010] sm:$0xff]
  %v560 = vld [vmem:[%s1 + $0x1018] sm:$0xff]
  %v561 = vld [vmem:[%s1 + $0x1020] sm:$0xff]
  %v562 = vld [vmem:[%s1 + $0x1028] sm:$0xff]
  %v563 = vld [vmem:[%s1 + $0x1030] sm:$0xff]
  %v564 = vld [vmem:[%s1 + $0x1038] sm:$0xff]
  %v565 = vld [vmem:[%s1 + $0x1040] sm:$0xff]
  %v566 = vld [vmem:[%s1 + $0x1048] sm:$0xff]
  %v567 = vld [vmem:[%s1 + $0x1050] sm:$0xff]
  %v568 = vld [vmem:[%s1 + $0x1058] sm:$0xff]
  %v569 = vld [vmem:[%s1 + $0x1060] sm:$0xff]
  %v570 = vld [vmem:[%s1 + $0x1068] sm:$0xff]
  %v571 = vld [vmem:[%s1 + $0x1070] sm:$0xff]
  %v572 = vld [vmem:[%s1 + $0x1078] sm:$0xff]
  %v573 = vld [vmem:[%s1 + $0x1080] sm:$0xff]
  %v574 = vld [vmem:[%s1 + $0x1088] sm:$0xff]
  %v575 = vld [vmem:[%s1 + $0x1090] sm:$0xff]
  %v576 = vld [vmem:[%s1 + $0x1098] sm:$0xff]
  %v577 = vld [vmem:[%s1 + $0x10a0] sm:$0xff]
  %v578 = vld [vmem:[%s1 + $0x10a8] sm:$0xff]
  %v579 = vld [vmem:[%s1 + $0x10b0] sm:$0xff]
  %v580 = vld [vmem:[%s1 + $0x10b8] sm:$0xff]
  %v581 = vld [vmem:[%s1 + $0x10c0] sm:$0xff]
  %v582 = vld [vmem:[%s1 + $0x10c8] sm:$0xff]
  %v583 = vld [vmem:[%s1 + $0x10d0] sm:$0xff]
  %v584 = vld [vmem:[%s1 + $0x10d8] sm:$0xff]
  %v585 = vld [vmem:[%s1 + $0x10e0] sm:$0xff]
  %v586 = vld [vmem:[%s1 + $0x10e8] sm:$0xff]
  %v587 = vld [vmem:[%s1 + $0x10f0] sm:$0xff]
  %v588 = vld [vmem:[%s1 + $0x10f8] sm:$0xff]
  %v589 = vld [vmem:[%s1 + $0x1100] sm:$0xff]
  %v590 = vld [vmem:[%s1 + $0x1108] sm:$0xff]
  %v591 = vld [vmem:[%s1 + $0x1110] sm:$0xff]
  %v592 = vld [vmem:[%s1 + $0x1118] sm:$0xff]
  %v593 = vld [vmem:[%s1 + $0x1120] sm:$0xff]
  %v594 = vld [vmem:[%s1 + $0x1128] sm:$0xff]
  %v595 = vld [vmem:[%s1 + $0x1130] sm:$0xff]
  %v596 = vld [vmem:[%s1 + $0x1138] sm:$0xff]
  %v597 = vld [vmem:[%s1 + $0x1140] sm:$0xff]
  %v598 = vld [vmem:[%s1 + $0x1148] sm:$0xff]
  %v599 = vld [vmem:[%s1 + $0x1150] sm:$0xff]
  %v600 = vld [vmem:[%s1 + $0x1158] sm:$0xff]
  %v601 = vld [vmem:[%s1 + $0x1160] sm:$0xff]
  %v602 = vld [vmem:[%s1 + $0x1168] sm:$0xff]
  %v603 = vld [vmem:[%s1 + $0x1170] sm:$0xff]
  %v604 = vld [vmem:[%s1 + $0x1178] sm:$0xff]
  %v605 = vld [vmem:[%s1 + $0x1180] sm:$0xff]
  %v606 = vld [vmem:[%s1 + $0x1188] sm:$0xff]
  %v607 = vld [vmem:[%s1 + $0x1190] sm:$0xff]
  %v608 = vld [vmem:[%s1 + $0x1198] sm:$0xff]
  %v609 = vld [vmem:[%s1 + $0x11a0] sm:$0xff]
  %v610 = vld [vmem:[%s1 + $0x11a8] sm:$0xff]
  %v611 = vld [vmem:[%s1 + $0x11b0] sm:$0xff]
  %v612 = vld [vmem:[%s1 + $0x11b8] sm:$0xff]
  %v613 = vld [vmem:[%s1 + $0x11c0] sm:$0xff]
  %v614 = vld [vmem:[%s1 + $0x11c8] sm:$0xff]
  %v615 = vld [vmem:[%s1 + $0x11d0] sm:$0xff]
  %v616 = vld [vmem:[%s1 + $0x11d8] sm:$0xff]
  %v617 = vld [vmem:[%s1 + $0x11e0] sm:$0xff]
  %v618 = vld [vmem:[%s1 + $0x11e8] sm:$0xff]
  %v619 = vld [vmem:[%s1 + $0x11f0] sm:$0xff]
  %v620 = vld [vmem:[%s1 + $0x11f8] sm:$0xff]
  %v621 = vld [vmem:[%s1 + $0x1200] sm:$0xff]
  %v622 = vld [vmem:[%s1 + $0x1208] sm:$0xff]
  %v623 = vld [vmem:[%s1 + $0x1210] sm:$0xff]
  %v624 = vld [vmem:[%s1 + $0x1218] sm:$0xff]
  %v625 = vld [vmem:[%s1 + $0x1220] sm:$0xff]
  %v626 = vld [vmem:[%s1 + $0x1228] sm:$0xff]
  %v627 = vld [vmem:[%s1 + $0x1230] sm:$0xff]
  %v628 = vld [vmem:[%s1 + $0x1238] sm:$0xff]
  %v629 = vld [vmem:[%s1 + $0x1240] sm:$0xff]
  %v630 = vld [vmem:[%s1 + $0x1248] sm:$0xff]
  %v631 = vld [vmem:[%s1 + $0x1250] sm:$0xff]
  %v632 = vld [vmem:[%s1 + $0x1258] sm:$0xff]
  %v633 = vld [vmem:[%s1 + $0x1260] sm:$0xff]
  %v634 = vld [vmem:[%s1 + $0x1268] sm:$0xff]
  %v635 = vld [vmem:[%s1 + $0x1270] sm:$0xff]
  %v636 = vld [vmem:[%s1 + $0x1278] sm:$0xff]
  %v637 = vld [vmem:[%s1 + $0x1280] sm:$0xff]
  %v638 = vld [vmem:[%s1 + $0x1288] sm:$0xff]
  %v639 = vld [vmem:[%s1 + $0x1290] sm:$0xff]
  %v640 = vld [vmem:[%s1 + $0x1298] sm:$0xff]
  %v641 = vld [vmem:[%s1 + $0x12a0] sm:$0xff]
  %v642 = vld [vmem:[%s1 + $0x12a8] sm:$0xff]
  %v643 = vld [vmem:[%s1 + $0x12b0] sm:$0xff]
  %v644 = vld [vmem:[%s1 + $0x12b8] sm:$0xff]
  %v645 = vld [vmem:[%s1 + $0x12c0] sm:$0xff]
  %v646 = vld [vmem:[%s1 + $0x12c8] sm:$0xff]
  %v647 = vld [vmem:[%s1 + $0x12d0] sm:$0xff]
  %v648 = vld [vmem:[%s1 + $0x12d8] sm:$0xff]
  %v649 = vld [vmem:[%s1 + $0x12e0] sm:$0xff]
  %v650 = vld [vmem:[%s1 + $0x12e8] sm:$0xff]
  %v651 = vld [vmem:[%s1 + $0x12f0] sm:$0xff]
  %v652 = vld [vmem:[%s1 + $0x12f8] sm:$0xff]
  %v653 = vld [vmem:[%s1 + $0x1300] sm:$0xff]
  %v654 = vld [vmem:[%s1 + $0x1308] sm:$0xff]
  %v655 = vld [vmem:[%s1 + $0x1310] sm:$0xff]
  %v656 = vld [vmem:[%s1 + $0x1318] sm:$0xff]
  %v657 = vld [vmem:[%s1 + $0x1320] sm:$0xff]
  %v658 = vld [vmem:[%s1 + $0x1328] sm:$0xff]
  %v659 = vld [vmem:[%s1 + $0x1330] sm:$0xff]
  %v660 = vld [vmem:[%s1 + $0x1338] sm:$0xff]
  %v661 = vld [vmem:[%s1 + $0x1340] sm:$0xff]
  %v662 = vld [vmem:[%s1 + $0x1348] sm:$0xff]
  %v663 = vld [vmem:[%s1 + $0x1350] sm:$0xff]
  %v664 = vld [vmem:[%s1 + $0x1358] sm:$0xff]
  %v665 = vld [vmem:[%s1 + $0x1360] sm:$0xff]
  %v666 = vld [vmem:[%s1 + $0x1368] sm:$0xff]
  %v667 = vld [vmem:[%s1 + $0x1370] sm:$0xff]
  %v668 = vld [vmem:[%s1 + $0x1378] sm:$0xff]
  %v669 = vld [vmem:[%s1 + $0x1380] sm:$0xff]
  %v670 = vld [vmem:[%s1 + $0x1388] sm:$0xff]
  %v671 = vld [vmem:[%s1 + $0x1390] sm:$0xff]
  %v672 = vld [vmem:[%s1 + $0x1398] sm:$0xff]
  %v673 = vld [vmem:[%s1 + $0x13a0] sm:$0xff]
  %v674 = vld [vmem:[%s1 + $0x13a8] sm:$0xff]
  %v675 = vld [vmem:[%s1 + $0x13b0] sm:$0xff]
  %v676 = vld [vmem:[%s1 + $0x13b8] sm:$0xff]
  %v677 = vld [vmem:[%s1 + $0x13c0] sm:$0xff]
  %v678 = vld [vmem:[%s1 + $0x13c8] sm:$0xff]
  %v679 = vld [vmem:[%s1 + $0x13d0] sm:$0xff]
  %v680 = vld [vmem:[%s1 + $0x13d8] sm:$0xff]
  %v681 = vld [vmem:[%s1 + $0x13e0] sm:$0xff]
  %v682 = vld [vmem:[%s1 + $0x13e8] sm:$0xff]
  %v683 = vld [vmem:[%s1 + $0x13f0] sm:$0xff]
  %v684 = vld [vmem:[%s1 + $0x13f8] sm:$0xff]
  %v685 = vld [vmem:[%s1 + $0x1400] sm:$0xff]
  %v686 = vld [vmem:[%s1 + $0x1408] sm:$0xff]
  %v687 = vld [vmem:[%s1 + $0x1410] sm:$0xff]
  %v688 = vld [vmem:[%s1 + $0x1418] sm:$0xff]
  %v689 = vld [vmem:[%s1 + $0x1420] sm:$0xff]
  %v690 = vld [vmem:[%s1 + $0x1428] sm:$0xff]
  %v691 = vld [vmem:[%s1 + $0x1430] sm:$0xff]
  %v692 = vld [vmem:[%s1 + $0x1438] sm:$0xff]
  %v693 = vld [vmem:[%s1 + $0x1440] sm:$0xff]
  %v694 = vld [vmem:[%s1 + $0x1448] sm:$0xff]
  %v695 = vld [vmem:[%s1 + $0x1450] sm:$0xff]
  %v696 = vld [vmem:[%s1 + $0x1458] sm:$0xff]
  %v697 = vld [vmem:[%s1 + $0x1460] sm:$0xff]
  %v698 = vld [vmem:[%s1 + $0x1468] sm:$0xff]
  %v699 = vld [vmem:[%s1 + $0x1470] sm:$0xff]
  %v700 = vld [vmem:[%s1 + $0x1478] sm:$0xff]
  %v701 = vld [vmem:[%s1 + $0x1480] sm:$0xff]
  %v702 = vld [vmem:[%s1 + $0x1488] sm:$0xff]
  %v703 = vld [vmem:[%s1 + $0x1490] sm:$0xff]
  %v704 = vld [vmem:[%s1 + $0x1498] sm:$0xff]
  %v705 = vld [vmem:[%s1 + $0x14a0] sm:$0xff]
  %v706 = vld [vmem:[%s1 + $0x14a8] sm:$0xff]
  %v707 = vld [vmem:[%s1 + $0x14b0] sm:$0xff]
  %v708 = vld [vmem:[%s1 + $0x14b8] sm:$0xff]
  %v709 = vld [vmem:[%s1 + $0x14c0] sm:$0xff]
  %v710 = vld [vmem:[%s1 + $0x14c8] sm:$0xff]
  %v711 = vld [vmem:[%s1 + $0x14d0] sm:$0xff]
  %v712 = vld [vmem:[%s1 + $0x14d8] sm:$0xff]
  %v713 = vld [vmem:[%s1 + $0x14e0] sm:$0xff]
  %v714 = vld [vmem:[%s1 + $0x14e8] sm:$0xff]
  %v715 = vld [vmem:[%s1 + $0x14f0] sm:$0xff]
  %v716 = vld [vmem:[%s1 + $0x14f8] sm:$0xff]
  %v717 = vld [vmem:[%s1 + $0x1500] sm:$0xff]
  %v718 = vld [vmem:[%s1 + $0x1508] sm:$0xff]
  %v719 = vld [vmem:[%s1 + $0x1510] sm:$0xff]
  %v720 = vld [vmem:[%s1 + $0x1518] sm:$0xff]
  %v721 = vld [vmem:[%s1 + $0x1520] sm:$0xff]
  %v722 = vld [vmem:[%s1 + $0x1528] sm:$0xff]
  %v723 = vld [vmem:[%s1 + $0x1530] sm:$0xff]
  %v724 = vld [vmem:[%s1 + $0x1538] sm:$0xff]
  %v725 = vld [vmem:[%s1 + $0x1540] sm:$0xff]
  %v726 = vld [vmem:[%s1 + $0x1548] sm:$0xff]
  %v727 = vld [vmem:[%s1 + $0x1550] sm:$0xff]
  %v728 = vld [vmem:[%s1 + $0x1558] sm:$0xff]
  %v729 = vld [vmem:[%s1 + $0x1560] sm:$0xff]
  %v730 = vld [vmem:[%s1 + $0x1568] sm:$0xff]
  %v731 = vld [vmem:[%s1 + $0x1570] sm:$0xff]
  %v732 = vld [vmem:[%s1 + $0x1578] sm:$0xff]
  %v733 = vld [vmem:[%s1 + $0x1580] sm:$0xff]
  %v734 = vld [vmem:[%s1 + $0x1588] sm:$0xff]
  %v735 = vld [vmem:[%s1 + $0x1590] sm:$0xff]
  %v736 = vld [vmem:[%s1 + $0x1598] sm:$0xff]
  %v737 = vld [vmem:[%s1 + $0x15a0] sm:$0xff]
  %v738 = vld [vmem:[%s1 + $0x15a8] sm:$0xff]
  %v739 = vld [vmem:[%s1 + $0x15b0] sm:$0xff]
  %v740 = vld [vmem:[%s1 + $0x15b8] sm:$0xff]
  %v741 = vld [vmem:[%s1 + $0x15c0] sm:$0xff]
  %v742 = vld [vmem:[%s1 + $0x15c8] sm:$0xff]
  %v743 = vld [vmem:[%s1 + $0x15d0] sm:$0xff]
  %v744 = vld [vmem:[%s1 + $0x15d8] sm:$0xff]
  %v745 = vld [vmem:[%s1 + $0x15e0] sm:$0xff]
  %v746 = vld [vmem:[%s1 + $0x15e8] sm:$0xff]
  %v747 = vld [vmem:[%s1 + $0x15f0] sm:$0xff]
  %v748 = vld [vmem:[%s1 + $0x15f8] sm:$0xff]
  %v749 = vld [vmem:[%s1 + $0x1600] sm:$0xff]
  %v750 = vld [vmem:[%s1 + $0x1608] sm:$0xff]
  %v751 = vld [vmem:[%s1 + $0x1610] sm:$0xff]
  %v752 = vld [vmem:[%s1 + $0x1618] sm:$0xff]
  %v753 = vld [vmem:[%s1 + $0x1620] sm:$0xff]
  %v754 = vld [vmem:[%s1 + $0x1628] sm:$0xff]
  %v755 = vld [vmem:[%s1 + $0x1630] sm:$0xff]
  %v756 = vld [vmem:[%s1 + $0x1638] sm:$0xff]
  %v757 = vld [vmem:[%s1 + $0x1640] sm:$0xff]
  %v758 = vld [vmem:[%s1 + $0x1648] sm:$0xff]
  %v759 = vld [vmem:[%s1 + $0x1650] sm:$0xff]
  %v760 = vld [vmem:[%s1 + $0x1658] sm:$0xff]
  %v761 = vld [vmem:[%s1 + $0x1660] sm:$0xff]
  %v762 = vld [vmem:[%s1 + $0x1668] sm:$0xff]
  %v763 = vld [vmem:[%s1 + $0x1670] sm:$0xff]
  %v764 = vld [vmem:[%s1 + $0x1678] sm:$0xff]
  %v765 = vld [vmem:[%s1 + $0x1680] sm:$0xff]
  %v766 = vld [vmem:[%s1 + $0x1688] sm:$0xff]
  %v767 = vld [vmem:[%s1 + $0x1690] sm:$0xff]
  %v768 = vld [vmem:[%s1 + $0x1698] sm:$0xff]
  %v769 = vld [vmem:[%s1 + $0x16a0] sm:$0xff]
  %v770 = vld [vmem:[%s1 + $0x16a8] sm:$0xff]
  %v771 = vld [vmem:[%s1 + $0x16b0] sm:$0xff]
  %v772 = vld [vmem:[%s1 + $0x16b8] sm:$0xff]
  %v773 = vld [vmem:[%s1 + $0x16c0] sm:$0xff]
  %v774 = vld [vmem:[%s1 + $0x16c8] sm:$0xff]
  %v775 = vld [vmem:[%s1 + $0x16d0] sm:$0xff]
  %v776 = vld [vmem:[%s1 + $0x16d8] sm:$0xff]
  %v777 = vld [vmem:[%s1 + $0x16e0] sm:$0xff]
  %v778 = vld [vmem:[%s1 + $0x16e8] sm:$0xff]
  %v779 = vld [vmem:[%s1 + $0x16f0] sm:$0xff]
  %v780 = vld [vmem:[%s1 + $0x16f8] sm:$0xff]
  %v781 = vld [vmem:[%s1 + $0x1700] sm:$0xff]
  %v782 = vld [vmem:[%s1 + $0x1708] sm:$0xff]
  %v783 = vld [vmem:[%s1 + $0x1710] sm:$0xff]
  %v784 = vld [vmem:[%s1 + $0x1718] sm:$0xff]
  %v785 = vld [vmem:[%s1 + $0x1720] sm:$0xff]
  %v786 = vld [vmem:[%s1 + $0x1728] sm:$0xff]
  %v787 = vld [vmem:[%s1 + $0x1730] sm:$0xff]
  %v788 = vld [vmem:[%s1 + $0x1738] sm:$0xff]
  %v789 = vld [vmem:[%s1 + $0x1740] sm:$0xff]
  %v790 = vld [vmem:[%s1 + $0x1748] sm:$0xff]
  %v791 = vld [vmem:[%s1 + $0x1750] sm:$0xff]
  %v792 = vld [vmem:[%s1 + $0x1758] sm:$0xff]
  %v793 = vld [vmem:[%s1 + $0x1760] sm:$0xff]
  %v794 = vld [vmem:[%s1 + $0x1768] sm:$0xff]
  %v795 = vld [vmem:[%s1 + $0x1770] sm:$0xff]
  %v796 = vld [vmem:[%s1 + $0x1778] sm:$0xff]
  %v797 = vld [vmem:[%s1 + $0x1780] sm:$0xff]
  %v798 = vld [vmem:[%s1 + $0x1788] sm:$0xff]
  %v799 = vld [vmem:[%s1 + $0x1790] sm:$0xff]
  %v800 = vld [vmem:[%s1 + $0x1798] sm:$0xff]
  %v801 = vld [vmem:[%s1 + $0x17a0] sm:$0xff]
  %v802 = vld [vmem:[%s1 + $0x17a8] sm:$0xff]
  %v803 = vld [vmem:[%s1 + $0x17b0] sm:$0xff]
  %v804 = vld [vmem:[%s1 + $0x17b8] sm:$0xff]
  %v805 = vld [vmem:[%s1 + $0x17c0] sm:$0xff]
  %v806 = vld [vmem:[%s1 + $0x17c8] sm:$0xff]
  %v807 = vld [vmem:[%s1 + $0x17d0] sm:$0xff]
  %v808 = vld [vmem:[%s1 + $0x17d8] sm:$0xff]
  %v809 = vld [vmem:[%s1 + $0x17e0] sm:$0xff]
  %v810 = vld [vmem:[%s1 + $0x17e8] sm:$0xff]
  %v811 = vld [vmem:[%s1 + $0x17f0] sm:$0xff]
  %v812 = vld [vmem:[%s1 + $0x17f8] sm:$0xff]
  %v813 = vld [vmem:[%s1 + $0x1800] sm:$0xff]
  %v814 = vld [vmem:[%s1 + $0x1808] sm:$0xff]
  %v815 = vld [vmem:[%s1 + $0x1810] sm:$0xff]
  %v816 = vld [vmem:[%s1 + $0x1818] sm:$0xff]
  %v817 = vld [vmem:[%s1 + $0x1820] sm:$0xff]
  %v818 = vld [vmem:[%s1 + $0x1828] sm:$0xff]
  %v819 = vld [vmem:[%s1 + $0x1830] sm:$0xff]
  %v820 = vld [vmem:[%s1 + $0x1838] sm:$0xff]
  %v821 = vld [vmem:[%s1 + $0x1840] sm:$0xff]
  %v822 = vld [vmem:[%s1 + $0x1848] sm:$0xff]
  %v823 = vld [vmem:[%s1 + $0x1850] sm:$0xff]
  %v824 = vld [vmem:[%s1 + $0x1858] sm:$0xff]
  %v825 = vld [vmem:[%s1 + $0x1860] sm:$0xff]
  %v826 = vld [vmem:[%s1 + $0x1868] sm:$0xff]
  %v827 = vld [vmem:[%s1 + $0x1870] sm:$0xff]
  %v828 = vld [vmem:[%s1 + $0x1878] sm:$0xff]
  %v829 = vld [vmem:[%s1 + $0x1880] sm:$0xff]
  %v830 = vld [vmem:[%s1 + $0x1888] sm:$0xff]
  %v831 = vld [vmem:[%s1 + $0x1890] sm:$0xff]
  %v832 = vld [vmem:[%s1 + $0x1898] sm:$0xff]
  %v833 = vld [vmem:[%s1 + $0x18a0] sm:$0xff]
  %v834 = vld [vmem:[%s1 + $0x18a8] sm:$0xff]
  %v835 = vld [vmem:[%s1 + $0x18b0] sm:$0xff]
  %v836 = vld [vmem:[%s1 + $0x18b8] sm:$0xff]
  %v837 = vld [vmem:[%s1 + $0x18c0] sm:$0xff]
  %v838 = vld [vmem:[%s1 + $0x18c8] sm:$0xff]
  %v839 = vld [vmem:[%s1 + $0x18d0] sm:$0xff]
  %v840 = vld [vmem:[%s1 + $0x18d8] sm:$0xff]
  %v841 = vld [vmem:[%s1 + $0x18e0] sm:$0xff]
  %v842 = vld [vmem:[%s1 + $0x18e8] sm:$0xff]
  %v843 = vld [vmem:[%s1 + $0x18f0] sm:$0xff]
  %v844 = vld [vmem:[%s1 + $0x18f8] sm:$0xff]
  %v845 = vld [vmem:[%s1 + $0x1900] sm:$0xff]
  %v846 = vld [vmem:[%s1 + $0x1908] sm:$0xff]
  %v847 = vld [vmem:[%s1 + $0x1910] sm:$0xff]
  %v848 = vld [vmem:[%s1 + $0x1918] sm:$0xff]
  %v849 = vld [vmem:[%s1 + $0x1920] sm:$0xff]
  %v850 = vld [vmem:[%s1 + $0x1928] sm:$0xff]
  %v851 = vld [vmem:[%s1 + $0x1930] sm:$0xff]
  %v852 = vld [vmem:[%s1 + $0x1938] sm:$0xff]
  %v853 = vld [vmem:[%s1 + $0x1940] sm:$0xff]
  %v854 = vld [vmem:[%s1 + $0x1948] sm:$0xff]
  %v855 = vld [vmem:[%s1 + $0x1950] sm:$0xff]
  %v856 = vld [vmem:[%s1 + $0x1958] sm:$0xff]
  %v857 = vld [vmem:[%s1 + $0x1960] sm:$0xff]
  %v858 = vld [vmem:[%s1 + $0x1968] sm:$0xff]
  %v859 = vld [vmem:[%s1 + $0x1970] sm:$0xff]
  %v860 = vld [vmem:[%s1 + $0x1978] sm:$0xff]
  %v861 = vld [vmem:[%s1 + $0x1980] sm:$0xff]
  %v862 = vld [vmem:[%s1 + $0x1988] sm:$0xff]
  %v863 = vld [vmem:[%s1 + $0x1990] sm:$0xff]
  %v864 = vld [vmem:[%s1 + $0x1998] sm:$0xff]
  %v865 = vld [vmem:[%s1 + $0x19a0] sm:$0xff]
  %v866 = vld [vmem:[%s1 + $0x19a8] sm:$0xff]
  %v867 = vld [vmem:[%s1 + $0x19b0] sm:$0xff]
  %v868 = vld [vmem:[%s1 + $0x19b8] sm:$0xff]
  %v869 = vld [vmem:[%s1 + $0x19c0] sm:$0xff]
  %v870 = vld [vmem:[%s1 + $0x19c8] sm:$0xff]
  %v871 = vld [vmem:[%s1 + $0x19d0] sm:$0xff]
  %v872 = vld [vmem:[%s1 + $0x19d8] sm:$0xff]
  %v873 = vld [vmem:[%s1 + $0x19e0] sm:$0xff]
  %v874 = vld [vmem:[%s1 + $0x19e8] sm:$0xff]
  %v875 = vld [vmem:[%s1 + $0x19f0] sm:$0xff]
  %v876 = vld [vmem:[%s1 + $0x19f8] sm:$0xff]
  %v877 = vld [vmem:[%s1 + $0x1a00] sm:$0xff]
  %v878 = vld [vmem:[%s1 + $0x1a08] sm:$0xff]
  %v879 = vld [vmem:[%s1 + $0x1a10] sm:$0xff]
  %v880 = vld [vmem:[%s1 + $0x1a18] sm:$0xff]
  %v881 = vld [vmem:[%s1 + $0x1a20] sm:$0xff]
  %v882 = vld [vmem:[%s1 + $0x1a28] sm:$0xff]
  %v883 = vld [vmem:[%s1 + $0x1a30] sm:$0xff]
  %v884 = vld [vmem:[%s1 + $0x1a38] sm:$0xff]
  %v885 = vld [vmem:[%s1 + $0x1a40] sm:$0xff]
  %v886 = vld [vmem:[%s1 + $0x1a48] sm:$0xff]
  %v887 = vld [vmem:[%s1 + $0x1a50] sm:$0xff]
  %v888 = vld [vmem:[%s1 + $0x1a58] sm:$0xff]
  %v889 = vld [vmem:[%s1 + $0x1a60] sm:$0xff]
  %v890 = vld [vmem:[%s1 + $0x1a68] sm:$0xff]
  %v891 = vld [vmem:[%s1 + $0x1a70] sm:$0xff]
  %v892 = vld [vmem:[%s1 + $0x1a78] sm:$0xff]
  %v893 = vld [vmem:[%s1 + $0x1a80] sm:$0xff]
  %v894 = vld [vmem:[%s1 + $0x1a88] sm:$0xff]
  %v895 = vld [vmem:[%s1 + $0x1a90] sm:$0xff]
  %v896 = vld [vmem:[%s1 + $0x1a98] sm:$0xff]
  %v897 = vld [vmem:[%s1 + $0x1aa0] sm:$0xff]
  %v898 = vld [vmem:[%s1 + $0x1aa8] sm:$0xff]
  %v899 = vld [vmem:[%s1 + $0x1ab0] sm:$0xff]
  %v900 = vld [vmem:[%s1 + $0x1ab8] sm:$0xff]
  %v901 = vld [vmem:[%s1 + $0x1ac0] sm:$0xff]
  %v902 = vld [vmem:[%s1 + $0x1ac8] sm:$0xff]
  %v903 = vld [vmem:[%s1 + $0x1ad0] sm:$0xff]
  %v904 = vld [vmem:[%s1 + $0x1ad8] sm:$0xff]
  %v905 = vld [vmem:[%s1 + $0x1ae0] sm:$0xff]
  %v906 = vld [vmem:[%s1 + $0x1ae8] sm:$0xff]
  %v907 = vld [vmem:[%s1 + $0x1af0] sm:$0xff]
  %v908 = vld [vmem:[%s1 + $0x1af8] sm:$0xff]
  %v909 = vld [vmem:[%s1 + $0x1b00] sm:$0xff]
  %v910 = vld [vmem:[%s1 + $0x1b08] sm:$0xff]
  %v911 = vld [vmem:[%s1 + $0x1b10] sm:$0xff]
  %v912 = vld [vmem:[%s1 + $0x1b18] sm:$0xff]
  %v913 = vld [vmem:[%s1 + $0x1b20] sm:$0xff]
  %v914 = vld [vmem:[%s1 + $0x1b28] sm:$0xff]
  %v915 = vld [vmem:[%s1 + $0x1b30] sm:$0xff]
  %v916 = vld [vmem:[%s1 + $0x1b38] sm:$0xff]
  %v917 = vld [vmem:[%s1 + $0x1b40] sm:$0xff]
  %v918 = vld [vmem:[%s1 + $0x1b48] sm:$0xff]
  %v919 = vld [vmem:[%s1 + $0x1b50] sm:$0xff]
  %v920 = vld [vmem:[%s1 + $0x1b58] sm:$0xff]
  %v921 = vld [vmem:[%s1 + $0x1b60] sm:$0xff]
  %v922 = vld [vmem:[%s1 + $0x1b68] sm:$0xff]
  %v923 = vld [vmem:[%s1 + $0x1b70] sm:$0xff]
  %v924 = vld [vmem:[%s1 + $0x1b78] sm:$0xff]
  %v925 = vld [vmem:[%s1 + $0x1b80] sm:$0xff]
  %v926 = vld [vmem:[%s1 + $0x1b88] sm:$0xff]
  %v927 = vld [vmem:[%s1 + $0x1b90] sm:$0xff]
  %v928 = vld [vmem:[%s1 + $0x1b98] sm:$0xff]
  %v929 = vld [vmem:[%s1 + $0x1ba0] sm:$0xff]
  %v930 = vld [vmem:[%s1 + $0x1ba8] sm:$0xff]
  %v931 = vld [vmem:[%s1 + $0x1bb0] sm:$0xff]
  %v932 = vld [vmem:[%s1 + $0x1bb8] sm:$0xff]
  %v933 = vld [vmem:[%s1 + $0x1bc0] sm:$0xff]
  %v934 = vld [vmem:[%s1 + $0x1bc8] sm:$0xff]
  %v935 = vld [vmem:[%s1 + $0x1bd0] sm:$0xff]
  %v936 = vld [vmem:[%s1 + $0x1bd8] sm:$0xff]
  %v937 = vld [vmem:[%s1 + $0x1be0] sm:$0xff]
  %v938 = vld [vmem:[%s1 + $0x1be8] sm:$0xff]
  %v939 = vld [vmem:[%s1 + $0x1bf0] sm:$0xff]
  %v940 = vld [vmem:[%s1 + $0x1bf8] sm:$0xff]
  %v941 = vld [vmem:[%s1 + $0x1c00] sm:$0xff]
  %v942 = vld [vmem:[%s1 + $0x1c08] sm:$0xff]
  %v943 = vld [vmem:[%s1 + $0x1c10] sm:$0xff]
  %v944 = vld [vmem:[%s1 + $0x1c18] sm:$0xff]
  %v945 = vld [vmem:[%s1 + $0x1c20] sm:$0xff]
  %v946 = vld [vmem:[%s1 + $0x1c28] sm:$0xff]
  %v947 = vld [vmem:[%s1 + $0x1c30] sm:$0xff]
  %v948 = vld [vmem:[%s1 + $0x1c38] sm:$0xff]
  %v949 = vld [vmem:[%s1 + $0x1c40] sm:$0xff]
  %v950 = vld [vmem:[%s1 + $0x1c48] sm:$0xff]
  %v951 = vld [vmem:[%s1 + $0x1c50] sm:$0xff]
  %v952 = vld [vmem:[%s1 + $0x1c58] sm:$0xff]
  %v953 = vld [vmem:[%s1 + $0x1c60] sm:$0xff]
  %v954 = vld [vmem:[%s1 + $0x1c68] sm:$0xff]
  %v955 = vld [vmem:[%s1 + $0x1c70] sm:$0xff]
  %v956 = vld [vmem:[%s1 + $0x1c78] sm:$0xff]
  %v957 = vld [vmem:[%s1 + $0x1c80] sm:$0xff]
  %v958 = vld [vmem:[%s1 + $0x1c88] sm:$0xff]
  %v959 = vld [vmem:[%s1 + $0x1c90] sm:$0xff]
  %v960 = vld [vmem:[%s1 + $0x1c98] sm:$0xff]
  %v961 = vld [vmem:[%s1 + $0x1ca0] sm:$0xff]
  %v962 = vld [vmem:[%s1 + $0x1ca8] sm:$0xff]
  %v963 = vld [vmem:[%s1 + $0x1cb0] sm:$0xff]
  %v964 = vld [vmem:[%s1 + $0x1cb8] sm:$0xff]
  %v965 = vld [vmem:[%s1 + $0x1cc0] sm:$0xff]
  %v966 = vld [vmem:[%s1 + $0x1cc8] sm:$0xff]
  %v967 = vld [vmem:[%s1 + $0x1cd0] sm:$0xff]
  %v968 = vld [vmem:[%s1 + $0x1cd8] sm:$0xff]
  %v969 = vld [vmem:[%s1 + $0x1ce0] sm:$0xff]
  %v970 = vld [vmem:[%s1 + $0x1ce8] sm:$0xff]
  %v971 = vld [vmem:[%s1 + $0x1cf0] sm:$0xff]
  %v972 = vld [vmem:[%s1 + $0x1cf8] sm:$0xff]
  %v973 = vld [vmem:[%s1 + $0x1d00] sm:$0xff]
  %v974 = vld [vmem:[%s1 + $0x1d08] sm:$0xff]
  %v975 = vld [vmem:[%s1 + $0x1d10] sm:$0xff]
  %v976 = vld [vmem:[%s1 + $0x1d18] sm:$0xff]
  %v977 = vld [vmem:[%s1 + $0x1d20] sm:$0xff]
  %v978 = vld [vmem:[%s1 + $0x1d28] sm:$0xff]
  %v979 = vld [vmem:[%s1 + $0x1d30] sm:$0xff]
  %v980 = vld [vmem:[%s1 + $0x1d38] sm:$0xff]
  %v981 = vld [vmem:[%s1 + $0x1d40] sm:$0xff]
  %v982 = vld [vmem:[%s1 + $0x1d48] sm:$0xff]
  %v983 = vld [vmem:[%s1 + $0x1d50] sm:$0xff]
  %v984 = vld [vmem:[%s1 + $0x1d58] sm:$0xff]
  %v985 = vld [vmem:[%s1 + $0x1d60] sm:$0xff]
  %v986 = vld [vmem:[%s1 + $0x1d68] sm:$0xff]
  %v987 = vld [vmem:[%s1 + $0x1d70] sm:$0xff]
  %v988 = vld [vmem:[%s1 + $0x1d78] sm:$0xff]
  %v989 = vld [vmem:[%s1 + $0x1d80] sm:$0xff]
  %v990 = vld [vmem:[%s1 + $0x1d88] sm:$0xff]
  %v991 = vld [vmem:[%s1 + $0x1d90] sm:$0xff]
  %v992 = vld [vmem:[%s1 + $0x1d98] sm:$0xff]
  %v993 = vld [vmem:[%s1 + $0x1da0] sm:$0xff]
  %v994 = vld [vmem:[%s1 + $0x1da8] sm:$0xff]
  %v995 = vld [vmem:[%s1 + $0x1db0] sm:$0xff]
  %v996 = vld [vmem:[%s1 + $0x1db8] sm:$0xff]
  %v997 = vld [vmem:[%s1 + $0x1dc0] sm:$0xff]
  %v998 = vld [vmem:[%s1 + $0x1dc8] sm:$0xff]
  %v999 = vld [vmem:[%s1 + $0x1dd0] sm:$0xff]
  %v1000 = vld [vmem:[%s1 + $0x1dd8] sm:$0xff]
  %v1001 = vld [vmem:[%s1 + $0x1de0] sm:$0xff]
  %v1002 = vld [vmem:[%s1 + $0x1de8] sm:$0xff]
  %v1003 = vld [vmem:[%s1 + $0x1df0] sm:$0xff]
  %v1004 = vld [vmem:[%s1 + $0x1df8] sm:$0xff]
  %v1005 = vld [vmem:[%s1 + $0x1e00] sm:$0xff]
  %v1006 = vld [vmem:[%s1 + $0x1e08] sm:$0xff]
  %v1007 = vld [vmem:[%s1 + $0x1e10] sm:$0xff]
  %v1008 = vld [vmem:[%s1 + $0x1e18] sm:$0xff]
  %v1009 = vld [vmem:[%s1 + $0x1e20] sm:$0xff]
  %v1010 = vld [vmem:[%s1 + $0x1e28] sm:$0xff]
  %v1011 = vld [vmem:[%s1 + $0x1e30] sm:$0xff]
  %v1012 = vld [vmem:[%s1 + $0x1e38] sm:$0xff]
  %v1013 = vld [vmem:[%s1 + $0x1e40] sm:$0xff]
  %v1014 = vld [vmem:[%s1 + $0x1e48] sm:$0xff]
  %v1015 = vld [vmem:[%s1 + $0x1e50] sm:$0xff]
  %v1016 = vld [vmem:[%s1 + $0x1e58] sm:$0xff]
  %v1017 = vld [vmem:[%s1 + $0x1e60] sm:$0xff]
  %v1018 = vld [vmem:[%s1 + $0x1e68] sm:$0xff]
  %v1019 = vld [vmem:[%s1 + $0x1e70] sm:$0xff]
  %v1020 = vld [vmem:[%s1 + $0x1e78] sm:$0xff]
  %v1021 = vld [vmem:[%s1 + $0x1e80] sm:$0xff]
  %v1022 = vld [vmem:[%s1 + $0x1e88] sm:$0xff]
  %v1023 = vld [vmem:[%s1 + $0x1e90] sm:$0xff]
  %v1024 = vld [vmem:[%s1 + $0x1e98] sm:$0xff]
  %v1025 = vld [vmem:[%s1 + $0x1ea0] sm:$0xff]
  %v1026 = vld [vmem:[%s1 + $0x1ea8] sm:$0xff]
  %v1027 = vld [vmem:[%s1 + $0x1eb0] sm:$0xff]
  %v1028 = vld [vmem:[%s1 + $0x1eb8] sm:$0xff]
  %v1029 = vld [vmem:[%s1 + $0x1ec0] sm:$0xff]
  %v1030 = vld [vmem:[%s1 + $0x1ec8] sm:$0xff]
  %v1031 = vld [vmem:[%s1 + $0x1ed0] sm:$0xff]
  %v1032 = vld [vmem:[%s1 + $0x1ed8] sm:$0xff]
  %v1033 = vld [vmem:[%s1 + $0x1ee0] sm:$0xff]
  %v1034 = vld [vmem:[%s1 + $0x1ee8] sm:$0xff]
  %v1035 = vld [vmem:[%s1 + $0x1ef0] sm:$0xff]
  %v1036 = vld [vmem:[%s1 + $0x1ef8] sm:$0xff]
  %v1037 = vld [vmem:[%s1 + $0x1f00] sm:$0xff]
  %v1038 = vld [vmem:[%s1 + $0x1f08] sm:$0xff]
  %v1039 = vld [vmem:[%s1 + $0x1f10] sm:$0xff]
  %v1040 = vld [vmem:[%s1 + $0x1f18] sm:$0xff]
  %v1041 = vld [vmem:[%s1 + $0x1f20] sm:$0xff]
  %v1042 = vld [vmem:[%s1 + $0x1f28] sm:$0xff]
  %v1043 = vld [vmem:[%s1 + $0x1f30] sm:$0xff]
  %v1044 = vld [vmem:[%s1 + $0x1f38] sm:$0xff]
  %v1045 = vld [vmem:[%s1 + $0x1f40] sm:$0xff]
  %v1046 = vld [vmem:[%s1 + $0x1f48] sm:$0xff]
  %v1047 = vld [vmem:[%s1 + $0x1f50] sm:$0xff]
  %v1048 = vld [vmem:[%s1 + $0x1f58] sm:$0xff]
  %v1049 = vld [vmem:[%s1 + $0x1f60] sm:$0xff]
  %v1050 = vld [vmem:[%s1 + $0x1f68] sm:$0xff]
  %v1051 = vld [vmem:[%s1 + $0x1f70] sm:$0xff]
  %v1052 = vld [vmem:[%s1 + $0x1f78] sm:$0xff]
  %v1053 = vld [vmem:[%s1 + $0x1f80] sm:$0xff]
  %v1054 = vld [vmem:[%s1 + $0x1f88] sm:$0xff]
  %v1055 = vld [vmem:[%s1 + $0x1f90] sm:$0xff]
  %v1056 = vld [vmem:[%s1 + $0x1f98] sm:$0xff]
  %v1057 = vld [vmem:[%s1 + $0x1fa0] sm:$0xff]
  %v1058 = vld [vmem:[%s1 + $0x1fa8] sm:$0xff]
  %v1059 = vld [vmem:[%s1 + $0x1fb0] sm:$0xff]
  %v1060 = vld [vmem:[%s1 + $0x1fb8] sm:$0xff]
  %v1061 = vld [vmem:[%s1 + $0x1fc0] sm:$0xff]
  %v1062 = vld [vmem:[%s1 + $0x1fc8] sm:$0xff]
  %v1063 = vld [vmem:[%s1 + $0x1fd0] sm:$0xff]
  %v1064 = vld [vmem:[%s1 + $0x1fd8] sm:$0xff]
  %v1065 = vld [vmem:[%s1 + $0x1fe0] sm:$0xff]
  %v1066 = vld [vmem:[%s1 + $0x1fe8] sm:$0xff]
  %v1067 = vld [vmem:[%s1 + $0x1ff0] sm:$0xff]
  %v1068 = vld [vmem:[%s1 + $0x1ff8] sm:$0xff]
  %v1069 = vld [vmem:[%s1 + $0x2000] sm:$0xff]
  %v1070 = vld [vmem:[%s1 + $0x2008] sm:$0xff]
  %v1071 = vld [vmem:[%s1 + $0x2010] sm:$0xff]
  %v1072 = vld [vmem:[%s1 + $0x2018] sm:$0xff]
  %v1073 = vld [vmem:[%s1 + $0x2020] sm:$0xff]
  %v1074 = vld [vmem:[%s1 + $0x2028] sm:$0xff]
  %v1075 = vld [vmem:[%s1 + $0x2030] sm:$0xff]
  %v1076 = vld [vmem:[%s1 + $0x2038] sm:$0xff]
  %v1077 = vld [vmem:[%s1 + $0x2040] sm:$0xff]
  %v1078 = vld [vmem:[%s1 + $0x2048] sm:$0xff]
  %v1079 = vld [vmem:[%s1 + $0x2050] sm:$0xff]
  %v1080 = vld [vmem:[%s1 + $0x2058] sm:$0xff]
  %v1081 = vld [vmem:[%s1 + $0x2060] sm:$0xff]
  %v1082 = vld [vmem:[%s1 + $0x2068] sm:$0xff]
  %v1083 = vld [vmem:[%s1 + $0x2070] sm:$0xff]
  %v1084 = vld [vmem:[%s1 + $0x2078] sm:$0xff]
  %v1085 = vld [vmem:[%s1 + $0x2080] sm:$0xff]
  %v1086 = vld [vmem:[%s1 + $0x2088] sm:$0xff]
  %v1087 = vld [vmem:[%s1 + $0x2090] sm:$0xff]
  %v1088 = vld [vmem:[%s1 + $0x2098] sm:$0xff]
  %v1089 = vld [vmem:[%s1 + $0x20a0] sm:$0xff]
  %v1090 = vld [vmem:[%s1 + $0x20a8] sm:$0xff]
  %v1091 = vld [vmem:[%s1 + $0x20b0] sm:$0xff]
  %v1092 = vld [vmem:[%s1 + $0x20b8] sm:$0xff]
  %v1093 = vld [vmem:[%s1 + $0x20c0] sm:$0xff]
  %v1094 = vld [vmem:[%s1 + $0x20c8] sm:$0xff]
  %v1095 = vld [vmem:[%s1 + $0x20d0] sm:$0xff]
  %v1096 = vld [vmem:[%s1 + $0x20d8] sm:$0xff]
  %v1097 = vld [vmem:[%s1 + $0x20e0] sm:$0xff]
  %v1098 = vld [vmem:[%s1 + $0x20e8] sm:$0xff]
  %v1099 = vld [vmem:[%s1 + $0x20f0] sm:$0xff]
  %v1100 = vld [vmem:[%s1 + $0x20f8] sm:$0xff]
  %v1101 = vld [vmem:[%s1 + $0x2100] sm:$0xff]
  %v1102 = vld [vmem:[%s1 + $0x2108] sm:$0xff]
  %v1103 = vld [vmem:[%s1 + $0x2110] sm:$0xff]
  %v1104 = vld [vmem:[%s1 + $0x2118] sm:$0xff]
  %v1105 = vld [vmem:[%s1 + $0x2120] sm:$0xff]
  %v1106 = vld [vmem:[%s1 + $0x2128] sm:$0xff]
  %v1107 = vld [vmem:[%s1 + $0x2130] sm:$0xff]
  %v1108 = vld [vmem:[%s1 + $0x2138] sm:$0xff]
  %v1109 = vld [vmem:[%s1 + $0x2140] sm:$0xff]
  %v1110 = vld [vmem:[%s1 + $0x2148] sm:$0xff]
  %v1111 = vld [vmem:[%s1 + $0x2150] sm:$0xff]
  %v1112 = vld [vmem:[%s1 + $0x2158] sm:$0xff]
  %v1113 = vld [vmem:[%s1 + $0x2160] sm:$0xff]
  %v1114 = vld [vmem:[%s1 + $0x2168] sm:$0xff]
  %v1115 = vld [vmem:[%s1 + $0x2170] sm:$0xff]
  %v1116 = vld [vmem:[%s1 + $0x2178] sm:$0xff]
  %v1117 = vld [vmem:[%s1 + $0x2180] sm:$0xff]
  %v1118 = vld [vmem:[%s1 + $0x2188] sm:$0xff]
  %v1119 = vld [vmem:[%s1 + $0x2190] sm:$0xff]
  %v1120 = vld [vmem:[%s1 + $0x2198] sm:$0xff]
  %v1121 = vld [vmem:[%s1 + $0x21a0] sm:$0xff]
  %v1122 = vld [vmem:[%s1 + $0x21a8] sm:$0xff]
  %v1123 = vld [vmem:[%s1 + $0x21b0] sm:$0xff]
  %v1124 = vld [vmem:[%s1 + $0x21b8] sm:$0xff]
  %v1125 = vld [vmem:[%s1 + $0x21c0] sm:$0xff]
  %v1126 = vld [vmem:[%s1 + $0x21c8] sm:$0xff]
  %v1127 = vld [vmem:[%s1 + $0x21d0] sm:$0xff]
  %v1128 = vld [vmem:[%s1 + $0x21d8] sm:$0xff]
  %v1129 = vld [vmem:[%s1 + $0x21e0] sm:$0xff]
  %v1130 = vld [vmem:[%s1 + $0x21e8] sm:$0xff]
  %v1131 = vld [vmem:[%s1 + $0x21f0] sm:$0xff]
  %v1132 = vld [vmem:[%s1 + $0x21f8] sm:$0xff]
  %v1133 = vld [vmem:[%s1 + $0x2200] sm:$0xff]
  %v1134 = vld [vmem:[%s1 + $0x2208] sm:$0xff]
  %v1135 = vld [vmem:[%s1 + $0x2210] sm:$0xff]
  %v1136 = vld [vmem:[%s1 + $0x2218] sm:$0xff]
  %v1137 = vld [vmem:[%s1 + $0x2220] sm:$0xff]
  %v1138 = vld [vmem:[%s1 + $0x2228] sm:$0xff]
  %v1139 = vld [vmem:[%s1 + $0x2230] sm:$0xff]
  %v1140 = vld [vmem:[%s1 + $0x2238] sm:$0xff]
  %v1141 = vld [vmem:[%s1 + $0x2240] sm:$0xff]
  %v1142 = vld [vmem:[%s1 + $0x2248] sm:$0xff]
  %v1143 = vld [vmem:[%s1 + $0x2250] sm:$0xff]
  %v1144 = vld [vmem:[%s1 + $0x2258] sm:$0xff]
  %v1145 = vld [vmem:[%s1 + $0x2260] sm:$0xff]
  %v1146 = vld [vmem:[%s1 + $0x2268] sm:$0xff]
  %v1147 = vld [vmem:[%s1 + $0x2270] sm:$0xff]
  %v1148 = vld [vmem:[%s1 + $0x2278] sm:$0xff]
  %v1149 = vld [vmem:[%s1 + $0x2280] sm:$0xff]
  %v1150 = vld [vmem:[%s1 + $0x2288] sm:$0xff]
  %v1151 = vld [vmem:[%s1 + $0x2290] sm:$0xff]
  %v1152 = vld [vmem:[%s1 + $0x2298] sm:$0xff]
  %v1153 = vld [vmem:[%s1 + $0x22a0] sm:$0xff]
  %v1154 = vld [vmem:[%s1 + $0x22a8] sm:$0xff]
  %v1155 = vld [vmem:[%s1 + $0x22b0] sm:$0xff]
  %v1156 = vld [vmem:[%s1 + $0x22b8] sm:$0xff]
  %v1157 = vld [vmem:[%s1 + $0x22c0] sm:$0xff]
  %v1158 = vld [vmem:[%s1 + $0x22c8] sm:$0xff]
  %v1159 = vld [vmem:[%s1 + $0x22d0] sm:$0xff]
  %v1160 = vld [vmem:[%s1 + $0x22d8] sm:$0xff]
  %v1161 = vld [vmem:[%s1 + $0x22e0] sm:$0xff]
  %v1162 = vld [vmem:[%s1 + $0x22e8] sm:$0xff]
  %v1163 = vld [vmem:[%s1 + $0x22f0] sm:$0xff]
  %v1164 = vld [vmem:[%s1 + $0x22f8] sm:$0xff]
  %v1165 = vld [vmem:[%s1 + $0x2300] sm:$0xff]
  %v1166 = vld [vmem:[%s1 + $0x2308] sm:$0xff]
  %v1167 = vld [vmem:[%s1 + $0x2310] sm:$0xff]
  %v1168 = vld [vmem:[%s1 + $0x2318] sm:$0xff]
  %v1169 = vld [vmem:[%s1 + $0x2320] sm:$0xff]
  %v1170 = vld [vmem:[%s1 + $0x2328] sm:$0xff]
  %v1171 = vld [vmem:[%s1 + $0x2330] sm:$0xff]
  %v1172 = vld [vmem:[%s1 + $0x2338] sm:$0xff]
  %v1173 = vld [vmem:[%s1 + $0x2340] sm:$0xff]
  %v1174 = vld [vmem:[%s1 + $0x2348] sm:$0xff]
  %v1175 = vld [vmem:[%s1 + $0x2350] sm:$0xff]
  %v1176 = vld [vmem:[%s1 + $0x2358] sm:$0xff]
  %v1177 = vld [vmem:[%s1 + $0x2360] sm:$0xff]
  %v1178 = vld [vmem:[%s1 + $0x2368] sm:$0xff]
  %v1179 = vld [vmem:[%s1 + $0x2370] sm:$0xff]
  %v1180 = vld [vmem:[%s1 + $0x2378] sm:$0xff]
  %v1181 = vld [vmem:[%s1 + $0x2380] sm:$0xff]
  %v1182 = vld [vmem:[%s1 + $0x2388] sm:$0xff]
  %v1183 = vld [vmem:[%s1 + $0x2390] sm:$0xff]
  %v1184 = vld [vmem:[%s1 + $0x2398] sm:$0xff]
  %v1185 = vld [vmem:[%s1 + $0x23a0] sm:$0xff]
  %v1186 = vld [vmem:[%s1 + $0x23a8] sm:$0xff]
  %v1187 = vld [vmem:[%s1 + $0x23b0] sm:$0xff]
  %v1188 = vld [vmem:[%s1 + $0x23b8] sm:$0xff]
  %v1189 = vld [vmem:[%s1 + $0x23c0] sm:$0xff]
  %v1190 = vld [vmem:[%s1 + $0x23c8] sm:$0xff]
  %v1191 = vld [vmem:[%s1 + $0x23d0] sm:$0xff]
  %v1192 = vld [vmem:[%s1 + $0x23d8] sm:$0xff]
  %v1193 = vld [vmem:[%s1 + $0x23e0] sm:$0xff]
  %v1194 = vld [vmem:[%s1 + $0x23e8] sm:$0xff]
  %v1195 = vld [vmem:[%s1 + $0x23f0] sm:$0xff]
  %v1196 = vld [vmem:[%s1 + $0x23f8] sm:$0xff]
  %v1197 = vld [vmem:[%s1 + $0x2400] sm:$0xff]
  %v1198 = vld [vmem:[%s1 + $0x2408] sm:$0xff]
  %v1199 = vld [vmem:[%s1 + $0x2410] sm:$0xff]
  %v1200 = vld [vmem:[%s1 + $0x2418] sm:$0xff]
  %v1201 = vld [vmem:[%s1 + $0x2420] sm:$0xff]
  %v1202 = vld [vmem:[%s1 + $0x2428] sm:$0xff]
  %v1203 = vld [vmem:[%s1 + $0x2430] sm:$0xff]
  %v1204 = vld [vmem:[%s1 + $0x2438] sm:$0xff]
  %v1205 = vld [vmem:[%s1 + $0x2440] sm:$0xff]
  %v1206 = vld [vmem:[%s1 + $0x2448] sm:$0xff]
  %v1207 = vld [vmem:[%s1 + $0x2450] sm:$0xff]
  %v1208 = vld [vmem:[%s1 + $0x2458] sm:$0xff]
  %v1209 = vld [vmem:[%s1 + $0x2460] sm:$0xff]
  %v1210 = vld [vmem:[%s1 + $0x2468] sm:$0xff]
  %v1211 = vld [vmem:[%s1 + $0x2470] sm:$0xff]
  %v1212 = vld [vmem:[%s1 + $0x2478] sm:$0xff]
  %v1213 = vld [vmem:[%s1 + $0x2480] sm:$0xff]
  %v1214 = vld [vmem:[%s1 + $0x2488] sm:$0xff]
  %v1215 = vld [vmem:[%s1 + $0x2490] sm:$0xff]
  %v1216 = vld [vmem:[%s1 + $0x2498] sm:$0xff]
  %v1217 = vld [vmem:[%s1 + $0x24a0] sm:$0xff]
  %v1218 = vld [vmem:[%s1 + $0x24a8] sm:$0xff]
  %v1219 = vld [vmem:[%s1 + $0x24b0] sm:$0xff]
  %v1220 = vld [vmem:[%s1 + $0x24b8] sm:$0xff]
  %v1221 = vld [vmem:[%s1 + $0x24c0] sm:$0xff]
  %v1222 = vld [vmem:[%s1 + $0x24c8] sm:$0xff]
  %v1223 = vld [vmem:[%s1 + $0x24d0] sm:$0xff]
  %v1224 = vld [vmem:[%s1 + $0x24d8] sm:$0xff]
  %v1225 = vld [vmem:[%s1 + $0x24e0] sm:$0xff]
  %v1226 = vld [vmem:[%s1 + $0x24e8] sm:$0xff]
  %v1227 = vld [vmem:[%s1 + $0x24f0] sm:$0xff]
  %v1228 = vld [vmem:[%s1 + $0x24f8] sm:$0xff]
  %v1229 = vld [vmem:[%s1 + $0x2500] sm:$0xff]
  %v1230 = vld [vmem:[%s1 + $0x2508] sm:$0xff]
  %v1231 = vld [vmem:[%s1 + $0x2510] sm:$0xff]
  %v1232 = vld [vmem:[%s1 + $0x2518] sm:$0xff]
  %v1233 = vld [vmem:[%s1 + $0x2520] sm:$0xff]
  %v1234 = vld [vmem:[%s1 + $0x2528] sm:$0xff]
  %v1235 = vld [vmem:[%s1 + $0x2530] sm:$0xff]
  %v1236 = vld [vmem:[%s1 + $0x2538] sm:$0xff]
  %v1237 = vld [vmem:[%s1 + $0x2540] sm:$0xff]
  %v1238 = vld [vmem:[%s1 + $0x2548] sm:$0xff]
  %v1239 = vld [vmem:[%s1 + $0x2550] sm:$0xff]
  %v1240 = vld [vmem:[%s1 + $0x2558] sm:$0xff]
  %v1241 = vld [vmem:[%s1 + $0x2560] sm:$0xff]
  %v1242 = vld [vmem:[%s1 + $0x2568] sm:$0xff]
  %v1243 = vld [vmem:[%s1 + $0x2570] sm:$0xff]
  %v1244 = vld [vmem:[%s1 + $0x2578] sm:$0xff]
  %v1245 = vld [vmem:[%s1 + $0x2580] sm:$0xff]
  %v1246 = vld [vmem:[%s1 + $0x2588] sm:$0xff]
  %v1247 = vld [vmem:[%s1 + $0x2590] sm:$0xff]
  %v1248 = vld [vmem:[%s1 + $0x2598] sm:$0xff]
  %v1249 = vld [vmem:[%s1 + $0x25a0] sm:$0xff]
  %v1250 = vld [vmem:[%s1 + $0x25a8] sm:$0xff]
  %v1251 = vld [vmem:[%s1 + $0x25b0] sm:$0xff]
  %v1252 = vld [vmem:[%s1 + $0x25b8] sm:$0xff]
  %v1253 = vld [vmem:[%s1 + $0x25c0] sm:$0xff]
  %v1254 = vld [vmem:[%s1 + $0x25c8] sm:$0xff]
  %v1255 = vld [vmem:[%s1 + $0x25d0] sm:$0xff]
  %v1256 = vld [vmem:[%s1 + $0x25d8] sm:$0xff]
  %v1257 = vld [vmem:[%s1 + $0x25e0] sm:$0xff]
  %v1258 = vld [vmem:[%s1 + $0x25e8] sm:$0xff]
  %v1259 = vld [vmem:[%s1 + $0x25f0] sm:$0xff]
  %v1260 = vld [vmem:[%s1 + $0x25f8] sm:$0xff]
  %v1261 = vld [vmem:[%s1 + $0x2600] sm:$0xff]
  %v1262 = vld [vmem:[%s1 + $0x2608] sm:$0xff]
  %v1263 = vld [vmem:[%s1 + $0x2610] sm:$0xff]
  %v1264 = vld [vmem:[%s1 + $0x2618] sm:$0xff]
  %v1265 = vld [vmem:[%s1 + $0x2620] sm:$0xff]
  %v1266 = vld [vmem:[%s1 + $0x2628] sm:$0xff]
  %v1267 = vld [vmem:[%s1 + $0x2630] sm:$0xff]
  %v1268 = vld [vmem:[%s1 + $0x2638] sm:$0xff]
  %v1269 = vld [vmem:[%s1 + $0x2640] sm:$0xff]
  %v1270 = vld [vmem:[%s1 + $0x2648] sm:$0xff]
  %v1271 = vld [vmem:[%s1 + $0x2650] sm:$0xff]
  %v1272 = vld [vmem:[%s1 + $0x2658] sm:$0xff]
  %v1273 = vld [vmem:[%s1 + $0x2660] sm:$0xff]
  %v1274 = vld [vmem:[%s1 + $0x2668] sm:$0xff]
  %v1275 = vld [vmem:[%s1 + $0x2670] sm:$0xff]
  %v1276 = vld [vmem:[%s1 + $0x2678] sm:$0xff]
  %v1277 = vld [vmem:[%s1 + $0x2680] sm:$0xff]
  %v1278 = vld [vmem:[%s1 + $0x2688] sm:$0xff]
  %v1279 = vld [vmem:[%s1 + $0x2690] sm:$0xff]
  %v1280 = vld [vmem:[%s1 + $0x2698] sm:$0xff]
  %v1281 = vld [vmem:[%s1 + $0x26a0] sm:$0xff]
  %v1282 = vld [vmem:[%s1 + $0x26a8] sm:$0xff]
  %v1283 = vld [vmem:[%s1 + $0x26b0] sm:$0xff]
  %v1284 = vld [vmem:[%s1 + $0x26b8] sm:$0xff]
  %v1285 = vld [vmem:[%s1 + $0x26c0] sm:$0xff]
  %v1286 = vld [vmem:[%s1 + $0x26c8] sm:$0xff]
  %v1287 = vld [vmem:[%s1 + $0x26d0] sm:$0xff]
  %v1288 = vld [vmem:[%s1 + $0x26d8] sm:$0xff]
  %v1289 = vld [vmem:[%s1 + $0x26e0] sm:$0xff]
  %v1290 = vld [vmem:[%s1 + $0x26e8] sm:$0xff]
  %v1291 = vld [vmem:[%s1 + $0x26f0] sm:$0xff]
  %v1292 = vld [vmem:[%s1 + $0x26f8] sm:$0xff]
  %v1293 = vld [vmem:[%s1 + $0x2700] sm:$0xff]
  %v1294 = vld [vmem:[%s1 + $0x2708] sm:$0xff]
  %v1295 = vld [vmem:[%s1 + $0x2710] sm:$0xff]
  %v1296 = vld [vmem:[%s1 + $0x2718] sm:$0xff]
  %v1297 = vld [vmem:[%s1 + $0x2720] sm:$0xff]
  %v1298 = vld [vmem:[%s1 + $0x2728] sm:$0xff]
  %v1299 = vld [vmem:[%s1 + $0x2730] sm:$0xff]
  %v1300 = vld [vmem:[%s1 + $0x2738] sm:$0xff]
  %v1301 = vld [vmem:[%s1 + $0x2740] sm:$0xff]
  %v1302 = vld [vmem:[%s1 + $0x2748] sm:$0xff]
  %v1303 = vld [vmem:[%s1 + $0x2750] sm:$0xff]
  %v1304 = vld [vmem:[%s1 + $0x2758] sm:$0xff]
  %v1305 = vld [vmem:[%s1 + $0x2760] sm:$0xff]
  %v1306 = vld [vmem:[%s1 + $0x2768] sm:$0xff]
  %v1307 = vld [vmem:[%s1 + $0x2770] sm:$0xff]
  %v1308 = vld [vmem:[%s1 + $0x2778] sm:$0xff]
  %v1309 = vld [vmem:[%s1 + $0x2780] sm:$0xff]
  %v1310 = vld [vmem:[%s1 + $0x2788] sm:$0xff]
  %v1311 = vld [vmem:[%s1 + $0x2790] sm:$0xff]
  %v1312 = vld [vmem:[%s1 + $0x2798] sm:$0xff]
  %v1313 = vld [vmem:[%s1 + $0x27a0] sm:$0xff]
  %v1314 = vld [vmem:[%s1 + $0x27a8] sm:$0xff]
  %v1315 = vld [vmem:[%s1 + $0x27b0] sm:$0xff]
  %v1316 = vld [vmem:[%s1 + $0x27b8] sm:$0xff]
  %v1317 = vld [vmem:[%s1 + $0x27c0] sm:$0xff]
  %v1318 = vld [vmem:[%s1 + $0x27c8] sm:$0xff]
  %v1319 = vld [vmem:[%s2] sm:$0xff]
  %v1320 = vld [vmem:[%s2 + $0x8] sm:$0x1f]
  %v1323 = vlaneseq
  %v1324 = vshrl.u32 %v1323, 7
  %v1325 = vsub.s32 0, %v1324
  %v1326 = vrot.slane %v1319, %v1325
  %v1327 = vlaneseq
  %v1328 = vshrl.u32 %v1327, 7
  %v1329 = vsub.s32 1, %v1328
  %v1330 = vrot.slane %v1319, %v1329
  %v1331 = vlaneseq
  %v1332 = vshrl.u32 %v1331, 7
  %v1333 = vsub.s32 2, %v1332
  %v1334 = vrot.slane %v1319, %v1333
  %v1335 = vlaneseq
  %v1336 = vshrl.u32 %v1335, 7
  %v1337 = vsub.s32 3, %v1336
  %v1338 = vrot.slane %v1319, %v1337
  %v1339 = vlaneseq
  %v1340 = vshrl.u32 %v1339, 7
  %v1341 = vsub.s32 4, %v1340
  %v1342 = vrot.slane %v1319, %v1341
  %v1343 = vlaneseq
  %v1344 = vshrl.u32 %v1343, 7
  %v1345 = vsub.s32 5, %v1344
  %v1346 = vrot.slane %v1319, %v1345
  %v1347 = vlaneseq
  %v1348 = vshrl.u32 %v1347, 7
  %v1349 = vsub.s32 6, %v1348
  %v1350 = vrot.slane %v1319, %v1349
  %v1351 = vlaneseq
  %v1352 = vshrl.u32 %v1351, 7
  %v1353 = vsub.s32 7, %v1352
  %v1354 = vrot.slane %v1319, %v1353
  %v1355 = vlaneseq
  %v1356 = vshrl.u32 %v1355, 7
  %v1357 = vsub.s32 0, %v1356
  %v1358 = vrot.slane %v1320, %v1357
  %v1359 = vlaneseq
  %v1360 = vshrl.u32 %v1359, 7
  %v1361 = vsub.s32 1, %v1360
  %v1362 = vrot.slane %v1320, %v1361
  %v1363 = vlaneseq
  %v1364 = vshrl.u32 %v1363, 7
  %v1365 = vsub.s32 2, %v1364
  %v1366 = vrot.slane %v1320, %v1365
  %v1367 = vlaneseq
  %v1368 = vshrl.u32 %v1367, 7
  %v1369 = vsub.s32 3, %v1368
  %v1370 = vrot.slane %v1320, %v1369
  %v1371 = vlaneseq
  %v1372 = vshrl.u32 %v1371, 7
  %v1373 = vsub.s32 4, %v1372
  %v1374 = vrot.slane %v1320, %v1373
  %vm1388 = vcmask 130048
  %v1390 = vsel %vm1388, %v44, 0
  %1392 = vmatprep.subr.mxu0 %v46
  %1393 = vmatpush1.msra.mxu0 %v45
  %1394 = vmatprep.subr.mxu0 %v59
  %1395 = vmatpush1.msra.mxu0 %v58
  %1396 = vmatprep.subr.mxu0 %v72
  %1397 = vmatpush1.msra.mxu0 %v71
  %1398 = vmatprep.subr.mxu0 %v85
  %1399 = vmatpush1.msra.mxu0 %v84
  %1400 = vmatprep.subr.mxu0 %v98
  %1401 = vmatpush1.msra.mxu0 %v97
  %1402 = vmatprep.subr.mxu0 %v111
  %1403 = vmatpush1.msra.mxu0 %v110
  %1404 = vmatprep.subr.mxu0 %v124
  %1405 = vmatpush1.msra.mxu0 %v123
  %1406 = vmatprep.subr.mxu0 %v137
  %1407 = vmatpush1.msra.mxu0 %v136
  %1408 = vmatprep.subr.mxu0 %v150
  %1409 = vmatpush1.msra.mxu0 %v149
  %1410 = vmatprep.subr.mxu0 %v163
  %1411 = vmatpush1.msra.mxu0 %v162
  %1412 = vmatprep.subr.mxu0 %v176
  %1413 = vmatpush1.msra.mxu0 %v175
  %1414 = vmatprep.subr.mxu0 %v189
  %1415 = vmatpush1.msra.mxu0 %v188
  %1416 = vmatprep.subr.mxu0 %v202
  %1417 = vmatpush1.msra.mxu0 %v201
  %1418 = vmatprep.subr.mxu0 %v215
  %1419 = vmatpush1.msra.mxu0 %v214
  %1420 = vmatprep.subr.mxu0 %v228
  %1421 = vmatpush1.msra.mxu0 %v227
  %1422 = vmatprep.subr.mxu0 %v241
  %1423 = vmatpush1.msra.mxu0 %v240
  %1424 = vmatprep.subr.mxu0 %v254
  %1425 = vmatpush1.msra.mxu0 %v253
  %1426 = vmatprep.subr.mxu0 %v267
  %1427 = vmatpush1.msra.mxu0 %v266
  %1428 = vmatprep.subr.mxu0 %v280
  %1429 = vmatpush1.msra.mxu0 %v279
  %1430 = vmatprep.subr.mxu0 %v293
  %1431 = vmatpush1.msra.mxu0 %v292
  %1432 = vmatprep.subr.mxu0 %v306
  %1433 = vmatpush1.msra.mxu0 %v305
  %1434 = vmatprep.subr.mxu0 %v319
  %1435 = vmatpush1.msra.mxu0 %v318
  %1436 = vmatprep.subr.mxu0 %v332
  %1437 = vmatpush1.msra.mxu0 %v331
  %1438 = vmatprep.subr.mxu0 %v345
  %1439 = vmatpush1.msra.mxu0 %v344
  %1440 = vmatprep.subr.mxu0 %v358
  %1441 = vmatpush1.msra.mxu0 %v357
  %1442 = vmatprep.subr.mxu0 %v371
  %1443 = vmatpush1.msra.mxu0 %v370
  %1444 = vmatprep.subr.mxu0 %v384
  %1445 = vmatpush1.msra.mxu0 %v383
  %1446 = vmatprep.subr.mxu0 %v397
  %1447 = vmatpush1.msra.mxu0 %v396
  %1448 = vmatprep.subr.mxu0 %v410
  %1449 = vmatpush1.msra.mxu0 %v409
  %1450 = vmatprep.subr.mxu0 %v423
  %1451 = vmatpush1.msra.mxu0 %v422
  %1452 = vmatprep.subr.mxu0 %v436
  %1453 = vmatpush1.msra.mxu0 %v435
  %1454 = vmatprep.subr.mxu0 %v449
  %1455 = vmatpush1.msra.mxu0 %v448
  %1456 = vmatprep.mubr.f32.mxu0 %v39
  %1457 = vmatmul.mubr.f32.gmra.mrb[0].mxu0 %v38
  %v1458 = vpop.f32.mrb[0].mxu0
  %v1459 = vadd.f32 %v1326, %v1458
  %v1460 = vpop.f32.mrb[0].mxu0
  %v1461 = vadd.f32 %v1330, %v1460
  %1462 = vdwg.mxu0
  %1463 = vmatprep.subr.mxu0 %v462
  %1464 = vmatpush1.msra.mxu0 %v461
  %1465 = vmatprep.subr.mxu0 %v475
  %1466 = vmatpush1.msra.mxu0 %v474
  %1467 = vmatprep.subr.mxu0 %v488
  %1468 = vmatpush1.msra.mxu0 %v487
  %1469 = vmatprep.subr.mxu0 %v501
  %1470 = vmatpush1.msra.mxu0 %v500
  %1471 = vmatprep.subr.mxu0 %v514
  %1472 = vmatpush1.msra.mxu0 %v513
  %1473 = vmatprep.subr.mxu0 %v527
  %1474 = vmatpush1.msra.mxu0 %v526
  %1475 = vmatprep.subr.mxu0 %v540
  %1476 = vmatpush1.msra.mxu0 %v539
  %1477 = vmatprep.subr.mxu0 %v553
  %1478 = vmatpush1.msra.mxu0 %v552
  %1479 = vmatprep.subr.mxu0 %v566
  %1480 = vmatpush1.msra.mxu0 %v565
  %1481 = vmatprep.subr.mxu0 %v579
  %1482 = vmatpush1.msra.mxu0 %v578
  %1483 = vmatprep.subr.mxu0 %v592
  %1484 = vmatpush1.msra.mxu0 %v591
  %1485 = vmatprep.subr.mxu0 %v605
  %1486 = vmatpush1.msra.mxu0 %v604
  %1487 = vmatprep.subr.mxu0 %v618
  %1488 = vmatpush1.msra.mxu0 %v617
  %1489 = vmatprep.subr.mxu0 %v631
  %1490 = vmatpush1.msra.mxu0 %v630
  %1491 = vmatprep.subr.mxu0 %v644
  %1492 = vmatpush1.msra.mxu0 %v643
  %1493 = vmatprep.subr.mxu0 %v657
  %1494 = vmatpush1.msra.mxu0 %v656
  %1495 = vmatprep.subr.mxu0 %v670
  %1496 = vmatpush1.msra.mxu0 %v669
  %1497 = vmatprep.subr.mxu0 %v683
  %1498 = vmatpush1.msra.mxu0 %v682
  %1499 = vmatprep.subr.mxu0 %v696
  %1500 = vmatpush1.msra.mxu0 %v695
  %1501 = vmatprep.subr.mxu0 %v709
  %1502 = vmatpush1.msra.mxu0 %v708
  %1503 = vmatprep.subr.mxu0 %v722
  %1504 = vmatpush1.msra.mxu0 %v721
  %1505 = vmatprep.subr.mxu0 %v735
  %1506 = vmatpush1.msra.mxu0 %v734
  %1507 = vmatprep.subr.mxu0 %v748
  %1508 = vmatpush1.msra.mxu0 %v747
  %1509 = vmatprep.subr.mxu0 %v761
  %1510 = vmatpush1.msra.mxu0 %v760
  %1511 = vmatprep.subr.mxu0 %v774
  %1512 = vmatpush1.msra.mxu0 %v773
  %1513 = vmatprep.subr.mxu0 %v787
  %1514 = vmatpush1.msra.mxu0 %v786
  %1515 = vmatprep.subr.mxu0 %v800
  %1516 = vmatpush1.msra.mxu0 %v799
  %1517 = vmatprep.subr.mxu0 %v813
  %1518 = vmatpush1.msra.mxu0 %v812
  %1519 = vmatprep.subr.mxu0 %v826
  %1520 = vmatpush1.msra.mxu0 %v825
  %1521 = vmatprep.subr.mxu0 %v839
  %1522 = vmatpush1.msra.mxu0 %v838
  %1523 = vmatprep.subr.mxu0 %v852
  %1524 = vmatpush1.msra.mxu0 %v851
  %1525 = vmatprep.subr.mxu0 %v865
  %1526 = vmatpush1.msra.mxu0 %v864
  %1527 = vmatprep.mubr.f32.mxu0 %v41
  %1528 = vmatmul.mubr.f32.gmra.mrb[0].mxu0 %v40
  %v1529 = vpop.f32.mrb[0].mxu0
  %v1530 = vadd.f32 %v1459, %v1529
  %v1531 = vpop.f32.mrb[0].mxu0
  %v1532 = vadd.f32 %v1461, %v1531
  %1533 = vdwg.mxu0
  %1534 = vmatprep.subr.mxu0 %v878
  %1535 = vmatpush1.msra.mxu0 %v877
  %1536 = vmatprep.subr.mxu0 %v891
  %1537 = vmatpush1.msra.mxu0 %v890
  %1538 = vmatprep.subr.mxu0 %v904
  %1539 = vmatpush1.msra.mxu0 %v903
  %1540 = vmatprep.subr.mxu0 %v917
  %1541 = vmatpush1.msra.mxu0 %v916
  %1542 = vmatprep.subr.mxu0 %v930
  %1543 = vmatpush1.msra.mxu0 %v929
  %1544 = vmatprep.subr.mxu0 %v943
  %1545 = vmatpush1.msra.mxu0 %v942
  %1546 = vmatprep.subr.mxu0 %v956
  %1547 = vmatpush1.msra.mxu0 %v955
  %1548 = vmatprep.subr.mxu0 %v969
  %1549 = vmatpush1.msra.mxu0 %v968
  %1550 = vmatprep.subr.mxu0 %v982
  %1551 = vmatpush1.msra.mxu0 %v981
  %1552 = vmatprep.subr.mxu0 %v995
  %1553 = vmatpush1.msra.mxu0 %v994
  %1554 = vmatprep.subr.mxu0 %v1008
  %1555 = vmatpush1.msra.mxu0 %v1007
  %1556 = vmatprep.subr.mxu0 %v1021
  %1557 = vmatpush1.msra.mxu0 %v1020
  %1558 = vmatprep.subr.mxu0 %v1034
  %1559 = vmatpush1.msra.mxu0 %v1033
  %1560 = vmatprep.subr.mxu0 %v1047
  %1561 = vmatpush1.msra.mxu0 %v1046
  %1562 = vmatprep.subr.mxu0 %v1060
  %1563 = vmatpush1.msra.mxu0 %v1059
  %1564 = vmatprep.subr.mxu0 %v1073
  %1565 = vmatpush1.msra.mxu0 %v1072
  %1566 = vmatprep.subr.mxu0 %v1086
  %1567 = vmatpush1.msra.mxu0 %v1085
  %1568 = vmatprep.subr.mxu0 %v1099
  %1569 = vmatpush1.msra.mxu0 %v1098
  %1570 = vmatprep.subr.mxu0 %v1112
  %1571 = vmatpush1.msra.mxu0 %v1111
  %1572 = vmatprep.subr.mxu0 %v1125
  %1573 = vmatpush1.msra.mxu0 %v1124
  %1574 = vmatprep.subr.mxu0 %v1138
  %1575 = vmatpush1.msra.mxu0 %v1137
  %1576 = vmatprep.subr.mxu0 %v1151
  %1577 = vmatpush1.msra.mxu0 %v1150
  %1578 = vmatprep.subr.mxu0 %v1164
  %1579 = vmatpush1.msra.mxu0 %v1163
  %1580 = vmatprep.subr.mxu0 %v1177
  %1581 = vmatpush1.msra.mxu0 %v1176
  %1582 = vmatprep.subr.mxu0 %v1190
  %1583 = vmatpush1.msra.mxu0 %v1189
  %1584 = vmatprep.subr.mxu0 %v1203
  %1585 = vmatpush1.msra.mxu0 %v1202
  %1586 = vmatprep.subr.mxu0 %v1216
  %1587 = vmatpush1.msra.mxu0 %v1215
  %1588 = vmatprep.subr.mxu0 %v1229
  %1589 = vmatpush1.msra.mxu0 %v1228
  %1590 = vmatprep.subr.mxu0 %v1242
  %1591 = vmatpush1.msra.mxu0 %v1241
  %1592 = vmatprep.subr.mxu0 %v1255
  %1593 = vmatpush1.msra.mxu0 %v1254
  %1594 = vmatprep.subr.mxu0 %v1268
  %1595 = vmatpush1.msra.mxu0 %v1267
  %1596 = vmatprep.subr.mxu0 %v1281
  %1597 = vmatpush1.msra.mxu0 %v1280
  %1598 = vmatprep.mubr.f32.mxu0 %v43
  %1599 = vmatmul.mubr.f32.gmra.mrb[0].mxu0 %v42
  %v1600 = vpop.f32.mrb[0].mxu0
  %v1601 = vadd.f32 %v1530, %v1600
  %v1602 = vpop.f32.mrb[0].mxu0
  %v1603 = vadd.f32 %v1532, %v1602
  %1604 = vdwg.mxu0
  %1605 = vmatprep.subr.mxu0 %v1294
  %1606 = vmatpush1.msra.mxu0 %v1293
  %1607 = vmatprep.subr.mxu0 %v1307
  %1608 = vmatpush1.msra.mxu0 %v1306
  %1609 = vmatprep.subr.mxu0 0.0
  %1610 = vmatpush1.msra.mxu0 0.0
  %1611 = vmatprep.subr.mxu0 0.0
  %1612 = vmatpush1.msra.mxu0 0.0
  %1613 = vmatprep.subr.mxu0 0.0
  %1614 = vmatpush1.msra.mxu0 0.0
  %1615 = vmatprep.subr.mxu0 0.0
  %1616 = vmatpush1.msra.mxu0 0.0
  %1617 = vmatprep.subr.mxu0 0.0
  %1618 = vmatpush1.msra.mxu0 0.0
  %1619 = vmatprep.subr.mxu0 0.0
  %1620 = vmatpush1.msra.mxu0 0.0
  %1621 = vmatprep.subr.mxu0 0.0
  %1622 = vmatpush1.msra.mxu0 0.0
  %1623 = vmatprep.subr.mxu0 0.0
  %1624 = vmatpush1.msra.mxu0 0.0
  %1625 = vmatprep.subr.mxu0 0.0
  %1626 = vmatpush1.msra.mxu0 0.0
  %1627 = vmatprep.subr.mxu0 0.0
  %1628 = vmatpush1.msra.mxu0 0.0
  %1629 = vmatprep.subr.mxu0 0.0
  %1630 = vmatpush1.msra.mxu0 0.0
  %1631 = vmatprep.subr.mxu0 0.0
  %1632 = vmatpush1.msra.mxu0 0.0
  %1633 = vmatprep.subr.mxu0 0.0
  %1634 = vmatpush1.msra.mxu0 0.0
  %1635 = vmatprep.subr.mxu0 0.0
  %1636 = vmatpush1.msra.mxu0 0.0
  %1637 = vmatprep.subr.mxu0 0.0
  %1638 = vmatpush1.msra.mxu0 0.0
  %1639 = vmatprep.subr.mxu0 0.0
  %1640 = vmatpush1.msra.mxu0 0.0
  %1641 = vmatprep.subr.mxu0 0.0
  %1642 = vmatpush1.msra.mxu0 0.0
  %1643 = vmatprep.subr.mxu0 0.0
  %1644 = vmatpush1.msra.mxu0 0.0
  %1645 = vmatprep.subr.mxu0 0.0
  %1646 = vmatpush1.msra.mxu0 0.0
  %1647 = vmatprep.subr.mxu0 0.0
  %1648 = vmatpush1.msra.mxu0 0.0
  %1649 = vmatprep.subr.mxu0 0.0
  %1650 = vmatpush1.msra.mxu0 0.0
  %1651 = vmatprep.subr.mxu0 0.0
  %1652 = vmatpush1.msra.mxu0 0.0
  %1653 = vmatprep.subr.mxu0 0.0
  %1654 = vmatpush1.msra.mxu0 0.0
  %1655 = vmatprep.subr.mxu0 0.0
  %1656 = vmatpush1.msra.mxu0 0.0
  %1657 = vmatprep.subr.mxu0 0.0
  %1658 = vmatpush1.msra.mxu0 0.0
  %1659 = vmatprep.subr.mxu0 0.0
  %1660 = vmatpush1.msra.mxu0 0.0
  %1661 = vmatprep.subr.mxu0 0.0
  %1662 = vmatpush1.msra.mxu0 0.0
  %1663 = vmatprep.subr.mxu0 0.0
  %1664 = vmatpush1.msra.mxu0 0.0
  %1665 = vmatprep.subr.mxu0 0.0
  %1666 = vmatpush1.msra.mxu0 0.0
  %1667 = vmatprep.subr.mxu0 0.0
  %1668 = vmatpush1.msra.mxu0 0.0
  %1669 = vmatprep.mubr.f32.mxu0 0.0
  %1670 = vmatmul.mubr.f32.gmra.mrb[0].mxu0 %v1390
  %v1671 = vpop.f32.mrb[0].mxu0
  %v1672 = vadd.f32 %v1601, %v1671
  %v1673 = vpop.f32.mrb[0].mxu0
  %v1674 = vadd.f32 %v1603, %v1673
  %1675 = vdwg.mxu0
  %1676 = vmatprep.subr.mxu0 %v48
  %1677 = vmatpush1.msra.mxu0 %v47
  %1678 = vmatprep.subr.mxu0 %v61
  %1679 = vmatpush1.msra.mxu0 %v60
  %1680 = vmatprep.subr.mxu0 %v74
  %1681 = vmatpush1.msra.mxu0 %v73
  %1682 = vmatprep.subr.mxu0 %v87
  %1683 = vmatpush1.msra.mxu0 %v86
  %1684 = vmatprep.subr.mxu0 %v100
  %1685 = vmatpush1.msra.mxu0 %v99
  %1686 = vmatprep.subr.mxu0 %v113
  %1687 = vmatpush1.msra.mxu0 %v112
  %1688 = vmatprep.subr.mxu0 %v126
  %1689 = vmatpush1.msra.mxu0 %v125
  %1690 = vmatprep.subr.mxu0 %v139
  %1691 = vmatpush1.msra.mxu0 %v138
  %1692 = vmatprep.subr.mxu0 %v152
  %1693 = vmatpush1.msra.mxu0 %v151
  %1694 = vmatprep.subr.mxu0 %v165
  %1695 = vmatpush1.msra.mxu0 %v164
  %1696 = vmatprep.subr.mxu0 %v178
  %1697 = vmatpush1.msra.mxu0 %v177
  %1698 = vmatprep.subr.mxu0 %v191
  %1699 = vmatpush1.msra.mxu0 %v190
  %1700 = vmatprep.subr.mxu0 %v204
  %1701 = vmatpush1.msra.mxu0 %v203
  %1702 = vmatprep.subr.mxu0 %v217
  %1703 = vmatpush1.msra.mxu0 %v216
  %1704 = vmatprep.subr.mxu0 %v230
  %1705 = vmatpush1.msra.mxu0 %v229
  %1706 = vmatprep.subr.mxu0 %v243
  %1707 = vmatpush1.msra.mxu0 %v242
  %1708 = vmatprep.subr.mxu0 %v256
  %1709 = vmatpush1.msra.mxu0 %v255
  %1710 = vmatprep.subr.mxu0 %v269
  %1711 = vmatpush1.msra.mxu0 %v268
  %1712 = vmatprep.subr.mxu0 %v282
  %1713 = vmatpush1.msra.mxu0 %v281
  %1714 = vmatprep.subr.mxu0 %v295
  %1715 = vmatpush1.msra.mxu0 %v294
  %1716 = vmatprep.subr.mxu0 %v308
  %1717 = vmatpush1.msra.mxu0 %v307
  %1718 = vmatprep.subr.mxu0 %v321
  %1719 = vmatpush1.msra.mxu0 %v320
  %1720 = vmatprep.subr.mxu0 %v334
  %1721 = vmatpush1.msra.mxu0 %v333
  %1722 = vmatprep.subr.mxu0 %v347
  %1723 = vmatpush1.msra.mxu0 %v346
  %1724 = vmatprep.subr.mxu0 %v360
  %1725 = vmatpush1.msra.mxu0 %v359
  %1726 = vmatprep.subr.mxu0 %v373
  %1727 = vmatpush1.msra.mxu0 %v372
  %1728 = vmatprep.subr.mxu0 %v386
  %1729 = vmatpush1.msra.mxu0 %v385
  %1730 = vmatprep.subr.mxu0 %v399
  %1731 = vmatpush1.msra.mxu0 %v398
  %1732 = vmatprep.subr.mxu0 %v412
  %1733 = vmatpush1.msra.mxu0 %v411
  %1734 = vmatprep.subr.mxu0 %v425
  %1735 = vmatpush1.msra.mxu0 %v424
  %1736 = vmatprep.subr.mxu0 %v438
  %1737 = vmatpush1.msra.mxu0 %v437
  %1738 = vmatprep.subr.mxu0 %v451
  %1739 = vmatpush1.msra.mxu0 %v450
  %1740 = vmatprep.mubr.f32.mxu0 %v39
  %1741 = vmatmul.mubr.f32.gmra.mrb[0].mxu0 %v38
  %v1742 = vpop.f32.mrb[0].mxu0
  %v1743 = vadd.f32 %v1334, %v1742
  %v1744 = vpop.f32.mrb[0].mxu0
  %v1745 = vadd.f32 %v1338, %v1744
  %1746 = vdwg.mxu0
  %1747 = vmatprep.subr.mxu0 %v464
  %1748 = vmatpush1.msra.mxu0 %v463
  %1749 = vmatprep.subr.mxu0 %v477
  %1750 = vmatpush1.msra.mxu0 %v476
  %1751 = vmatprep.subr.mxu0 %v490
  %1752 = vmatpush1.msra.mxu0 %v489
  %1753 = vmatprep.subr.mxu0 %v503
  %1754 = vmatpush1.msra.mxu0 %v502
  %1755 = vmatprep.subr.mxu0 %v516
  %1756 = vmatpush1.msra.mxu0 %v515
  %1757 = vmatprep.subr.mxu0 %v529
  %1758 = vmatpush1.msra.mxu0 %v528
  %1759 = vmatprep.subr.mxu0 %v542
  %1760 = vmatpush1.msra.mxu0 %v541
  %1761 = vmatprep.subr.mxu0 %v555
  %1762 = vmatpush1.msra.mxu0 %v554
  %1763 = vmatprep.subr.mxu0 %v568
  %1764 = vmatpush1.msra.mxu0 %v567
  %1765 = vmatprep.subr.mxu0 %v581
  %1766 = vmatpush1.msra.mxu0 %v580
  %1767 = vmatprep.subr.mxu0 %v594
  %1768 = vmatpush1.msra.mxu0 %v593
  %1769 = vmatprep.subr.mxu0 %v607
  %1770 = vmatpush1.msra.mxu0 %v606
  %1771 = vmatprep.subr.mxu0 %v620
  %1772 = vmatpush1.msra.mxu0 %v619
  %1773 = vmatprep.subr.mxu0 %v633
  %1774 = vmatpush1.msra.mxu0 %v632
  %1775 = vmatprep.subr.mxu0 %v646
  %1776 = vmatpush1.msra.mxu0 %v645
  %1777 = vmatprep.subr.mxu0 %v659
  %1778 = vmatpush1.msra.mxu0 %v658
  %1779 = vmatprep.subr.mxu0 %v672
  %1780 = vmatpush1.msra.mxu0 %v671
  %1781 = vmatprep.subr.mxu0 %v685
  %1782 = vmatpush1.msra.mxu0 %v684
  %1783 = vmatprep.subr.mxu0 %v698
  %1784 = vmatpush1.msra.mxu0 %v697
  %1785 = vmatprep.subr.mxu0 %v711
  %1786 = vmatpush1.msra.mxu0 %v710
  %1787 = vmatprep.subr.mxu0 %v724
  %1788 = vmatpush1.msra.mxu0 %v723
  %1789 = vmatprep.subr.mxu0 %v737
  %1790 = vmatpush1.msra.mxu0 %v736
  %1791 = vmatprep.subr.mxu0 %v750
  %1792 = vmatpush1.msra.mxu0 %v749
  %1793 = vmatprep.subr.mxu0 %v763
  %1794 = vmatpush1.msra.mxu0 %v762
  %1795 = vmatprep.subr.mxu0 %v776
  %1796 = vmatpush1.msra.mxu0 %v775
  %1797 = vmatprep.subr.mxu0 %v789
  %1798 = vmatpush1.msra.mxu0 %v788
  %1799 = vmatprep.subr.mxu0 %v802
  %1800 = vmatpush1.msra.mxu0 %v801
  %1801 = vmatprep.subr.mxu0 %v815
  %1802 = vmatpush1.msra.mxu0 %v814
  %1803 = vmatprep.subr.mxu0 %v828
  %1804 = vmatpush1.msra.mxu0 %v827
  %1805 = vmatprep.subr.mxu0 %v841
  %1806 = vmatpush1.msra.mxu0 %v840
  %1807 = vmatprep.subr.mxu0 %v854
  %1808 = vmatpush1.msra.mxu0 %v853
  %1809 = vmatprep.subr.mxu0 %v867
  %1810 = vmatpush1.msra.mxu0 %v866
  %1811 = vmatprep.mubr.f32.mxu0 %v41
  %1812 = vmatmul.mubr.f32.gmra.mrb[0].mxu0 %v40
  %v1813 = vpop.f32.mrb[0].mxu0
  %v1814 = vadd.f32 %v1743, %v1813
  %v1815 = vpop.f32.mrb[0].mxu0
  %v1816 = vadd.f32 %v1745, %v1815
  %1817 = vdwg.mxu0
  %1818 = vmatprep.subr.mxu0 %v880
  %1819 = vmatpush1.msra.mxu0 %v879
  %1820 = vmatprep.subr.mxu0 %v893
  %1821 = vmatpush1.msra.mxu0 %v892
  %1822 = vmatprep.subr.mxu0 %v906
  %1823 = vmatpush1.msra.mxu0 %v905
  %1824 = vmatprep.subr.mxu0 %v919
  %1825 = vmatpush1.msra.mxu0 %v918
  %1826 = vmatprep.subr.mxu0 %v932
  %1827 = vmatpush1.msra.mxu0 %v931
  %1828 = vmatprep.subr.mxu0 %v945
  %1829 = vmatpush1.msra.mxu0 %v944
  %1830 = vmatprep.subr.mxu0 %v958
  %1831 = vmatpush1.msra.mxu0 %v957
  %1832 = vmatprep.subr.mxu0 %v971
  %1833 = vmatpush1.msra.mxu0 %v970
  %1834 = vmatprep.subr.mxu0 %v984
  %1835 = vmatpush1.msra.mxu0 %v983
  %1836 = vmatprep.subr.mxu0 %v997
  %1837 = vmatpush1.msra.mxu0 %v996
  %1838 = vmatprep.subr.mxu0 %v1010
  %1839 = vmatpush1.msra.mxu0 %v1009
  %1840 = vmatprep.subr.mxu0 %v1023
  %1841 = vmatpush1.msra.mxu0 %v1022
  %1842 = vmatprep.subr.mxu0 %v1036
  %1843 = vmatpush1.msra.mxu0 %v1035
  %1844 = vmatprep.subr.mxu0 %v1049
  %1845 = vmatpush1.msra.mxu0 %v1048
  %1846 = vmatprep.subr.mxu0 %v1062
  %1847 = vmatpush1.msra.mxu0 %v1061
  %1848 = vmatprep.subr.mxu0 %v1075
  %1849 = vmatpush1.msra.mxu0 %v1074
  %1850 = vmatprep.subr.mxu0 %v1088
  %1851 = vmatpush1.msra.mxu0 %v1087
  %1852 = vmatprep.subr.mxu0 %v1101
  %1853 = vmatpush1.msra.mxu0 %v1100
  %1854 = vmatprep.subr.mxu0 %v1114
  %1855 = vmatpush1.msra.mxu0 %v1113
  %1856 = vmatprep.subr.mxu0 %v1127
  %1857 = vmatpush1.msra.mxu0 %v1126
  %1858 = vmatprep.subr.mxu0 %v1140
  %1859 = vmatpush1.msra.mxu0 %v1139
  %1860 = vmatprep.subr.mxu0 %v1153
  %1861 = vmatpush1.msra.mxu0 %v1152
  %1862 = vmatprep.subr.mxu0 %v1166
  %1863 = vmatpush1.msra.mxu0 %v1165
  %1864 = vmatprep.subr.mxu0 %v1179
  %1865 = vmatpush1.msra.mxu0 %v1178
  %1866 = vmatprep.subr.mxu0 %v1192
  %1867 = vmatpush1.msra.mxu0 %v1191
  %1868 = vmatprep.subr.mxu0 %v1205
  %1869 = vmatpush1.msra.mxu0 %v1204
  %1870 = vmatprep.subr.mxu0 %v1218
  %1871 = vmatpush1.msra.mxu0 %v1217
  %1872 = vmatprep.subr.mxu0 %v1231
  %1873 = vmatpush1.msra.mxu0 %v1230
  %1874 = vmatprep.subr.mxu0 %v1244
  %1875 = vmatpush1.msra.mxu0 %v1243
  %1876 = vmatprep.subr.mxu0 %v1257
  %1877 = vmatpush1.msra.mxu0 %v1256
  %1878 = vmatprep.subr.mxu0 %v1270
  %1879 = vmatpush1.msra.mxu0 %v1269
  %1880 = vmatprep.subr.mxu0 %v1283
  %1881 = vmatpush1.msra.mxu0 %v1282
  %1882 = vmatprep.mubr.f32.mxu0 %v43
  %1883 = vmatmul.mubr.f32.gmra.mrb[0].mxu0 %v42
  %v1884 = vpop.f32.mrb[0].mxu0
  %v1885 = vadd.f32 %v1814, %v1884
  %v1886 = vpop.f32.mrb[0].mxu0
  %v1887 = vadd.f32 %v1816, %v1886
  %1888 = vdwg.mxu0
  %1889 = vmatprep.subr.mxu0 %v1296
  %1890 = vmatpush1.msra.mxu0 %v1295
  %1891 = vmatprep.subr.mxu0 %v1309
  %1892 = vmatpush1.msra.mxu0 %v1308
  %1893 = vmatprep.subr.mxu0 0.0
  %1894 = vmatpush1.msra.mxu0 0.0
  %1895 = vmatprep.subr.mxu0 0.0
  %1896 = vmatpush1.msra.mxu0 0.0
  %1897 = vmatprep.subr.mxu0 0.0
  %1898 = vmatpush1.msra.mxu0 0.0
  %1899 = vmatprep.subr.mxu0 0.0
  %1900 = vmatpush1.msra.mxu0 0.0
  %1901 = vmatprep.subr.mxu0 0.0
  %1902 = vmatpush1.msra.mxu0 0.0
  %1903 = vmatprep.subr.mxu0 0.0
  %1904 = vmatpush1.msra.mxu0 0.0
  %1905 = vmatprep.subr.mxu0 0.0
  %1906 = vmatpush1.msra.mxu0 0.0
  %1907 = vmatprep.subr.mxu0 0.0
  %1908 = vmatpush1.msra.mxu0 0.0
  %1909 = vmatprep.subr.mxu0 0.0
  %1910 = vmatpush1.msra.mxu0 0.0
  %1911 = vmatprep.subr.mxu0 0.0
  %1912 = vmatpush1.msra.mxu0 0.0
  %1913 = vmatprep.subr.mxu0 0.0
  %1914 = vmatpush1.msra.mxu0 0.0
  %1915 = vmatprep.subr.mxu0 0.0
  %1916 = vmatpush1.msra.mxu0 0.0
  %1917 = vmatprep.subr.mxu0 0.0
  %1918 = vmatpush1.msra.mxu0 0.0
  %1919 = vmatprep.subr.mxu0 0.0
  %1920 = vmatpush1.msra.mxu0 0.0
  %1921 = vmatprep.subr.mxu0 0.0
  %1922 = vmatpush1.msra.mxu0 0.0
  %1923 = vmatprep.subr.mxu0 0.0
  %1924 = vmatpush1.msra.mxu0 0.0
  %1925 = vmatprep.subr.mxu0 0.0
  %1926 = vmatpush1.msra.mxu0 0.0
  %1927 = vmatprep.subr.mxu0 0.0
  %1928 = vmatpush1.msra.mxu0 0.0
  %1929 = vmatprep.subr.mxu0 0.0
  %1930 = vmatpush1.msra.mxu0 0.0
  %1931 = vmatprep.subr.mxu0 0.0
  %1932 = vmatpush1.msra.mxu0 0.0
  %1933 = vmatprep.subr.mxu0 0.0
  %1934 = vmatpush1.msra.mxu0 0.0
  %1935 = vmatprep.subr.mxu0 0.0
  %1936 = vmatpush1.msra.mxu0 0.0
  %1937 = vmatprep.subr.mxu0 0.0
  %1938 = vmatpush1.msra.mxu0 0.0
  %1939 = vmatprep.subr.mxu0 0.0
  %1940 = vmatpush1.msra.mxu0 0.0
  %1941 = vmatprep.subr.mxu0 0.0
  %1942 = vmatpush1.msra.mxu0 0.0
  %1943 = vmatprep.subr.mxu0 0.0
  %1944 = vmatpush1.msra.mxu0 0.0
  %1945 = vmatprep.subr.mxu0 0.0
  %1946 = vmatpush1.msra.mxu0 0.0
  %1947 = vmatprep.subr.mxu0 0.0
  %1948 = vmatpush1.msra.mxu0 0.0
  %1949 = vmatprep.subr.mxu0 0.0
  %1950 = vmatpush1.msra.mxu0 0.0
  %1951 = vmatprep.subr.mxu0 0.0
  %1952 = vmatpush1.msra.mxu0 0.0
  %1953 = vmatprep.mubr.f32.mxu0 0.0
  %1954 = vmatmul.mubr.f32.gmra.mrb[0].mxu0 %v1390
  %v1955 = vpop.f32.mrb[0].mxu0
  %v1956 = vadd.f32 %v1885, %v1955
  %v1957 = vpop.f32.mrb[0].mxu0
  %v1958 = vadd.f32 %v1887, %v1957
  %1959 = vdwg.mxu0
  %1960 = vmatprep.subr.mxu0 %v50
  %1961 = vmatpush1.msra.mxu0 %v49
  %1962 = vmatprep.subr.mxu0 %v63
  %1963 = vmatpush1.msra.mxu0 %v62
  %1964 = vmatprep.subr.mxu0 %v76
  %1965 = vmatpush1.msra.mxu0 %v75
  %1966 = vmatprep.subr.mxu0 %v89
  %1967 = vmatpush1.msra.mxu0 %v88
  %1968 = vmatprep.subr.mxu0 %v102
  %1969 = vmatpush1.msra.mxu0 %v101
  %1970 = vmatprep.subr.mxu0 %v115
  %1971 = vmatpush1.msra.mxu0 %v114
  %1972 = vmatprep.subr.mxu0 %v128
  %1973 = vmatpush1.msra.mxu0 %v127
  %1974 = vmatprep.subr.mxu0 %v141
  %1975 = vmatpush1.msra.mxu0 %v140
  %1976 = vmatprep.subr.mxu0 %v154
  %1977 = vmatpush1.msra.mxu0 %v153
  %1978 = vmatprep.subr.mxu0 %v167
  %1979 = vmatpush1.msra.mxu0 %v166
  %1980 = vmatprep.subr.mxu0 %v180
  %1981 = vmatpush1.msra.mxu0 %v179
  %1982 = vmatprep.subr.mxu0 %v193
  %1983 = vmatpush1.msra.mxu0 %v192
  %1984 = vmatprep.subr.mxu0 %v206
  %1985 = vmatpush1.msra.mxu0 %v205
  %1986 = vmatprep.subr.mxu0 %v219
  %1987 = vmatpush1.msra.mxu0 %v218
  %1988 = vmatprep.subr.mxu0 %v232
  %1989 = vmatpush1.msra.mxu0 %v231
  %1990 = vmatprep.subr.mxu0 %v245
  %1991 = vmatpush1.msra.mxu0 %v244
  %1992 = vmatprep.subr.mxu0 %v258
  %1993 = vmatpush1.msra.mxu0 %v257
  %1994 = vmatprep.subr.mxu0 %v271
  %1995 = vmatpush1.msra.mxu0 %v270
  %1996 = vmatprep.subr.mxu0 %v284
  %1997 = vmatpush1.msra.mxu0 %v283
  %1998 = vmatprep.subr.mxu0 %v297
  %1999 = vmatpush1.msra.mxu0 %v296
  %2000 = vmatprep.subr.mxu0 %v310
  %2001 = vmatpush1.msra.mxu0 %v309
  %2002 = vmatprep.subr.mxu0 %v323
  %2003 = vmatpush1.msra.mxu0 %v322
  %2004 = vmatprep.subr.mxu0 %v336
  %2005 = vmatpush1.msra.mxu0 %v335
  %2006 = vmatprep.subr.mxu0 %v349
  %2007 = vmatpush1.msra.mxu0 %v348
  %2008 = vmatprep.subr.mxu0 %v362
  %2009 = vmatpush1.msra.mxu0 %v361
  %2010 = vmatprep.subr.mxu0 %v375
  %2011 = vmatpush1.msra.mxu0 %v374
  %2012 = vmatprep.subr.mxu0 %v388
  %2013 = vmatpush1.msra.mxu0 %v387
  %2014 = vmatprep.subr.mxu0 %v401
  %2015 = vmatpush1.msra.mxu0 %v400
  %2016 = vmatprep.subr.mxu0 %v414
  %2017 = vmatpush1.msra.mxu0 %v413
  %2018 = vmatprep.subr.mxu0 %v427
  %2019 = vmatpush1.msra.mxu0 %v426
  %2020 = vmatprep.subr.mxu0 %v440
  %2021 = vmatpush1.msra.mxu0 %v439
  %2022 = vmatprep.subr.mxu0 %v453
  %2023 = vmatpush1.msra.mxu0 %v452
  %2024 = vmatprep.mubr.f32.mxu0 %v39
  %2025 = vmatmul.mubr.f32.gmra.mrb[0].mxu0 %v38
  %v2026 = vpop.f32.mrb[0].mxu0
  %v2027 = vadd.f32 %v1342, %v2026
  %v2028 = vpop.f32.mrb[0].mxu0
  %v2029 = vadd.f32 %v1346, %v2028
  %2030 = vdwg.mxu0
  %2031 = vmatprep.subr.mxu0 %v466
  %2032 = vmatpush1.msra.mxu0 %v465
  %2033 = vmatprep.subr.mxu0 %v479
  %2034 = vmatpush1.msra.mxu0 %v478
  %2035 = vmatprep.subr.mxu0 %v492
  %2036 = vmatpush1.msra.mxu0 %v491
  %2037 = vmatprep.subr.mxu0 %v505
  %2038 = vmatpush1.msra.mxu0 %v504
  %2039 = vmatprep.subr.mxu0 %v518
  %2040 = vmatpush1.msra.mxu0 %v517
  %2041 = vmatprep.subr.mxu0 %v531
  %2042 = vmatpush1.msra.mxu0 %v530
  %2043 = vmatprep.subr.mxu0 %v544
  %2044 = vmatpush1.msra.mxu0 %v543
  %2045 = vmatprep.subr.mxu0 %v557
  %2046 = vmatpush1.msra.mxu0 %v556
  %2047 = vmatprep.subr.mxu0 %v570
  %2048 = vmatpush1.msra.mxu0 %v569
  %2049 = vmatprep.subr.mxu0 %v583
  %2050 = vmatpush1.msra.mxu0 %v582
  %2051 = vmatprep.subr.mxu0 %v596
  %2052 = vmatpush1.msra.mxu0 %v595
  %2053 = vmatprep.subr.mxu0 %v609
  %2054 = vmatpush1.msra.mxu0 %v608
  %2055 = vmatprep.subr.mxu0 %v622
  %2056 = vmatpush1.msra.mxu0 %v621
  %2057 = vmatprep.subr.mxu0 %v635
  %2058 = vmatpush1.msra.mxu0 %v634
  %2059 = vmatprep.subr.mxu0 %v648
  %2060 = vmatpush1.msra.mxu0 %v647
  %2061 = vmatprep.subr.mxu0 %v661
  %2062 = vmatpush1.msra.mxu0 %v660
  %2063 = vmatprep.subr.mxu0 %v674
  %2064 = vmatpush1.msra.mxu0 %v673
  %2065 = vmatprep.subr.mxu0 %v687
  %2066 = vmatpush1.msra.mxu0 %v686
  %2067 = vmatprep.subr.mxu0 %v700
  %2068 = vmatpush1.msra.mxu0 %v699
  %2069 = vmatprep.subr.mxu0 %v713
  %2070 = vmatpush1.msra.mxu0 %v712
  %2071 = vmatprep.subr.mxu0 %v726
  %2072 = vmatpush1.msra.mxu0 %v725
  %2073 = vmatprep.subr.mxu0 %v739
  %2074 = vmatpush1.msra.mxu0 %v738
  %2075 = vmatprep.subr.mxu0 %v752
  %2076 = vmatpush1.msra.mxu0 %v751
  %2077 = vmatprep.subr.mxu0 %v765
  %2078 = vmatpush1.msra.mxu0 %v764
  %2079 = vmatprep.subr.mxu0 %v778
  %2080 = vmatpush1.msra.mxu0 %v777
  %2081 = vmatprep.subr.mxu0 %v791
  %2082 = vmatpush1.msra.mxu0 %v790
  %2083 = vmatprep.subr.mxu0 %v804
  %2084 = vmatpush1.msra.mxu0 %v803
  %2085 = vmatprep.subr.mxu0 %v817
  %2086 = vmatpush1.msra.mxu0 %v816
  %2087 = vmatprep.subr.mxu0 %v830
  %2088 = vmatpush1.msra.mxu0 %v829
  %2089 = vmatprep.subr.mxu0 %v843
  %2090 = vmatpush1.msra.mxu0 %v842
  %2091 = vmatprep.subr.mxu0 %v856
  %2092 = vmatpush1.msra.mxu0 %v855
  %2093 = vmatprep.subr.mxu0 %v869
  %2094 = vmatpush1.msra.mxu0 %v868
  %2095 = vmatprep.mubr.f32.mxu0 %v41
  %2096 = vmatmul.mubr.f32.gmra.mrb[0].mxu0 %v40
  %v2097 = vpop.f32.mrb[0].mxu0
  %v2098 = vadd.f32 %v2027, %v2097
  %v2099 = vpop.f32.mrb[0].mxu0
  %v2100 = vadd.f32 %v2029, %v2099
  %2101 = vdwg.mxu0
  %2102 = vmatprep.subr.mxu0 %v882
  %2103 = vmatpush1.msra.mxu0 %v881
  %2104 = vmatprep.subr.mxu0 %v895
  %2105 = vmatpush1.msra.mxu0 %v894
  %2106 = vmatprep.subr.mxu0 %v908
  %2107 = vmatpush1.msra.mxu0 %v907
  %2108 = vmatprep.subr.mxu0 %v921
  %2109 = vmatpush1.msra.mxu0 %v920
  %2110 = vmatprep.subr.mxu0 %v934
  %2111 = vmatpush1.msra.mxu0 %v933
  %2112 = vmatprep.subr.mxu0 %v947
  %2113 = vmatpush1.msra.mxu0 %v946
  %2114 = vmatprep.subr.mxu0 %v960
  %2115 = vmatpush1.msra.mxu0 %v959
  %2116 = vmatprep.subr.mxu0 %v973
  %2117 = vmatpush1.msra.mxu0 %v972
  %2118 = vmatprep.subr.mxu0 %v986
  %2119 = vmatpush1.msra.mxu0 %v985
  %2120 = vmatprep.subr.mxu0 %v999
  %2121 = vmatpush1.msra.mxu0 %v998
  %2122 = vmatprep.subr.mxu0 %v1012
  %2123 = vmatpush1.msra.mxu0 %v1011
  %2124 = vmatprep.subr.mxu0 %v1025
  %2125 = vmatpush1.msra.mxu0 %v1024
  %2126 = vmatprep.subr.mxu0 %v1038
  %2127 = vmatpush1.msra.mxu0 %v1037
  %2128 = vmatprep.subr.mxu0 %v1051
  %2129 = vmatpush1.msra.mxu0 %v1050
  %2130 = vmatprep.subr.mxu0 %v1064
  %2131 = vmatpush1.msra.mxu0 %v1063
  %2132 = vmatprep.subr.mxu0 %v1077
  %2133 = vmatpush1.msra.mxu0 %v1076
  %2134 = vmatprep.subr.mxu0 %v1090
  %2135 = vmatpush1.msra.mxu0 %v1089
  %2136 = vmatprep.subr.mxu0 %v1103
  %2137 = vmatpush1.msra.mxu0 %v1102
  %2138 = vmatprep.subr.mxu0 %v1116
  %2139 = vmatpush1.msra.mxu0 %v1115
  %2140 = vmatprep.subr.mxu0 %v1129
  %2141 = vmatpush1.msra.mxu0 %v1128
  %2142 = vmatprep.subr.mxu0 %v1142
  %2143 = vmatpush1.msra.mxu0 %v1141
  %2144 = vmatprep.subr.mxu0 %v1155
  %2145 = vmatpush1.msra.mxu0 %v1154
  %2146 = vmatprep.subr.mxu0 %v1168
  %2147 = vmatpush1.msra.mxu0 %v1167
  %2148 = vmatprep.subr.mxu0 %v1181
  %2149 = vmatpush1.msra.mxu0 %v1180
  %2150 = vmatprep.subr.mxu0 %v1194
  %2151 = vmatpush1.msra.mxu0 %v1193
  %2152 = vmatprep.subr.mxu0 %v1207
  %2153 = vmatpush1.msra.mxu0 %v1206
  %2154 = vmatprep.subr.mxu0 %v1220
  %2155 = vmatpush1.msra.mxu0 %v1219
  %2156 = vmatprep.subr.mxu0 %v1233
  %2157 = vmatpush1.msra.mxu0 %v1232
  %2158 = vmatprep.subr.mxu0 %v1246
  %2159 = vmatpush1.msra.mxu0 %v1245
  %2160 = vmatprep.subr.mxu0 %v1259
  %2161 = vmatpush1.msra.mxu0 %v1258
  %2162 = vmatprep.subr.mxu0 %v1272
  %2163 = vmatpush1.msra.mxu0 %v1271
  %2164 = vmatprep.subr.mxu0 %v1285
  %2165 = vmatpush1.msra.mxu0 %v1284
  %2166 = vmatprep.mubr.f32.mxu0 %v43
  %2167 = vmatmul.mubr.f32.gmra.mrb[0].mxu0 %v42
  %v2168 = vpop.f32.mrb[0].mxu0
  %v2169 = vadd.f32 %v2098, %v2168
  %v2170 = vpop.f32.mrb[0].mxu0
  %v2171 = vadd.f32 %v2100, %v2170
  %2172 = vdwg.mxu0
  %2173 = vmatprep.subr.mxu0 %v1298
  %2174 = vmatpush1.msra.mxu0 %v1297
  %2175 = vmatprep.subr.mxu0 %v1311
  %2176 = vmatpush1.msra.mxu0 %v1310
  %2177 = vmatprep.subr.mxu0 0.0
  %2178 = vmatpush1.msra.mxu0 0.0
  %2179 = vmatprep.subr.mxu0 0.0
  %2180 = vmatpush1.msra.mxu0 0.0
  %2181 = vmatprep.subr.mxu0 0.0
  %2182 = vmatpush1.msra.mxu0 0.0
  %2183 = vmatprep.subr.mxu0 0.0
  %2184 = vmatpush1.msra.mxu0 0.0
  %2185 = vmatprep.subr.mxu0 0.0
  %2186 = vmatpush1.msra.mxu0 0.0
  %2187 = vmatprep.subr.mxu0 0.0
  %2188 = vmatpush1.msra.mxu0 0.0
  %2189 = vmatprep.subr.mxu0 0.0
  %2190 = vmatpush1.msra.mxu0 0.0
  %2191 = vmatprep.subr.mxu0 0.0
  %2192 = vmatpush1.msra.mxu0 0.0
  %2193 = vmatprep.subr.mxu0 0.0
  %2194 = vmatpush1.msra.mxu0 0.0
  %2195 = vmatprep.subr.mxu0 0.0
  %2196 = vmatpush1.msra.mxu0 0.0
  %2197 = vmatprep.subr.mxu0 0.0
  %2198 = vmatpush1.msra.mxu0 0.0
  %2199 = vmatprep.subr.mxu0 0.0
  %2200 = vmatpush1.msra.mxu0 0.0
  %2201 = vmatprep.subr.mxu0 0.0
  %2202 = vmatpush1.msra.mxu0 0.0
  %2203 = vmatprep.subr.mxu0 0.0
  %2204 = vmatpush1.msra.mxu0 0.0
  %2205 = vmatprep.subr.mxu0 0.0
  %2206 = vmatpush1.msra.mxu0 0.0
  %2207 = vmatprep.subr.mxu0 0.0
  %2208 = vmatpush1.msra.mxu0 0.0
  %2209 = vmatprep.subr.mxu0 0.0
  %2210 = vmatpush1.msra.mxu0 0.0
  %2211 = vmatprep.subr.mxu0 0.0
  %2212 = vmatpush1.msra.mxu0 0.0
  %2213 = vmatprep.subr.mxu0 0.0
  %2214 = vmatpush1.msra.mxu0 0.0
  %2215 = vmatprep.subr.mxu0 0.0
  %2216 = vmatpush1.msra.mxu0 0.0
  %2217 = vmatprep.subr.mxu0 0.0
  %2218 = vmatpush1.msra.mxu0 0.0
  %2219 = vmatprep.subr.mxu0 0.0
  %2220 = vmatpush1.msra.mxu0 0.0
  %2221 = vmatprep.subr.mxu0 0.0
  %2222 = vmatpush1.msra.mxu0 0.0
  %2223 = vmatprep.subr.mxu0 0.0
  %2224 = vmatpush1.msra.mxu0 0.0
  %2225 = vmatprep.subr.mxu0 0.0
  %2226 = vmatpush1.msra.mxu0 0.0
  %2227 = vmatprep.subr.mxu0 0.0
  %2228 = vmatpush1.msra.mxu0 0.0
  %2229 = vmatprep.subr.mxu0 0.0
  %2230 = vmatpush1.msra.mxu0 0.0
  %2231 = vmatprep.subr.mxu0 0.0
  %2232 = vmatpush1.msra.mxu0 0.0
  %2233 = vmatprep.subr.mxu0 0.0
  %2234 = vmatpush1.msra.mxu0 0.0
  %2235 = vmatprep.subr.mxu0 0.0
  %2236 = vmatpush1.msra.mxu0 0.0
  %2237 = vmatprep.mubr.f32.mxu0 0.0
  %2238 = vmatmul.mubr.f32.gmra.mrb[0].mxu0 %v1390
  %v2239 = vpop.f32.mrb[0].mxu0
  %v2240 = vadd.f32 %v2169, %v2239
  %v2241 = vpop.f32.mrb[0].mxu0
  %v2242 = vadd.f32 %v2171, %v2241
  %2243 = vdwg.mxu0
  %2244 = vmatprep.subr.mxu0 %v52
  %2245 = vmatpush1.msra.mxu0 %v51
  %2246 = vmatprep.subr.mxu0 %v65
  %2247 = vmatpush1.msra.mxu0 %v64
  %2248 = vmatprep.subr.mxu0 %v78
  %2249 = vmatpush1.msra.mxu0 %v77
  %2250 = vmatprep.subr.mxu0 %v91
  %2251 = vmatpush1.msra.mxu0 %v90
  %2252 = vmatprep.subr.mxu0 %v104
  %2253 = vmatpush1.msra.mxu0 %v103
  %2254 = vmatprep.subr.mxu0 %v117
  %2255 = vmatpush1.msra.mxu0 %v116
  %2256 = vmatprep.subr.mxu0 %v130
  %2257 = vmatpush1.msra.mxu0 %v129
  %2258 = vmatprep.subr.mxu0 %v143
  %2259 = vmatpush1.msra.mxu0 %v142
  %2260 = vmatprep.subr.mxu0 %v156
  %2261 = vmatpush1.msra.mxu0 %v155
  %2262 = vmatprep.subr.mxu0 %v169
  %2263 = vmatpush1.msra.mxu0 %v168
  %2264 = vmatprep.subr.mxu0 %v182
  %2265 = vmatpush1.msra.mxu0 %v181
  %2266 = vmatprep.subr.mxu0 %v195
  %2267 = vmatpush1.msra.mxu0 %v194
  %2268 = vmatprep.subr.mxu0 %v208
  %2269 = vmatpush1.msra.mxu0 %v207
  %2270 = vmatprep.subr.mxu0 %v221
  %2271 = vmatpush1.msra.mxu0 %v220
  %2272 = vmatprep.subr.mxu0 %v234
  %2273 = vmatpush1.msra.mxu0 %v233
  %2274 = vmatprep.subr.mxu0 %v247
  %2275 = vmatpush1.msra.mxu0 %v246
  %2276 = vmatprep.subr.mxu0 %v260
  %2277 = vmatpush1.msra.mxu0 %v259
  %2278 = vmatprep.subr.mxu0 %v273
  %2279 = vmatpush1.msra.mxu0 %v272
  %2280 = vmatprep.subr.mxu0 %v286
  %2281 = vmatpush1.msra.mxu0 %v285
  %2282 = vmatprep.subr.mxu0 %v299
  %2283 = vmatpush1.msra.mxu0 %v298
  %2284 = vmatprep.subr.mxu0 %v312
  %2285 = vmatpush1.msra.mxu0 %v311
  %2286 = vmatprep.subr.mxu0 %v325
  %2287 = vmatpush1.msra.mxu0 %v324
  %2288 = vmatprep.subr.mxu0 %v338
  %2289 = vmatpush1.msra.mxu0 %v337
  %2290 = vmatprep.subr.mxu0 %v351
  %2291 = vmatpush1.msra.mxu0 %v350
  %2292 = vmatprep.subr.mxu0 %v364
  %2293 = vmatpush1.msra.mxu0 %v363
  %2294 = vmatprep.subr.mxu0 %v377
  %2295 = vmatpush1.msra.mxu0 %v376
  %2296 = vmatprep.subr.mxu0 %v390
  %2297 = vmatpush1.msra.mxu0 %v389
  %2298 = vmatprep.subr.mxu0 %v403
  %2299 = vmatpush1.msra.mxu0 %v402
  %2300 = vmatprep.subr.mxu0 %v416
  %2301 = vmatpush1.msra.mxu0 %v415
  %2302 = vmatprep.subr.mxu0 %v429
  %2303 = vmatpush1.msra.mxu0 %v428
  %2304 = vmatprep.subr.mxu0 %v442
  %2305 = vmatpush1.msra.mxu0 %v441
  %2306 = vmatprep.subr.mxu0 %v455
  %2307 = vmatpush1.msra.mxu0 %v454
  %2308 = vmatprep.mubr.f32.mxu0 %v39
  %2309 = vmatmul.mubr.f32.gmra.mrb[0].mxu0 %v38
  %v2310 = vpop.f32.mrb[0].mxu0
  %v2311 = vadd.f32 %v1350, %v2310
  %v2312 = vpop.f32.mrb[0].mxu0
  %v2313 = vadd.f32 %v1354, %v2312
  %2314 = vdwg.mxu0
  %2315 = vmatprep.subr.mxu0 %v468
  %2316 = vmatpush1.msra.mxu0 %v467
  %2317 = vmatprep.subr.mxu0 %v481
  %2318 = vmatpush1.msra.mxu0 %v480
  %2319 = vmatprep.subr.mxu0 %v494
  %2320 = vmatpush1.msra.mxu0 %v493
  %2321 = vmatprep.subr.mxu0 %v507
  %2322 = vmatpush1.msra.mxu0 %v506
  %2323 = vmatprep.subr.mxu0 %v520
  %2324 = vmatpush1.msra.mxu0 %v519
  %2325 = vmatprep.subr.mxu0 %v533
  %2326 = vmatpush1.msra.mxu0 %v532
  %2327 = vmatprep.subr.mxu0 %v546
  %2328 = vmatpush1.msra.mxu0 %v545
  %2329 = vmatprep.subr.mxu0 %v559
  %2330 = vmatpush1.msra.mxu0 %v558
  %2331 = vmatprep.subr.mxu0 %v572
  %2332 = vmatpush1.msra.mxu0 %v571
  %2333 = vmatprep.subr.mxu0 %v585
  %2334 = vmatpush1.msra.mxu0 %v584
  %2335 = vmatprep.subr.mxu0 %v598
  %2336 = vmatpush1.msra.mxu0 %v597
  %2337 = vmatprep.subr.mxu0 %v611
  %2338 = vmatpush1.msra.mxu0 %v610
  %2339 = vmatprep.subr.mxu0 %v624
  %2340 = vmatpush1.msra.mxu0 %v623
  %2341 = vmatprep.subr.mxu0 %v637
  %2342 = vmatpush1.msra.mxu0 %v636
  %2343 = vmatprep.subr.mxu0 %v650
  %2344 = vmatpush1.msra.mxu0 %v649
  %2345 = vmatprep.subr.mxu0 %v663
  %2346 = vmatpush1.msra.mxu0 %v662
  %2347 = vmatprep.subr.mxu0 %v676
  %2348 = vmatpush1.msra.mxu0 %v675
  %2349 = vmatprep.subr.mxu0 %v689
  %2350 = vmatpush1.msra.mxu0 %v688
  %2351 = vmatprep.subr.mxu0 %v702
  %2352 = vmatpush1.msra.mxu0 %v701
  %2353 = vmatprep.subr.mxu0 %v715
  %2354 = vmatpush1.msra.mxu0 %v714
  %2355 = vmatprep.subr.mxu0 %v728
  %2356 = vmatpush1.msra.mxu0 %v727
  %2357 = vmatprep.subr.mxu0 %v741
  %2358 = vmatpush1.msra.mxu0 %v740
  %2359 = vmatprep.subr.mxu0 %v754
  %2360 = vmatpush1.msra.mxu0 %v753
  %2361 = vmatprep.subr.mxu0 %v767
  %2362 = vmatpush1.msra.mxu0 %v766
  %2363 = vmatprep.subr.mxu0 %v780
  %2364 = vmatpush1.msra.mxu0 %v779
  %2365 = vmatprep.subr.mxu0 %v793
  %2366 = vmatpush1.msra.mxu0 %v792
  %2367 = vmatprep.subr.mxu0 %v806
  %2368 = vmatpush1.msra.mxu0 %v805
  %2369 = vmatprep.subr.mxu0 %v819
  %2370 = vmatpush1.msra.mxu0 %v818
  %2371 = vmatprep.subr.mxu0 %v832
  %2372 = vmatpush1.msra.mxu0 %v831
  %2373 = vmatprep.subr.mxu0 %v845
  %2374 = vmatpush1.msra.mxu0 %v844
  %2375 = vmatprep.subr.mxu0 %v858
  %2376 = vmatpush1.msra.mxu0 %v857
  %2377 = vmatprep.subr.mxu0 %v871
  %2378 = vmatpush1.msra.mxu0 %v870
  %2379 = vmatprep.mubr.f32.mxu0 %v41
  %2380 = vmatmul.mubr.f32.gmra.mrb[0].mxu0 %v40
  %v2381 = vpop.f32.mrb[0].mxu0
  %v2382 = vadd.f32 %v2311, %v2381
  %v2383 = vpop.f32.mrb[0].mxu0
  %v2384 = vadd.f32 %v2313, %v2383
  %2385 = vdwg.mxu0
  %2386 = vmatprep.subr.mxu0 %v884
  %2387 = vmatpush1.msra.mxu0 %v883
  %2388 = vmatprep.subr.mxu0 %v897
  %2389 = vmatpush1.msra.mxu0 %v896
  %2390 = vmatprep.subr.mxu0 %v910
  %2391 = vmatpush1.msra.mxu0 %v909
  %2392 = vmatprep.subr.mxu0 %v923
  %2393 = vmatpush1.msra.mxu0 %v922
  %2394 = vmatprep.subr.mxu0 %v936
  %2395 = vmatpush1.msra.mxu0 %v935
  %2396 = vmatprep.subr.mxu0 %v949
  %2397 = vmatpush1.msra.mxu0 %v948
  %2398 = vmatprep.subr.mxu0 %v962
  %2399 = vmatpush1.msra.mxu0 %v961
  %2400 = vmatprep.subr.mxu0 %v975
  %2401 = vmatpush1.msra.mxu0 %v974
  %2402 = vmatprep.subr.mxu0 %v988
  %2403 = vmatpush1.msra.mxu0 %v987
  %2404 = vmatprep.subr.mxu0 %v1001
  %2405 = vmatpush1.msra.mxu0 %v1000
  %2406 = vmatprep.subr.mxu0 %v1014
  %2407 = vmatpush1.msra.mxu0 %v1013
  %2408 = vmatprep.subr.mxu0 %v1027
  %2409 = vmatpush1.msra.mxu0 %v1026
  %2410 = vmatprep.subr.mxu0 %v1040
  %2411 = vmatpush1.msra.mxu0 %v1039
  %2412 = vmatprep.subr.mxu0 %v1053
  %2413 = vmatpush1.msra.mxu0 %v1052
  %2414 = vmatprep.subr.mxu0 %v1066
  %2415 = vmatpush1.msra.mxu0 %v1065
  %2416 = vmatprep.subr.mxu0 %v1079
  %2417 = vmatpush1.msra.mxu0 %v1078
  %2418 = vmatprep.subr.mxu0 %v1092
  %2419 = vmatpush1.msra.mxu0 %v1091
  %2420 = vmatprep.subr.mxu0 %v1105
  %2421 = vmatpush1.msra.mxu0 %v1104
  %2422 = vmatprep.subr.mxu0 %v1118
  %2423 = vmatpush1.msra.mxu0 %v1117
  %2424 = vmatprep.subr.mxu0 %v1131
  %2425 = vmatpush1.msra.mxu0 %v1130
  %2426 = vmatprep.subr.mxu0 %v1144
  %2427 = vmatpush1.msra.mxu0 %v1143
  %2428 = vmatprep.subr.mxu0 %v1157
  %2429 = vmatpush1.msra.mxu0 %v1156
  %2430 = vmatprep.subr.mxu0 %v1170
  %2431 = vmatpush1.msra.mxu0 %v1169
  %2432 = vmatprep.subr.mxu0 %v1183
  %2433 = vmatpush1.msra.mxu0 %v1182
  %2434 = vmatprep.subr.mxu0 %v1196
  %2435 = vmatpush1.msra.mxu0 %v1195
  %2436 = vmatprep.subr.mxu0 %v1209
  %2437 = vmatpush1.msra.mxu0 %v1208
  %2438 = vmatprep.subr.mxu0 %v1222
  %2439 = vmatpush1.msra.mxu0 %v1221
  %2440 = vmatprep.subr.mxu0 %v1235
  %2441 = vmatpush1.msra.mxu0 %v1234
  %2442 = vmatprep.subr.mxu0 %v1248
  %2443 = vmatpush1.msra.mxu0 %v1247
  %2444 = vmatprep.subr.mxu0 %v1261
  %2445 = vmatpush1.msra.mxu0 %v1260
  %2446 = vmatprep.subr.mxu0 %v1274
  %2447 = vmatpush1.msra.mxu0 %v1273
  %2448 = vmatprep.subr.mxu0 %v1287
  %2449 = vmatpush1.msra.mxu0 %v1286
  %2450 = vmatprep.mubr.f32.mxu0 %v43
  %2451 = vmatmul.mubr.f32.gmra.mrb[0].mxu0 %v42
  %v2452 = vpop.f32.mrb[0].mxu0
  %v2453 = vadd.f32 %v2382, %v2452
  %v2454 = vpop.f32.mrb[0].mxu0
  %v2455 = vadd.f32 %v2384, %v2454
  %2456 = vdwg.mxu0
  %2457 = vmatprep.subr.mxu0 %v1300
  %2458 = vmatpush1.msra.mxu0 %v1299
  %2459 = vmatprep.subr.mxu0 %v1313
  %2460 = vmatpush1.msra.mxu0 %v1312
  %2461 = vmatprep.subr.mxu0 0.0
  %2462 = vmatpush1.msra.mxu0 0.0
  %2463 = vmatprep.subr.mxu0 0.0
  %2464 = vmatpush1.msra.mxu0 0.0
  %2465 = vmatprep.subr.mxu0 0.0
  %2466 = vmatpush1.msra.mxu0 0.0
  %2467 = vmatprep.subr.mxu0 0.0
  %2468 = vmatpush1.msra.mxu0 0.0
  %2469 = vmatprep.subr.mxu0 0.0
  %2470 = vmatpush1.msra.mxu0 0.0
  %2471 = vmatprep.subr.mxu0 0.0
  %2472 = vmatpush1.msra.mxu0 0.0
  %2473 = vmatprep.subr.mxu0 0.0
  %2474 = vmatpush1.msra.mxu0 0.0
  %2475 = vmatprep.subr.mxu0 0.0
  %2476 = vmatpush1.msra.mxu0 0.0
  %2477 = vmatprep.subr.mxu0 0.0
  %2478 = vmatpush1.msra.mxu0 0.0
  %2479 = vmatprep.subr.mxu0 0.0
  %2480 = vmatpush1.msra.mxu0 0.0
  %2481 = vmatprep.subr.mxu0 0.0
  %2482 = vmatpush1.msra.mxu0 0.0
  %2483 = vmatprep.subr.mxu0 0.0
  %2484 = vmatpush1.msra.mxu0 0.0
  %2485 = vmatprep.subr.mxu0 0.0
  %2486 = vmatpush1.msra.mxu0 0.0
  %2487 = vmatprep.subr.mxu0 0.0
  %2488 = vmatpush1.msra.mxu0 0.0
  %2489 = vmatprep.subr.mxu0 0.0
  %2490 = vmatpush1.msra.mxu0 0.0
  %2491 = vmatprep.subr.mxu0 0.0
  %2492 = vmatpush1.msra.mxu0 0.0
  %2493 = vmatprep.subr.mxu0 0.0
  %2494 = vmatpush1.msra.mxu0 0.0
  %2495 = vmatprep.subr.mxu0 0.0
  %2496 = vmatpush1.msra.mxu0 0.0
  %2497 = vmatprep.subr.mxu0 0.0
  %2498 = vmatpush1.msra.mxu0 0.0
  %2499 = vmatprep.subr.mxu0 0.0
  %2500 = vmatpush1.msra.mxu0 0.0
  %2501 = vmatprep.subr.mxu0 0.0
  %2502 = vmatpush1.msra.mxu0 0.0
  %2503 = vmatprep.subr.mxu0 0.0
  %2504 = vmatpush1.msra.mxu0 0.0
  %2505 = vmatprep.subr.mxu0 0.0
  %2506 = vmatpush1.msra.mxu0 0.0
  %2507 = vmatprep.subr.mxu0 0.0
  %2508 = vmatpush1.msra.mxu0 0.0
  %2509 = vmatprep.subr.mxu0 0.0
  %2510 = vmatpush1.msra.mxu0 0.0
  %2511 = vmatprep.subr.mxu0 0.0
  %2512 = vmatpush1.msra.mxu0 0.0
  %2513 = vmatprep.subr.mxu0 0.0
  %2514 = vmatpush1.msra.mxu0 0.0
  %2515 = vmatprep.subr.mxu0 0.0
  %2516 = vmatpush1.msra.mxu0 0.0
  %2517 = vmatprep.subr.mxu0 0.0
  %2518 = vmatpush1.msra.mxu0 0.0
  %2519 = vmatprep.subr.mxu0 0.0
  %2520 = vmatpush1.msra.mxu0 0.0
  %2521 = vmatprep.mubr.f32.mxu0 0.0
  %2522 = vmatmul.mubr.f32.gmra.mrb[0].mxu0 %v1390
  %v2523 = vpop.f32.mrb[0].mxu0
  %v2524 = vadd.f32 %v2453, %v2523
  %v2525 = vpop.f32.mrb[0].mxu0
  %v2526 = vadd.f32 %v2455, %v2525
  %2527 = vdwg.mxu0
  %2528 = vmatprep.subr.mxu0 %v54
  %2529 = vmatpush1.msra.mxu0 %v53
  %2530 = vmatprep.subr.mxu0 %v67
  %2531 = vmatpush1.msra.mxu0 %v66
  %2532 = vmatprep.subr.mxu0 %v80
  %2533 = vmatpush1.msra.mxu0 %v79
  %2534 = vmatprep.subr.mxu0 %v93
  %2535 = vmatpush1.msra.mxu0 %v92
  %2536 = vmatprep.subr.mxu0 %v106
  %2537 = vmatpush1.msra.mxu0 %v105
  %2538 = vmatprep.subr.mxu0 %v119
  %2539 = vmatpush1.msra.mxu0 %v118
  %2540 = vmatprep.subr.mxu0 %v132
  %2541 = vmatpush1.msra.mxu0 %v131
  %2542 = vmatprep.subr.mxu0 %v145
  %2543 = vmatpush1.msra.mxu0 %v144
  %2544 = vmatprep.subr.mxu0 %v158
  %2545 = vmatpush1.msra.mxu0 %v157
  %2546 = vmatprep.subr.mxu0 %v171
  %2547 = vmatpush1.msra.mxu0 %v170
  %2548 = vmatprep.subr.mxu0 %v184
  %2549 = vmatpush1.msra.mxu0 %v183
  %2550 = vmatprep.subr.mxu0 %v197
  %2551 = vmatpush1.msra.mxu0 %v196
  %2552 = vmatprep.subr.mxu0 %v210
  %2553 = vmatpush1.msra.mxu0 %v209
  %2554 = vmatprep.subr.mxu0 %v223
  %2555 = vmatpush1.msra.mxu0 %v222
  %2556 = vmatprep.subr.mxu0 %v236
  %2557 = vmatpush1.msra.mxu0 %v235
  %2558 = vmatprep.subr.mxu0 %v249
  %2559 = vmatpush1.msra.mxu0 %v248
  %2560 = vmatprep.subr.mxu0 %v262
  %2561 = vmatpush1.msra.mxu0 %v261
  %2562 = vmatprep.subr.mxu0 %v275
  %2563 = vmatpush1.msra.mxu0 %v274
  %2564 = vmatprep.subr.mxu0 %v288
  %2565 = vmatpush1.msra.mxu0 %v287
  %2566 = vmatprep.subr.mxu0 %v301
  %2567 = vmatpush1.msra.mxu0 %v300
  %2568 = vmatprep.subr.mxu0 %v314
  %2569 = vmatpush1.msra.mxu0 %v313
  %2570 = vmatprep.subr.mxu0 %v327
  %2571 = vmatpush1.msra.mxu0 %v326
  %2572 = vmatprep.subr.mxu0 %v340
  %2573 = vmatpush1.msra.mxu0 %v339
  %2574 = vmatprep.subr.mxu0 %v353
  %2575 = vmatpush1.msra.mxu0 %v352
  %2576 = vmatprep.subr.mxu0 %v366
  %2577 = vmatpush1.msra.mxu0 %v365
  %2578 = vmatprep.subr.mxu0 %v379
  %2579 = vmatpush1.msra.mxu0 %v378
  %2580 = vmatprep.subr.mxu0 %v392
  %2581 = vmatpush1.msra.mxu0 %v391
  %2582 = vmatprep.subr.mxu0 %v405
  %2583 = vmatpush1.msra.mxu0 %v404
  %2584 = vmatprep.subr.mxu0 %v418
  %2585 = vmatpush1.msra.mxu0 %v417
  %2586 = vmatprep.subr.mxu0 %v431
  %2587 = vmatpush1.msra.mxu0 %v430
  %2588 = vmatprep.subr.mxu0 %v444
  %2589 = vmatpush1.msra.mxu0 %v443
  %2590 = vmatprep.subr.mxu0 %v457
  %2591 = vmatpush1.msra.mxu0 %v456
  %2592 = vmatprep.mubr.f32.mxu0 %v39
  %2593 = vmatmul.mubr.f32.gmra.mrb[0].mxu0 %v38
  %v2594 = vpop.f32.mrb[0].mxu0
  %v2595 = vadd.f32 %v1358, %v2594
  %v2596 = vpop.f32.mrb[0].mxu0
  %v2597 = vadd.f32 %v1362, %v2596
  %2598 = vdwg.mxu0
  %2599 = vmatprep.subr.mxu0 %v470
  %2600 = vmatpush1.msra.mxu0 %v469
  %2601 = vmatprep.subr.mxu0 %v483
  %2602 = vmatpush1.msra.mxu0 %v482
  %2603 = vmatprep.subr.mxu0 %v496
  %2604 = vmatpush1.msra.mxu0 %v495
  %2605 = vmatprep.subr.mxu0 %v509
  %2606 = vmatpush1.msra.mxu0 %v508
  %2607 = vmatprep.subr.mxu0 %v522
  %2608 = vmatpush1.msra.mxu0 %v521
  %2609 = vmatprep.subr.mxu0 %v535
  %2610 = vmatpush1.msra.mxu0 %v534
  %2611 = vmatprep.subr.mxu0 %v548
  %2612 = vmatpush1.msra.mxu0 %v547
  %2613 = vmatprep.subr.mxu0 %v561
  %2614 = vmatpush1.msra.mxu0 %v560
  %2615 = vmatprep.subr.mxu0 %v574
  %2616 = vmatpush1.msra.mxu0 %v573
  %2617 = vmatprep.subr.mxu0 %v587
  %2618 = vmatpush1.msra.mxu0 %v586
  %2619 = vmatprep.subr.mxu0 %v600
  %2620 = vmatpush1.msra.mxu0 %v599
  %2621 = vmatprep.subr.mxu0 %v613
  %2622 = vmatpush1.msra.mxu0 %v612
  %2623 = vmatprep.subr.mxu0 %v626
  %2624 = vmatpush1.msra.mxu0 %v625
  %2625 = vmatprep.subr.mxu0 %v639
  %2626 = vmatpush1.msra.mxu0 %v638
  %2627 = vmatprep.subr.mxu0 %v652
  %2628 = vmatpush1.msra.mxu0 %v651
  %2629 = vmatprep.subr.mxu0 %v665
  %2630 = vmatpush1.msra.mxu0 %v664
  %2631 = vmatprep.subr.mxu0 %v678
  %2632 = vmatpush1.msra.mxu0 %v677
  %2633 = vmatprep.subr.mxu0 %v691
  %2634 = vmatpush1.msra.mxu0 %v690
  %2635 = vmatprep.subr.mxu0 %v704
  %2636 = vmatpush1.msra.mxu0 %v703
  %2637 = vmatprep.subr.mxu0 %v717
  %2638 = vmatpush1.msra.mxu0 %v716
  %2639 = vmatprep.subr.mxu0 %v730
  %2640 = vmatpush1.msra.mxu0 %v729
  %2641 = vmatprep.subr.mxu0 %v743
  %2642 = vmatpush1.msra.mxu0 %v742
  %2643 = vmatprep.subr.mxu0 %v756
  %2644 = vmatpush1.msra.mxu0 %v755
  %2645 = vmatprep.subr.mxu0 %v769
  %2646 = vmatpush1.msra.mxu0 %v768
  %2647 = vmatprep.subr.mxu0 %v782
  %2648 = vmatpush1.msra.mxu0 %v781
  %2649 = vmatprep.subr.mxu0 %v795
  %2650 = vmatpush1.msra.mxu0 %v794
  %2651 = vmatprep.subr.mxu0 %v808
  %2652 = vmatpush1.msra.mxu0 %v807
  %2653 = vmatprep.subr.mxu0 %v821
  %2654 = vmatpush1.msra.mxu0 %v820
  %2655 = vmatprep.subr.mxu0 %v834
  %2656 = vmatpush1.msra.mxu0 %v833
  %2657 = vmatprep.subr.mxu0 %v847
  %2658 = vmatpush1.msra.mxu0 %v846
  %2659 = vmatprep.subr.mxu0 %v860
  %2660 = vmatpush1.msra.mxu0 %v859
  %2661 = vmatprep.subr.mxu0 %v873
  %2662 = vmatpush1.msra.mxu0 %v872
  %2663 = vmatprep.mubr.f32.mxu0 %v41
  %2664 = vmatmul.mubr.f32.gmra.mrb[0].mxu0 %v40
  %v2665 = vpop.f32.mrb[0].mxu0
  %v2666 = vadd.f32 %v2595, %v2665
  %v2667 = vpop.f32.mrb[0].mxu0
  %v2668 = vadd.f32 %v2597, %v2667
  %2669 = vdwg.mxu0
  %2670 = vmatprep.subr.mxu0 %v886
  %2671 = vmatpush1.msra.mxu0 %v885
  %2672 = vmatprep.subr.mxu0 %v899
  %2673 = vmatpush1.msra.mxu0 %v898
  %2674 = vmatprep.subr.mxu0 %v912
  %2675 = vmatpush1.msra.mxu0 %v911
  %2676 = vmatprep.subr.mxu0 %v925
  %2677 = vmatpush1.msra.mxu0 %v924
  %2678 = vmatprep.subr.mxu0 %v938
  %2679 = vmatpush1.msra.mxu0 %v937
  %2680 = vmatprep.subr.mxu0 %v951
  %2681 = vmatpush1.msra.mxu0 %v950
  %2682 = vmatprep.subr.mxu0 %v964
  %2683 = vmatpush1.msra.mxu0 %v963
  %2684 = vmatprep.subr.mxu0 %v977
  %2685 = vmatpush1.msra.mxu0 %v976
  %2686 = vmatprep.subr.mxu0 %v990
  %2687 = vmatpush1.msra.mxu0 %v989
  %2688 = vmatprep.subr.mxu0 %v1003
  %2689 = vmatpush1.msra.mxu0 %v1002
  %2690 = vmatprep.subr.mxu0 %v1016
  %2691 = vmatpush1.msra.mxu0 %v1015
  %2692 = vmatprep.subr.mxu0 %v1029
  %2693 = vmatpush1.msra.mxu0 %v1028
  %2694 = vmatprep.subr.mxu0 %v1042
  %2695 = vmatpush1.msra.mxu0 %v1041
  %2696 = vmatprep.subr.mxu0 %v1055
  %2697 = vmatpush1.msra.mxu0 %v1054
  %2698 = vmatprep.subr.mxu0 %v1068
  %2699 = vmatpush1.msra.mxu0 %v1067
  %2700 = vmatprep.subr.mxu0 %v1081
  %2701 = vmatpush1.msra.mxu0 %v1080
  %2702 = vmatprep.subr.mxu0 %v1094
  %2703 = vmatpush1.msra.mxu0 %v1093
  %2704 = vmatprep.subr.mxu0 %v1107
  %2705 = vmatpush1.msra.mxu0 %v1106
  %2706 = vmatprep.subr.mxu0 %v1120
  %2707 = vmatpush1.msra.mxu0 %v1119
  %2708 = vmatprep.subr.mxu0 %v1133
  %2709 = vmatpush1.msra.mxu0 %v1132
  %2710 = vmatprep.subr.mxu0 %v1146
  %2711 = vmatpush1.msra.mxu0 %v1145
  %2712 = vmatprep.subr.mxu0 %v1159
  %2713 = vmatpush1.msra.mxu0 %v1158
  %2714 = vmatprep.subr.mxu0 %v1172
  %2715 = vmatpush1.msra.mxu0 %v1171
  %2716 = vmatprep.subr.mxu0 %v1185
  %2717 = vmatpush1.msra.mxu0 %v1184
  %2718 = vmatprep.subr.mxu0 %v1198
  %2719 = vmatpush1.msra.mxu0 %v1197
  %2720 = vmatprep.subr.mxu0 %v1211
  %2721 = vmatpush1.msra.mxu0 %v1210
  %2722 = vmatprep.subr.mxu0 %v1224
  %2723 = vmatpush1.msra.mxu0 %v1223
  %2724 = vmatprep.subr.mxu0 %v1237
  %2725 = vmatpush1.msra.mxu0 %v1236
  %2726 = vmatprep.subr.mxu0 %v1250
  %2727 = vmatpush1.msra.mxu0 %v1249
  %2728 = vmatprep.subr.mxu0 %v1263
  %2729 = vmatpush1.msra.mxu0 %v1262
  %2730 = vmatprep.subr.mxu0 %v1276
  %2731 = vmatpush1.msra.mxu0 %v1275
  %2732 = vmatprep.subr.mxu0 %v1289
  %2733 = vmatpush1.msra.mxu0 %v1288
  %2734 = vmatprep.mubr.f32.mxu0 %v43
  %2735 = vmatmul.mubr.f32.gmra.mrb[0].mxu0 %v42
  %v2736 = vpop.f32.mrb[0].mxu0
  %v2737 = vadd.f32 %v2666, %v2736
  %v2738 = vpop.f32.mrb[0].mxu0
  %v2739 = vadd.f32 %v2668, %v2738
  %2740 = vdwg.mxu0
  %2741 = vmatprep.subr.mxu0 %v1302
  %2742 = vmatpush1.msra.mxu0 %v1301
  %2743 = vmatprep.subr.mxu0 %v1315
  %2744 = vmatpush1.msra.mxu0 %v1314
  %2745 = vmatprep.subr.mxu0 0.0
  %2746 = vmatpush1.msra.mxu0 0.0
  %2747 = vmatprep.subr.mxu0 0.0
  %2748 = vmatpush1.msra.mxu0 0.0
  %2749 = vmatprep.subr.mxu0 0.0
  %2750 = vmatpush1.msra.mxu0 0.0
  %2751 = vmatprep.subr.mxu0 0.0
  %2752 = vmatpush1.msra.mxu0 0.0
  %2753 = vmatprep.subr.mxu0 0.0
  %2754 = vmatpush1.msra.mxu0 0.0
  %2755 = vmatprep.subr.mxu0 0.0
  %2756 = vmatpush1.msra.mxu0 0.0
  %2757 = vmatprep.subr.mxu0 0.0
  %2758 = vmatpush1.msra.mxu0 0.0
  %2759 = vmatprep.subr.mxu0 0.0
  %2760 = vmatpush1.msra.mxu0 0.0
  %2761 = vmatprep.subr.mxu0 0.0
  %2762 = vmatpush1.msra.mxu0 0.0
  %2763 = vmatprep.subr.mxu0 0.0
  %2764 = vmatpush1.msra.mxu0 0.0
  %2765 = vmatprep.subr.mxu0 0.0
  %2766 = vmatpush1.msra.mxu0 0.0
  %2767 = vmatprep.subr.mxu0 0.0
  %2768 = vmatpush1.msra.mxu0 0.0
  %2769 = vmatprep.subr.mxu0 0.0
  %2770 = vmatpush1.msra.mxu0 0.0
  %2771 = vmatprep.subr.mxu0 0.0
  %2772 = vmatpush1.msra.mxu0 0.0
  %2773 = vmatprep.subr.mxu0 0.0
  %2774 = vmatpush1.msra.mxu0 0.0
  %2775 = vmatprep.subr.mxu0 0.0
  %2776 = vmatpush1.msra.mxu0 0.0
  %2777 = vmatprep.subr.mxu0 0.0
  %2778 = vmatpush1.msra.mxu0 0.0
  %2779 = vmatprep.subr.mxu0 0.0
  %2780 = vmatpush1.msra.mxu0 0.0
  %2781 = vmatprep.subr.mxu0 0.0
  %2782 = vmatpush1.msra.mxu0 0.0
  %2783 = vmatprep.subr.mxu0 0.0
  %2784 = vmatpush1.msra.mxu0 0.0
  %2785 = vmatprep.subr.mxu0 0.0
  %2786 = vmatpush1.msra.mxu0 0.0
  %2787 = vmatprep.subr.mxu0 0.0
  %2788 = vmatpush1.msra.mxu0 0.0
  %2789 = vmatprep.subr.mxu0 0.0
  %2790 = vmatpush1.msra.mxu0 0.0
  %2791 = vmatprep.subr.mxu0 0.0
  %2792 = vmatpush1.msra.mxu0 0.0
  %2793 = vmatprep.subr.mxu0 0.0
  %2794 = vmatpush1.msra.mxu0 0.0
  %2795 = vmatprep.subr.mxu0 0.0
  %2796 = vmatpush1.msra.mxu0 0.0
  %2797 = vmatprep.subr.mxu0 0.0
  %2798 = vmatpush1.msra.mxu0 0.0
  %2799 = vmatprep.subr.mxu0 0.0
  %2800 = vmatpush1.msra.mxu0 0.0
  %2801 = vmatprep.subr.mxu0 0.0
  %2802 = vmatpush1.msra.mxu0 0.0
  %2803 = vmatprep.subr.mxu0 0.0
  %2804 = vmatpush1.msra.mxu0 0.0
  %2805 = vmatprep.mubr.f32.mxu0 0.0
  %2806 = vmatmul.mubr.f32.gmra.mrb[0].mxu0 %v1390
  %v2807 = vpop.f32.mrb[0].mxu0
  %v2808 = vadd.f32 %v2737, %v2807
  %v2809 = vpop.f32.mrb[0].mxu0
  %v2810 = vadd.f32 %v2739, %v2809
  %2811 = vdwg.mxu0
  %2812 = vmatprep.subr.mxu0 %v56
  %2813 = vmatpush1.msra.mxu0 %v55
  %2814 = vmatprep.subr.mxu0 %v69
  %2815 = vmatpush1.msra.mxu0 %v68
  %2816 = vmatprep.subr.mxu0 %v82
  %2817 = vmatpush1.msra.mxu0 %v81
  %2818 = vmatprep.subr.mxu0 %v95
  %2819 = vmatpush1.msra.mxu0 %v94
  %2820 = vmatprep.subr.mxu0 %v108
  %2821 = vmatpush1.msra.mxu0 %v107
  %2822 = vmatprep.subr.mxu0 %v121
  %2823 = vmatpush1.msra.mxu0 %v120
  %2824 = vmatprep.subr.mxu0 %v134
  %2825 = vmatpush1.msra.mxu0 %v133
  %2826 = vmatprep.subr.mxu0 %v147
  %2827 = vmatpush1.msra.mxu0 %v146
  %2828 = vmatprep.subr.mxu0 %v160
  %2829 = vmatpush1.msra.mxu0 %v159
  %2830 = vmatprep.subr.mxu0 %v173
  %2831 = vmatpush1.msra.mxu0 %v172
  %2832 = vmatprep.subr.mxu0 %v186
  %2833 = vmatpush1.msra.mxu0 %v185
  %2834 = vmatprep.subr.mxu0 %v199
  %2835 = vmatpush1.msra.mxu0 %v198
  %2836 = vmatprep.subr.mxu0 %v212
  %2837 = vmatpush1.msra.mxu0 %v211
  %2838 = vmatprep.subr.mxu0 %v225
  %2839 = vmatpush1.msra.mxu0 %v224
  %2840 = vmatprep.subr.mxu0 %v238
  %2841 = vmatpush1.msra.mxu0 %v237
  %2842 = vmatprep.subr.mxu0 %v251
  %2843 = vmatpush1.msra.mxu0 %v250
  %2844 = vmatprep.subr.mxu0 %v264
  %2845 = vmatpush1.msra.mxu0 %v263
  %2846 = vmatprep.subr.mxu0 %v277
  %2847 = vmatpush1.msra.mxu0 %v276
  %2848 = vmatprep.subr.mxu0 %v290
  %2849 = vmatpush1.msra.mxu0 %v289
  %2850 = vmatprep.subr.mxu0 %v303
  %2851 = vmatpush1.msra.mxu0 %v302
  %2852 = vmatprep.subr.mxu0 %v316
  %2853 = vmatpush1.msra.mxu0 %v315
  %2854 = vmatprep.subr.mxu0 %v329
  %2855 = vmatpush1.msra.mxu0 %v328
  %2856 = vmatprep.subr.mxu0 %v342
  %2857 = vmatpush1.msra.mxu0 %v341
  %2858 = vmatprep.subr.mxu0 %v355
  %2859 = vmatpush1.msra.mxu0 %v354
  %2860 = vmatprep.subr.mxu0 %v368
  %2861 = vmatpush1.msra.mxu0 %v367
  %2862 = vmatprep.subr.mxu0 %v381
  %2863 = vmatpush1.msra.mxu0 %v380
  %2864 = vmatprep.subr.mxu0 %v394
  %2865 = vmatpush1.msra.mxu0 %v393
  %2866 = vmatprep.subr.mxu0 %v407
  %2867 = vmatpush1.msra.mxu0 %v406
  %2868 = vmatprep.subr.mxu0 %v420
  %2869 = vmatpush1.msra.mxu0 %v419
  %2870 = vmatprep.subr.mxu0 %v433
  %2871 = vmatpush1.msra.mxu0 %v432
  %2872 = vmatprep.subr.mxu0 %v446
  %2873 = vmatpush1.msra.mxu0 %v445
  %2874 = vmatprep.subr.mxu0 %v459
  %2875 = vmatpush1.msra.mxu0 %v458
  %2876 = vmatprep.mubr.f32.mxu0 %v39
  %2877 = vmatmul.mubr.f32.gmra.mrb[0].mxu0 %v38
  %v2878 = vpop.f32.mrb[0].mxu0
  %v2879 = vadd.f32 %v1366, %v2878
  %v2880 = vpop.f32.mrb[0].mxu0
  %v2881 = vadd.f32 %v1370, %v2880
  %2882 = vdwg.mxu0
  %2883 = vmatprep.subr.mxu0 %v472
  %2884 = vmatpush1.msra.mxu0 %v471
  %2885 = vmatprep.subr.mxu0 %v485
  %2886 = vmatpush1.msra.mxu0 %v484
  %2887 = vmatprep.subr.mxu0 %v498
  %2888 = vmatpush1.msra.mxu0 %v497
  %2889 = vmatprep.subr.mxu0 %v511
  %2890 = vmatpush1.msra.mxu0 %v510
  %2891 = vmatprep.subr.mxu0 %v524
  %2892 = vmatpush1.msra.mxu0 %v523
  %2893 = vmatprep.subr.mxu0 %v537
  %2894 = vmatpush1.msra.mxu0 %v536
  %2895 = vmatprep.subr.mxu0 %v550
  %2896 = vmatpush1.msra.mxu0 %v549
  %2897 = vmatprep.subr.mxu0 %v563
  %2898 = vmatpush1.msra.mxu0 %v562
  %2899 = vmatprep.subr.mxu0 %v576
  %2900 = vmatpush1.msra.mxu0 %v575
  %2901 = vmatprep.subr.mxu0 %v589
  %2902 = vmatpush1.msra.mxu0 %v588
  %2903 = vmatprep.subr.mxu0 %v602
  %2904 = vmatpush1.msra.mxu0 %v601
  %2905 = vmatprep.subr.mxu0 %v615
  %2906 = vmatpush1.msra.mxu0 %v614
  %2907 = vmatprep.subr.mxu0 %v628
  %2908 = vmatpush1.msra.mxu0 %v627
  %2909 = vmatprep.subr.mxu0 %v641
  %2910 = vmatpush1.msra.mxu0 %v640
  %2911 = vmatprep.subr.mxu0 %v654
  %2912 = vmatpush1.msra.mxu0 %v653
  %2913 = vmatprep.subr.mxu0 %v667
  %2914 = vmatpush1.msra.mxu0 %v666
  %2915 = vmatprep.subr.mxu0 %v680
  %2916 = vmatpush1.msra.mxu0 %v679
  %2917 = vmatprep.subr.mxu0 %v693
  %2918 = vmatpush1.msra.mxu0 %v692
  %2919 = vmatprep.subr.mxu0 %v706
  %2920 = vmatpush1.msra.mxu0 %v705
  %2921 = vmatprep.subr.mxu0 %v719
  %2922 = vmatpush1.msra.mxu0 %v718
  %2923 = vmatprep.subr.mxu0 %v732
  %2924 = vmatpush1.msra.mxu0 %v731
  %2925 = vmatprep.subr.mxu0 %v745
  %2926 = vmatpush1.msra.mxu0 %v744
  %2927 = vmatprep.subr.mxu0 %v758
  %2928 = vmatpush1.msra.mxu0 %v757
  %2929 = vmatprep.subr.mxu0 %v771
  %2930 = vmatpush1.msra.mxu0 %v770
  %2931 = vmatprep.subr.mxu0 %v784
  %2932 = vmatpush1.msra.mxu0 %v783
  %2933 = vmatprep.subr.mxu0 %v797
  %2934 = vmatpush1.msra.mxu0 %v796
  %2935 = vmatprep.subr.mxu0 %v810
  %2936 = vmatpush1.msra.mxu0 %v809
  %2937 = vmatprep.subr.mxu0 %v823
  %2938 = vmatpush1.msra.mxu0 %v822
  %2939 = vmatprep.subr.mxu0 %v836
  %2940 = vmatpush1.msra.mxu0 %v835
  %2941 = vmatprep.subr.mxu0 %v849
  %2942 = vmatpush1.msra.mxu0 %v848
  %2943 = vmatprep.subr.mxu0 %v862
  %2944 = vmatpush1.msra.mxu0 %v861
  %2945 = vmatprep.subr.mxu0 %v875
  %2946 = vmatpush1.msra.mxu0 %v874
  %2947 = vmatprep.mubr.f32.mxu0 %v41
  %2948 = vmatmul.mubr.f32.gmra.mrb[0].mxu0 %v40
  %v2949 = vpop.f32.mrb[0].mxu0
  %v2950 = vadd.f32 %v2879, %v2949
  %v2951 = vpop.f32.mrb[0].mxu0
  %v2952 = vadd.f32 %v2881, %v2951
  %2953 = vdwg.mxu0
  %2954 = vmatprep.subr.mxu0 %v888
  %2955 = vmatpush1.msra.mxu0 %v887
  %2956 = vmatprep.subr.mxu0 %v901
  %2957 = vmatpush1.msra.mxu0 %v900
  %2958 = vmatprep.subr.mxu0 %v914
  %2959 = vmatpush1.msra.mxu0 %v913
  %2960 = vmatprep.subr.mxu0 %v927
  %2961 = vmatpush1.msra.mxu0 %v926
  %2962 = vmatprep.subr.mxu0 %v940
  %2963 = vmatpush1.msra.mxu0 %v939
  %2964 = vmatprep.subr.mxu0 %v953
  %2965 = vmatpush1.msra.mxu0 %v952
  %2966 = vmatprep.subr.mxu0 %v966
  %2967 = vmatpush1.msra.mxu0 %v965
  %2968 = vmatprep.subr.mxu0 %v979
  %2969 = vmatpush1.msra.mxu0 %v978
  %2970 = vmatprep.subr.mxu0 %v992
  %2971 = vmatpush1.msra.mxu0 %v991
  %2972 = vmatprep.subr.mxu0 %v1005
  %2973 = vmatpush1.msra.mxu0 %v1004
  %2974 = vmatprep.subr.mxu0 %v1018
  %2975 = vmatpush1.msra.mxu0 %v1017
  %2976 = vmatprep.subr.mxu0 %v1031
  %2977 = vmatpush1.msra.mxu0 %v1030
  %2978 = vmatprep.subr.mxu0 %v1044
  %2979 = vmatpush1.msra.mxu0 %v1043
  %2980 = vmatprep.subr.mxu0 %v1057
  %2981 = vmatpush1.msra.mxu0 %v1056
  %2982 = vmatprep.subr.mxu0 %v1070
  %2983 = vmatpush1.msra.mxu0 %v1069
  %2984 = vmatprep.subr.mxu0 %v1083
  %2985 = vmatpush1.msra.mxu0 %v1082
  %2986 = vmatprep.subr.mxu0 %v1096
  %2987 = vmatpush1.msra.mxu0 %v1095
  %2988 = vmatprep.subr.mxu0 %v1109
  %2989 = vmatpush1.msra.mxu0 %v1108
  %2990 = vmatprep.subr.mxu0 %v1122
  %2991 = vmatpush1.msra.mxu0 %v1121
  %2992 = vmatprep.subr.mxu0 %v1135
  %2993 = vmatpush1.msra.mxu0 %v1134
  %2994 = vmatprep.subr.mxu0 %v1148
  %2995 = vmatpush1.msra.mxu0 %v1147
  %2996 = vmatprep.subr.mxu0 %v1161
  %2997 = vmatpush1.msra.mxu0 %v1160
  %2998 = vmatprep.subr.mxu0 %v1174
  %2999 = vmatpush1.msra.mxu0 %v1173
  %3000 = vmatprep.subr.mxu0 %v1187
  %3001 = vmatpush1.msra.mxu0 %v1186
  %3002 = vmatprep.subr.mxu0 %v1200
  %3003 = vmatpush1.msra.mxu0 %v1199
  %3004 = vmatprep.subr.mxu0 %v1213
  %3005 = vmatpush1.msra.mxu0 %v1212
  %3006 = vmatprep.subr.mxu0 %v1226
  %3007 = vmatpush1.msra.mxu0 %v1225
  %3008 = vmatprep.subr.mxu0 %v1239
  %3009 = vmatpush1.msra.mxu0 %v1238
  %3010 = vmatprep.subr.mxu0 %v1252
  %3011 = vmatpush1.msra.mxu0 %v1251
  %3012 = vmatprep.subr.mxu0 %v1265
  %3013 = vmatpush1.msra.mxu0 %v1264
  %3014 = vmatprep.subr.mxu0 %v1278
  %3015 = vmatpush1.msra.mxu0 %v1277
  %3016 = vmatprep.subr.mxu0 %v1291
  %3017 = vmatpush1.msra.mxu0 %v1290
  %3018 = vmatprep.mubr.f32.mxu0 %v43
  %3019 = vmatmul.mubr.f32.gmra.mrb[0].mxu0 %v42
  %v3020 = vpop.f32.mrb[0].mxu0
  %v3021 = vadd.f32 %v2950, %v3020
  %v3022 = vpop.f32.mrb[0].mxu0
  %v3023 = vadd.f32 %v2952, %v3022
  %3024 = vdwg.mxu0
  %3025 = vmatprep.subr.mxu0 %v1304
  %3026 = vmatpush1.msra.mxu0 %v1303
  %3027 = vmatprep.subr.mxu0 %v1317
  %3028 = vmatpush1.msra.mxu0 %v1316
  %3029 = vmatprep.subr.mxu0 0.0
  %3030 = vmatpush1.msra.mxu0 0.0
  %3031 = vmatprep.subr.mxu0 0.0
  %3032 = vmatpush1.msra.mxu0 0.0
  %3033 = vmatprep.subr.mxu0 0.0
  %3034 = vmatpush1.msra.mxu0 0.0
  %3035 = vmatprep.subr.mxu0 0.0
  %3036 = vmatpush1.msra.mxu0 0.0
  %3037 = vmatprep.subr.mxu0 0.0
  %3038 = vmatpush1.msra.mxu0 0.0
  %3039 = vmatprep.subr.mxu0 0.0
  %3040 = vmatpush1.msra.mxu0 0.0
  %3041 = vmatprep.subr.mxu0 0.0
  %3042 = vmatpush1.msra.mxu0 0.0
  %3043 = vmatprep.subr.mxu0 0.0
  %3044 = vmatpush1.msra.mxu0 0.0
  %3045 = vmatprep.subr.mxu0 0.0
  %3046 = vmatpush1.msra.mxu0 0.0
  %3047 = vmatprep.subr.mxu0 0.0
  %3048 = vmatpush1.msra.mxu0 0.0
  %3049 = vmatprep.subr.mxu0 0.0
  %3050 = vmatpush1.msra.mxu0 0.0
  %3051 = vmatprep.subr.mxu0 0.0
  %3052 = vmatpush1.msra.mxu0 0.0
  %3053 = vmatprep.subr.mxu0 0.0
  %3054 = vmatpush1.msra.mxu0 0.0
  %3055 = vmatprep.subr.mxu0 0.0
  %3056 = vmatpush1.msra.mxu0 0.0
  %3057 = vmatprep.subr.mxu0 0.0
  %3058 = vmatpush1.msra.mxu0 0.0
  %3059 = vmatprep.subr.mxu0 0.0
  %3060 = vmatpush1.msra.mxu0 0.0
  %3061 = vmatprep.subr.mxu0 0.0
  %3062 = vmatpush1.msra.mxu0 0.0
  %3063 = vmatprep.subr.mxu0 0.0
  %3064 = vmatpush1.msra.mxu0 0.0
  %3065 = vmatprep.subr.mxu0 0.0
  %3066 = vmatpush1.msra.mxu0 0.0
  %3067 = vmatprep.subr.mxu0 0.0
  %3068 = vmatpush1.msra.mxu0 0.0
  %3069 = vmatprep.subr.mxu0 0.0
  %3070 = vmatpush1.msra.mxu0 0.0
  %3071 = vmatprep.subr.mxu0 0.0
  %3072 = vmatpush1.msra.mxu0 0.0
  %3073 = vmatprep.subr.mxu0 0.0
  %3074 = vmatpush1.msra.mxu0 0.0
  %3075 = vmatprep.subr.mxu0 0.0
  %3076 = vmatpush1.msra.mxu0 0.0
  %3077 = vmatprep.subr.mxu0 0.0
  %3078 = vmatpush1.msra.mxu0 0.0
  %3079 = vmatprep.subr.mxu0 0.0
  %3080 = vmatpush1.msra.mxu0 0.0
  %3081 = vmatprep.subr.mxu0 0.0
  %3082 = vmatpush1.msra.mxu0 0.0
  %3083 = vmatprep.subr.mxu0 0.0
  %3084 = vmatpush1.msra.mxu0 0.0
  %3085 = vmatprep.subr.mxu0 0.0
  %3086 = vmatpush1.msra.mxu0 0.0
  %3087 = vmatprep.subr.mxu0 0.0
  %3088 = vmatpush1.msra.mxu0 0.0
  %3089 = vmatprep.mubr.f32.mxu0 0.0
  %3090 = vmatmul.mubr.f32.gmra.mrb[0].mxu0 %v1390
  %v3091 = vpop.f32.mrb[0].mxu0
  %v3092 = vadd.f32 %v3021, %v3091
  %v3093 = vpop.f32.mrb[0].mxu0
  %v3094 = vadd.f32 %v3023, %v3093
  %3095 = vdwg.mxu0
  %3096 = vmatprep.subr.mxu0 0.0
  %3097 = vmatpush1.msra.mxu0 %v57
  %3098 = vmatprep.subr.mxu0 0.0
  %3099 = vmatpush1.msra.mxu0 %v70
  %3100 = vmatprep.subr.mxu0 0.0
  %3101 = vmatpush1.msra.mxu0 %v83
  %3102 = vmatprep.subr.mxu0 0.0
  %3103 = vmatpush1.msra.mxu0 %v96
  %3104 = vmatprep.subr.mxu0 0.0
  %3105 = vmatpush1.msra.mxu0 %v109
  %3106 = vmatprep.subr.mxu0 0.0
  %3107 = vmatpush1.msra.mxu0 %v122
  %3108 = vmatprep.subr.mxu0 0.0
  %3109 = vmatpush1.msra.mxu0 %v135
  %3110 = vmatprep.subr.mxu0 0.0
  %3111 = vmatpush1.msra.mxu0 %v148
  %3112 = vmatprep.subr.mxu0 0.0
  %3113 = vmatpush1.msra.mxu0 %v161
  %3114 = vmatprep.subr.mxu0 0.0
  %3115 = vmatpush1.msra.mxu0 %v174
  %3116 = vmatprep.subr.mxu0 0.0
  %3117 = vmatpush1.msra.mxu0 %v187
  %3118 = vmatprep.subr.mxu0 0.0
  %3119 = vmatpush1.msra.mxu0 %v200
  %3120 = vmatprep.subr.mxu0 0.0
  %3121 = vmatpush1.msra.mxu0 %v213
  %3122 = vmatprep.subr.mxu0 0.0
  %3123 = vmatpush1.msra.mxu0 %v226
  %3124 = vmatprep.subr.mxu0 0.0
  %3125 = vmatpush1.msra.mxu0 %v239
  %3126 = vmatprep.subr.mxu0 0.0
  %3127 = vmatpush1.msra.mxu0 %v252
  %3128 = vmatprep.subr.mxu0 0.0
  %3129 = vmatpush1.msra.mxu0 %v265
  %3130 = vmatprep.subr.mxu0 0.0
  %3131 = vmatpush1.msra.mxu0 %v278
  %3132 = vmatprep.subr.mxu0 0.0
  %3133 = vmatpush1.msra.mxu0 %v291
  %3134 = vmatprep.subr.mxu0 0.0
  %3135 = vmatpush1.msra.mxu0 %v304
  %3136 = vmatprep.subr.mxu0 0.0
  %3137 = vmatpush1.msra.mxu0 %v317
  %3138 = vmatprep.subr.mxu0 0.0
  %3139 = vmatpush1.msra.mxu0 %v330
  %3140 = vmatprep.subr.mxu0 0.0
  %3141 = vmatpush1.msra.mxu0 %v343
  %3142 = vmatprep.subr.mxu0 0.0
  %3143 = vmatpush1.msra.mxu0 %v356
  %3144 = vmatprep.subr.mxu0 0.0
  %3145 = vmatpush1.msra.mxu0 %v369
  %3146 = vmatprep.subr.mxu0 0.0
  %3147 = vmatpush1.msra.mxu0 %v382
  %3148 = vmatprep.subr.mxu0 0.0
  %3149 = vmatpush1.msra.mxu0 %v395
  %3150 = vmatprep.subr.mxu0 0.0
  %3151 = vmatpush1.msra.mxu0 %v408
  %3152 = vmatprep.subr.mxu0 0.0
  %3153 = vmatpush1.msra.mxu0 %v421
  %3154 = vmatprep.subr.mxu0 0.0
  %3155 = vmatpush1.msra.mxu0 %v434
  %3156 = vmatprep.subr.mxu0 0.0
  %3157 = vmatpush1.msra.mxu0 %v447
  %3158 = vmatprep.subr.mxu0 0.0
  %3159 = vmatpush1.msra.mxu0 %v460
  %3160 = vmatprep.mubr.f32.mxu0 %v39
  %3161 = vmatmul.mubr.f32.gmra.mrb[0].mxu0 %v38
  %v3162 = vpop.f32.mrb[0].mxu0
  %v3163 = vadd.f32 %v1374, %v3162
  %v3164 = vpop.f32.mrb[0].mxu0
  %3165 = vdwg.mxu0
  %3166 = vmatprep.subr.mxu0 0.0
  %3167 = vmatpush1.msra.mxu0 %v473
  %3168 = vmatprep.subr.mxu0 0.0
  %3169 = vmatpush1.msra.mxu0 %v486
  %3170 = vmatprep.subr.mxu0 0.0
  %3171 = vmatpush1.msra.mxu0 %v499
  %3172 = vmatprep.subr.mxu0 0.0
  %3173 = vmatpush1.msra.mxu0 %v512
  %3174 = vmatprep.subr.mxu0 0.0
  %3175 = vmatpush1.msra.mxu0 %v525
  %3176 = vmatprep.subr.mxu0 0.0
  %3177 = vmatpush1.msra.mxu0 %v538
  %3178 = vmatprep.subr.mxu0 0.0
  %3179 = vmatpush1.msra.mxu0 %v551
  %3180 = vmatprep.subr.mxu0 0.0
  %3181 = vmatpush1.msra.mxu0 %v564
  %3182 = vmatprep.subr.mxu0 0.0
  %3183 = vmatpush1.msra.mxu0 %v577
  %3184 = vmatprep.subr.mxu0 0.0
  %3185 = vmatpush1.msra.mxu0 %v590
  %3186 = vmatprep.subr.mxu0 0.0
  %3187 = vmatpush1.msra.mxu0 %v603
  %3188 = vmatprep.subr.mxu0 0.0
  %3189 = vmatpush1.msra.mxu0 %v616
  %3190 = vmatprep.subr.mxu0 0.0
  %3191 = vmatpush1.msra.mxu0 %v629
  %3192 = vmatprep.subr.mxu0 0.0
  %3193 = vmatpush1.msra.mxu0 %v642
  %3194 = vmatprep.subr.mxu0 0.0
  %3195 = vmatpush1.msra.mxu0 %v655
  %3196 = vmatprep.subr.mxu0 0.0
  %3197 = vmatpush1.msra.mxu0 %v668
  %3198 = vmatprep.subr.mxu0 0.0
  %3199 = vmatpush1.msra.mxu0 %v681
  %3200 = vmatprep.subr.mxu0 0.0
  %3201 = vmatpush1.msra.mxu0 %v694
  %3202 = vmatprep.subr.mxu0 0.0
  %3203 = vmatpush1.msra.mxu0 %v707
  %3204 = vmatprep.subr.mxu0 0.0
  %3205 = vmatpush1.msra.mxu0 %v720
  %3206 = vmatprep.subr.mxu0 0.0
  %3207 = vmatpush1.msra.mxu0 %v733
  %3208 = vmatprep.subr.mxu0 0.0
  %3209 = vmatpush1.msra.mxu0 %v746
  %3210 = vmatprep.subr.mxu0 0.0
  %3211 = vmatpush1.msra.mxu0 %v759
  %3212 = vmatprep.subr.mxu0 0.0
  %3213 = vmatpush1.msra.mxu0 %v772
  %3214 = vmatprep.subr.mxu0 0.0
  %3215 = vmatpush1.msra.mxu0 %v785
  %3216 = vmatprep.subr.mxu0 0.0
  %3217 = vmatpush1.msra.mxu0 %v798
  %3218 = vmatprep.subr.mxu0 0.0
  %3219 = vmatpush1.msra.mxu0 %v811
  %3220 = vmatprep.subr.mxu0 0.0
  %3221 = vmatpush1.msra.mxu0 %v824
  %3222 = vmatprep.subr.mxu0 0.0
  %3223 = vmatpush1.msra.mxu0 %v837
  %3224 = vmatprep.subr.mxu0 0.0
  %3225 = vmatpush1.msra.mxu0 %v850
  %3226 = vmatprep.subr.mxu0 0.0
  %3227 = vmatpush1.msra.mxu0 %v863
  %3228 = vmatprep.subr.mxu0 0.0
  %3229 = vmatpush1.msra.mxu0 %v876
  %3230 = vmatprep.mubr.f32.mxu0 %v41
  %3231 = vmatmul.mubr.f32.gmra.mrb[0].mxu0 %v40
  %v3232 = vpop.f32.mrb[0].mxu0
  %v3233 = vadd.f32 %v3163, %v3232
  %v3234 = vpop.f32.mrb[0].mxu0
  %3235 = vdwg.mxu0
  %3236 = vmatprep.subr.mxu0 0.0
  %3237 = vmatpush1.msra.mxu0 %v889
  %3238 = vmatprep.subr.mxu0 0.0
  %3239 = vmatpush1.msra.mxu0 %v902
  %3240 = vmatprep.subr.mxu0 0.0
  %3241 = vmatpush1.msra.mxu0 %v915
  %3242 = vmatprep.subr.mxu0 0.0
  %3243 = vmatpush1.msra.mxu0 %v928
  %3244 = vmatprep.subr.mxu0 0.0
  %3245 = vmatpush1.msra.mxu0 %v941
  %3246 = vmatprep.subr.mxu0 0.0
  %3247 = vmatpush1.msra.mxu0 %v954
  %3248 = vmatprep.subr.mxu0 0.0
  %3249 = vmatpush1.msra.mxu0 %v967
  %3250 = vmatprep.subr.mxu0 0.0
  %3251 = vmatpush1.msra.mxu0 %v980
  %3252 = vmatprep.subr.mxu0 0.0
  %3253 = vmatpush1.msra.mxu0 %v993
  %3254 = vmatprep.subr.mxu0 0.0
  %3255 = vmatpush1.msra.mxu0 %v1006
  %3256 = vmatprep.subr.mxu0 0.0
  %3257 = vmatpush1.msra.mxu0 %v1019
  %3258 = vmatprep.subr.mxu0 0.0
  %3259 = vmatpush1.msra.mxu0 %v1032
  %3260 = vmatprep.subr.mxu0 0.0
  %3261 = vmatpush1.msra.mxu0 %v1045
  %3262 = vmatprep.subr.mxu0 0.0
  %3263 = vmatpush1.msra.mxu0 %v1058
  %3264 = vmatprep.subr.mxu0 0.0
  %3265 = vmatpush1.msra.mxu0 %v1071
  %3266 = vmatprep.subr.mxu0 0.0
  %3267 = vmatpush1.msra.mxu0 %v1084
  %3268 = vmatprep.subr.mxu0 0.0
  %3269 = vmatpush1.msra.mxu0 %v1097
  %3270 = vmatprep.subr.mxu0 0.0
  %3271 = vmatpush1.msra.mxu0 %v1110
  %3272 = vmatprep.subr.mxu0 0.0
  %3273 = vmatpush1.msra.mxu0 %v1123
  %3274 = vmatprep.subr.mxu0 0.0
  %3275 = vmatpush1.msra.mxu0 %v1136
  %3276 = vmatprep.subr.mxu0 0.0
  %3277 = vmatpush1.msra.mxu0 %v1149
  %3278 = vmatprep.subr.mxu0 0.0
  %3279 = vmatpush1.msra.mxu0 %v1162
  %3280 = vmatprep.subr.mxu0 0.0
  %3281 = vmatpush1.msra.mxu0 %v1175
  %3282 = vmatprep.subr.mxu0 0.0
  %3283 = vmatpush1.msra.mxu0 %v1188
  %3284 = vmatprep.subr.mxu0 0.0
  %3285 = vmatpush1.msra.mxu0 %v1201
  %3286 = vmatprep.subr.mxu0 0.0
  %3287 = vmatpush1.msra.mxu0 %v1214
  %3288 = vmatprep.subr.mxu0 0.0
  %3289 = vmatpush1.msra.mxu0 %v1227
  %3290 = vmatprep.subr.mxu0 0.0
  %3291 = vmatpush1.msra.mxu0 %v1240
  %3292 = vmatprep.subr.mxu0 0.0
  %3293 = vmatpush1.msra.mxu0 %v1253
  %3294 = vmatprep.subr.mxu0 0.0
  %3295 = vmatpush1.msra.mxu0 %v1266
  %3296 = vmatprep.subr.mxu0 0.0
  %3297 = vmatpush1.msra.mxu0 %v1279
  %3298 = vmatprep.subr.mxu0 0.0
  %3299 = vmatpush1.msra.mxu0 %v1292
  %3300 = vmatprep.mubr.f32.mxu0 %v43
  %3301 = vmatmul.mubr.f32.gmra.mrb[0].mxu0 %v42
  %v3302 = vpop.f32.mrb[0].mxu0
  %v3303 = vadd.f32 %v3233, %v3302
  %v3304 = vpop.f32.mrb[0].mxu0
  %3305 = vdwg.mxu0
  %3306 = vmatprep.subr.mxu0 0.0
  %3307 = vmatpush1.msra.mxu0 %v1305
  %3308 = vmatprep.subr.mxu0 0.0
  %3309 = vmatpush1.msra.mxu0 %v1318
  %3310 = vmatprep.subr.mxu0 0.0
  %3311 = vmatpush1.msra.mxu0 0.0
  %3312 = vmatprep.subr.mxu0 0.0
  %3313 = vmatpush1.msra.mxu0 0.0
  %3314 = vmatprep.subr.mxu0 0.0
  %3315 = vmatpush1.msra.mxu0 0.0
  %3316 = vmatprep.subr.mxu0 0.0
  %3317 = vmatpush1.msra.mxu0 0.0
  %3318 = vmatprep.subr.mxu0 0.0
  %3319 = vmatpush1.msra.mxu0 0.0
  %3320 = vmatprep.subr.mxu0 0.0
  %3321 = vmatpush1.msra.mxu0 0.0
  %3322 = vmatprep.subr.mxu0 0.0
  %3323 = vmatpush1.msra.mxu0 0.0
  %3324 = vmatprep.subr.mxu0 0.0
  %3325 = vmatpush1.msra.mxu0 0.0
  %3326 = vmatprep.subr.mxu0 0.0
  %3327 = vmatpush1.msra.mxu0 0.0
  %3328 = vmatprep.subr.mxu0 0.0
  %3329 = vmatpush1.msra.mxu0 0.0
  %3330 = vmatprep.subr.mxu0 0.0
  %3331 = vmatpush1.msra.mxu0 0.0
  %3332 = vmatprep.subr.mxu0 0.0
  %3333 = vmatpush1.msra.mxu0 0.0
  %3334 = vmatprep.subr.mxu0 0.0
  %3335 = vmatpush1.msra.mxu0 0.0
  %3336 = vmatprep.subr.mxu0 0.0
  %3337 = vmatpush1.msra.mxu0 0.0
  %3338 = vmatprep.subr.mxu0 0.0
  %3339 = vmatpush1.msra.mxu0 0.0
  %3340 = vmatprep.subr.mxu0 0.0
  %3341 = vmatpush1.msra.mxu0 0.0
  %3342 = vmatprep.subr.mxu0 0.0
  %3343 = vmatpush1.msra.mxu0 0.0
  %3344 = vmatprep.subr.mxu0 0.0
  %3345 = vmatpush1.msra.mxu0 0.0
  %3346 = vmatprep.subr.mxu0 0.0
  %3347 = vmatpush1.msra.mxu0 0.0
  %3348 = vmatprep.subr.mxu0 0.0
  %3349 = vmatpush1.msra.mxu0 0.0
  %3350 = vmatprep.subr.mxu0 0.0
  %3351 = vmatpush1.msra.mxu0 0.0
  %3352 = vmatprep.subr.mxu0 0.0
  %3353 = vmatpush1.msra.mxu0 0.0
  %3354 = vmatprep.subr.mxu0 0.0
  %3355 = vmatpush1.msra.mxu0 0.0
  %3356 = vmatprep.subr.mxu0 0.0
  %3357 = vmatpush1.msra.mxu0 0.0
  %3358 = vmatprep.subr.mxu0 0.0
  %3359 = vmatpush1.msra.mxu0 0.0
  %3360 = vmatprep.subr.mxu0 0.0
  %3361 = vmatpush1.msra.mxu0 0.0
  %3362 = vmatprep.subr.mxu0 0.0
  %3363 = vmatpush1.msra.mxu0 0.0
  %3364 = vmatprep.subr.mxu0 0.0
  %3365 = vmatpush1.msra.mxu0 0.0
  %3366 = vmatprep.subr.mxu0 0.0
  %3367 = vmatpush1.msra.mxu0 0.0
  %3368 = vmatprep.subr.mxu0 0.0
  %3369 = vmatpush1.msra.mxu0 0.0
  %3370 = vmatprep.mubr.f32.mxu0 0.0
  %3371 = vmatmul.mubr.f32.gmra.mrb[0].mxu0 %v1390
  %v3372 = vpop.f32.mrb[0].mxu0
  %v3373 = vadd.f32 %v3303, %v3372
  %v3374 = vpop.f32.mrb[0].mxu0
  %3375 = vdwg.mxu0
  %v3376 = vmax.f32 %v1672, 0.0
  %v3377 = vmax.f32 %v1674, 0.0
  %v3378 = vmax.f32 %v1956, 0.0
  %v3379 = vmax.f32 %v1958, 0.0
  %v3380 = vmax.f32 %v2240, 0.0
  %v3381 = vmax.f32 %v2242, 0.0
  %v3382 = vmax.f32 %v2524, 0.0
  %v3383 = vmax.f32 %v2526, 0.0
  %v3384 = vmax.f32 %v2808, 0.0
  %v3385 = vmax.f32 %v2810, 0.0
  %v3386 = vmax.f32 %v3092, 0.0
  %v3387 = vmax.f32 %v3094, 0.0
  %v3388 = vmax.f32 %v3373, 0.0
  %v3389 = vld [vmem:[%s3] sm:$0xff]
  %v3390 = vld [vmem:[%s3 + $0x8] sm:$0xff]
  %v3391 = vld [vmem:[%s3 + $0x10] sm:$0xff]
  %v3392 = vld [vmem:[%s3 + $0x18] sm:$0xff]
  %v3393 = vld [vmem:[%s3 + $0x20] sm:$0xff]
  %v3394 = vld [vmem:[%s3 + $0x28] sm:$0xff]
  %v3395 = vld [vmem:[%s3 + $0x30] sm:$0xff]
  %v3396 = vld [vmem:[%s3 + $0x38] sm:$0xff]
  %v3397 = vld [vmem:[%s3 + $0x40] sm:$0xff]
  %v3398 = vld [vmem:[%s3 + $0x48] sm:$0xff]
  %v3399 = vld [vmem:[%s3 + $0x50] sm:$0xff]
  %v3400 = vld [vmem:[%s3 + $0x58] sm:$0xff]
  %v3401 = vld [vmem:[%s3 + $0x60] sm:$0xff]
  %v3402 = vld [vmem:[%s3 + $0x68] sm:$0xff]
  %v3403 = vld [vmem:[%s3 + $0x70] sm:$0xff]
  %v3404 = vld [vmem:[%s3 + $0x78] sm:$0xff]
  %v3405 = vld [vmem:[%s3 + $0x80] sm:$0xff]
  %v3406 = vld [vmem:[%s3 + $0x88] sm:$0xff]
  %v3407 = vld [vmem:[%s3 + $0x90] sm:$0xff]
  %v3408 = vld [vmem:[%s3 + $0x98] sm:$0xff]
  %v3409 = vld [vmem:[%s3 + $0xa0] sm:$0xff]
  %v3410 = vld [vmem:[%s3 + $0xa8] sm:$0xff]
  %v3411 = vld [vmem:[%s3 + $0xb0] sm:$0xff]
  %v3412 = vld [vmem:[%s3 + $0xb8] sm:$0xff]
  %v3413 = vld [vmem:[%s3 + $0xc0] sm:$0xff]
  %v3414 = vld [vmem:[%s3 + $0xc8] sm:$0xff]
  %v3415 = vld [vmem:[%s3 + $0xd0] sm:$0xff]
  %v3416 = vld [vmem:[%s3 + $0xd8] sm:$0xff]
  %v3417 = vld [vmem:[%s3 + $0xe0] sm:$0xff]
  %v3418 = vld [vmem:[%s3 + $0xe8] sm:$0xff]
  %v3419 = vld [vmem:[%s3 + $0xf0] sm:$0xff]
  %v3420 = vld [vmem:[%s3 + $0xf8] sm:$0xff]
  %v3421 = vld [vmem:[%s3 + $0x100] sm:$0xff]
  %v3422 = vld [vmem:[%s3 + $0x108] sm:$0xff]
  %v3423 = vld [vmem:[%s3 + $0x110] sm:$0xff]
  %v3424 = vld [vmem:[%s3 + $0x118] sm:$0xff]
  %v3425 = vld [vmem:[%s3 + $0x120] sm:$0xff]
  %v3426 = vld [vmem:[%s3 + $0x128] sm:$0xff]
  %v3427 = vld [vmem:[%s3 + $0x130] sm:$0xff]
  %v3428 = vld [vmem:[%s3 + $0x138] sm:$0xff]
  %v3429 = vld [vmem:[%s3 + $0x140] sm:$0xff]
  %v3430 = vld [vmem:[%s3 + $0x148] sm:$0xff]
  %v3431 = vld [vmem:[%s3 + $0x150] sm:$0xff]
  %v3432 = vld [vmem:[%s3 + $0x158] sm:$0xff]
  %v3433 = vld [vmem:[%s3 + $0x160] sm:$0xff]
  %v3434 = vld [vmem:[%s3 + $0x168] sm:$0xff]
  %v3435 = vld [vmem:[%s3 + $0x170] sm:$0xff]
  %v3436 = vld [vmem:[%s3 + $0x178] sm:$0xff]
  %v3437 = vld [vmem:[%s3 + $0x180] sm:$0xff]
  %v3438 = vld [vmem:[%s3 + $0x188] sm:$0xff]
  %v3439 = vld [vmem:[%s3 + $0x190] sm:$0xff]
  %v3440 = vld [vmem:[%s3 + $0x198] sm:$0xff]
  %v3441 = vld [vmem:[%s3 + $0x1a0] sm:$0xff]
  %v3442 = vld [vmem:[%s3 + $0x1a8] sm:$0xff]
  %v3443 = vld [vmem:[%s3 + $0x1b0] sm:$0xff]
  %v3444 = vld [vmem:[%s3 + $0x1b8] sm:$0xff]
  %v3445 = vld [vmem:[%s3 + $0x1c0] sm:$0xff]
  %v3446 = vld [vmem:[%s3 + $0x1c8] sm:$0xff]
  %v3447 = vld [vmem:[%s3 + $0x1d0] sm:$0xff]
  %v3448 = vld [vmem:[%s3 + $0x1d8] sm:$0xff]
  %v3449 = vld [vmem:[%s3 + $0x1e0] sm:$0xff]
  %v3450 = vld [vmem:[%s3 + $0x1e8] sm:$0xff]
  %v3451 = vld [vmem:[%s3 + $0x1f0] sm:$0xff]
  %v3452 = vld [vmem:[%s3 + $0x1f8] sm:$0xff]
  %v3453 = vld [vmem:[%s3 + $0x200] sm:$0xff]
  %v3454 = vld [vmem:[%s3 + $0x208] sm:$0xff]
  %v3455 = vld [vmem:[%s3 + $0x210] sm:$0xff]
  %v3456 = vld [vmem:[%s3 + $0x218] sm:$0xff]
  %v3457 = vld [vmem:[%s3 + $0x220] sm:$0xff]
  %v3458 = vld [vmem:[%s3 + $0x228] sm:$0xff]
  %v3459 = vld [vmem:[%s3 + $0x230] sm:$0xff]
  %v3460 = vld [vmem:[%s3 + $0x238] sm:$0xff]
  %v3461 = vld [vmem:[%s3 + $0x240] sm:$0xff]
  %v3462 = vld [vmem:[%s3 + $0x248] sm:$0xff]
  %v3463 = vld [vmem:[%s3 + $0x250] sm:$0xff]
  %v3464 = vld [vmem:[%s3 + $0x258] sm:$0xff]
  %v3465 = vld [vmem:[%s3 + $0x260] sm:$0xff]
  %v3466 = vld [vmem:[%s3 + $0x268] sm:$0xff]
  %v3467 = vld [vmem:[%s3 + $0x270] sm:$0xff]
  %v3468 = vld [vmem:[%s3 + $0x278] sm:$0xff]
  %v3469 = vld [vmem:[%s3 + $0x280] sm:$0xff]
  %v3470 = vld [vmem:[%s3 + $0x288] sm:$0xff]
  %v3471 = vld [vmem:[%s3 + $0x290] sm:$0xff]
  %v3472 = vld [vmem:[%s3 + $0x298] sm:$0xff]
  %v3473 = vld [vmem:[%s3 + $0x2a0] sm:$0xff]
  %v3474 = vld [vmem:[%s3 + $0x2a8] sm:$0xff]
  %v3475 = vld [vmem:[%s3 + $0x2b0] sm:$0xff]
  %v3476 = vld [vmem:[%s3 + $0x2b8] sm:$0xff]
  %v3477 = vld [vmem:[%s3 + $0x2c0] sm:$0xff]
  %v3478 = vld [vmem:[%s3 + $0x2c8] sm:$0xff]
  %v3479 = vld [vmem:[%s3 + $0x2d0] sm:$0xff]
  %v3480 = vld [vmem:[%s3 + $0x2d8] sm:$0xff]
  %v3481 = vld [vmem:[%s3 + $0x2e0] sm:$0xff]
  %v3482 = vld [vmem:[%s3 + $0x2e8] sm:$0xff]
  %v3483 = vld [vmem:[%s3 + $0x2f0] sm:$0xff]
  %v3484 = vld [vmem:[%s3 + $0x2f8] sm:$0xff]
  %v3485 = vld [vmem:[%s3 + $0x300] sm:$0xff]
  %v3486 = vld [vmem:[%s3 + $0x308] sm:$0xff]
  %v3487 = vld [vmem:[%s3 + $0x310] sm:$0xff]
  %v3488 = vld [vmem:[%s3 + $0x318] sm:$0xff]
  %v3489 = vld [vmem:[%s3 + $0x320] sm:$0xff]
  %v3490 = vld [vmem:[%s3 + $0x328] sm:$0xff]
  %v3491 = vld [vmem:[%s3 + $0x330] sm:$0xff]
  %v3492 = vld [vmem:[%s3 + $0x338] sm:$0xff]
  %v3493 = vld [vmem:[%s3 + $0x340] sm:$0xff]
  %v3494 = vld [vmem:[%s3 + $0x348] sm:$0xff]
  %v3495 = vld [vmem:[%s3 + $0x350] sm:$0xff]
  %v3496 = vld [vmem:[%s3 + $0x358] sm:$0xff]
  %v3497 = vld [vmem:[%s3 + $0x360] sm:$0xff]
  %v3498 = vld [vmem:[%s3 + $0x368] sm:$0xff]
  %v3499 = vld [vmem:[%s3 + $0x370] sm:$0xff]
  %v3500 = vld [vmem:[%s3 + $0x378] sm:$0xff]
  %v3501 = vld [vmem:[%s3 + $0x380] sm:$0xff]
  %v3502 = vld [vmem:[%s3 + $0x388] sm:$0xff]
  %v3503 = vld [vmem:[%s3 + $0x390] sm:$0xff]
  %v3504 = vld [vmem:[%s3 + $0x398] sm:$0xff]
  %v3505 = vld [vmem:[%s3 + $0x3a0] sm:$0xff]
  %v3506 = vld [vmem:[%s3 + $0x3a8] sm:$0xff]
  %v3507 = vld [vmem:[%s3 + $0x3b0] sm:$0xff]
  %v3508 = vld [vmem:[%s3 + $0x3b8] sm:$0xff]
  %v3509 = vld [vmem:[%s3 + $0x3c0] sm:$0xff]
  %v3510 = vld [vmem:[%s3 + $0x3c8] sm:$0xff]
  %v3511 = vld [vmem:[%s3 + $0x3d0] sm:$0xff]
  %v3512 = vld [vmem:[%s3 + $0x3d8] sm:$0xff]
  %v3513 = vld [vmem:[%s3 + $0x3e0] sm:$0xff]
  %v3514 = vld [vmem:[%s3 + $0x3e8] sm:$0xff]
  %v3515 = vld [vmem:[%s3 + $0x3f0] sm:$0xff]
  %v3516 = vld [vmem:[%s3 + $0x3f8] sm:$0xff]
  %v3517 = vld [vmem:[%s3 + $0x400] sm:$0xff]
  %v3518 = vld [vmem:[%s3 + $0x408] sm:$0xff]
  %v3519 = vld [vmem:[%s3 + $0x410] sm:$0xff]
  %v3520 = vld [vmem:[%s3 + $0x418] sm:$0xff]
  %v3521 = vld [vmem:[%s3 + $0x420] sm:$0xff]
  %v3522 = vld [vmem:[%s3 + $0x428] sm:$0xff]
  %v3523 = vld [vmem:[%s3 + $0x430] sm:$0xff]
  %v3524 = vld [vmem:[%s3 + $0x438] sm:$0xff]
  %v3525 = vld [vmem:[%s3 + $0x440] sm:$0xff]
  %v3526 = vld [vmem:[%s3 + $0x448] sm:$0xff]
  %v3527 = vld [vmem:[%s3 + $0x450] sm:$0xff]
  %v3528 = vld [vmem:[%s3 + $0x458] sm:$0xff]
  %v3529 = vld [vmem:[%s3 + $0x460] sm:$0xff]
  %v3530 = vld [vmem:[%s3 + $0x468] sm:$0xff]
  %v3531 = vld [vmem:[%s3 + $0x470] sm:$0xff]
  %v3532 = vld [vmem:[%s3 + $0x478] sm:$0xff]
  %v3533 = vld [vmem:[%s3 + $0x480] sm:$0xff]
  %v3534 = vld [vmem:[%s3 + $0x488] sm:$0xff]
  %v3535 = vld [vmem:[%s3 + $0x490] sm:$0xff]
  %v3536 = vld [vmem:[%s3 + $0x498] sm:$0xff]
  %v3537 = vld [vmem:[%s3 + $0x4a0] sm:$0xff]
  %v3538 = vld [vmem:[%s3 + $0x4a8] sm:$0xff]
  %v3539 = vld [vmem:[%s3 + $0x4b0] sm:$0xff]
  %v3540 = vld [vmem:[%s3 + $0x4b8] sm:$0xff]
  %v3541 = vld [vmem:[%s3 + $0x4c0] sm:$0xff]
  %v3542 = vld [vmem:[%s3 + $0x4c8] sm:$0xff]
  %v3543 = vld [vmem:[%s3 + $0x4d0] sm:$0xff]
  %v3544 = vld [vmem:[%s3 + $0x4d8] sm:$0xff]
  %v3545 = vld [vmem:[%s3 + $0x4e0] sm:$0xff]
  %v3546 = vld [vmem:[%s3 + $0x4e8] sm:$0xff]
  %v3547 = vld [vmem:[%s3 + $0x4f0] sm:$0xff]
  %v3548 = vld [vmem:[%s3 + $0x4f8] sm:$0xff]
  %v3549 = vld [vmem:[%s3 + $0x500] sm:$0xff]
  %v3550 = vld [vmem:[%s3 + $0x508] sm:$0xff]
  %v3551 = vld [vmem:[%s3 + $0x510] sm:$0xff]
  %v3552 = vld [vmem:[%s3 + $0x518] sm:$0xff]
  %v3553 = vld [vmem:[%s3 + $0x520] sm:$0xff]
  %v3554 = vld [vmem:[%s3 + $0x528] sm:$0xff]
  %v3555 = vld [vmem:[%s3 + $0x530] sm:$0xff]
  %v3556 = vld [vmem:[%s3 + $0x538] sm:$0xff]
  %v3557 = vld [vmem:[%s3 + $0x540] sm:$0xff]
  %v3558 = vld [vmem:[%s3 + $0x548] sm:$0xff]
  %v3559 = vld [vmem:[%s3 + $0x550] sm:$0xff]
  %v3560 = vld [vmem:[%s3 + $0x558] sm:$0xff]
  %v3561 = vld [vmem:[%s3 + $0x560] sm:$0xff]
  %v3562 = vld [vmem:[%s3 + $0x568] sm:$0xff]
  %v3563 = vld [vmem:[%s3 + $0x570] sm:$0xff]
  %v3564 = vld [vmem:[%s3 + $0x578] sm:$0xff]
  %v3565 = vld [vmem:[%s3 + $0x580] sm:$0xff]
  %v3566 = vld [vmem:[%s3 + $0x588] sm:$0xff]
  %v3567 = vld [vmem:[%s3 + $0x590] sm:$0xff]
  %v3568 = vld [vmem:[%s3 + $0x598] sm:$0xff]
  %v3569 = vld [vmem:[%s3 + $0x5a0] sm:$0xff]
  %v3570 = vld [vmem:[%s3 + $0x5a8] sm:$0xff]
  %v3571 = vld [vmem:[%s3 + $0x5b0] sm:$0xff]
  %v3572 = vld [vmem:[%s3 + $0x5b8] sm:$0xff]
  %v3573 = vld [vmem:[%s3 + $0x5c0] sm:$0xff]
  %v3574 = vld [vmem:[%s3 + $0x5c8] sm:$0xff]
  %v3575 = vld [vmem:[%s3 + $0x5d0] sm:$0xff]
  %v3576 = vld [vmem:[%s3 + $0x5d8] sm:$0xff]
  %v3577 = vld [vmem:[%s3 + $0x5e0] sm:$0xff]
  %v3578 = vld [vmem:[%s3 + $0x5e8] sm:$0xff]
  %v3579 = vld [vmem:[%s3 + $0x5f0] sm:$0xff]
  %v3580 = vld [vmem:[%s3 + $0x5f8] sm:$0xff]
  %v3581 = vld [vmem:[%s3 + $0x600] sm:$0xff]
  %v3582 = vld [vmem:[%s3 + $0x608] sm:$0xff]
  %v3583 = vld [vmem:[%s3 + $0x610] sm:$0xff]
  %v3584 = vld [vmem:[%s3 + $0x618] sm:$0xff]
  %v3585 = vld [vmem:[%s3 + $0x620] sm:$0xff]
  %v3586 = vld [vmem:[%s3 + $0x628] sm:$0xff]
  %v3587 = vld [vmem:[%s3 + $0x630] sm:$0xff]
  %v3588 = vld [vmem:[%s3 + $0x638] sm:$0xff]
  %v3589 = vld [vmem:[%s3 + $0x640] sm:$0xff]
  %v3590 = vld [vmem:[%s3 + $0x648] sm:$0xff]
  %v3591 = vld [vmem:[%s3 + $0x650] sm:$0xff]
  %v3592 = vld [vmem:[%s3 + $0x658] sm:$0xff]
  %v3593 = vld [vmem:[%s3 + $0x660] sm:$0xff]
  %v3594 = vld [vmem:[%s3 + $0x668] sm:$0xff]
  %v3595 = vld [vmem:[%s3 + $0x670] sm:$0xff]
  %v3596 = vld [vmem:[%s3 + $0x678] sm:$0xff]
  %v3597 = vld [vmem:[%s3 + $0x680] sm:$0xff]
  %v3598 = vld [vmem:[%s3 + $0x688] sm:$0xff]
  %v3599 = vld [vmem:[%s3 + $0x690] sm:$0xff]
  %v3600 = vld [vmem:[%s3 + $0x698] sm:$0xff]
  %v3601 = vld [vmem:[%s3 + $0x6a0] sm:$0xff]
  %v3602 = vld [vmem:[%s3 + $0x6a8] sm:$0xff]
  %v3603 = vld [vmem:[%s3 + $0x6b0] sm:$0xff]
  %v3604 = vld [vmem:[%s3 + $0x6b8] sm:$0xff]
  %v3605 = vld [vmem:[%s3 + $0x6c0] sm:$0xff]
  %v3606 = vld [vmem:[%s3 + $0x6c8] sm:$0xff]
  %v3607 = vld [vmem:[%s3 + $0x6d0] sm:$0xff]
  %v3608 = vld [vmem:[%s3 + $0x6d8] sm:$0xff]
  %v3609 = vld [vmem:[%s3 + $0x6e0] sm:$0xff]
  %v3610 = vld [vmem:[%s3 + $0x6e8] sm:$0xff]
  %v3611 = vld [vmem:[%s3 + $0x6f0] sm:$0xff]
  %v3612 = vld [vmem:[%s3 + $0x6f8] sm:$0xff]
  %v3613 = vld [vmem:[%s3 + $0x700] sm:$0xff]
  %v3614 = vld [vmem:[%s3 + $0x708] sm:$0xff]
  %v3615 = vld [vmem:[%s3 + $0x710] sm:$0xff]
  %v3616 = vld [vmem:[%s3 + $0x718] sm:$0xff]
  %v3617 = vld [vmem:[%s3 + $0x720] sm:$0xff]
  %v3618 = vld [vmem:[%s3 + $0x728] sm:$0xff]
  %v3619 = vld [vmem:[%s3 + $0x730] sm:$0xff]
  %v3620 = vld [vmem:[%s3 + $0x738] sm:$0xff]
  %v3621 = vld [vmem:[%s3 + $0x740] sm:$0xff]
  %v3622 = vld [vmem:[%s3 + $0x748] sm:$0xff]
  %v3623 = vld [vmem:[%s3 + $0x750] sm:$0xff]
  %v3624 = vld [vmem:[%s3 + $0x758] sm:$0xff]
  %v3625 = vld [vmem:[%s3 + $0x760] sm:$0xff]
  %v3626 = vld [vmem:[%s3 + $0x768] sm:$0xff]
  %v3627 = vld [vmem:[%s3 + $0x770] sm:$0xff]
  %v3628 = vld [vmem:[%s3 + $0x778] sm:$0xff]
  %v3629 = vld [vmem:[%s3 + $0x780] sm:$0xff]
  %v3630 = vld [vmem:[%s3 + $0x788] sm:$0xff]
  %v3631 = vld [vmem:[%s3 + $0x790] sm:$0xff]
  %v3632 = vld [vmem:[%s3 + $0x798] sm:$0xff]
  %v3633 = vld [vmem:[%s3 + $0x7a0] sm:$0xff]
  %v3634 = vld [vmem:[%s3 + $0x7a8] sm:$0xff]
  %v3635 = vld [vmem:[%s3 + $0x7b0] sm:$0xff]
  %v3636 = vld [vmem:[%s3 + $0x7b8] sm:$0xff]
  %v3637 = vld [vmem:[%s3 + $0x7c0] sm:$0xff]
  %v3638 = vld [vmem:[%s3 + $0x7c8] sm:$0xff]
  %v3639 = vld [vmem:[%s3 + $0x7d0] sm:$0xff]
  %v3640 = vld [vmem:[%s3 + $0x7d8] sm:$0xff]
  %v3641 = vld [vmem:[%s3 + $0x7e0] sm:$0xff]
  %v3642 = vld [vmem:[%s3 + $0x7e8] sm:$0xff]
  %v3643 = vld [vmem:[%s3 + $0x7f0] sm:$0xff]
  %v3644 = vld [vmem:[%s3 + $0x7f8] sm:$0xff]
  %v3645 = vld [vmem:[%s3 + $0x800] sm:$0xff]
  %v3646 = vld [vmem:[%s3 + $0x808] sm:$0xff]
  %v3647 = vld [vmem:[%s3 + $0x810] sm:$0xff]
  %v3648 = vld [vmem:[%s3 + $0x818] sm:$0xff]
  %v3649 = vld [vmem:[%s3 + $0x820] sm:$0xff]
  %v3650 = vld [vmem:[%s3 + $0x828] sm:$0xff]
  %v3651 = vld [vmem:[%s3 + $0x830] sm:$0xff]
  %v3652 = vld [vmem:[%s3 + $0x838] sm:$0xff]
  %v3653 = vld [vmem:[%s3 + $0x840] sm:$0xff]
  %v3654 = vld [vmem:[%s3 + $0x848] sm:$0xff]
  %v3655 = vld [vmem:[%s3 + $0x850] sm:$0xff]
  %v3656 = vld [vmem:[%s3 + $0x858] sm:$0xff]
  %v3657 = vld [vmem:[%s3 + $0x860] sm:$0xff]
  %v3658 = vld [vmem:[%s3 + $0x868] sm:$0xff]
  %v3659 = vld [vmem:[%s3 + $0x870] sm:$0xff]
  %v3660 = vld [vmem:[%s3 + $0x878] sm:$0xff]
  %v3661 = vld [vmem:[%s3 + $0x880] sm:$0xff]
  %v3662 = vld [vmem:[%s3 + $0x888] sm:$0xff]
  %v3663 = vld [vmem:[%s3 + $0x890] sm:$0xff]
  %v3664 = vld [vmem:[%s3 + $0x898] sm:$0xff]
  %v3665 = vld [vmem:[%s3 + $0x8a0] sm:$0xff]
  %v3666 = vld [vmem:[%s3 + $0x8a8] sm:$0xff]
  %v3667 = vld [vmem:[%s3 + $0x8b0] sm:$0xff]
  %v3668 = vld [vmem:[%s3 + $0x8b8] sm:$0xff]
  %v3669 = vld [vmem:[%s3 + $0x8c0] sm:$0xff]
  %v3670 = vld [vmem:[%s3 + $0x8c8] sm:$0xff]
  %v3671 = vld [vmem:[%s3 + $0x8d0] sm:$0xff]
  %v3672 = vld [vmem:[%s3 + $0x8d8] sm:$0xff]
  %v3673 = vld [vmem:[%s3 + $0x8e0] sm:$0xff]
  %v3674 = vld [vmem:[%s3 + $0x8e8] sm:$0xff]
  %v3675 = vld [vmem:[%s3 + $0x8f0] sm:$0xff]
  %v3676 = vld [vmem:[%s3 + $0x8f8] sm:$0xff]
  %v3677 = vld [vmem:[%s3 + $0x900] sm:$0xff]
  %v3678 = vld [vmem:[%s3 + $0x908] sm:$0xff]
  %v3679 = vld [vmem:[%s3 + $0x910] sm:$0xff]
  %v3680 = vld [vmem:[%s3 + $0x918] sm:$0xff]
  %v3681 = vld [vmem:[%s3 + $0x920] sm:$0xff]
  %v3682 = vld [vmem:[%s3 + $0x928] sm:$0xff]
  %v3683 = vld [vmem:[%s3 + $0x930] sm:$0xff]
  %v3684 = vld [vmem:[%s3 + $0x938] sm:$0xff]
  %v3685 = vld [vmem:[%s3 + $0x940] sm:$0xff]
  %v3686 = vld [vmem:[%s3 + $0x948] sm:$0xff]
  %v3687 = vld [vmem:[%s3 + $0x950] sm:$0xff]
  %v3688 = vld [vmem:[%s3 + $0x958] sm:$0xff]
  %v3689 = vld [vmem:[%s3 + $0x960] sm:$0xff]
  %v3690 = vld [vmem:[%s3 + $0x968] sm:$0xff]
  %v3691 = vld [vmem:[%s3 + $0x970] sm:$0xff]
  %v3692 = vld [vmem:[%s3 + $0x978] sm:$0xff]
  %v3693 = vld [vmem:[%s3 + $0x980] sm:$0xff]
  %v3694 = vld [vmem:[%s3 + $0x988] sm:$0xff]
  %v3695 = vld [vmem:[%s3 + $0x990] sm:$0xff]
  %v3696 = vld [vmem:[%s3 + $0x998] sm:$0xff]
  %v3697 = vld [vmem:[%s3 + $0x9a0] sm:$0xff]
  %v3698 = vld [vmem:[%s3 + $0x9a8] sm:$0xff]
  %v3699 = vld [vmem:[%s3 + $0x9b0] sm:$0xff]
  %v3700 = vld [vmem:[%s3 + $0x9b8] sm:$0xff]
  %v3701 = vld [vmem:[%s3 + $0x9c0] sm:$0xff]
  %v3702 = vld [vmem:[%s3 + $0x9c8] sm:$0xff]
  %v3703 = vld [vmem:[%s3 + $0x9d0] sm:$0xff]
  %v3704 = vld [vmem:[%s3 + $0x9d8] sm:$0xff]
  %v3705 = vld [vmem:[%s3 + $0x9e0] sm:$0xff]
  %v3706 = vld [vmem:[%s3 + $0x9e8] sm:$0xff]
  %v3707 = vld [vmem:[%s3 + $0x9f0] sm:$0xff]
  %v3708 = vld [vmem:[%s3 + $0x9f8] sm:$0xff]
  %v3709 = vld [vmem:[%s3 + $0xa00] sm:$0xff]
  %v3710 = vld [vmem:[%s3 + $0xa08] sm:$0xff]
  %v3711 = vld [vmem:[%s3 + $0xa10] sm:$0xff]
  %v3712 = vld [vmem:[%s3 + $0xa18] sm:$0xff]
  %v3713 = vld [vmem:[%s3 + $0xa20] sm:$0xff]
  %v3714 = vld [vmem:[%s3 + $0xa28] sm:$0xff]
  %v3715 = vld [vmem:[%s3 + $0xa30] sm:$0xff]
  %v3716 = vld [vmem:[%s3 + $0xa38] sm:$0xff]
  %v3717 = vld [vmem:[%s3 + $0xa40] sm:$0xff]
  %v3718 = vld [vmem:[%s3 + $0xa48] sm:$0xff]
  %v3719 = vld [vmem:[%s3 + $0xa50] sm:$0xff]
  %v3720 = vld [vmem:[%s3 + $0xa58] sm:$0xff]
  %v3721 = vld [vmem:[%s3 + $0xa60] sm:$0xff]
  %v3722 = vld [vmem:[%s3 + $0xa68] sm:$0xff]
  %v3723 = vld [vmem:[%s3 + $0xa70] sm:$0xff]
  %v3724 = vld [vmem:[%s3 + $0xa78] sm:$0xff]
  %v3725 = vld [vmem:[%s3 + $0xa80] sm:$0xff]
  %v3726 = vld [vmem:[%s3 + $0xa88] sm:$0xff]
  %v3727 = vld [vmem:[%s3 + $0xa90] sm:$0xff]
  %v3728 = vld [vmem:[%s3 + $0xa98] sm:$0xff]
  %v3729 = vld [vmem:[%s3 + $0xaa0] sm:$0xff]
  %v3730 = vld [vmem:[%s3 + $0xaa8] sm:$0xff]
  %v3731 = vld [vmem:[%s3 + $0xab0] sm:$0xff]
  %v3732 = vld [vmem:[%s3 + $0xab8] sm:$0xff]
  %v3733 = vld [vmem:[%s3 + $0xac0] sm:$0xff]
  %v3734 = vld [vmem:[%s3 + $0xac8] sm:$0xff]
  %v3735 = vld [vmem:[%s3 + $0xad0] sm:$0xff]
  %v3736 = vld [vmem:[%s3 + $0xad8] sm:$0xff]
  %v3737 = vld [vmem:[%s3 + $0xae0] sm:$0xff]
  %v3738 = vld [vmem:[%s3 + $0xae8] sm:$0xff]
  %v3739 = vld [vmem:[%s3 + $0xaf0] sm:$0xff]
  %v3740 = vld [vmem:[%s3 + $0xaf8] sm:$0xff]
  %v3741 = vld [vmem:[%s3 + $0xb00] sm:$0xff]
  %v3742 = vld [vmem:[%s3 + $0xb08] sm:$0xff]
  %v3743 = vld [vmem:[%s3 + $0xb10] sm:$0xff]
  %v3744 = vld [vmem:[%s3 + $0xb18] sm:$0xff]
  %v3745 = vld [vmem:[%s3 + $0xb20] sm:$0xff]
  %v3746 = vld [vmem:[%s3 + $0xb28] sm:$0xff]
  %v3747 = vld [vmem:[%s3 + $0xb30] sm:$0xff]
  %v3748 = vld [vmem:[%s3 + $0xb38] sm:$0xff]
  %v3749 = vld [vmem:[%s3 + $0xb40] sm:$0xff]
  %v3750 = vld [vmem:[%s3 + $0xb48] sm:$0xff]
  %v3751 = vld [vmem:[%s3 + $0xb50] sm:$0xff]
  %v3752 = vld [vmem:[%s3 + $0xb58] sm:$0xff]
  %v3753 = vld [vmem:[%s3 + $0xb60] sm:$0xff]
  %v3754 = vld [vmem:[%s3 + $0xb68] sm:$0xff]
  %v3755 = vld [vmem:[%s3 + $0xb70] sm:$0xff]
  %v3756 = vld [vmem:[%s3 + $0xb78] sm:$0xff]
  %v3757 = vld [vmem:[%s3 + $0xb80] sm:$0xff]
  %v3758 = vld [vmem:[%s3 + $0xb88] sm:$0xff]
  %v3759 = vld [vmem:[%s3 + $0xb90] sm:$0xff]
  %v3760 = vld [vmem:[%s3 + $0xb98] sm:$0xff]
  %v3761 = vld [vmem:[%s3 + $0xba0] sm:$0xff]
  %v3762 = vld [vmem:[%s3 + $0xba8] sm:$0xff]
  %v3763 = vld [vmem:[%s3 + $0xbb0] sm:$0xff]
  %v3764 = vld [vmem:[%s3 + $0xbb8] sm:$0xff]
  %v3765 = vld [vmem:[%s3 + $0xbc0] sm:$0xff]
  %v3766 = vld [vmem:[%s3 + $0xbc8] sm:$0xff]
  %v3767 = vld [vmem:[%s3 + $0xbd0] sm:$0xff]
  %v3768 = vld [vmem:[%s3 + $0xbd8] sm:$0xff]
  %v3769 = vld [vmem:[%s3 + $0xbe0] sm:$0xff]
  %v3770 = vld [vmem:[%s3 + $0xbe8] sm:$0xff]
  %v3771 = vld [vmem:[%s3 + $0xbf0] sm:$0xff]
  %v3772 = vld [vmem:[%s3 + $0xbf8] sm:$0xff]
  %v3773 = vld [vmem:[%s3 + $0xc00] sm:$0xff]
  %v3774 = vld [vmem:[%s3 + $0xc08] sm:$0xff]
  %v3775 = vld [vmem:[%s3 + $0xc10] sm:$0xff]
  %v3776 = vld [vmem:[%s3 + $0xc18] sm:$0xff]
  %v3777 = vld [vmem:[%s3 + $0xc20] sm:$0xff]
  %v3778 = vld [vmem:[%s3 + $0xc28] sm:$0xff]
  %v3779 = vld [vmem:[%s3 + $0xc30] sm:$0xff]
  %v3780 = vld [vmem:[%s3 + $0xc38] sm:$0xff]
  %v3781 = vld [vmem:[%s3 + $0xc40] sm:$0xff]
  %v3782 = vld [vmem:[%s3 + $0xc48] sm:$0xff]
  %v3783 = vld [vmem:[%s3 + $0xc50] sm:$0xff]
  %v3784 = vld [vmem:[%s3 + $0xc58] sm:$0xff]
  %v3785 = vld [vmem:[%s3 + $0xc60] sm:$0xff]
  %v3786 = vld [vmem:[%s3 + $0xc68] sm:$0xff]
  %v3787 = vld [vmem:[%s3 + $0xc70] sm:$0xff]
  %v3788 = vld [vmem:[%s3 + $0xc78] sm:$0xff]
  %v3789 = vld [vmem:[%s3 + $0xc80] sm:$0xff]
  %v3790 = vld [vmem:[%s3 + $0xc88] sm:$0xff]
  %v3791 = vld [vmem:[%s3 + $0xc90] sm:$0xff]
  %v3792 = vld [vmem:[%s3 + $0xc98] sm:$0xff]
  %v3793 = vld [vmem:[%s3 + $0xca0] sm:$0xff]
  %v3794 = vld [vmem:[%s3 + $0xca8] sm:$0xff]
  %v3795 = vld [vmem:[%s3 + $0xcb0] sm:$0xff]
  %v3796 = vld [vmem:[%s3 + $0xcb8] sm:$0xff]
  %v3797 = vld [vmem:[%s3 + $0xcc0] sm:$0xff]
  %v3798 = vld [vmem:[%s3 + $0xcc8] sm:$0xff]
  %v3799 = vld [vmem:[%s3 + $0xcd0] sm:$0xff]
  %v3800 = vld [vmem:[%s3 + $0xcd8] sm:$0xff]
  %v3801 = vld [vmem:[%s3 + $0xce0] sm:$0xff]
  %v3802 = vld [vmem:[%s3 + $0xce8] sm:$0xff]
  %v3803 = vld [vmem:[%s3 + $0xcf0] sm:$0xff]
  %v3804 = vld [vmem:[%s3 + $0xcf8] sm:$0xff]
  %v3805 = vld [vmem:[%s3 + $0xd00] sm:$0xff]
  %v3806 = vld [vmem:[%s3 + $0xd08] sm:$0xff]
  %v3807 = vld [vmem:[%s3 + $0xd10] sm:$0xff]
  %v3808 = vld [vmem:[%s3 + $0xd18] sm:$0xff]
  %v3809 = vld [vmem:[%s3 + $0xd20] sm:$0xff]
  %v3810 = vld [vmem:[%s3 + $0xd28] sm:$0xff]
  %v3811 = vld [vmem:[%s3 + $0xd30] sm:$0xff]
  %v3812 = vld [vmem:[%s3 + $0xd38] sm:$0xff]
  %v3813 = vld [vmem:[%s3 + $0xd40] sm:$0xff]
  %v3814 = vld [vmem:[%s3 + $0xd48] sm:$0xff]
  %v3815 = vld [vmem:[%s3 + $0xd50] sm:$0xff]
  %v3816 = vld [vmem:[%s3 + $0xd58] sm:$0xff]
  %v3817 = vld [vmem:[%s3 + $0xd60] sm:$0xff]
  %v3818 = vld [vmem:[%s3 + $0xd68] sm:$0xff]
  %v3819 = vld [vmem:[%s3 + $0xd70] sm:$0xff]
  %v3820 = vld [vmem:[%s3 + $0xd78] sm:$0xff]
  %v3821 = vld [vmem:[%s3 + $0xd80] sm:$0xff]
  %v3822 = vld [vmem:[%s3 + $0xd88] sm:$0xff]
  %v3823 = vld [vmem:[%s3 + $0xd90] sm:$0xff]
  %v3824 = vld [vmem:[%s3 + $0xd98] sm:$0xff]
  %v3825 = vld [vmem:[%s3 + $0xda0] sm:$0xff]
  %v3826 = vld [vmem:[%s3 + $0xda8] sm:$0xff]
  %v3827 = vld [vmem:[%s3 + $0xdb0] sm:$0xff]
  %v3828 = vld [vmem:[%s3 + $0xdb8] sm:$0xff]
  %v3829 = vld [vmem:[%s3 + $0xdc0] sm:$0xff]
  %v3830 = vld [vmem:[%s3 + $0xdc8] sm:$0xff]
  %v3831 = vld [vmem:[%s3 + $0xdd0] sm:$0xff]
  %v3832 = vld [vmem:[%s3 + $0xdd8] sm:$0xff]
  %v3833 = vld [vmem:[%s3 + $0xde0] sm:$0xff]
  %v3834 = vld [vmem:[%s3 + $0xde8] sm:$0xff]
  %v3835 = vld [vmem:[%s3 + $0xdf0] sm:$0xff]
  %v3836 = vld [vmem:[%s3 + $0xdf8] sm:$0xff]
  %v3837 = vld [vmem:[%s3 + $0xe00] sm:$0xff]
  %v3838 = vld [vmem:[%s3 + $0xe08] sm:$0xff]
  %v3839 = vld [vmem:[%s3 + $0xe10] sm:$0xff]
  %v3840 = vld [vmem:[%s3 + $0xe18] sm:$0xff]
  %v3841 = vld [vmem:[%s3 + $0xe20] sm:$0xff]
  %v3842 = vld [vmem:[%s3 + $0xe28] sm:$0xff]
  %v3843 = vld [vmem:[%s3 + $0xe30] sm:$0xff]
  %v3844 = vld [vmem:[%s3 + $0xe38] sm:$0xff]
  %v3845 = vld [vmem:[%s3 + $0xe40] sm:$0xff]
  %v3846 = vld [vmem:[%s3 + $0xe48] sm:$0xff]
  %v3847 = vld [vmem:[%s3 + $0xe50] sm:$0xff]
  %v3848 = vld [vmem:[%s3 + $0xe58] sm:$0xff]
  %v3849 = vld [vmem:[%s3 + $0xe60] sm:$0xff]
  %v3850 = vld [vmem:[%s3 + $0xe68] sm:$0xff]
  %v3851 = vld [vmem:[%s3 + $0xe70] sm:$0xff]
  %v3852 = vld [vmem:[%s3 + $0xe78] sm:$0xff]
  %v3853 = vld [vmem:[%s3 + $0xe80] sm:$0xff]
  %v3854 = vld [vmem:[%s3 + $0xe88] sm:$0xff]
  %v3855 = vld [vmem:[%s3 + $0xe90] sm:$0xff]
  %v3856 = vld [vmem:[%s3 + $0xe98] sm:$0xff]
  %v3857 = vld [vmem:[%s3 + $0xea0] sm:$0xff]
  %v3858 = vld [vmem:[%s3 + $0xea8] sm:$0xff]
  %v3859 = vld [vmem:[%s3 + $0xeb0] sm:$0xff]
  %v3860 = vld [vmem:[%s3 + $0xeb8] sm:$0xff]
  %v3861 = vld [vmem:[%s3 + $0xec0] sm:$0xff]
  %v3862 = vld [vmem:[%s3 + $0xec8] sm:$0xff]
  %v3863 = vld [vmem:[%s3 + $0xed0] sm:$0xff]
  %v3864 = vld [vmem:[%s3 + $0xed8] sm:$0xff]
  %v3865 = vld [vmem:[%s3 + $0xee0] sm:$0xff]
  %v3866 = vld [vmem:[%s3 + $0xee8] sm:$0xff]
  %v3867 = vld [vmem:[%s3 + $0xef0] sm:$0xff]
  %v3868 = vld [vmem:[%s3 + $0xef8] sm:$0xff]
  %v3869 = vld [vmem:[%s3 + $0xf00] sm:$0xff]
  %v3870 = vld [vmem:[%s3 + $0xf08] sm:$0xff]
  %v3871 = vld [vmem:[%s3 + $0xf10] sm:$0xff]
  %v3872 = vld [vmem:[%s3 + $0xf18] sm:$0xff]
  %v3873 = vld [vmem:[%s3 + $0xf20] sm:$0xff]
  %v3874 = vld [vmem:[%s3 + $0xf28] sm:$0xff]
  %v3875 = vld [vmem:[%s3 + $0xf30] sm:$0xff]
  %v3876 = vld [vmem:[%s3 + $0xf38] sm:$0xff]
  %v3877 = vld [vmem:[%s3 + $0xf40] sm:$0xff]
  %v3878 = vld [vmem:[%s3 + $0xf48] sm:$0xff]
  %v3879 = vld [vmem:[%s3 + $0xf50] sm:$0xff]
  %v3880 = vld [vmem:[%s3 + $0xf58] sm:$0xff]
  %v3881 = vld [vmem:[%s3 + $0xf60] sm:$0xff]
  %v3882 = vld [vmem:[%s3 + $0xf68] sm:$0xff]
  %v3883 = vld [vmem:[%s3 + $0xf70] sm:$0xff]
  %v3884 = vld [vmem:[%s3 + $0xf78] sm:$0xff]
  %v3885 = vld [vmem:[%s3 + $0xf80] sm:$0xff]
  %v3886 = vld [vmem:[%s3 + $0xf88] sm:$0xff]
  %v3887 = vld [vmem:[%s3 + $0xf90] sm:$0xff]
  %v3888 = vld [vmem:[%s3 + $0xf98] sm:$0xff]
  %v3889 = vld [vmem:[%s3 + $0xfa0] sm:$0xff]
  %v3890 = vld [vmem:[%s3 + $0xfa8] sm:$0xff]
  %v3891 = vld [vmem:[%s3 + $0xfb0] sm:$0xff]
  %v3892 = vld [vmem:[%s3 + $0xfb8] sm:$0xff]
  %v3893 = vld [vmem:[%s3 + $0xfc0] sm:$0xff]
  %v3894 = vld [vmem:[%s3 + $0xfc8] sm:$0xff]
  %v3895 = vld [vmem:[%s3 + $0xfd0] sm:$0xff]
  %v3896 = vld [vmem:[%s3 + $0xfd8] sm:$0xff]
  %v3897 = vld [vmem:[%s3 + $0xfe0] sm:$0xff]
  %v3898 = vld [vmem:[%s3 + $0xfe8] sm:$0xff]
  %v3899 = vld [vmem:[%s3 + $0xff0] sm:$0xff]
  %v3900 = vld [vmem:[%s3 + $0xff8] sm:$0xff]
  %v3901 = vld [vmem:[%s3 + $0x1000] sm:$0xff]
  %v3902 = vld [vmem:[%s3 + $0x1008] sm:$0xff]
  %v3903 = vld [vmem:[%s3 + $0x1010] sm:$0xff]
  %v3904 = vld [vmem:[%s3 + $0x1018] sm:$0xff]
  %v3905 = vld [vmem:[%s3 + $0x1020] sm:$0xff]
  %v3906 = vld [vmem:[%s3 + $0x1028] sm:$0xff]
  %v3907 = vld [vmem:[%s3 + $0x1030] sm:$0xff]
  %v3908 = vld [vmem:[%s3 + $0x1038] sm:$0xff]
  %v3909 = vld [vmem:[%s3 + $0x1040] sm:$0xff]
  %v3910 = vld [vmem:[%s3 + $0x1048] sm:$0xff]
  %v3911 = vld [vmem:[%s3 + $0x1050] sm:$0xff]
  %v3912 = vld [vmem:[%s3 + $0x1058] sm:$0xff]
  %v3913 = vld [vmem:[%s3 + $0x1060] sm:$0xff]
  %v3914 = vld [vmem:[%s3 + $0x1068] sm:$0xff]
  %v3915 = vld [vmem:[%s3 + $0x1070] sm:$0xff]
  %v3916 = vld [vmem:[%s3 + $0x1078] sm:$0xff]
  %v3917 = vld [vmem:[%s3 + $0x1080] sm:$0xff]
  %v3918 = vld [vmem:[%s3 + $0x1088] sm:$0xff]
  %v3919 = vld [vmem:[%s3 + $0x1090] sm:$0xff]
  %v3920 = vld [vmem:[%s3 + $0x1098] sm:$0xff]
  %v3921 = vld [vmem:[%s3 + $0x10a0] sm:$0xff]
  %v3922 = vld [vmem:[%s3 + $0x10a8] sm:$0xff]
  %v3923 = vld [vmem:[%s3 + $0x10b0] sm:$0xff]
  %v3924 = vld [vmem:[%s3 + $0x10b8] sm:$0xff]
  %v3925 = vld [vmem:[%s3 + $0x10c0] sm:$0xff]
  %v3926 = vld [vmem:[%s3 + $0x10c8] sm:$0xff]
  %v3927 = vld [vmem:[%s3 + $0x10d0] sm:$0xff]
  %v3928 = vld [vmem:[%s3 + $0x10d8] sm:$0xff]
  %v3929 = vld [vmem:[%s3 + $0x10e0] sm:$0xff]
  %v3930 = vld [vmem:[%s3 + $0x10e8] sm:$0xff]
  %v3931 = vld [vmem:[%s3 + $0x10f0] sm:$0xff]
  %v3932 = vld [vmem:[%s3 + $0x10f8] sm:$0xff]
  %v3933 = vld [vmem:[%s3 + $0x1100] sm:$0xff]
  %v3934 = vld [vmem:[%s3 + $0x1108] sm:$0xff]
  %v3935 = vld [vmem:[%s3 + $0x1110] sm:$0xff]
  %v3936 = vld [vmem:[%s3 + $0x1118] sm:$0xff]
  %v3937 = vld [vmem:[%s3 + $0x1120] sm:$0xff]
  %v3938 = vld [vmem:[%s3 + $0x1128] sm:$0xff]
  %v3939 = vld [vmem:[%s3 + $0x1130] sm:$0xff]
  %v3940 = vld [vmem:[%s3 + $0x1138] sm:$0xff]
  %v3941 = vld [vmem:[%s3 + $0x1140] sm:$0xff]
  %v3942 = vld [vmem:[%s3 + $0x1148] sm:$0xff]
  %v3943 = vld [vmem:[%s3 + $0x1150] sm:$0xff]
  %v3944 = vld [vmem:[%s3 + $0x1158] sm:$0xff]
  %v3945 = vld [vmem:[%s3 + $0x1160] sm:$0xff]
  %v3946 = vld [vmem:[%s3 + $0x1168] sm:$0xff]
  %v3947 = vld [vmem:[%s3 + $0x1170] sm:$0xff]
  %v3948 = vld [vmem:[%s3 + $0x1178] sm:$0xff]
  %v3949 = vld [vmem:[%s3 + $0x1180] sm:$0xff]
  %v3950 = vld [vmem:[%s3 + $0x1188] sm:$0xff]
  %v3951 = vld [vmem:[%s3 + $0x1190] sm:$0xff]
  %v3952 = vld [vmem:[%s3 + $0x1198] sm:$0xff]
  %v3953 = vld [vmem:[%s3 + $0x11a0] sm:$0xff]
  %v3954 = vld [vmem:[%s3 + $0x11a8] sm:$0xff]
  %v3955 = vld [vmem:[%s3 + $0x11b0] sm:$0xff]
  %v3956 = vld [vmem:[%s3 + $0x11b8] sm:$0xff]
  %v3957 = vld [vmem:[%s3 + $0x11c0] sm:$0xff]
  %v3958 = vld [vmem:[%s3 + $0x11c8] sm:$0xff]
  %v3959 = vld [vmem:[%s3 + $0x11d0] sm:$0xff]
  %v3960 = vld [vmem:[%s3 + $0x11d8] sm:$0xff]
  %v3961 = vld [vmem:[%s3 + $0x11e0] sm:$0xff]
  %v3962 = vld [vmem:[%s3 + $0x11e8] sm:$0xff]
  %v3963 = vld [vmem:[%s3 + $0x11f0] sm:$0xff]
  %v3964 = vld [vmem:[%s3 + $0x11f8] sm:$0xff]
  %v3965 = vld [vmem:[%s3 + $0x1200] sm:$0xff]
  %v3966 = vld [vmem:[%s3 + $0x1208] sm:$0xff]
  %v3967 = vld [vmem:[%s3 + $0x1210] sm:$0xff]
  %v3968 = vld [vmem:[%s3 + $0x1218] sm:$0xff]
  %v3969 = vld [vmem:[%s3 + $0x1220] sm:$0xff]
  %v3970 = vld [vmem:[%s3 + $0x1228] sm:$0xff]
  %v3971 = vld [vmem:[%s3 + $0x1230] sm:$0xff]
  %v3972 = vld [vmem:[%s3 + $0x1238] sm:$0xff]
  %v3973 = vld [vmem:[%s3 + $0x1240] sm:$0xff]
  %v3974 = vld [vmem:[%s3 + $0x1248] sm:$0xff]
  %v3975 = vld [vmem:[%s3 + $0x1250] sm:$0xff]
  %v3976 = vld [vmem:[%s3 + $0x1258] sm:$0xff]
  %v3977 = vld [vmem:[%s3 + $0x1260] sm:$0xff]
  %v3978 = vld [vmem:[%s3 + $0x1268] sm:$0xff]
  %v3979 = vld [vmem:[%s3 + $0x1270] sm:$0xff]
  %v3980 = vld [vmem:[%s3 + $0x1278] sm:$0xff]
  %v3981 = vld [vmem:[%s3 + $0x1280] sm:$0xff]
  %v3982 = vld [vmem:[%s3 + $0x1288] sm:$0xff]
  %v3983 = vld [vmem:[%s3 + $0x1290] sm:$0xff]
  %v3984 = vld [vmem:[%s3 + $0x1298] sm:$0xff]
  %v3985 = vld [vmem:[%s3 + $0x12a0] sm:$0xff]
  %v3986 = vld [vmem:[%s3 + $0x12a8] sm:$0xff]
  %v3987 = vld [vmem:[%s3 + $0x12b0] sm:$0xff]
  %v3988 = vld [vmem:[%s3 + $0x12b8] sm:$0xff]
  %v3989 = vld [vmem:[%s3 + $0x12c0] sm:$0xff]
  %v3990 = vld [vmem:[%s3 + $0x12c8] sm:$0xff]
  %v3991 = vld [vmem:[%s3 + $0x12d0] sm:$0xff]
  %v3992 = vld [vmem:[%s3 + $0x12d8] sm:$0xff]
  %v3993 = vld [vmem:[%s3 + $0x12e0] sm:$0xff]
  %v3994 = vld [vmem:[%s3 + $0x12e8] sm:$0xff]
  %v3995 = vld [vmem:[%s3 + $0x12f0] sm:$0xff]
  %v3996 = vld [vmem:[%s3 + $0x12f8] sm:$0xff]
  %v3997 = vld [vmem:[%s3 + $0x1300] sm:$0xff]
  %v3998 = vld [vmem:[%s3 + $0x1308] sm:$0xff]
  %v3999 = vld [vmem:[%s3 + $0x1310] sm:$0xff]
  %v4000 = vld [vmem:[%s3 + $0x1318] sm:$0xff]
  %v4001 = vld [vmem:[%s3 + $0x1320] sm:$0xff]
  %v4002 = vld [vmem:[%s3 + $0x1328] sm:$0xff]
  %v4003 = vld [vmem:[%s3 + $0x1330] sm:$0xff]
  %v4004 = vld [vmem:[%s3 + $0x1338] sm:$0xff]
  %v4005 = vld [vmem:[%s3 + $0x1340] sm:$0xff]
  %v4006 = vld [vmem:[%s3 + $0x1348] sm:$0xff]
  %v4007 = vld [vmem:[%s3 + $0x1350] sm:$0xff]
  %v4008 = vld [vmem:[%s3 + $0x1358] sm:$0xff]
  %v4009 = vld [vmem:[%s3 + $0x1360] sm:$0xff]
  %v4010 = vld [vmem:[%s3 + $0x1368] sm:$0xff]
  %v4011 = vld [vmem:[%s3 + $0x1370] sm:$0xff]
  %v4012 = vld [vmem:[%s3 + $0x1378] sm:$0xff]
  %v4013 = vld [vmem:[%s3 + $0x1380] sm:$0xff]
  %v4014 = vld [vmem:[%s3 + $0x1388] sm:$0xff]
  %v4015 = vld [vmem:[%s3 + $0x1390] sm:$0xff]
  %v4016 = vld [vmem:[%s3 + $0x1398] sm:$0xff]
  %v4017 = vld [vmem:[%s3 + $0x13a0] sm:$0xff]
  %v4018 = vld [vmem:[%s3 + $0x13a8] sm:$0xff]
  %v4019 = vld [vmem:[%s3 + $0x13b0] sm:$0xff]
  %v4020 = vld [vmem:[%s3 + $0x13b8] sm:$0xff]
  %v4021 = vld [vmem:[%s3 + $0x13c0] sm:$0xff]
  %v4022 = vld [vmem:[%s3 + $0x13c8] sm:$0xff]
  %v4023 = vld [vmem:[%s3 + $0x13d0] sm:$0xff]
  %v4024 = vld [vmem:[%s3 + $0x13d8] sm:$0xff]
  %v4025 = vld [vmem:[%s3 + $0x13e0] sm:$0xff]
  %v4026 = vld [vmem:[%s3 + $0x13e8] sm:$0xff]
  %v4027 = vld [vmem:[%s3 + $0x13f0] sm:$0xff]
  %v4028 = vld [vmem:[%s3 + $0x13f8] sm:$0xff]
  %v4029 = vld [vmem:[%s3 + $0x1400] sm:$0xff]
  %v4030 = vld [vmem:[%s3 + $0x1408] sm:$0xff]
  %v4031 = vld [vmem:[%s3 + $0x1410] sm:$0xff]
  %v4032 = vld [vmem:[%s3 + $0x1418] sm:$0xff]
  %v4033 = vld [vmem:[%s3 + $0x1420] sm:$0xff]
  %v4034 = vld [vmem:[%s3 + $0x1428] sm:$0xff]
  %v4035 = vld [vmem:[%s3 + $0x1430] sm:$0xff]
  %v4036 = vld [vmem:[%s3 + $0x1438] sm:$0xff]
  %v4037 = vld [vmem:[%s3 + $0x1440] sm:$0xff]
  %v4038 = vld [vmem:[%s3 + $0x1448] sm:$0xff]
  %v4039 = vld [vmem:[%s3 + $0x1450] sm:$0xff]
  %v4040 = vld [vmem:[%s3 + $0x1458] sm:$0xff]
  %v4041 = vld [vmem:[%s3 + $0x1460] sm:$0xff]
  %v4042 = vld [vmem:[%s3 + $0x1468] sm:$0xff]
  %v4043 = vld [vmem:[%s3 + $0x1470] sm:$0xff]
  %v4044 = vld [vmem:[%s3 + $0x1478] sm:$0xff]
  %v4045 = vld [vmem:[%s3 + $0x1480] sm:$0xff]
  %v4046 = vld [vmem:[%s3 + $0x1488] sm:$0xff]
  %v4047 = vld [vmem:[%s3 + $0x1490] sm:$0xff]
  %v4048 = vld [vmem:[%s3 + $0x1498] sm:$0xff]
  %v4049 = vld [vmem:[%s3 + $0x14a0] sm:$0xff]
  %v4050 = vld [vmem:[%s3 + $0x14a8] sm:$0xff]
  %v4051 = vld [vmem:[%s3 + $0x14b0] sm:$0xff]
  %v4052 = vld [vmem:[%s3 + $0x14b8] sm:$0xff]
  %v4053 = vld [vmem:[%s3 + $0x14c0] sm:$0xff]
  %v4054 = vld [vmem:[%s3 + $0x14c8] sm:$0xff]
  %v4055 = vld [vmem:[%s3 + $0x14d0] sm:$0xff]
  %v4056 = vld [vmem:[%s3 + $0x14d8] sm:$0xff]
  %v4057 = vld [vmem:[%s3 + $0x14e0] sm:$0xff]
  %v4058 = vld [vmem:[%s3 + $0x14e8] sm:$0xff]
  %v4059 = vld [vmem:[%s3 + $0x14f0] sm:$0xff]
  %v4060 = vld [vmem:[%s3 + $0x14f8] sm:$0xff]
  %v4061 = vld [vmem:[%s3 + $0x1500] sm:$0xff]
  %v4062 = vld [vmem:[%s3 + $0x1508] sm:$0xff]
  %v4063 = vld [vmem:[%s3 + $0x1510] sm:$0xff]
  %v4064 = vld [vmem:[%s3 + $0x1518] sm:$0xff]
  %v4065 = vld [vmem:[%s3 + $0x1520] sm:$0xff]
  %v4066 = vld [vmem:[%s3 + $0x1528] sm:$0xff]
  %v4067 = vld [vmem:[%s3 + $0x1530] sm:$0xff]
  %v4068 = vld [vmem:[%s3 + $0x1538] sm:$0xff]
  %v4069 = vld [vmem:[%s3 + $0x1540] sm:$0xff]
  %v4070 = vld [vmem:[%s3 + $0x1548] sm:$0xff]
  %v4071 = vld [vmem:[%s3 + $0x1550] sm:$0xff]
  %v4072 = vld [vmem:[%s3 + $0x1558] sm:$0xff]
  %v4073 = vld [vmem:[%s3 + $0x1560] sm:$0xff]
  %v4074 = vld [vmem:[%s3 + $0x1568] sm:$0xff]
  %v4075 = vld [vmem:[%s3 + $0x1570] sm:$0xff]
  %v4076 = vld [vmem:[%s3 + $0x1578] sm:$0xff]
  %v4077 = vld [vmem:[%s3 + $0x1580] sm:$0xff]
  %v4078 = vld [vmem:[%s3 + $0x1588] sm:$0xff]
  %v4079 = vld [vmem:[%s3 + $0x1590] sm:$0xff]
  %v4080 = vld [vmem:[%s3 + $0x1598] sm:$0xff]
  %v4081 = vld [vmem:[%s3 + $0x15a0] sm:$0xff]
  %v4082 = vld [vmem:[%s3 + $0x15a8] sm:$0xff]
  %v4083 = vld [vmem:[%s3 + $0x15b0] sm:$0xff]
  %v4084 = vld [vmem:[%s3 + $0x15b8] sm:$0xff]
  %v4085 = vld [vmem:[%s3 + $0x15c0] sm:$0xff]
  %v4086 = vld [vmem:[%s3 + $0x15c8] sm:$0xff]
  %v4087 = vld [vmem:[%s3 + $0x15d0] sm:$0xff]
  %v4088 = vld [vmem:[%s3 + $0x15d8] sm:$0xff]
  %v4089 = vld [vmem:[%s3 + $0x15e0] sm:$0xff]
  %v4090 = vld [vmem:[%s3 + $0x15e8] sm:$0xff]
  %v4091 = vld [vmem:[%s3 + $0x15f0] sm:$0xff]
  %v4092 = vld [vmem:[%s3 + $0x15f8] sm:$0xff]
  %v4093 = vld [vmem:[%s3 + $0x1600] sm:$0xff]
  %v4094 = vld [vmem:[%s3 + $0x1608] sm:$0xff]
  %v4095 = vld [vmem:[%s3 + $0x1610] sm:$0xff]
  %v4096 = vld [vmem:[%s3 + $0x1618] sm:$0xff]
  %v4097 = vld [vmem:[%s3 + $0x1620] sm:$0xff]
  %v4098 = vld [vmem:[%s3 + $0x1628] sm:$0xff]
  %v4099 = vld [vmem:[%s3 + $0x1630] sm:$0xff]
  %v4100 = vld [vmem:[%s3 + $0x1638] sm:$0xff]
  %v4101 = vld [vmem:[%s3 + $0x1640] sm:$0xff]
  %v4102 = vld [vmem:[%s3 + $0x1648] sm:$0xff]
  %v4103 = vld [vmem:[%s3 + $0x1650] sm:$0xff]
  %v4104 = vld [vmem:[%s3 + $0x1658] sm:$0xff]
  %v4105 = vld [vmem:[%s3 + $0x1660] sm:$0xff]
  %v4106 = vld [vmem:[%s3 + $0x1668] sm:$0xff]
  %v4107 = vld [vmem:[%s3 + $0x1670] sm:$0xff]
  %v4108 = vld [vmem:[%s3 + $0x1678] sm:$0xff]
  %v4109 = vld [vmem:[%s3 + $0x1680] sm:$0xff]
  %v4110 = vld [vmem:[%s3 + $0x1688] sm:$0xff]
  %v4111 = vld [vmem:[%s3 + $0x1690] sm:$0xff]
  %v4112 = vld [vmem:[%s3 + $0x1698] sm:$0xff]
  %v4113 = vld [vmem:[%s3 + $0x16a0] sm:$0xff]
  %v4114 = vld [vmem:[%s3 + $0x16a8] sm:$0xff]
  %v4115 = vld [vmem:[%s3 + $0x16b0] sm:$0xff]
  %v4116 = vld [vmem:[%s3 + $0x16b8] sm:$0xff]
  %v4117 = vld [vmem:[%s3 + $0x16c0] sm:$0xff]
  %v4118 = vld [vmem:[%s3 + $0x16c8] sm:$0xff]
  %v4119 = vld [vmem:[%s3 + $0x16d0] sm:$0xff]
  %v4120 = vld [vmem:[%s3 + $0x16d8] sm:$0xff]
  %v4121 = vld [vmem:[%s3 + $0x16e0] sm:$0xff]
  %v4122 = vld [vmem:[%s3 + $0x16e8] sm:$0xff]
  %v4123 = vld [vmem:[%s3 + $0x16f0] sm:$0xff]
  %v4124 = vld [vmem:[%s3 + $0x16f8] sm:$0xff]
  %v4125 = vld [vmem:[%s3 + $0x1700] sm:$0xff]
  %v4126 = vld [vmem:[%s3 + $0x1708] sm:$0xff]
  %v4127 = vld [vmem:[%s3 + $0x1710] sm:$0xff]
  %v4128 = vld [vmem:[%s3 + $0x1718] sm:$0xff]
  %v4129 = vld [vmem:[%s3 + $0x1720] sm:$0xff]
  %v4130 = vld [vmem:[%s3 + $0x1728] sm:$0xff]
  %v4131 = vld [vmem:[%s3 + $0x1730] sm:$0xff]
  %v4132 = vld [vmem:[%s3 + $0x1738] sm:$0xff]
  %v4133 = vld [vmem:[%s3 + $0x1740] sm:$0xff]
  %v4134 = vld [vmem:[%s3 + $0x1748] sm:$0xff]
  %v4135 = vld [vmem:[%s3 + $0x1750] sm:$0xff]
  %v4136 = vld [vmem:[%s3 + $0x1758] sm:$0xff]
  %v4137 = vld [vmem:[%s3 + $0x1760] sm:$0xff]
  %v4138 = vld [vmem:[%s3 + $0x1768] sm:$0xff]
  %v4139 = vld [vmem:[%s3 + $0x1770] sm:$0xff]
  %v4140 = vld [vmem:[%s3 + $0x1778] sm:$0xff]
  %v4141 = vld [vmem:[%s3 + $0x1780] sm:$0xff]
  %v4142 = vld [vmem:[%s3 + $0x1788] sm:$0xff]
  %v4143 = vld [vmem:[%s3 + $0x1790] sm:$0xff]
  %v4144 = vld [vmem:[%s3 + $0x1798] sm:$0xff]
  %v4145 = vld [vmem:[%s3 + $0x17a0] sm:$0xff]
  %v4146 = vld [vmem:[%s3 + $0x17a8] sm:$0xff]
  %v4147 = vld [vmem:[%s3 + $0x17b0] sm:$0xff]
  %v4148 = vld [vmem:[%s3 + $0x17b8] sm:$0xff]
  %v4149 = vld [vmem:[%s3 + $0x17c0] sm:$0xff]
  %v4150 = vld [vmem:[%s3 + $0x17c8] sm:$0xff]
  %v4151 = vld [vmem:[%s3 + $0x17d0] sm:$0xff]
  %v4152 = vld [vmem:[%s3 + $0x17d8] sm:$0xff]
  %v4153 = vld [vmem:[%s3 + $0x17e0] sm:$0xff]
  %v4154 = vld [vmem:[%s3 + $0x17e8] sm:$0xff]
  %v4155 = vld [vmem:[%s3 + $0x17f0] sm:$0xff]
  %v4156 = vld [vmem:[%s3 + $0x17f8] sm:$0xff]
  %v4157 = vld [vmem:[%s3 + $0x1800] sm:$0xff]
  %v4158 = vld [vmem:[%s3 + $0x1808] sm:$0xff]
  %v4159 = vld [vmem:[%s3 + $0x1810] sm:$0xff]
  %v4160 = vld [vmem:[%s3 + $0x1818] sm:$0xff]
  %v4161 = vld [vmem:[%s3 + $0x1820] sm:$0xff]
  %v4162 = vld [vmem:[%s3 + $0x1828] sm:$0xff]
  %v4163 = vld [vmem:[%s3 + $0x1830] sm:$0xff]
  %v4164 = vld [vmem:[%s3 + $0x1838] sm:$0xff]
  %v4165 = vld [vmem:[%s3 + $0x1840] sm:$0xff]
  %v4166 = vld [vmem:[%s3 + $0x1848] sm:$0xff]
  %v4167 = vld [vmem:[%s3 + $0x1850] sm:$0xff]
  %v4168 = vld [vmem:[%s3 + $0x1858] sm:$0xff]
  %v4169 = vld [vmem:[%s3 + $0x1860] sm:$0xff]
  %v4170 = vld [vmem:[%s3 + $0x1868] sm:$0xff]
  %v4171 = vld [vmem:[%s3 + $0x1870] sm:$0xff]
  %v4172 = vld [vmem:[%s3 + $0x1878] sm:$0xff]
  %v4173 = vld [vmem:[%s3 + $0x1880] sm:$0xff]
  %v4174 = vld [vmem:[%s3 + $0x1888] sm:$0xff]
  %v4175 = vld [vmem:[%s3 + $0x1890] sm:$0xff]
  %v4176 = vld [vmem:[%s3 + $0x1898] sm:$0xff]
  %v4177 = vld [vmem:[%s3 + $0x18a0] sm:$0xff]
  %v4178 = vld [vmem:[%s3 + $0x18a8] sm:$0xff]
  %v4179 = vld [vmem:[%s3 + $0x18b0] sm:$0xff]
  %v4180 = vld [vmem:[%s3 + $0x18b8] sm:$0xff]
  %v4181 = vld [vmem:[%s3 + $0x18c0] sm:$0xff]
  %v4182 = vld [vmem:[%s3 + $0x18c8] sm:$0xff]
  %v4183 = vld [vmem:[%s3 + $0x18d0] sm:$0xff]
  %v4184 = vld [vmem:[%s3 + $0x18d8] sm:$0xff]
  %v4185 = vld [vmem:[%s3 + $0x18e0] sm:$0xff]
  %v4186 = vld [vmem:[%s3 + $0x18e8] sm:$0xff]
  %v4187 = vld [vmem:[%s3 + $0x18f0] sm:$0xff]
  %v4188 = vld [vmem:[%s3 + $0x18f8] sm:$0xff]
  %v4189 = vld [vmem:[%s3 + $0x1900] sm:$0xff]
  %v4190 = vld [vmem:[%s3 + $0x1908] sm:$0xff]
  %v4191 = vld [vmem:[%s3 + $0x1910] sm:$0xff]
  %v4192 = vld [vmem:[%s3 + $0x1918] sm:$0xff]
  %v4193 = vld [vmem:[%s3 + $0x1920] sm:$0xff]
  %v4194 = vld [vmem:[%s3 + $0x1928] sm:$0xff]
  %v4195 = vld [vmem:[%s3 + $0x1930] sm:$0xff]
  %v4196 = vld [vmem:[%s3 + $0x1938] sm:$0xff]
  %v4197 = vld [vmem:[%s3 + $0x1940] sm:$0xff]
  %v4198 = vld [vmem:[%s3 + $0x1948] sm:$0xff]
  %v4199 = vld [vmem:[%s3 + $0x1950] sm:$0xff]
  %v4200 = vld [vmem:[%s3 + $0x1958] sm:$0xff]
  %v4201 = vld [vmem:[%s3 + $0x1960] sm:$0xff]
  %v4202 = vld [vmem:[%s3 + $0x1968] sm:$0xff]
  %v4203 = vld [vmem:[%s3 + $0x1970] sm:$0xff]
  %v4204 = vld [vmem:[%s3 + $0x1978] sm:$0xff]
  %v4205 = vld [vmem:[%s3 + $0x1980] sm:$0xff]
  %v4206 = vld [vmem:[%s3 + $0x1988] sm:$0xff]
  %v4207 = vld [vmem:[%s3 + $0x1990] sm:$0xff]
  %v4208 = vld [vmem:[%s3 + $0x1998] sm:$0xff]
  %v4209 = vld [vmem:[%s3 + $0x19a0] sm:$0xff]
  %v4210 = vld [vmem:[%s3 + $0x19a8] sm:$0xff]
  %v4211 = vld [vmem:[%s3 + $0x19b0] sm:$0xff]
  %v4212 = vld [vmem:[%s3 + $0x19b8] sm:$0xff]
  %v4213 = vld [vmem:[%s3 + $0x19c0] sm:$0xff]
  %v4214 = vld [vmem:[%s3 + $0x19c8] sm:$0xff]
  %v4215 = vld [vmem:[%s3 + $0x19d0] sm:$0xff]
  %v4216 = vld [vmem:[%s3 + $0x19d8] sm:$0xff]
  %v4217 = vld [vmem:[%s3 + $0x19e0] sm:$0xff]
  %v4218 = vld [vmem:[%s3 + $0x19e8] sm:$0xff]
  %v4219 = vld [vmem:[%s3 + $0x19f0] sm:$0xff]
  %v4220 = vld [vmem:[%s3 + $0x19f8] sm:$0xff]
  %v4221 = vld [vmem:[%s3 + $0x1a00] sm:$0xff]
  %v4222 = vld [vmem:[%s3 + $0x1a08] sm:$0xff]
  %v4223 = vld [vmem:[%s3 + $0x1a10] sm:$0xff]
  %v4224 = vld [vmem:[%s3 + $0x1a18] sm:$0xff]
  %v4225 = vld [vmem:[%s3 + $0x1a20] sm:$0xff]
  %v4226 = vld [vmem:[%s3 + $0x1a28] sm:$0xff]
  %v4227 = vld [vmem:[%s3 + $0x1a30] sm:$0xff]
  %v4228 = vld [vmem:[%s3 + $0x1a38] sm:$0xff]
  %v4229 = vld [vmem:[%s3 + $0x1a40] sm:$0xff]
  %v4230 = vld [vmem:[%s3 + $0x1a48] sm:$0xff]
  %v4231 = vld [vmem:[%s3 + $0x1a50] sm:$0xff]
  %v4232 = vld [vmem:[%s3 + $0x1a58] sm:$0xff]
  %v4233 = vld [vmem:[%s3 + $0x1a60] sm:$0xff]
  %v4234 = vld [vmem:[%s3 + $0x1a68] sm:$0xff]
  %v4235 = vld [vmem:[%s3 + $0x1a70] sm:$0xff]
  %v4236 = vld [vmem:[%s3 + $0x1a78] sm:$0xff]
  %v4237 = vld [vmem:[%s3 + $0x1a80] sm:$0xff]
  %v4238 = vld [vmem:[%s3 + $0x1a88] sm:$0xff]
  %v4239 = vld [vmem:[%s3 + $0x1a90] sm:$0xff]
  %v4240 = vld [vmem:[%s3 + $0x1a98] sm:$0xff]
  %v4241 = vld [vmem:[%s3 + $0x1aa0] sm:$0xff]
  %v4242 = vld [vmem:[%s3 + $0x1aa8] sm:$0xff]
  %v4243 = vld [vmem:[%s3 + $0x1ab0] sm:$0xff]
  %v4244 = vld [vmem:[%s3 + $0x1ab8] sm:$0xff]
  %v4245 = vld [vmem:[%s3 + $0x1ac0] sm:$0xff]
  %v4246 = vld [vmem:[%s3 + $0x1ac8] sm:$0xff]
  %v4247 = vld [vmem:[%s3 + $0x1ad0] sm:$0xff]
  %v4248 = vld [vmem:[%s3 + $0x1ad8] sm:$0xff]
  %v4249 = vld [vmem:[%s3 + $0x1ae0] sm:$0xff]
  %v4250 = vld [vmem:[%s3 + $0x1ae8] sm:$0xff]
  %v4251 = vld [vmem:[%s3 + $0x1af0] sm:$0xff]
  %v4252 = vld [vmem:[%s3 + $0x1af8] sm:$0xff]
  %v4253 = vld [vmem:[%s3 + $0x1b00] sm:$0xff]
  %v4254 = vld [vmem:[%s3 + $0x1b08] sm:$0xff]
  %v4255 = vld [vmem:[%s3 + $0x1b10] sm:$0xff]
  %v4256 = vld [vmem:[%s3 + $0x1b18] sm:$0xff]
  %v4257 = vld [vmem:[%s3 + $0x1b20] sm:$0xff]
  %v4258 = vld [vmem:[%s3 + $0x1b28] sm:$0xff]
  %v4259 = vld [vmem:[%s3 + $0x1b30] sm:$0xff]
  %v4260 = vld [vmem:[%s3 + $0x1b38] sm:$0xff]
  %v4261 = vld [vmem:[%s3 + $0x1b40] sm:$0xff]
  %v4262 = vld [vmem:[%s3 + $0x1b48] sm:$0xff]
  %v4263 = vld [vmem:[%s3 + $0x1b50] sm:$0xff]
  %v4264 = vld [vmem:[%s3 + $0x1b58] sm:$0xff]
  %v4265 = vld [vmem:[%s3 + $0x1b60] sm:$0xff]
  %v4266 = vld [vmem:[%s3 + $0x1b68] sm:$0xff]
  %v4267 = vld [vmem:[%s3 + $0x1b70] sm:$0xff]
  %v4268 = vld [vmem:[%s3 + $0x1b78] sm:$0xff]
  %v4269 = vld [vmem:[%s3 + $0x1b80] sm:$0xff]
  %v4270 = vld [vmem:[%s3 + $0x1b88] sm:$0xff]
  %v4271 = vld [vmem:[%s3 + $0x1b90] sm:$0xff]
  %v4272 = vld [vmem:[%s3 + $0x1b98] sm:$0xff]
  %v4273 = vld [vmem:[%s3 + $0x1ba0] sm:$0xff]
  %v4274 = vld [vmem:[%s3 + $0x1ba8] sm:$0xff]
  %v4275 = vld [vmem:[%s3 + $0x1bb0] sm:$0xff]
  %v4276 = vld [vmem:[%s3 + $0x1bb8] sm:$0xff]
  %v4277 = vld [vmem:[%s3 + $0x1bc0] sm:$0xff]
  %v4278 = vld [vmem:[%s3 + $0x1bc8] sm:$0xff]
  %v4279 = vld [vmem:[%s3 + $0x1bd0] sm:$0xff]
  %v4280 = vld [vmem:[%s3 + $0x1bd8] sm:$0xff]
  %v4281 = vld [vmem:[%s3 + $0x1be0] sm:$0xff]
  %v4282 = vld [vmem:[%s3 + $0x1be8] sm:$0xff]
  %v4283 = vld [vmem:[%s3 + $0x1bf0] sm:$0xff]
  %v4284 = vld [vmem:[%s3 + $0x1bf8] sm:$0xff]
  %v4285 = vld [vmem:[%s3 + $0x1c00] sm:$0xff]
  %v4286 = vld [vmem:[%s3 + $0x1c08] sm:$0xff]
  %v4287 = vld [vmem:[%s3 + $0x1c10] sm:$0xff]
  %v4288 = vld [vmem:[%s3 + $0x1c18] sm:$0xff]
  %v4289 = vld [vmem:[%s3 + $0x1c20] sm:$0xff]
  %v4290 = vld [vmem:[%s3 + $0x1c28] sm:$0xff]
  %v4291 = vld [vmem:[%s3 + $0x1c30] sm:$0xff]
  %v4292 = vld [vmem:[%s3 + $0x1c38] sm:$0xff]
  %v4293 = vld [vmem:[%s3 + $0x1c40] sm:$0xff]
  %v4294 = vld [vmem:[%s3 + $0x1c48] sm:$0xff]
  %v4295 = vld [vmem:[%s3 + $0x1c50] sm:$0xff]
  %v4296 = vld [vmem:[%s3 + $0x1c58] sm:$0xff]
  %v4297 = vld [vmem:[%s3 + $0x1c60] sm:$0xff]
  %v4298 = vld [vmem:[%s3 + $0x1c68] sm:$0xff]
  %v4299 = vld [vmem:[%s3 + $0x1c70] sm:$0xff]
  %v4300 = vld [vmem:[%s3 + $0x1c78] sm:$0xff]
  %v4301 = vld [vmem:[%s3 + $0x1c80] sm:$0xff]
  %v4302 = vld [vmem:[%s3 + $0x1c88] sm:$0xff]
  %v4303 = vld [vmem:[%s3 + $0x1c90] sm:$0xff]
  %v4304 = vld [vmem:[%s3 + $0x1c98] sm:$0xff]
  %v4305 = vld [vmem:[%s3 + $0x1ca0] sm:$0xff]
  %v4306 = vld [vmem:[%s3 + $0x1ca8] sm:$0xff]
  %v4307 = vld [vmem:[%s3 + $0x1cb0] sm:$0xff]
  %v4308 = vld [vmem:[%s3 + $0x1cb8] sm:$0xff]
  %v4309 = vld [vmem:[%s3 + $0x1cc0] sm:$0xff]
  %v4310 = vld [vmem:[%s3 + $0x1cc8] sm:$0xff]
  %v4311 = vld [vmem:[%s3 + $0x1cd0] sm:$0xff]
  %v4312 = vld [vmem:[%s3 + $0x1cd8] sm:$0xff]
  %v4313 = vld [vmem:[%s3 + $0x1ce0] sm:$0xff]
  %v4314 = vld [vmem:[%s3 + $0x1ce8] sm:$0xff]
  %v4315 = vld [vmem:[%s3 + $0x1cf0] sm:$0xff]
  %v4316 = vld [vmem:[%s3 + $0x1cf8] sm:$0xff]
  %v4317 = vld [vmem:[%s3 + $0x1d00] sm:$0xff]
  %v4318 = vld [vmem:[%s3 + $0x1d08] sm:$0xff]
  %v4319 = vld [vmem:[%s3 + $0x1d10] sm:$0xff]
  %v4320 = vld [vmem:[%s3 + $0x1d18] sm:$0xff]
  %v4321 = vld [vmem:[%s3 + $0x1d20] sm:$0xff]
  %v4322 = vld [vmem:[%s3 + $0x1d28] sm:$0xff]
  %v4323 = vld [vmem:[%s3 + $0x1d30] sm:$0xff]
  %v4324 = vld [vmem:[%s3 + $0x1d38] sm:$0xff]
  %v4325 = vld [vmem:[%s3 + $0x1d40] sm:$0xff]
  %v4326 = vld [vmem:[%s3 + $0x1d48] sm:$0xff]
  %v4327 = vld [vmem:[%s3 + $0x1d50] sm:$0xff]
  %v4328 = vld [vmem:[%s3 + $0x1d58] sm:$0xff]
  %v4329 = vld [vmem:[%s3 + $0x1d60] sm:$0xff]
  %v4330 = vld [vmem:[%s3 + $0x1d68] sm:$0xff]
  %v4331 = vld [vmem:[%s3 + $0x1d70] sm:$0xff]
  %v4332 = vld [vmem:[%s3 + $0x1d78] sm:$0xff]
  %v4333 = vld [vmem:[%s3 + $0x1d80] sm:$0xff]
  %v4334 = vld [vmem:[%s3 + $0x1d88] sm:$0xff]
  %v4335 = vld [vmem:[%s3 + $0x1d90] sm:$0xff]
  %v4336 = vld [vmem:[%s3 + $0x1d98] sm:$0xff]
  %v4337 = vld [vmem:[%s3 + $0x1da0] sm:$0xff]
  %v4338 = vld [vmem:[%s3 + $0x1da8] sm:$0xff]
  %v4339 = vld [vmem:[%s3 + $0x1db0] sm:$0xff]
  %v4340 = vld [vmem:[%s3 + $0x1db8] sm:$0xff]
  %v4341 = vld [vmem:[%s3 + $0x1dc0] sm:$0xff]
  %v4342 = vld [vmem:[%s3 + $0x1dc8] sm:$0xff]
  %v4343 = vld [vmem:[%s3 + $0x1dd0] sm:$0xff]
  %v4344 = vld [vmem:[%s3 + $0x1dd8] sm:$0xff]
  %v4345 = vld [vmem:[%s3 + $0x1de0] sm:$0xff]
  %v4346 = vld [vmem:[%s3 + $0x1de8] sm:$0xff]
  %v4347 = vld [vmem:[%s3 + $0x1df0] sm:$0xff]
  %v4348 = vld [vmem:[%s3 + $0x1df8] sm:$0xff]
  %v4349 = vld [vmem:[%s3 + $0x1e00] sm:$0xff]
  %v4350 = vld [vmem:[%s3 + $0x1e08] sm:$0xff]
  %v4351 = vld [vmem:[%s3 + $0x1e10] sm:$0xff]
  %v4352 = vld [vmem:[%s3 + $0x1e18] sm:$0xff]
  %v4353 = vld [vmem:[%s3 + $0x1e20] sm:$0xff]
  %v4354 = vld [vmem:[%s3 + $0x1e28] sm:$0xff]
  %v4355 = vld [vmem:[%s3 + $0x1e30] sm:$0xff]
  %v4356 = vld [vmem:[%s3 + $0x1e38] sm:$0xff]
  %v4357 = vld [vmem:[%s3 + $0x1e40] sm:$0xff]
  %v4358 = vld [vmem:[%s3 + $0x1e48] sm:$0xff]
  %v4359 = vld [vmem:[%s3 + $0x1e50] sm:$0xff]
  %v4360 = vld [vmem:[%s3 + $0x1e58] sm:$0xff]
  %v4361 = vld [vmem:[%s3 + $0x1e60] sm:$0xff]
  %v4362 = vld [vmem:[%s3 + $0x1e68] sm:$0xff]
  %v4363 = vld [vmem:[%s3 + $0x1e70] sm:$0xff]
  %v4364 = vld [vmem:[%s3 + $0x1e78] sm:$0xff]
  %v4365 = vld [vmem:[%s3 + $0x1e80] sm:$0xff]
  %v4366 = vld [vmem:[%s3 + $0x1e88] sm:$0xff]
  %v4367 = vld [vmem:[%s3 + $0x1e90] sm:$0xff]
  %v4368 = vld [vmem:[%s3 + $0x1e98] sm:$0xff]
  %v4369 = vld [vmem:[%s3 + $0x1ea0] sm:$0xff]
  %v4370 = vld [vmem:[%s3 + $0x1ea8] sm:$0xff]
  %v4371 = vld [vmem:[%s3 + $0x1eb0] sm:$0xff]
  %v4372 = vld [vmem:[%s3 + $0x1eb8] sm:$0xff]
  %v4373 = vld [vmem:[%s3 + $0x1ec0] sm:$0xff]
  %v4374 = vld [vmem:[%s3 + $0x1ec8] sm:$0xff]
  %v4375 = vld [vmem:[%s3 + $0x1ed0] sm:$0xff]
  %v4376 = vld [vmem:[%s3 + $0x1ed8] sm:$0xff]
  %v4377 = vld [vmem:[%s3 + $0x1ee0] sm:$0xff]
  %v4378 = vld [vmem:[%s3 + $0x1ee8] sm:$0xff]
  %v4379 = vld [vmem:[%s3 + $0x1ef0] sm:$0xff]
  %v4380 = vld [vmem:[%s3 + $0x1ef8] sm:$0xff]
  %v4381 = vld [vmem:[%s3 + $0x1f00] sm:$0xff]
  %v4382 = vld [vmem:[%s3 + $0x1f08] sm:$0xff]
  %v4383 = vld [vmem:[%s3 + $0x1f10] sm:$0xff]
  %v4384 = vld [vmem:[%s3 + $0x1f18] sm:$0xff]
  %v4385 = vld [vmem:[%s3 + $0x1f20] sm:$0xff]
  %v4386 = vld [vmem:[%s3 + $0x1f28] sm:$0xff]
  %v4387 = vld [vmem:[%s3 + $0x1f30] sm:$0xff]
  %v4388 = vld [vmem:[%s3 + $0x1f38] sm:$0xff]
  %v4389 = vld [vmem:[%s3 + $0x1f40] sm:$0xff]
  %v4390 = vld [vmem:[%s3 + $0x1f48] sm:$0xff]
  %v4391 = vld [vmem:[%s3 + $0x1f50] sm:$0xff]
  %v4392 = vld [vmem:[%s3 + $0x1f58] sm:$0xff]
  %v4393 = vld [vmem:[%s3 + $0x1f60] sm:$0xff]
  %v4394 = vld [vmem:[%s3 + $0x1f68] sm:$0xff]
  %v4395 = vld [vmem:[%s3 + $0x1f70] sm:$0xff]
  %v4396 = vld [vmem:[%s3 + $0x1f78] sm:$0xff]
  %v4397 = vld [vmem:[%s3 + $0x1f80] sm:$0xff]
  %v4398 = vld [vmem:[%s3 + $0x1f88] sm:$0xff]
  %v4399 = vld [vmem:[%s3 + $0x1f90] sm:$0xff]
  %v4400 = vld [vmem:[%s3 + $0x1f98] sm:$0xff]
  %v4401 = vld [vmem:[%s3 + $0x1fa0] sm:$0xff]
  %v4402 = vld [vmem:[%s3 + $0x1fa8] sm:$0xff]
  %v4403 = vld [vmem:[%s3 + $0x1fb0] sm:$0xff]
  %v4404 = vld [vmem:[%s3 + $0x1fb8] sm:$0xff]
  %v4405 = vld [vmem:[%s3 + $0x1fc0] sm:$0xff]
  %v4406 = vld [vmem:[%s3 + $0x1fc8] sm:$0xff]
  %v4407 = vld [vmem:[%s3 + $0x1fd0] sm:$0xff]
  %v4408 = vld [vmem:[%s3 + $0x1fd8] sm:$0xff]
  %v4409 = vld [vmem:[%s3 + $0x1fe0] sm:$0xff]
  %v4410 = vld [vmem:[%s3 + $0x1fe8] sm:$0xff]
  %v4411 = vld [vmem:[%s3 + $0x1ff0] sm:$0xff]
  %v4412 = vld [vmem:[%s3 + $0x1ff8] sm:$0xff]
  %v4413 = vld [vmem:[%s3 + $0x2000] sm:$0xff]
  %v4414 = vld [vmem:[%s3 + $0x2008] sm:$0xff]
  %v4415 = vld [vmem:[%s3 + $0x2010] sm:$0xff]
  %v4416 = vld [vmem:[%s3 + $0x2018] sm:$0xff]
  %v4417 = vld [vmem:[%s3 + $0x2020] sm:$0xff]
  %v4418 = vld [vmem:[%s3 + $0x2028] sm:$0xff]
  %v4419 = vld [vmem:[%s3 + $0x2030] sm:$0xff]
  %v4420 = vld [vmem:[%s3 + $0x2038] sm:$0xff]
  %v4421 = vld [vmem:[%s3 + $0x2040] sm:$0xff]
  %v4422 = vld [vmem:[%s3 + $0x2048] sm:$0xff]
  %v4423 = vld [vmem:[%s3 + $0x2050] sm:$0xff]
  %v4424 = vld [vmem:[%s3 + $0x2058] sm:$0xff]
  %v4425 = vld [vmem:[%s3 + $0x2060] sm:$0xff]
  %v4426 = vld [vmem:[%s3 + $0x2068] sm:$0xff]
  %v4427 = vld [vmem:[%s3 + $0x2070] sm:$0xff]
  %v4428 = vld [vmem:[%s3 + $0x2078] sm:$0xff]
  %v4429 = vld [vmem:[%s3 + $0x2080] sm:$0xff]
  %v4430 = vld [vmem:[%s3 + $0x2088] sm:$0xff]
  %v4431 = vld [vmem:[%s3 + $0x2090] sm:$0xff]
  %v4432 = vld [vmem:[%s3 + $0x2098] sm:$0xff]
  %v4433 = vld [vmem:[%s3 + $0x20a0] sm:$0xff]
  %v4434 = vld [vmem:[%s3 + $0x20a8] sm:$0xff]
  %v4435 = vld [vmem:[%s3 + $0x20b0] sm:$0xff]
  %v4436 = vld [vmem:[%s3 + $0x20b8] sm:$0xff]
  %v4437 = vld [vmem:[%s3 + $0x20c0] sm:$0xff]
  %v4438 = vld [vmem:[%s3 + $0x20c8] sm:$0xff]
  %v4439 = vld [vmem:[%s3 + $0x20d0] sm:$0xff]
  %v4440 = vld [vmem:[%s3 + $0x20d8] sm:$0xff]
  %v4441 = vld [vmem:[%s3 + $0x20e0] sm:$0xff]
  %v4442 = vld [vmem:[%s3 + $0x20e8] sm:$0xff]
  %v4443 = vld [vmem:[%s3 + $0x20f0] sm:$0xff]
  %v4444 = vld [vmem:[%s3 + $0x20f8] sm:$0xff]
  %v4445 = vld [vmem:[%s3 + $0x2100] sm:$0xff]
  %v4446 = vld [vmem:[%s3 + $0x2108] sm:$0xff]
  %v4447 = vld [vmem:[%s3 + $0x2110] sm:$0xff]
  %v4448 = vld [vmem:[%s3 + $0x2118] sm:$0xff]
  %v4449 = vld [vmem:[%s3 + $0x2120] sm:$0xff]
  %v4450 = vld [vmem:[%s3 + $0x2128] sm:$0xff]
  %v4451 = vld [vmem:[%s3 + $0x2130] sm:$0xff]
  %v4452 = vld [vmem:[%s3 + $0x2138] sm:$0xff]
  %v4453 = vld [vmem:[%s3 + $0x2140] sm:$0xff]
  %v4454 = vld [vmem:[%s3 + $0x2148] sm:$0xff]
  %v4455 = vld [vmem:[%s3 + $0x2150] sm:$0xff]
  %v4456 = vld [vmem:[%s3 + $0x2158] sm:$0xff]
  %v4457 = vld [vmem:[%s3 + $0x2160] sm:$0xff]
  %v4458 = vld [vmem:[%s3 + $0x2168] sm:$0xff]
  %v4459 = vld [vmem:[%s3 + $0x2170] sm:$0xff]
  %v4460 = vld [vmem:[%s3 + $0x2178] sm:$0xff]
  %v4461 = vld [vmem:[%s3 + $0x2180] sm:$0xff]
  %v4462 = vld [vmem:[%s3 + $0x2188] sm:$0xff]
  %v4463 = vld [vmem:[%s3 + $0x2190] sm:$0xff]
  %v4464 = vld [vmem:[%s3 + $0x2198] sm:$0xff]
  %v4465 = vld [vmem:[%s3 + $0x21a0] sm:$0xff]
  %v4466 = vld [vmem:[%s3 + $0x21a8] sm:$0xff]
  %v4467 = vld [vmem:[%s3 + $0x21b0] sm:$0xff]
  %v4468 = vld [vmem:[%s3 + $0x21b8] sm:$0xff]
  %v4469 = vld [vmem:[%s3 + $0x21c0] sm:$0xff]
  %v4470 = vld [vmem:[%s3 + $0x21c8] sm:$0xff]
  %v4471 = vld [vmem:[%s3 + $0x21d0] sm:$0xff]
  %v4472 = vld [vmem:[%s3 + $0x21d8] sm:$0xff]
  %v4473 = vld [vmem:[%s3 + $0x21e0] sm:$0xff]
  %v4474 = vld [vmem:[%s3 + $0x21e8] sm:$0xff]
  %v4475 = vld [vmem:[%s3 + $0x21f0] sm:$0xff]
  %v4476 = vld [vmem:[%s3 + $0x21f8] sm:$0xff]
  %v4477 = vld [vmem:[%s3 + $0x2200] sm:$0xff]
  %v4478 = vld [vmem:[%s3 + $0x2208] sm:$0xff]
  %v4479 = vld [vmem:[%s3 + $0x2210] sm:$0xff]
  %v4480 = vld [vmem:[%s3 + $0x2218] sm:$0xff]
  %v4481 = vld [vmem:[%s3 + $0x2220] sm:$0xff]
  %v4482 = vld [vmem:[%s3 + $0x2228] sm:$0xff]
  %v4483 = vld [vmem:[%s3 + $0x2230] sm:$0xff]
  %v4484 = vld [vmem:[%s3 + $0x2238] sm:$0xff]
  %v4485 = vld [vmem:[%s3 + $0x2240] sm:$0xff]
  %v4486 = vld [vmem:[%s3 + $0x2248] sm:$0xff]
  %v4487 = vld [vmem:[%s3 + $0x2250] sm:$0xff]
  %v4488 = vld [vmem:[%s3 + $0x2258] sm:$0xff]
  %v4489 = vld [vmem:[%s3 + $0x2260] sm:$0xff]
  %v4490 = vld [vmem:[%s3 + $0x2268] sm:$0xff]
  %v4491 = vld [vmem:[%s3 + $0x2270] sm:$0xff]
  %v4492 = vld [vmem:[%s3 + $0x2278] sm:$0xff]
  %v4493 = vld [vmem:[%s3 + $0x2280] sm:$0xff]
  %v4494 = vld [vmem:[%s3 + $0x2288] sm:$0xff]
  %v4495 = vld [vmem:[%s3 + $0x2290] sm:$0xff]
  %v4496 = vld [vmem:[%s3 + $0x2298] sm:$0xff]
  %v4497 = vld [vmem:[%s3 + $0x22a0] sm:$0xff]
  %v4498 = vld [vmem:[%s3 + $0x22a8] sm:$0xff]
  %v4499 = vld [vmem:[%s3 + $0x22b0] sm:$0xff]
  %v4500 = vld [vmem:[%s3 + $0x22b8] sm:$0xff]
  %v4501 = vld [vmem:[%s3 + $0x22c0] sm:$0xff]
  %v4502 = vld [vmem:[%s3 + $0x22c8] sm:$0xff]
  %v4503 = vld [vmem:[%s3 + $0x22d0] sm:$0xff]
  %v4504 = vld [vmem:[%s3 + $0x22d8] sm:$0xff]
  %v4505 = vld [vmem:[%s3 + $0x22e0] sm:$0xff]
  %v4506 = vld [vmem:[%s3 + $0x22e8] sm:$0xff]
  %v4507 = vld [vmem:[%s3 + $0x22f0] sm:$0xff]
  %v4508 = vld [vmem:[%s3 + $0x22f8] sm:$0xff]
  %v4509 = vld [vmem:[%s3 + $0x2300] sm:$0xff]
  %v4510 = vld [vmem:[%s3 + $0x2308] sm:$0xff]
  %v4511 = vld [vmem:[%s3 + $0x2310] sm:$0xff]
  %v4512 = vld [vmem:[%s3 + $0x2318] sm:$0xff]
  %v4513 = vld [vmem:[%s3 + $0x2320] sm:$0xff]
  %v4514 = vld [vmem:[%s3 + $0x2328] sm:$0xff]
  %v4515 = vld [vmem:[%s3 + $0x2330] sm:$0xff]
  %v4516 = vld [vmem:[%s3 + $0x2338] sm:$0xff]
  %v4517 = vld [vmem:[%s3 + $0x2340] sm:$0xff]
  %v4518 = vld [vmem:[%s3 + $0x2348] sm:$0xff]
  %v4519 = vld [vmem:[%s3 + $0x2350] sm:$0xff]
  %v4520 = vld [vmem:[%s3 + $0x2358] sm:$0xff]
  %v4521 = vld [vmem:[%s3 + $0x2360] sm:$0xff]
  %v4522 = vld [vmem:[%s3 + $0x2368] sm:$0xff]
  %v4523 = vld [vmem:[%s3 + $0x2370] sm:$0xff]
  %v4524 = vld [vmem:[%s3 + $0x2378] sm:$0xff]
  %v4525 = vld [vmem:[%s3 + $0x2380] sm:$0xff]
  %v4526 = vld [vmem:[%s3 + $0x2388] sm:$0xff]
  %v4527 = vld [vmem:[%s3 + $0x2390] sm:$0xff]
  %v4528 = vld [vmem:[%s3 + $0x2398] sm:$0xff]
  %v4529 = vld [vmem:[%s3 + $0x23a0] sm:$0xff]
  %v4530 = vld [vmem:[%s3 + $0x23a8] sm:$0xff]
  %v4531 = vld [vmem:[%s3 + $0x23b0] sm:$0xff]
  %v4532 = vld [vmem:[%s3 + $0x23b8] sm:$0xff]
  %v4533 = vld [vmem:[%s3 + $0x23c0] sm:$0xff]
  %v4534 = vld [vmem:[%s3 + $0x23c8] sm:$0xff]
  %v4535 = vld [vmem:[%s3 + $0x23d0] sm:$0xff]
  %v4536 = vld [vmem:[%s3 + $0x23d8] sm:$0xff]
  %v4537 = vld [vmem:[%s3 + $0x23e0] sm:$0xff]
  %v4538 = vld [vmem:[%s3 + $0x23e8] sm:$0xff]
  %v4539 = vld [vmem:[%s3 + $0x23f0] sm:$0xff]
  %v4540 = vld [vmem:[%s3 + $0x23f8] sm:$0xff]
  %v4541 = vld [vmem:[%s3 + $0x2400] sm:$0xff]
  %v4542 = vld [vmem:[%s3 + $0x2408] sm:$0xff]
  %v4543 = vld [vmem:[%s3 + $0x2410] sm:$0xff]
  %v4544 = vld [vmem:[%s3 + $0x2418] sm:$0xff]
  %v4545 = vld [vmem:[%s3 + $0x2420] sm:$0xff]
  %v4546 = vld [vmem:[%s3 + $0x2428] sm:$0xff]
  %v4547 = vld [vmem:[%s3 + $0x2430] sm:$0xff]
  %v4548 = vld [vmem:[%s3 + $0x2438] sm:$0xff]
  %v4549 = vld [vmem:[%s3 + $0x2440] sm:$0xff]
  %v4550 = vld [vmem:[%s3 + $0x2448] sm:$0xff]
  %v4551 = vld [vmem:[%s3 + $0x2450] sm:$0xff]
  %v4552 = vld [vmem:[%s3 + $0x2458] sm:$0xff]
  %v4553 = vld [vmem:[%s3 + $0x2460] sm:$0xff]
  %v4554 = vld [vmem:[%s3 + $0x2468] sm:$0xff]
  %v4555 = vld [vmem:[%s3 + $0x2470] sm:$0xff]
  %v4556 = vld [vmem:[%s3 + $0x2478] sm:$0xff]
  %v4557 = vld [vmem:[%s3 + $0x2480] sm:$0xff]
  %v4558 = vld [vmem:[%s3 + $0x2488] sm:$0xff]
  %v4559 = vld [vmem:[%s3 + $0x2490] sm:$0xff]
  %v4560 = vld [vmem:[%s3 + $0x2498] sm:$0xff]
  %v4561 = vld [vmem:[%s3 + $0x24a0] sm:$0xff]
  %v4562 = vld [vmem:[%s3 + $0x24a8] sm:$0xff]
  %v4563 = vld [vmem:[%s3 + $0x24b0] sm:$0xff]
  %v4564 = vld [vmem:[%s3 + $0x24b8] sm:$0xff]
  %v4565 = vld [vmem:[%s3 + $0x24c0] sm:$0xff]
  %v4566 = vld [vmem:[%s3 + $0x24c8] sm:$0xff]
  %v4567 = vld [vmem:[%s3 + $0x24d0] sm:$0xff]
  %v4568 = vld [vmem:[%s3 + $0x24d8] sm:$0xff]
  %v4569 = vld [vmem:[%s3 + $0x24e0] sm:$0xff]
  %v4570 = vld [vmem:[%s3 + $0x24e8] sm:$0xff]
  %v4571 = vld [vmem:[%s3 + $0x24f0] sm:$0xff]
  %v4572 = vld [vmem:[%s3 + $0x24f8] sm:$0xff]
  %v4573 = vld [vmem:[%s3 + $0x2500] sm:$0xff]
  %v4574 = vld [vmem:[%s3 + $0x2508] sm:$0xff]
  %v4575 = vld [vmem:[%s3 + $0x2510] sm:$0xff]
  %v4576 = vld [vmem:[%s3 + $0x2518] sm:$0xff]
  %v4577 = vld [vmem:[%s3 + $0x2520] sm:$0xff]
  %v4578 = vld [vmem:[%s3 + $0x2528] sm:$0xff]
  %v4579 = vld [vmem:[%s3 + $0x2530] sm:$0xff]
  %v4580 = vld [vmem:[%s3 + $0x2538] sm:$0xff]
  %v4581 = vld [vmem:[%s3 + $0x2540] sm:$0xff]
  %v4582 = vld [vmem:[%s3 + $0x2548] sm:$0xff]
  %v4583 = vld [vmem:[%s3 + $0x2550] sm:$0xff]
  %v4584 = vld [vmem:[%s3 + $0x2558] sm:$0xff]
  %v4585 = vld [vmem:[%s3 + $0x2560] sm:$0xff]
  %v4586 = vld [vmem:[%s3 + $0x2568] sm:$0xff]
  %v4587 = vld [vmem:[%s3 + $0x2570] sm:$0xff]
  %v4588 = vld [vmem:[%s3 + $0x2578] sm:$0xff]
  %v4589 = vld [vmem:[%s3 + $0x2580] sm:$0xff]
  %v4590 = vld [vmem:[%s3 + $0x2588] sm:$0xff]
  %v4591 = vld [vmem:[%s3 + $0x2590] sm:$0xff]
  %v4592 = vld [vmem:[%s3 + $0x2598] sm:$0xff]
  %v4593 = vld [vmem:[%s3 + $0x25a0] sm:$0xff]
  %v4594 = vld [vmem:[%s3 + $0x25a8] sm:$0xff]
  %v4595 = vld [vmem:[%s3 + $0x25b0] sm:$0xff]
  %v4596 = vld [vmem:[%s3 + $0x25b8] sm:$0xff]
  %v4597 = vld [vmem:[%s3 + $0x25c0] sm:$0xff]
  %v4598 = vld [vmem:[%s3 + $0x25c8] sm:$0xff]
  %v4599 = vld [vmem:[%s3 + $0x25d0] sm:$0xff]
  %v4600 = vld [vmem:[%s3 + $0x25d8] sm:$0xff]
  %v4601 = vld [vmem:[%s3 + $0x25e0] sm:$0xff]
  %v4602 = vld [vmem:[%s3 + $0x25e8] sm:$0xff]
  %v4603 = vld [vmem:[%s3 + $0x25f0] sm:$0xff]
  %v4604 = vld [vmem:[%s3 + $0x25f8] sm:$0xff]
  %v4605 = vld [vmem:[%s3 + $0x2600] sm:$0xff]
  %v4606 = vld [vmem:[%s3 + $0x2608] sm:$0xff]
  %v4607 = vld [vmem:[%s3 + $0x2610] sm:$0xff]
  %v4608 = vld [vmem:[%s3 + $0x2618] sm:$0xff]
  %v4609 = vld [vmem:[%s3 + $0x2620] sm:$0xff]
  %v4610 = vld [vmem:[%s3 + $0x2628] sm:$0xff]
  %v4611 = vld [vmem:[%s3 + $0x2630] sm:$0xff]
  %v4612 = vld [vmem:[%s3 + $0x2638] sm:$0xff]
  %v4613 = vld [vmem:[%s3 + $0x2640] sm:$0xff]
  %v4614 = vld [vmem:[%s3 + $0x2648] sm:$0xff]
  %v4615 = vld [vmem:[%s3 + $0x2650] sm:$0xff]
  %v4616 = vld [vmem:[%s3 + $0x2658] sm:$0xff]
  %v4617 = vld [vmem:[%s3 + $0x2660] sm:$0xff]
  %v4618 = vld [vmem:[%s3 + $0x2668] sm:$0xff]
  %v4619 = vld [vmem:[%s3 + $0x2670] sm:$0xff]
  %v4620 = vld [vmem:[%s3 + $0x2678] sm:$0xff]
  %v4621 = vld [vmem:[%s3 + $0x2680] sm:$0xff]
  %v4622 = vld [vmem:[%s3 + $0x2688] sm:$0xff]
  %v4623 = vld [vmem:[%s3 + $0x2690] sm:$0xff]
  %v4624 = vld [vmem:[%s3 + $0x2698] sm:$0xff]
  %v4625 = vld [vmem:[%s3 + $0x26a0] sm:$0xff]
  %v4626 = vld [vmem:[%s3 + $0x26a8] sm:$0xff]
  %v4627 = vld [vmem:[%s3 + $0x26b0] sm:$0xff]
  %v4628 = vld [vmem:[%s3 + $0x26b8] sm:$0xff]
  %v4629 = vld [vmem:[%s3 + $0x26c0] sm:$0xff]
  %v4630 = vld [vmem:[%s3 + $0x26c8] sm:$0xff]
  %v4631 = vld [vmem:[%s3 + $0x26d0] sm:$0xff]
  %v4632 = vld [vmem:[%s3 + $0x26d8] sm:$0xff]
  %v4633 = vld [vmem:[%s3 + $0x26e0] sm:$0xff]
  %v4634 = vld [vmem:[%s3 + $0x26e8] sm:$0xff]
  %v4635 = vld [vmem:[%s3 + $0x26f0] sm:$0xff]
  %v4636 = vld [vmem:[%s3 + $0x26f8] sm:$0xff]
  %v4637 = vld [vmem:[%s3 + $0x2700] sm:$0xff]
  %v4638 = vld [vmem:[%s3 + $0x2708] sm:$0xff]
  %v4639 = vld [vmem:[%s3 + $0x2710] sm:$0xff]
  %v4640 = vld [vmem:[%s3 + $0x2718] sm:$0xff]
  %v4641 = vld [vmem:[%s3 + $0x2720] sm:$0xff]
  %v4642 = vld [vmem:[%s3 + $0x2728] sm:$0xff]
  %v4643 = vld [vmem:[%s3 + $0x2730] sm:$0xff]
  %v4644 = vld [vmem:[%s3 + $0x2738] sm:$0xff]
  %v4645 = vld [vmem:[%s3 + $0x2740] sm:$0xff]
  %v4646 = vld [vmem:[%s3 + $0x2748] sm:$0xff]
  %v4647 = vld [vmem:[%s3 + $0x2750] sm:$0xff]
  %v4648 = vld [vmem:[%s3 + $0x2758] sm:$0xff]
  %v4649 = vld [vmem:[%s3 + $0x2760] sm:$0xff]
  %v4650 = vld [vmem:[%s3 + $0x2768] sm:$0xff]
  %v4651 = vld [vmem:[%s3 + $0x2770] sm:$0xff]
  %v4652 = vld [vmem:[%s3 + $0x2778] sm:$0xff]
  %v4653 = vld [vmem:[%s3 + $0x2780] sm:$0xff]
  %v4654 = vld [vmem:[%s3 + $0x2788] sm:$0xff]
  %v4655 = vld [vmem:[%s3 + $0x2790] sm:$0xff]
  %v4656 = vld [vmem:[%s3 + $0x2798] sm:$0xff]
  %v4657 = vld [vmem:[%s3 + $0x27a0] sm:$0xff]
  %v4658 = vld [vmem:[%s3 + $0x27a8] sm:$0xff]
  %v4659 = vld [vmem:[%s3 + $0x27b0] sm:$0xff]
  %v4660 = vld [vmem:[%s3 + $0x27b8] sm:$0xff]
  %v4661 = vld [vmem:[%s3 + $0x27c0] sm:$0xff]
  %v4662 = vld [vmem:[%s3 + $0x27c8] sm:$0xff]
  %v4663 = vld [vmem:[%s3 + $0x27d0] sm:$0xff]
  %v4664 = vld [vmem:[%s3 + $0x27d8] sm:$0xff]
  %v4665 = vld [vmem:[%s3 + $0x27e0] sm:$0xff]
  %v4666 = vld [vmem:[%s3 + $0x27e8] sm:$0xff]
  %v4667 = vld [vmem:[%s3 + $0x27f0] sm:$0xff]
  %v4668 = vld [vmem:[%s3 + $0x27f8] sm:$0xff]
  %v4669 = vld [vmem:[%s3 + $0x2800] sm:$0xff]
  %v4670 = vld [vmem:[%s3 + $0x2808] sm:$0xff]
  %v4671 = vld [vmem:[%s3 + $0x2810] sm:$0xff]
  %v4672 = vld [vmem:[%s3 + $0x2818] sm:$0xff]
  %v4673 = vld [vmem:[%s3 + $0x2820] sm:$0xff]
  %v4674 = vld [vmem:[%s3 + $0x2828] sm:$0xff]
  %v4675 = vld [vmem:[%s3 + $0x2830] sm:$0xff]
  %v4676 = vld [vmem:[%s3 + $0x2838] sm:$0xff]
  %v4677 = vld [vmem:[%s3 + $0x2840] sm:$0xff]
  %v4678 = vld [vmem:[%s3 + $0x2848] sm:$0xff]
  %v4679 = vld [vmem:[%s3 + $0x2850] sm:$0xff]
  %v4680 = vld [vmem:[%s3 + $0x2858] sm:$0xff]
  %v4681 = vld [vmem:[%s3 + $0x2860] sm:$0xff]
  %v4682 = vld [vmem:[%s3 + $0x2868] sm:$0xff]
  %v4683 = vld [vmem:[%s3 + $0x2870] sm:$0xff]
  %v4684 = vld [vmem:[%s3 + $0x2878] sm:$0xff]
  %v4685 = vld [vmem:[%s3 + $0x2880] sm:$0xff]
  %v4686 = vld [vmem:[%s3 + $0x2888] sm:$0xff]
  %v4687 = vld [vmem:[%s3 + $0x2890] sm:$0xff]
  %v4688 = vld [vmem:[%s3 + $0x2898] sm:$0xff]
  %v4689 = vld [vmem:[%s3 + $0x28a0] sm:$0xff]
  %v4690 = vld [vmem:[%s3 + $0x28a8] sm:$0xff]
  %v4691 = vld [vmem:[%s3 + $0x28b0] sm:$0xff]
  %v4692 = vld [vmem:[%s3 + $0x28b8] sm:$0xff]
  %v4693 = vld [vmem:[%s3 + $0x28c0] sm:$0xff]
  %v4694 = vld [vmem:[%s3 + $0x28c8] sm:$0xff]
  %v4695 = vld [vmem:[%s3 + $0x28d0] sm:$0xff]
  %v4696 = vld [vmem:[%s3 + $0x28d8] sm:$0xff]
  %v4697 = vld [vmem:[%s3 + $0x28e0] sm:$0xff]
  %v4698 = vld [vmem:[%s3 + $0x28e8] sm:$0xff]
  %v4699 = vld [vmem:[%s3 + $0x28f0] sm:$0xff]
  %v4700 = vld [vmem:[%s3 + $0x28f8] sm:$0xff]
  %v4701 = vld [vmem:[%s3 + $0x2900] sm:$0xff]
  %v4702 = vld [vmem:[%s3 + $0x2908] sm:$0xff]
  %v4703 = vld [vmem:[%s3 + $0x2910] sm:$0xff]
  %v4704 = vld [vmem:[%s3 + $0x2918] sm:$0xff]
  %v4705 = vld [vmem:[%s3 + $0x2920] sm:$0xff]
  %v4706 = vld [vmem:[%s3 + $0x2928] sm:$0xff]
  %v4707 = vld [vmem:[%s3 + $0x2930] sm:$0xff]
  %v4708 = vld [vmem:[%s3 + $0x2938] sm:$0xff]
  %v4709 = vld [vmem:[%s3 + $0x2940] sm:$0xff]
  %v4710 = vld [vmem:[%s3 + $0x2948] sm:$0xff]
  %v4711 = vld [vmem:[%s3 + $0x2950] sm:$0xff]
  %v4712 = vld [vmem:[%s3 + $0x2958] sm:$0xff]
  %v4713 = vld [vmem:[%s3 + $0x2960] sm:$0xff]
  %v4714 = vld [vmem:[%s3 + $0x2968] sm:$0xff]
  %v4715 = vld [vmem:[%s3 + $0x2970] sm:$0xff]
  %v4716 = vld [vmem:[%s3 + $0x2978] sm:$0xff]
  %v4717 = vld [vmem:[%s3 + $0x2980] sm:$0xff]
  %v4718 = vld [vmem:[%s3 + $0x2988] sm:$0xff]
  %v4719 = vld [vmem:[%s3 + $0x2990] sm:$0xff]
  %v4720 = vld [vmem:[%s3 + $0x2998] sm:$0xff]
  %v4721 = vld [vmem:[%s3 + $0x29a0] sm:$0xff]
  %v4722 = vld [vmem:[%s3 + $0x29a8] sm:$0xff]
  %v4723 = vld [vmem:[%s3 + $0x29b0] sm:$0xff]
  %v4724 = vld [vmem:[%s3 + $0x29b8] sm:$0xff]
  %v4725 = vld [vmem:[%s3 + $0x29c0] sm:$0xff]
  %v4726 = vld [vmem:[%s3 + $0x29c8] sm:$0xff]
  %v4727 = vld [vmem:[%s3 + $0x29d0] sm:$0xff]
  %v4728 = vld [vmem:[%s3 + $0x29d8] sm:$0xff]
  %v4729 = vld [vmem:[%s3 + $0x29e0] sm:$0xff]
  %v4730 = vld [vmem:[%s3 + $0x29e8] sm:$0xff]
  %v4731 = vld [vmem:[%s3 + $0x29f0] sm:$0xff]
  %v4732 = vld [vmem:[%s3 + $0x29f8] sm:$0xff]
  %v4733 = vld [vmem:[%s3 + $0x2a00] sm:$0xff]
  %v4734 = vld [vmem:[%s3 + $0x2a08] sm:$0xff]
  %v4735 = vld [vmem:[%s3 + $0x2a10] sm:$0xff]
  %v4736 = vld [vmem:[%s3 + $0x2a18] sm:$0xff]
  %v4737 = vld [vmem:[%s3 + $0x2a20] sm:$0xff]
  %v4738 = vld [vmem:[%s3 + $0x2a28] sm:$0xff]
  %v4739 = vld [vmem:[%s3 + $0x2a30] sm:$0xff]
  %v4740 = vld [vmem:[%s3 + $0x2a38] sm:$0xff]
  %v4741 = vld [vmem:[%s3 + $0x2a40] sm:$0xff]
  %v4742 = vld [vmem:[%s3 + $0x2a48] sm:$0xff]
  %v4743 = vld [vmem:[%s3 + $0x2a50] sm:$0xff]
  %v4744 = vld [vmem:[%s3 + $0x2a58] sm:$0xff]
  %v4745 = vld [vmem:[%s3 + $0x2a60] sm:$0xff]
  %v4746 = vld [vmem:[%s3 + $0x2a68] sm:$0xff]
  %v4747 = vld [vmem:[%s3 + $0x2a70] sm:$0xff]
  %v4748 = vld [vmem:[%s3 + $0x2a78] sm:$0xff]
  %v4749 = vld [vmem:[%s3 + $0x2a80] sm:$0xff]
  %v4750 = vld [vmem:[%s3 + $0x2a88] sm:$0xff]
  %v4751 = vld [vmem:[%s3 + $0x2a90] sm:$0xff]
  %v4752 = vld [vmem:[%s3 + $0x2a98] sm:$0xff]
  %v4753 = vld [vmem:[%s3 + $0x2aa0] sm:$0xff]
  %v4754 = vld [vmem:[%s3 + $0x2aa8] sm:$0xff]
  %v4755 = vld [vmem:[%s3 + $0x2ab0] sm:$0xff]
  %v4756 = vld [vmem:[%s3 + $0x2ab8] sm:$0xff]
  %v4757 = vld [vmem:[%s3 + $0x2ac0] sm:$0xff]
  %v4758 = vld [vmem:[%s3 + $0x2ac8] sm:$0xff]
  %v4759 = vld [vmem:[%s3 + $0x2ad0] sm:$0xff]
  %v4760 = vld [vmem:[%s3 + $0x2ad8] sm:$0xff]
  %v4761 = vld [vmem:[%s4] sm:$0x7f]
  %v4763 = vlaneseq
  %v4764 = vshrl.u32 %v4763, 7
  %v4765 = vsub.s32 0, %v4764
  %v4766 = vrot.slane %v4761, %v4765
  %v4767 = vlaneseq
  %v4768 = vshrl.u32 %v4767, 7
  %v4769 = vsub.s32 1, %v4768
  %v4770 = vrot.slane %v4761, %v4769
  %v4771 = vlaneseq
  %v4772 = vshrl.u32 %v4771, 7
  %v4773 = vsub.s32 2, %v4772
  %v4774 = vrot.slane %v4761, %v4773
  %v4775 = vlaneseq
  %v4776 = vshrl.u32 %v4775, 7
  %v4777 = vsub.s32 3, %v4776
  %v4778 = vrot.slane %v4761, %v4777
  %v4779 = vlaneseq
  %v4780 = vshrl.u32 %v4779, 7
  %v4781 = vsub.s32 4, %v4780
  %v4782 = vrot.slane %v4761, %v4781
  %v4783 = vlaneseq
  %v4784 = vshrl.u32 %v4783, 7
  %v4785 = vsub.s32 5, %v4784
  %v4786 = vrot.slane %v4761, %v4785
  %v4787 = vlaneseq
  %v4788 = vshrl.u32 %v4787, 7
  %v4789 = vsub.s32 6, %v4788
  %v4790 = vrot.slane %v4761, %v4789
  %vm4798 = vcmask 261120
  %v4800 = vsel %vm4798, %v3388, 0
  %4802 = vmatprep.subr.mxu0 %v3390
  %4803 = vmatpush1.msra.mxu0 %v3389
  %4804 = vmatprep.subr.mxu0 %v3397
  %4805 = vmatpush1.msra.mxu0 %v3396
  %4806 = vmatprep.subr.mxu0 %v3404
  %4807 = vmatpush1.msra.mxu0 %v3403
  %4808 = vmatprep.subr.mxu0 %v3411
  %4809 = vmatpush1.msra.mxu0 %v3410
  %4810 = vmatprep.subr.mxu0 %v3418
  %4811 = vmatpush1.msra.mxu0 %v3417
  %4812 = vmatprep.subr.mxu0 %v3425
  %4813 = vmatpush1.msra.mxu0 %v3424
  %4814 = vmatprep.subr.mxu0 %v3432
  %4815 = vmatpush1.msra.mxu0 %v3431
  %4816 = vmatprep.subr.mxu0 %v3439
  %4817 = vmatpush1.msra.mxu0 %v3438
  %4818 = vmatprep.subr.mxu0 %v3446
  %4819 = vmatpush1.msra.mxu0 %v3445
  %4820 = vmatprep.subr.mxu0 %v3453
  %4821 = vmatpush1.msra.mxu0 %v3452
  %4822 = vmatprep.subr.mxu0 %v3460
  %4823 = vmatpush1.msra.mxu0 %v3459
  %4824 = vmatprep.subr.mxu0 %v3467
  %4825 = vmatpush1.msra.mxu0 %v3466
  %4826 = vmatprep.subr.mxu0 %v3474
  %4827 = vmatpush1.msra.mxu0 %v3473
  %4828 = vmatprep.subr.mxu0 %v3481
  %4829 = vmatpush1.msra.mxu0 %v3480
  %4830 = vmatprep.subr.mxu0 %v3488
  %4831 = vmatpush1.msra.mxu0 %v3487
  %4832 = vmatprep.subr.mxu0 %v3495
  %4833 = vmatpush1.msra.mxu0 %v3494
  %4834 = vmatprep.subr.mxu0 %v3502
  %4835 = vmatpush1.msra.mxu0 %v3501
  %4836 = vmatprep.subr.mxu0 %v3509
  %4837 = vmatpush1.msra.mxu0 %v3508
  %4838 = vmatprep.subr.mxu0 %v3516
  %4839 = vmatpush1.msra.mxu0 %v3515
  %4840 = vmatprep.subr.mxu0 %v3523
  %4841 = vmatpush1.msra.mxu0 %v3522
  %4842 = vmatprep.subr.mxu0 %v3530
  %4843 = vmatpush1.msra.mxu0 %v3529
  %4844 = vmatprep.subr.mxu0 %v3537
  %4845 = vmatpush1.msra.mxu0 %v3536
  %4846 = vmatprep.subr.mxu0 %v3544
  %4847 = vmatpush1.msra.mxu0 %v3543
  %4848 = vmatprep.subr.mxu0 %v3551
  %4849 = vmatpush1.msra.mxu0 %v3550
  %4850 = vmatprep.subr.mxu0 %v3558
  %4851 = vmatpush1.msra.mxu0 %v3557
  %4852 = vmatprep.subr.mxu0 %v3565
  %4853 = vmatpush1.msra.mxu0 %v3564
  %4854 = vmatprep.subr.mxu0 %v3572
  %4855 = vmatpush1.msra.mxu0 %v3571
  %4856 = vmatprep.subr.mxu0 %v3579
  %4857 = vmatpush1.msra.mxu0 %v3578
  %4858 = vmatprep.subr.mxu0 %v3586
  %4859 = vmatpush1.msra.mxu0 %v3585
  %4860 = vmatprep.subr.mxu0 %v3593
  %4861 = vmatpush1.msra.mxu0 %v3592
  %4862 = vmatprep.subr.mxu0 %v3600
  %4863 = vmatpush1.msra.mxu0 %v3599
  %4864 = vmatprep.subr.mxu0 %v3607
  %4865 = vmatpush1.msra.mxu0 %v3606
  %4866 = vmatprep.mubr.f32.mxu0 %v3377
  %4867 = vmatmul.mubr.f32.gmra.mrb[0].mxu0 %v3376
  %v4868 = vpop.f32.mrb[0].mxu0
  %v4869 = vadd.f32 %v4766, %v4868
  %v4870 = vpop.f32.mrb[0].mxu0
  %v4871 = vadd.f32 %v4770, %v4870
  %4872 = vdwg.mxu0
  %4873 = vmatprep.subr.mxu0 %v3614
  %4874 = vmatpush1.msra.mxu0 %v3613
  %4875 = vmatprep.subr.mxu0 %v3621
  %4876 = vmatpush1.msra.mxu0 %v3620
  %4877 = vmatprep.subr.mxu0 %v3628
  %4878 = vmatpush1.msra.mxu0 %v3627
  %4879 = vmatprep.subr.mxu0 %v3635
  %4880 = vmatpush1.msra.mxu0 %v3634
  %4881 = vmatprep.subr.mxu0 %v3642
  %4882 = vmatpush1.msra.mxu0 %v3641
  %4883 = vmatprep.subr.mxu0 %v3649
  %4884 = vmatpush1.msra.mxu0 %v3648
  %4885 = vmatprep.subr.mxu0 %v3656
  %4886 = vmatpush1.msra.mxu0 %v3655
  %4887 = vmatprep.subr.mxu0 %v3663
  %4888 = vmatpush1.msra.mxu0 %v3662
  %4889 = vmatprep.subr.mxu0 %v3670
  %4890 = vmatpush1.msra.mxu0 %v3669
  %4891 = vmatprep.subr.mxu0 %v3677
  %4892 = vmatpush1.msra.mxu0 %v3676
  %4893 = vmatprep.subr.mxu0 %v3684
  %4894 = vmatpush1.msra.mxu0 %v3683
  %4895 = vmatprep.subr.mxu0 %v3691
  %4896 = vmatpush1.msra.mxu0 %v3690
  %4897 = vmatprep.subr.mxu0 %v3698
  %4898 = vmatpush1.msra.mxu0 %v3697
  %4899 = vmatprep.subr.mxu0 %v3705
  %4900 = vmatpush1.msra.mxu0 %v3704
  %4901 = vmatprep.subr.mxu0 %v3712
  %4902 = vmatpush1.msra.mxu0 %v3711
  %4903 = vmatprep.subr.mxu0 %v3719
  %4904 = vmatpush1.msra.mxu0 %v3718
  %4905 = vmatprep.subr.mxu0 %v3726
  %4906 = vmatpush1.msra.mxu0 %v3725
  %4907 = vmatprep.subr.mxu0 %v3733
  %4908 = vmatpush1.msra.mxu0 %v3732
  %4909 = vmatprep.subr.mxu0 %v3740
  %4910 = vmatpush1.msra.mxu0 %v3739
  %4911 = vmatprep.subr.mxu0 %v3747
  %4912 = vmatpush1.msra.mxu0 %v3746
  %4913 = vmatprep.subr.mxu0 %v3754
  %4914 = vmatpush1.msra.mxu0 %v3753
  %4915 = vmatprep.subr.mxu0 %v3761
  %4916 = vmatpush1.msra.mxu0 %v3760
  %4917 = vmatprep.subr.mxu0 %v3768
  %4918 = vmatpush1.msra.mxu0 %v3767
  %4919 = vmatprep.subr.mxu0 %v3775
  %4920 = vmatpush1.msra.mxu0 %v3774
  %4921 = vmatprep.subr.mxu0 %v3782
  %4922 = vmatpush1.msra.mxu0 %v3781
  %4923 = vmatprep.subr.mxu0 %v3789
  %4924 = vmatpush1.msra.mxu0 %v3788
  %4925 = vmatprep.subr.mxu0 %v3796
  %4926 = vmatpush1.msra.mxu0 %v3795
  %4927 = vmatprep.subr.mxu0 %v3803
  %4928 = vmatpush1.msra.mxu0 %v3802
  %4929 = vmatprep.subr.mxu0 %v3810
  %4930 = vmatpush1.msra.mxu0 %v3809
  %4931 = vmatprep.subr.mxu0 %v3817
  %4932 = vmatpush1.msra.mxu0 %v3816
  %4933 = vmatprep.subr.mxu0 %v3824
  %4934 = vmatpush1.msra.mxu0 %v3823
  %4935 = vmatprep.subr.mxu0 %v3831
  %4936 = vmatpush1.msra.mxu0 %v3830
  %4937 = vmatprep.mubr.f32.mxu0 %v3379
  %4938 = vmatmul.mubr.f32.gmra.mrb[0].mxu0 %v3378
  %v4939 = vpop.f32.mrb[0].mxu0
  %v4940 = vadd.f32 %v4869, %v4939
  %v4941 = vpop.f32.mrb[0].mxu0
  %v4942 = vadd.f32 %v4871, %v4941
  %4943 = vdwg.mxu0
  %4944 = vmatprep.subr.mxu0 %v3838
  %4945 = vmatpush1.msra.mxu0 %v3837
  %4946 = vmatprep.subr.mxu0 %v3845
  %4947 = vmatpush1.msra.mxu0 %v3844
  %4948 = vmatprep.subr.mxu0 %v3852
  %4949 = vmatpush1.msra.mxu0 %v3851
  %4950 = vmatprep.subr.mxu0 %v3859
  %4951 = vmatpush1.msra.mxu0 %v3858
  %4952 = vmatprep.subr.mxu0 %v3866
  %4953 = vmatpush1.msra.mxu0 %v3865
  %4954 = vmatprep.subr.mxu0 %v3873
  %4955 = vmatpush1.msra.mxu0 %v3872
  %4956 = vmatprep.subr.mxu0 %v3880
  %4957 = vmatpush1.msra.mxu0 %v3879
  %4958 = vmatprep.subr.mxu0 %v3887
  %4959 = vmatpush1.msra.mxu0 %v3886
  %4960 = vmatprep.subr.mxu0 %v3894
  %4961 = vmatpush1.msra.mxu0 %v3893
  %4962 = vmatprep.subr.mxu0 %v3901
  %4963 = vmatpush1.msra.mxu0 %v3900
  %4964 = vmatprep.subr.mxu0 %v3908
  %4965 = vmatpush1.msra.mxu0 %v3907
  %4966 = vmatprep.subr.mxu0 %v3915
  %4967 = vmatpush1.msra.mxu0 %v3914
  %4968 = vmatprep.subr.mxu0 %v3922
  %4969 = vmatpush1.msra.mxu0 %v3921
  %4970 = vmatprep.subr.mxu0 %v3929
  %4971 = vmatpush1.msra.mxu0 %v3928
  %4972 = vmatprep.subr.mxu0 %v3936
  %4973 = vmatpush1.msra.mxu0 %v3935
  %4974 = vmatprep.subr.mxu0 %v3943
  %4975 = vmatpush1.msra.mxu0 %v3942
  %4976 = vmatprep.subr.mxu0 %v3950
  %4977 = vmatpush1.msra.mxu0 %v3949
  %4978 = vmatprep.subr.mxu0 %v3957
  %4979 = vmatpush1.msra.mxu0 %v3956
  %4980 = vmatprep.subr.mxu0 %v3964
  %4981 = vmatpush1.msra.mxu0 %v3963
  %4982 = vmatprep.subr.mxu0 %v3971
  %4983 = vmatpush1.msra.mxu0 %v3970
  %4984 = vmatprep.subr.mxu0 %v3978
  %4985 = vmatpush1.msra.mxu0 %v3977
  %4986 = vmatprep.subr.mxu0 %v3985
  %4987 = vmatpush1.msra.mxu0 %v3984
  %4988 = vmatprep.subr.mxu0 %v3992
  %4989 = vmatpush1.msra.mxu0 %v3991
  %4990 = vmatprep.subr.mxu0 %v3999
  %4991 = vmatpush1.msra.mxu0 %v3998
  %4992 = vmatprep.subr.mxu0 %v4006
  %4993 = vmatpush1.msra.mxu0 %v4005
  %4994 = vmatprep.subr.mxu0 %v4013
  %4995 = vmatpush1.msra.mxu0 %v4012
  %4996 = vmatprep.subr.mxu0 %v4020
  %4997 = vmatpush1.msra.mxu0 %v4019
  %4998 = vmatprep.subr.mxu0 %v4027
  %4999 = vmatpush1.msra.mxu0 %v4026
  %5000 = vmatprep.subr.mxu0 %v4034
  %5001 = vmatpush1.msra.mxu0 %v4033
  %5002 = vmatprep.subr.mxu0 %v4041
  %5003 = vmatpush1.msra.mxu0 %v4040
  %5004 = vmatprep.subr.mxu0 %v4048
  %5005 = vmatpush1.msra.mxu0 %v4047
  %5006 = vmatprep.subr.mxu0 %v4055
  %5007 = vmatpush1.msra.mxu0 %v4054
  %5008 = vmatprep.mubr.f32.mxu0 %v3381
  %5009 = vmatmul.mubr.f32.gmra.mrb[0].mxu0 %v3380
  %v5010 = vpop.f32.mrb[0].mxu0
  %v5011 = vadd.f32 %v4940, %v5010
  %v5012 = vpop.f32.mrb[0].mxu0
  %v5013 = vadd.f32 %v4942, %v5012
  %5014 = vdwg.mxu0
  %5015 = vmatprep.subr.mxu0 %v4062
  %5016 = vmatpush1.msra.mxu0 %v4061
  %5017 = vmatprep.subr.mxu0 %v4069
  %5018 = vmatpush1.msra.mxu0 %v4068
  %5019 = vmatprep.subr.mxu0 %v4076
  %5020 = vmatpush1.msra.mxu0 %v4075
  %5021 = vmatprep.subr.mxu0 %v4083
  %5022 = vmatpush1.msra.mxu0 %v4082
  %5023 = vmatprep.subr.mxu0 %v4090
  %5024 = vmatpush1.msra.mxu0 %v4089
  %5025 = vmatprep.subr.mxu0 %v4097
  %5026 = vmatpush1.msra.mxu0 %v4096
  %5027 = vmatprep.subr.mxu0 %v4104
  %5028 = vmatpush1.msra.mxu0 %v4103
  %5029 = vmatprep.subr.mxu0 %v4111
  %5030 = vmatpush1.msra.mxu0 %v4110
  %5031 = vmatprep.subr.mxu0 %v4118
  %5032 = vmatpush1.msra.mxu0 %v4117
  %5033 = vmatprep.subr.mxu0 %v4125
  %5034 = vmatpush1.msra.mxu0 %v4124
  %5035 = vmatprep.subr.mxu0 %v4132
  %5036 = vmatpush1.msra.mxu0 %v4131
  %5037 = vmatprep.subr.mxu0 %v4139
  %5038 = vmatpush1.msra.mxu0 %v4138
  %5039 = vmatprep.subr.mxu0 %v4146
  %5040 = vmatpush1.msra.mxu0 %v4145
  %5041 = vmatprep.subr.mxu0 %v4153
  %5042 = vmatpush1.msra.mxu0 %v4152
  %5043 = vmatprep.subr.mxu0 %v4160
  %5044 = vmatpush1.msra.mxu0 %v4159
  %5045 = vmatprep.subr.mxu0 %v4167
  %5046 = vmatpush1.msra.mxu0 %v4166
  %5047 = vmatprep.subr.mxu0 %v4174
  %5048 = vmatpush1.msra.mxu0 %v4173
  %5049 = vmatprep.subr.mxu0 %v4181
  %5050 = vmatpush1.msra.mxu0 %v4180
  %5051 = vmatprep.subr.mxu0 %v4188
  %5052 = vmatpush1.msra.mxu0 %v4187
  %5053 = vmatprep.subr.mxu0 %v4195
  %5054 = vmatpush1.msra.mxu0 %v4194
  %5055 = vmatprep.subr.mxu0 %v4202
  %5056 = vmatpush1.msra.mxu0 %v4201
  %5057 = vmatprep.subr.mxu0 %v4209
  %5058 = vmatpush1.msra.mxu0 %v4208
  %5059 = vmatprep.subr.mxu0 %v4216
  %5060 = vmatpush1.msra.mxu0 %v4215
  %5061 = vmatprep.subr.mxu0 %v4223
  %5062 = vmatpush1.msra.mxu0 %v4222
  %5063 = vmatprep.subr.mxu0 %v4230
  %5064 = vmatpush1.msra.mxu0 %v4229
  %5065 = vmatprep.subr.mxu0 %v4237
  %5066 = vmatpush1.msra.mxu0 %v4236
  %5067 = vmatprep.subr.mxu0 %v4244
  %5068 = vmatpush1.msra.mxu0 %v4243
  %5069 = vmatprep.subr.mxu0 %v4251
  %5070 = vmatpush1.msra.mxu0 %v4250
  %5071 = vmatprep.subr.mxu0 %v4258
  %5072 = vmatpush1.msra.mxu0 %v4257
  %5073 = vmatprep.subr.mxu0 %v4265
  %5074 = vmatpush1.msra.mxu0 %v4264
  %5075 = vmatprep.subr.mxu0 %v4272
  %5076 = vmatpush1.msra.mxu0 %v4271
  %5077 = vmatprep.subr.mxu0 %v4279
  %5078 = vmatpush1.msra.mxu0 %v4278
  %5079 = vmatprep.mubr.f32.mxu0 %v3383
  %5080 = vmatmul.mubr.f32.gmra.mrb[0].mxu0 %v3382
  %v5081 = vpop.f32.mrb[0].mxu0
  %v5082 = vadd.f32 %v5011, %v5081
  %v5083 = vpop.f32.mrb[0].mxu0
  %v5084 = vadd.f32 %v5013, %v5083
  %5085 = vdwg.mxu0
  %5086 = vmatprep.subr.mxu0 %v4286
  %5087 = vmatpush1.msra.mxu0 %v4285
  %5088 = vmatprep.subr.mxu0 %v4293
  %5089 = vmatpush1.msra.mxu0 %v4292
  %5090 = vmatprep.subr.mxu0 %v4300
  %5091 = vmatpush1.msra.mxu0 %v4299
  %5092 = vmatprep.subr.mxu0 %v4307
  %5093 = vmatpush1.msra.mxu0 %v4306
  %5094 = vmatprep.subr.mxu0 %v4314
  %5095 = vmatpush1.msra.mxu0 %v4313
  %5096 = vmatprep.subr.mxu0 %v4321
  %5097 = vmatpush1.msra.mxu0 %v4320
  %5098 = vmatprep.subr.mxu0 %v4328
  %5099 = vmatpush1.msra.mxu0 %v4327
  %5100 = vmatprep.subr.mxu0 %v4335
  %5101 = vmatpush1.msra.mxu0 %v4334
  %5102 = vmatprep.subr.mxu0 %v4342
  %5103 = vmatpush1.msra.mxu0 %v4341
  %5104 = vmatprep.subr.mxu0 %v4349
  %5105 = vmatpush1.msra.mxu0 %v4348
  %5106 = vmatprep.subr.mxu0 %v4356
  %5107 = vmatpush1.msra.mxu0 %v4355
  %5108 = vmatprep.subr.mxu0 %v4363
  %5109 = vmatpush1.msra.mxu0 %v4362
  %5110 = vmatprep.subr.mxu0 %v4370
  %5111 = vmatpush1.msra.mxu0 %v4369
  %5112 = vmatprep.subr.mxu0 %v4377
  %5113 = vmatpush1.msra.mxu0 %v4376
  %5114 = vmatprep.subr.mxu0 %v4384
  %5115 = vmatpush1.msra.mxu0 %v4383
  %5116 = vmatprep.subr.mxu0 %v4391
  %5117 = vmatpush1.msra.mxu0 %v4390
  %5118 = vmatprep.subr.mxu0 %v4398
  %5119 = vmatpush1.msra.mxu0 %v4397
  %5120 = vmatprep.subr.mxu0 %v4405
  %5121 = vmatpush1.msra.mxu0 %v4404
  %5122 = vmatprep.subr.mxu0 %v4412
  %5123 = vmatpush1.msra.mxu0 %v4411
  %5124 = vmatprep.subr.mxu0 %v4419
  %5125 = vmatpush1.msra.mxu0 %v4418
  %5126 = vmatprep.subr.mxu0 %v4426
  %5127 = vmatpush1.msra.mxu0 %v4425
  %5128 = vmatprep.subr.mxu0 %v4433
  %5129 = vmatpush1.msra.mxu0 %v4432
  %5130 = vmatprep.subr.mxu0 %v4440
  %5131 = vmatpush1.msra.mxu0 %v4439
  %5132 = vmatprep.subr.mxu0 %v4447
  %5133 = vmatpush1.msra.mxu0 %v4446
  %5134 = vmatprep.subr.mxu0 %v4454
  %5135 = vmatpush1.msra.mxu0 %v4453
  %5136 = vmatprep.subr.mxu0 %v4461
  %5137 = vmatpush1.msra.mxu0 %v4460
  %5138 = vmatprep.subr.mxu0 %v4468
  %5139 = vmatpush1.msra.mxu0 %v4467
  %5140 = vmatprep.subr.mxu0 %v4475
  %5141 = vmatpush1.msra.mxu0 %v4474
  %5142 = vmatprep.subr.mxu0 %v4482
  %5143 = vmatpush1.msra.mxu0 %v4481
  %5144 = vmatprep.subr.mxu0 %v4489
  %5145 = vmatpush1.msra.mxu0 %v4488
  %5146 = vmatprep.subr.mxu0 %v4496
  %5147 = vmatpush1.msra.mxu0 %v4495
  %5148 = vmatprep.subr.mxu0 %v4503
  %5149 = vmatpush1.msra.mxu0 %v4502
  %5150 = vmatprep.mubr.f32.mxu0 %v3385
  %5151 = vmatmul.mubr.f32.gmra.mrb[0].mxu0 %v3384
  %v5152 = vpop.f32.mrb[0].mxu0
  %v5153 = vadd.f32 %v5082, %v5152
  %v5154 = vpop.f32.mrb[0].mxu0
  %v5155 = vadd.f32 %v5084, %v5154
  %5156 = vdwg.mxu0
  %5157 = vmatprep.subr.mxu0 %v4510
  %5158 = vmatpush1.msra.mxu0 %v4509
  %5159 = vmatprep.subr.mxu0 %v4517
  %5160 = vmatpush1.msra.mxu0 %v4516
  %5161 = vmatprep.subr.mxu0 %v4524
  %5162 = vmatpush1.msra.mxu0 %v4523
  %5163 = vmatprep.subr.mxu0 %v4531
  %5164 = vmatpush1.msra.mxu0 %v4530
  %5165 = vmatprep.subr.mxu0 %v4538
  %5166 = vmatpush1.msra.mxu0 %v4537
  %5167 = vmatprep.subr.mxu0 %v4545
  %5168 = vmatpush1.msra.mxu0 %v4544
  %5169 = vmatprep.subr.mxu0 %v4552
  %5170 = vmatpush1.msra.mxu0 %v4551
  %5171 = vmatprep.subr.mxu0 %v4559
  %5172 = vmatpush1.msra.mxu0 %v4558
  %5173 = vmatprep.subr.mxu0 %v4566
  %5174 = vmatpush1.msra.mxu0 %v4565
  %5175 = vmatprep.subr.mxu0 %v4573
  %5176 = vmatpush1.msra.mxu0 %v4572
  %5177 = vmatprep.subr.mxu0 %v4580
  %5178 = vmatpush1.msra.mxu0 %v4579
  %5179 = vmatprep.subr.mxu0 %v4587
  %5180 = vmatpush1.msra.mxu0 %v4586
  %5181 = vmatprep.subr.mxu0 %v4594
  %5182 = vmatpush1.msra.mxu0 %v4593
  %5183 = vmatprep.subr.mxu0 %v4601
  %5184 = vmatpush1.msra.mxu0 %v4600
  %5185 = vmatprep.subr.mxu0 %v4608
  %5186 = vmatpush1.msra.mxu0 %v4607
  %5187 = vmatprep.subr.mxu0 %v4615
  %5188 = vmatpush1.msra.mxu0 %v4614
  %5189 = vmatprep.subr.mxu0 %v4622
  %5190 = vmatpush1.msra.mxu0 %v4621
  %5191 = vmatprep.subr.mxu0 %v4629
  %5192 = vmatpush1.msra.mxu0 %v4628
  %5193 = vmatprep.subr.mxu0 %v4636
  %5194 = vmatpush1.msra.mxu0 %v4635
  %5195 = vmatprep.subr.mxu0 %v4643
  %5196 = vmatpush1.msra.mxu0 %v4642
  %5197 = vmatprep.subr.mxu0 %v4650
  %5198 = vmatpush1.msra.mxu0 %v4649
  %5199 = vmatprep.subr.mxu0 %v4657
  %5200 = vmatpush1.msra.mxu0 %v4656
  %5201 = vmatprep.subr.mxu0 %v4664
  %5202 = vmatpush1.msra.mxu0 %v4663
  %5203 = vmatprep.subr.mxu0 %v4671
  %5204 = vmatpush1.msra.mxu0 %v4670
  %5205 = vmatprep.subr.mxu0 %v4678
  %5206 = vmatpush1.msra.mxu0 %v4677
  %5207 = vmatprep.subr.mxu0 %v4685
  %5208 = vmatpush1.msra.mxu0 %v4684
  %5209 = vmatprep.subr.mxu0 %v4692
  %5210 = vmatpush1.msra.mxu0 %v4691
  %5211 = vmatprep.subr.mxu0 %v4699
  %5212 = vmatpush1.msra.mxu0 %v4698
  %5213 = vmatprep.subr.mxu0 %v4706
  %5214 = vmatpush1.msra.mxu0 %v4705
  %5215 = vmatprep.subr.mxu0 %v4713
  %5216 = vmatpush1.msra.mxu0 %v4712
  %5217 = vmatprep.subr.mxu0 %v4720
  %5218 = vmatpush1.msra.mxu0 %v4719
  %5219 = vmatprep.subr.mxu0 %v4727
  %5220 = vmatpush1.msra.mxu0 %v4726
  %5221 = vmatprep.mubr.f32.mxu0 %v3387
  %5222 = vmatmul.mubr.f32.gmra.mrb[0].mxu0 %v3386
  %v5223 = vpop.f32.mrb[0].mxu0
  %v5224 = vadd.f32 %v5153, %v5223
  %v5225 = vpop.f32.mrb[0].mxu0
  %v5226 = vadd.f32 %v5155, %v5225
  %5227 = vdwg.mxu0
  %5228 = vmatprep.subr.mxu0 %v4734
  %5229 = vmatpush1.msra.mxu0 %v4733
  %5230 = vmatprep.subr.mxu0 %v4741
  %5231 = vmatpush1.msra.mxu0 %v4740
  %5232 = vmatprep.subr.mxu0 %v4748
  %5233 = vmatpush1.msra.mxu0 %v4747
  %5234 = vmatprep.subr.mxu0 %v4755
  %5235 = vmatpush1.msra.mxu0 %v4754
  %5236 = vmatprep.subr.mxu0 0.0
  %5237 = vmatpush1.msra.mxu0 0.0
  %5238 = vmatprep.subr.mxu0 0.0
  %5239 = vmatpush1.msra.mxu0 0.0
  %5240 = vmatprep.subr.mxu0 0.0
  %5241 = vmatpush1.msra.mxu0 0.0
  %5242 = vmatprep.subr.mxu0 0.0
  %5243 = vmatpush1.msra.mxu0 0.0
  %5244 = vmatprep.subr.mxu0 0.0
  %5245 = vmatpush1.msra.mxu0 0.0
  %5246 = vmatprep.subr.mxu0 0.0
  %5247 = vmatpush1.msra.mxu0 0.0
  %5248 = vmatprep.subr.mxu0 0.0
  %5249 = vmatpush1.msra.mxu0 0.0
  %5250 = vmatprep.subr.mxu0 0.0
  %5251 = vmatpush1.msra.mxu0 0.0
  %5252 = vmatprep.subr.mxu0 0.0
  %5253 = vmatpush1.msra.mxu0 0.0
  %5254 = vmatprep.subr.mxu0 0.0
  %5255 = vmatpush1.msra.mxu0 0.0
  %5256 = vmatprep.subr.mxu0 0.0
  %5257 = vmatpush1.msra.mxu0 0.0
  %5258 = vmatprep.subr.mxu0 0.0
  %5259 = vmatpush1.msra.mxu0 0.0
  %5260 = vmatprep.subr.mxu0 0.0
  %5261 = vmatpush1.msra.mxu0 0.0
  %5262 = vmatprep.subr.mxu0 0.0
  %5263 = vmatpush1.msra.mxu0 0.0
  %5264 = vmatprep.subr.mxu0 0.0
  %5265 = vmatpush1.msra.mxu0 0.0
  %5266 = vmatprep.subr.mxu0 0.0
  %5267 = vmatpush1.msra.mxu0 0.0
  %5268 = vmatprep.subr.mxu0 0.0
  %5269 = vmatpush1.msra.mxu0 0.0
  %5270 = vmatprep.subr.mxu0 0.0
  %5271 = vmatpush1.msra.mxu0 0.0
  %5272 = vmatprep.subr.mxu0 0.0
  %5273 = vmatpush1.msra.mxu0 0.0
  %5274 = vmatprep.subr.mxu0 0.0
  %5275 = vmatpush1.msra.mxu0 0.0
  %5276 = vmatprep.subr.mxu0 0.0
  %5277 = vmatpush1.msra.mxu0 0.0
  %5278 = vmatprep.subr.mxu0 0.0
  %5279 = vmatpush1.msra.mxu0 0.0
  %5280 = vmatprep.subr.mxu0 0.0
  %5281 = vmatpush1.msra.mxu0 0.0
  %5282 = vmatprep.subr.mxu0 0.0
  %5283 = vmatpush1.msra.mxu0 0.0
  %5284 = vmatprep.subr.mxu0 0.0
  %5285 = vmatpush1.msra.mxu0 0.0
  %5286 = vmatprep.subr.mxu0 0.0
  %5287 = vmatpush1.msra.mxu0 0.0
  %5288 = vmatprep.subr.mxu0 0.0
  %5289 = vmatpush1.msra.mxu0 0.0
  %5290 = vmatprep.subr.mxu0 0.0
  %5291 = vmatpush1.msra.mxu0 0.0
  %5292 = vmatprep.mubr.f32.mxu0 0.0
  %5293 = vmatmul.mubr.f32.gmra.mrb[0].mxu0 %v4800
  %v5294 = vpop.f32.mrb[0].mxu0
  %v5295 = vadd.f32 %v5224, %v5294
  %v5296 = vpop.f32.mrb[0].mxu0
  %v5297 = vadd.f32 %v5226, %v5296
  %5298 = vdwg.mxu0
  %5299 = vmatprep.subr.mxu0 %v3392
  %5300 = vmatpush1.msra.mxu0 %v3391
  %5301 = vmatprep.subr.mxu0 %v3399
  %5302 = vmatpush1.msra.mxu0 %v3398
  %5303 = vmatprep.subr.mxu0 %v3406
  %5304 = vmatpush1.msra.mxu0 %v3405
  %5305 = vmatprep.subr.mxu0 %v3413
  %5306 = vmatpush1.msra.mxu0 %v3412
  %5307 = vmatprep.subr.mxu0 %v3420
  %5308 = vmatpush1.msra.mxu0 %v3419
  %5309 = vmatprep.subr.mxu0 %v3427
  %5310 = vmatpush1.msra.mxu0 %v3426
  %5311 = vmatprep.subr.mxu0 %v3434
  %5312 = vmatpush1.msra.mxu0 %v3433
  %5313 = vmatprep.subr.mxu0 %v3441
  %5314 = vmatpush1.msra.mxu0 %v3440
  %5315 = vmatprep.subr.mxu0 %v3448
  %5316 = vmatpush1.msra.mxu0 %v3447
  %5317 = vmatprep.subr.mxu0 %v3455
  %5318 = vmatpush1.msra.mxu0 %v3454
  %5319 = vmatprep.subr.mxu0 %v3462
  %5320 = vmatpush1.msra.mxu0 %v3461
  %5321 = vmatprep.subr.mxu0 %v3469
  %5322 = vmatpush1.msra.mxu0 %v3468
  %5323 = vmatprep.subr.mxu0 %v3476
  %5324 = vmatpush1.msra.mxu0 %v3475
  %5325 = vmatprep.subr.mxu0 %v3483
  %5326 = vmatpush1.msra.mxu0 %v3482
  %5327 = vmatprep.subr.mxu0 %v3490
  %5328 = vmatpush1.msra.mxu0 %v3489
  %5329 = vmatprep.subr.mxu0 %v3497
  %5330 = vmatpush1.msra.mxu0 %v3496
  %5331 = vmatprep.subr.mxu0 %v3504
  %5332 = vmatpush1.msra.mxu0 %v3503
  %5333 = vmatprep.subr.mxu0 %v3511
  %5334 = vmatpush1.msra.mxu0 %v3510
  %5335 = vmatprep.subr.mxu0 %v3518
  %5336 = vmatpush1.msra.mxu0 %v3517
  %5337 = vmatprep.subr.mxu0 %v3525
  %5338 = vmatpush1.msra.mxu0 %v3524
  %5339 = vmatprep.subr.mxu0 %v3532
  %5340 = vmatpush1.msra.mxu0 %v3531
  %5341 = vmatprep.subr.mxu0 %v3539
  %5342 = vmatpush1.msra.mxu0 %v3538
  %5343 = vmatprep.subr.mxu0 %v3546
  %5344 = vmatpush1.msra.mxu0 %v3545
  %5345 = vmatprep.subr.mxu0 %v3553
  %5346 = vmatpush1.msra.mxu0 %v3552
  %5347 = vmatprep.subr.mxu0 %v3560
  %5348 = vmatpush1.msra.mxu0 %v3559
  %5349 = vmatprep.subr.mxu0 %v3567
  %5350 = vmatpush1.msra.mxu0 %v3566
  %5351 = vmatprep.subr.mxu0 %v3574
  %5352 = vmatpush1.msra.mxu0 %v3573
  %5353 = vmatprep.subr.mxu0 %v3581
  %5354 = vmatpush1.msra.mxu0 %v3580
  %5355 = vmatprep.subr.mxu0 %v3588
  %5356 = vmatpush1.msra.mxu0 %v3587
  %5357 = vmatprep.subr.mxu0 %v3595
  %5358 = vmatpush1.msra.mxu0 %v3594
  %5359 = vmatprep.subr.mxu0 %v3602
  %5360 = vmatpush1.msra.mxu0 %v3601
  %5361 = vmatprep.subr.mxu0 %v3609
  %5362 = vmatpush1.msra.mxu0 %v3608
  %5363 = vmatprep.mubr.f32.mxu0 %v3377
  %5364 = vmatmul.mubr.f32.gmra.mrb[0].mxu0 %v3376
  %v5365 = vpop.f32.mrb[0].mxu0
  %v5366 = vadd.f32 %v4774, %v5365
  %v5367 = vpop.f32.mrb[0].mxu0
  %v5368 = vadd.f32 %v4778, %v5367
  %5369 = vdwg.mxu0
  %5370 = vmatprep.subr.mxu0 %v3616
  %5371 = vmatpush1.msra.mxu0 %v3615
  %5372 = vmatprep.subr.mxu0 %v3623
  %5373 = vmatpush1.msra.mxu0 %v3622
  %5374 = vmatprep.subr.mxu0 %v3630
  %5375 = vmatpush1.msra.mxu0 %v3629
  %5376 = vmatprep.subr.mxu0 %v3637
  %5377 = vmatpush1.msra.mxu0 %v3636
  %5378 = vmatprep.subr.mxu0 %v3644
  %5379 = vmatpush1.msra.mxu0 %v3643
  %5380 = vmatprep.subr.mxu0 %v3651
  %5381 = vmatpush1.msra.mxu0 %v3650
  %5382 = vmatprep.subr.mxu0 %v3658
  %5383 = vmatpush1.msra.mxu0 %v3657
  %5384 = vmatprep.subr.mxu0 %v3665
  %5385 = vmatpush1.msra.mxu0 %v3664
  %5386 = vmatprep.subr.mxu0 %v3672
  %5387 = vmatpush1.msra.mxu0 %v3671
  %5388 = vmatprep.subr.mxu0 %v3679
  %5389 = vmatpush1.msra.mxu0 %v3678
  %5390 = vmatprep.subr.mxu0 %v3686
  %5391 = vmatpush1.msra.mxu0 %v3685
  %5392 = vmatprep.subr.mxu0 %v3693
  %5393 = vmatpush1.msra.mxu0 %v3692
  %5394 = vmatprep.subr.mxu0 %v3700
  %5395 = vmatpush1.msra.mxu0 %v3699
  %5396 = vmatprep.subr.mxu0 %v3707
  %5397 = vmatpush1.msra.mxu0 %v3706
  %5398 = vmatprep.subr.mxu0 %v3714
  %5399 = vmatpush1.msra.mxu0 %v3713
  %5400 = vmatprep.subr.mxu0 %v3721
  %5401 = vmatpush1.msra.mxu0 %v3720
  %5402 = vmatprep.subr.mxu0 %v3728
  %5403 = vmatpush1.msra.mxu0 %v3727
  %5404 = vmatprep.subr.mxu0 %v3735
  %5405 = vmatpush1.msra.mxu0 %v3734
  %5406 = vmatprep.subr.mxu0 %v3742
  %5407 = vmatpush1.msra.mxu0 %v3741
  %5408 = vmatprep.subr.mxu0 %v3749
  %5409 = vmatpush1.msra.mxu0 %v3748
  %5410 = vmatprep.subr.mxu0 %v3756
  %5411 = vmatpush1.msra.mxu0 %v3755
  %5412 = vmatprep.subr.mxu0 %v3763
  %5413 = vmatpush1.msra.mxu0 %v3762
  %5414 = vmatprep.subr.mxu0 %v3770
  %5415 = vmatpush1.msra.mxu0 %v3769
  %5416 = vmatprep.subr.mxu0 %v3777
  %5417 = vmatpush1.msra.mxu0 %v3776
  %5418 = vmatprep.subr.mxu0 %v3784
  %5419 = vmatpush1.msra.mxu0 %v3783
  %5420 = vmatprep.subr.mxu0 %v3791
  %5421 = vmatpush1.msra.mxu0 %v3790
  %5422 = vmatprep.subr.mxu0 %v3798
  %5423 = vmatpush1.msra.mxu0 %v3797
  %5424 = vmatprep.subr.mxu0 %v3805
  %5425 = vmatpush1.msra.mxu0 %v3804
  %5426 = vmatprep.subr.mxu0 %v3812
  %5427 = vmatpush1.msra.mxu0 %v3811
  %5428 = vmatprep.subr.mxu0 %v3819
  %5429 = vmatpush1.msra.mxu0 %v3818
  %5430 = vmatprep.subr.mxu0 %v3826
  %5431 = vmatpush1.msra.mxu0 %v3825
  %5432 = vmatprep.subr.mxu0 %v3833
  %5433 = vmatpush1.msra.mxu0 %v3832
  %5434 = vmatprep.mubr.f32.mxu0 %v3379
  %5435 = vmatmul.mubr.f32.gmra.mrb[0].mxu0 %v3378
  %v5436 = vpop.f32.mrb[0].mxu0
  %v5437 = vadd.f32 %v5366, %v5436
  %v5438 = vpop.f32.mrb[0].mxu0
  %v5439 = vadd.f32 %v5368, %v5438
  %5440 = vdwg.mxu0
  %5441 = vmatprep.subr.mxu0 %v3840
  %5442 = vmatpush1.msra.mxu0 %v3839
  %5443 = vmatprep.subr.mxu0 %v3847
  %5444 = vmatpush1.msra.mxu0 %v3846
  %5445 = vmatprep.subr.mxu0 %v3854
  %5446 = vmatpush1.msra.mxu0 %v3853
  %5447 = vmatprep.subr.mxu0 %v3861
  %5448 = vmatpush1.msra.mxu0 %v3860
  %5449 = vmatprep.subr.mxu0 %v3868
  %5450 = vmatpush1.msra.mxu0 %v3867
  %5451 = vmatprep.subr.mxu0 %v3875
  %5452 = vmatpush1.msra.mxu0 %v3874
  %5453 = vmatprep.subr.mxu0 %v3882
  %5454 = vmatpush1.msra.mxu0 %v3881
  %5455 = vmatprep.subr.mxu0 %v3889
  %5456 = vmatpush1.msra.mxu0 %v3888
  %5457 = vmatprep.subr.mxu0 %v3896
  %5458 = vmatpush1.msra.mxu0 %v3895
  %5459 = vmatprep.subr.mxu0 %v3903
  %5460 = vmatpush1.msra.mxu0 %v3902
  %5461 = vmatprep.subr.mxu0 %v3910
  %5462 = vmatpush1.msra.mxu0 %v3909
  %5463 = vmatprep.subr.mxu0 %v3917
  %5464 = vmatpush1.msra.mxu0 %v3916
  %5465 = vmatprep.subr.mxu0 %v3924
  %5466 = vmatpush1.msra.mxu0 %v3923
  %5467 = vmatprep.subr.mxu0 %v3931
  %5468 = vmatpush1.msra.mxu0 %v3930
  %5469 = vmatprep.subr.mxu0 %v3938
  %5470 = vmatpush1.msra.mxu0 %v3937
  %5471 = vmatprep.subr.mxu0 %v3945
  %5472 = vmatpush1.msra.mxu0 %v3944
  %5473 = vmatprep.subr.mxu0 %v3952
  %5474 = vmatpush1.msra.mxu0 %v3951
  %5475 = vmatprep.subr.mxu0 %v3959
  %5476 = vmatpush1.msra.mxu0 %v3958
  %5477 = vmatprep.subr.mxu0 %v3966
  %5478 = vmatpush1.msra.mxu0 %v3965
  %5479 = vmatprep.subr.mxu0 %v3973
  %5480 = vmatpush1.msra.mxu0 %v3972
  %5481 = vmatprep.subr.mxu0 %v3980
  %5482 = vmatpush1.msra.mxu0 %v3979
  %5483 = vmatprep.subr.mxu0 %v3987
  %5484 = vmatpush1.msra.mxu0 %v3986
  %5485 = vmatprep.subr.mxu0 %v3994
  %5486 = vmatpush1.msra.mxu0 %v3993
  %5487 = vmatprep.subr.mxu0 %v4001
  %5488 = vmatpush1.msra.mxu0 %v4000
  %5489 = vmatprep.subr.mxu0 %v4008
  %5490 = vmatpush1.msra.mxu0 %v4007
  %5491 = vmatprep.subr.mxu0 %v4015
  %5492 = vmatpush1.msra.mxu0 %v4014
  %5493 = vmatprep.subr.mxu0 %v4022
  %5494 = vmatpush1.msra.mxu0 %v4021
  %5495 = vmatprep.subr.mxu0 %v4029
  %5496 = vmatpush1.msra.mxu0 %v4028
  %5497 = vmatprep.subr.mxu0 %v4036
  %5498 = vmatpush1.msra.mxu0 %v4035
  %5499 = vmatprep.subr.mxu0 %v4043
  %5500 = vmatpush1.msra.mxu0 %v4042
  %5501 = vmatprep.subr.mxu0 %v4050
  %5502 = vmatpush1.msra.mxu0 %v4049
  %5503 = vmatprep.subr.mxu0 %v4057
  %5504 = vmatpush1.msra.mxu0 %v4056
  %5505 = vmatprep.mubr.f32.mxu0 %v3381
  %5506 = vmatmul.mubr.f32.gmra.mrb[0].mxu0 %v3380
  %v5507 = vpop.f32.mrb[0].mxu0
  %v5508 = vadd.f32 %v5437, %v5507
  %v5509 = vpop.f32.mrb[0].mxu0
  %v5510 = vadd.f32 %v5439, %v5509
  %5511 = vdwg.mxu0
  %5512 = vmatprep.subr.mxu0 %v4064
  %5513 = vmatpush1.msra.mxu0 %v4063
  %5514 = vmatprep.subr.mxu0 %v4071
  %5515 = vmatpush1.msra.mxu0 %v4070
  %5516 = vmatprep.subr.mxu0 %v4078
  %5517 = vmatpush1.msra.mxu0 %v4077
  %5518 = vmatprep.subr.mxu0 %v4085
  %5519 = vmatpush1.msra.mxu0 %v4084
  %5520 = vmatprep.subr.mxu0 %v4092
  %5521 = vmatpush1.msra.mxu0 %v4091
  %5522 = vmatprep.subr.mxu0 %v4099
  %5523 = vmatpush1.msra.mxu0 %v4098
  %5524 = vmatprep.subr.mxu0 %v4106
  %5525 = vmatpush1.msra.mxu0 %v4105
  %5526 = vmatprep.subr.mxu0 %v4113
  %5527 = vmatpush1.msra.mxu0 %v4112
  %5528 = vmatprep.subr.mxu0 %v4120
  %5529 = vmatpush1.msra.mxu0 %v4119
  %5530 = vmatprep.subr.mxu0 %v4127
  %5531 = vmatpush1.msra.mxu0 %v4126
  %5532 = vmatprep.subr.mxu0 %v4134
  %5533 = vmatpush1.msra.mxu0 %v4133
  %5534 = vmatprep.subr.mxu0 %v4141
  %5535 = vmatpush1.msra.mxu0 %v4140
  %5536 = vmatprep.subr.mxu0 %v4148
  %5537 = vmatpush1.msra.mxu0 %v4147
  %5538 = vmatprep.subr.mxu0 %v4155
  %5539 = vmatpush1.msra.mxu0 %v4154
  %5540 = vmatprep.subr.mxu0 %v4162
  %5541 = vmatpush1.msra.mxu0 %v4161
  %5542 = vmatprep.subr.mxu0 %v4169
  %5543 = vmatpush1.msra.mxu0 %v4168
  %5544 = vmatprep.subr.mxu0 %v4176
  %5545 = vmatpush1.msra.mxu0 %v4175
  %5546 = vmatprep.subr.mxu0 %v4183
  %5547 = vmatpush1.msra.mxu0 %v4182
  %5548 = vmatprep.subr.mxu0 %v4190
  %5549 = vmatpush1.msra.mxu0 %v4189
  %5550 = vmatprep.subr.mxu0 %v4197
  %5551 = vmatpush1.msra.mxu0 %v4196
  %5552 = vmatprep.subr.mxu0 %v4204
  %5553 = vmatpush1.msra.mxu0 %v4203
  %5554 = vmatprep.subr.mxu0 %v4211
  %5555 = vmatpush1.msra.mxu0 %v4210
  %5556 = vmatprep.subr.mxu0 %v4218
  %5557 = vmatpush1.msra.mxu0 %v4217
  %5558 = vmatprep.subr.mxu0 %v4225
  %5559 = vmatpush1.msra.mxu0 %v4224
  %5560 = vmatprep.subr.mxu0 %v4232
  %5561 = vmatpush1.msra.mxu0 %v4231
  %5562 = vmatprep.subr.mxu0 %v4239
  %5563 = vmatpush1.msra.mxu0 %v4238
  %5564 = vmatprep.subr.mxu0 %v4246
  %5565 = vmatpush1.msra.mxu0 %v4245
  %5566 = vmatprep.subr.mxu0 %v4253
  %5567 = vmatpush1.msra.mxu0 %v4252
  %5568 = vmatprep.subr.mxu0 %v4260
  %5569 = vmatpush1.msra.mxu0 %v4259
  %5570 = vmatprep.subr.mxu0 %v4267
  %5571 = vmatpush1.msra.mxu0 %v4266
  %5572 = vmatprep.subr.mxu0 %v4274
  %5573 = vmatpush1.msra.mxu0 %v4273
  %5574 = vmatprep.subr.mxu0 %v4281
  %5575 = vmatpush1.msra.mxu0 %v4280
  %5576 = vmatprep.mubr.f32.mxu0 %v3383
  %5577 = vmatmul.mubr.f32.gmra.mrb[0].mxu0 %v3382
  %v5578 = vpop.f32.mrb[0].mxu0
  %v5579 = vadd.f32 %v5508, %v5578
  %v5580 = vpop.f32.mrb[0].mxu0
  %v5581 = vadd.f32 %v5510, %v5580
  %5582 = vdwg.mxu0
  %5583 = vmatprep.subr.mxu0 %v4288
  %5584 = vmatpush1.msra.mxu0 %v4287
  %5585 = vmatprep.subr.mxu0 %v4295
  %5586 = vmatpush1.msra.mxu0 %v4294
  %5587 = vmatprep.subr.mxu0 %v4302
  %5588 = vmatpush1.msra.mxu0 %v4301
  %5589 = vmatprep.subr.mxu0 %v4309
  %5590 = vmatpush1.msra.mxu0 %v4308
  %5591 = vmatprep.subr.mxu0 %v4316
  %5592 = vmatpush1.msra.mxu0 %v4315
  %5593 = vmatprep.subr.mxu0 %v4323
  %5594 = vmatpush1.msra.mxu0 %v4322
  %5595 = vmatprep.subr.mxu0 %v4330
  %5596 = vmatpush1.msra.mxu0 %v4329
  %5597 = vmatprep.subr.mxu0 %v4337
  %5598 = vmatpush1.msra.mxu0 %v4336
  %5599 = vmatprep.subr.mxu0 %v4344
  %5600 = vmatpush1.msra.mxu0 %v4343
  %5601 = vmatprep.subr.mxu0 %v4351
  %5602 = vmatpush1.msra.mxu0 %v4350
  %5603 = vmatprep.subr.mxu0 %v4358
  %5604 = vmatpush1.msra.mxu0 %v4357
  %5605 = vmatprep.subr.mxu0 %v4365
  %5606 = vmatpush1.msra.mxu0 %v4364
  %5607 = vmatprep.subr.mxu0 %v4372
  %5608 = vmatpush1.msra.mxu0 %v4371
  %5609 = vmatprep.subr.mxu0 %v4379
  %5610 = vmatpush1.msra.mxu0 %v4378
  %5611 = vmatprep.subr.mxu0 %v4386
  %5612 = vmatpush1.msra.mxu0 %v4385
  %5613 = vmatprep.subr.mxu0 %v4393
  %5614 = vmatpush1.msra.mxu0 %v4392
  %5615 = vmatprep.subr.mxu0 %v4400
  %5616 = vmatpush1.msra.mxu0 %v4399
  %5617 = vmatprep.subr.mxu0 %v4407
  %5618 = vmatpush1.msra.mxu0 %v4406
  %5619 = vmatprep.subr.mxu0 %v4414
  %5620 = vmatpush1.msra.mxu0 %v4413
  %5621 = vmatprep.subr.mxu0 %v4421
  %5622 = vmatpush1.msra.mxu0 %v4420
  %5623 = vmatprep.subr.mxu0 %v4428
  %5624 = vmatpush1.msra.mxu0 %v4427
  %5625 = vmatprep.subr.mxu0 %v4435
  %5626 = vmatpush1.msra.mxu0 %v4434
  %5627 = vmatprep.subr.mxu0 %v4442
  %5628 = vmatpush1.msra.mxu0 %v4441
  %5629 = vmatprep.subr.mxu0 %v4449
  %5630 = vmatpush1.msra.mxu0 %v4448
  %5631 = vmatprep.subr.mxu0 %v4456
  %5632 = vmatpush1.msra.mxu0 %v4455
  %5633 = vmatprep.subr.mxu0 %v4463
  %5634 = vmatpush1.msra.mxu0 %v4462
  %5635 = vmatprep.subr.mxu0 %v4470
  %5636 = vmatpush1.msra.mxu0 %v4469
  %5637 = vmatprep.subr.mxu0 %v4477
  %5638 = vmatpush1.msra.mxu0 %v4476
  %5639 = vmatprep.subr.mxu0 %v4484
  %5640 = vmatpush1.msra.mxu0 %v4483
  %5641 = vmatprep.subr.mxu0 %v4491
  %5642 = vmatpush1.msra.mxu0 %v4490
  %5643 = vmatprep.subr.mxu0 %v4498
  %5644 = vmatpush1.msra.mxu0 %v4497
  %5645 = vmatprep.subr.mxu0 %v4505
  %5646 = vmatpush1.msra.mxu0 %v4504
  %5647 = vmatprep.mubr.f32.mxu0 %v3385
  %5648 = vmatmul.mubr.f32.gmra.mrb[0].mxu0 %v3384
  %v5649 = vpop.f32.mrb[0].mxu0
  %v5650 = vadd.f32 %v5579, %v5649
  %v5651 = vpop.f32.mrb[0].mxu0
  %v5652 = vadd.f32 %v5581, %v5651
  %5653 = vdwg.mxu0
  %5654 = vmatprep.subr.mxu0 %v4512
  %5655 = vmatpush1.msra.mxu0 %v4511
  %5656 = vmatprep.subr.mxu0 %v4519
  %5657 = vmatpush1.msra.mxu0 %v4518
  %5658 = vmatprep.subr.mxu0 %v4526
  %5659 = vmatpush1.msra.mxu0 %v4525
  %5660 = vmatprep.subr.mxu0 %v4533
  %5661 = vmatpush1.msra.mxu0 %v4532
  %5662 = vmatprep.subr.mxu0 %v4540
  %5663 = vmatpush1.msra.mxu0 %v4539
  %5664 = vmatprep.subr.mxu0 %v4547
  %5665 = vmatpush1.msra.mxu0 %v4546
  %5666 = vmatprep.subr.mxu0 %v4554
  %5667 = vmatpush1.msra.mxu0 %v4553
  %5668 = vmatprep.subr.mxu0 %v4561
  %5669 = vmatpush1.msra.mxu0 %v4560
  %5670 = vmatprep.subr.mxu0 %v4568
  %5671 = vmatpush1.msra.mxu0 %v4567
  %5672 = vmatprep.subr.mxu0 %v4575
  %5673 = vmatpush1.msra.mxu0 %v4574
  %5674 = vmatprep.subr.mxu0 %v4582
  %5675 = vmatpush1.msra.mxu0 %v4581
  %5676 = vmatprep.subr.mxu0 %v4589
  %5677 = vmatpush1.msra.mxu0 %v4588
  %5678 = vmatprep.subr.mxu0 %v4596
  %5679 = vmatpush1.msra.mxu0 %v4595
  %5680 = vmatprep.subr.mxu0 %v4603
  %5681 = vmatpush1.msra.mxu0 %v4602
  %5682 = vmatprep.subr.mxu0 %v4610
  %5683 = vmatpush1.msra.mxu0 %v4609
  %5684 = vmatprep.subr.mxu0 %v4617
  %5685 = vmatpush1.msra.mxu0 %v4616
  %5686 = vmatprep.subr.mxu0 %v4624
  %5687 = vmatpush1.msra.mxu0 %v4623
  %5688 = vmatprep.subr.mxu0 %v4631
  %5689 = vmatpush1.msra.mxu0 %v4630
  %5690 = vmatprep.subr.mxu0 %v4638
  %5691 = vmatpush1.msra.mxu0 %v4637
  %5692 = vmatprep.subr.mxu0 %v4645
  %5693 = vmatpush1.msra.mxu0 %v4644
  %5694 = vmatprep.subr.mxu0 %v4652
  %5695 = vmatpush1.msra.mxu0 %v4651
  %5696 = vmatprep.subr.mxu0 %v4659
  %5697 = vmatpush1.msra.mxu0 %v4658
  %5698 = vmatprep.subr.mxu0 %v4666
  %5699 = vmatpush1.msra.mxu0 %v4665
  %5700 = vmatprep.subr.mxu0 %v4673
  %5701 = vmatpush1.msra.mxu0 %v4672
  %5702 = vmatprep.subr.mxu0 %v4680
  %5703 = vmatpush1.msra.mxu0 %v4679
  %5704 = vmatprep.subr.mxu0 %v4687
  %5705 = vmatpush1.msra.mxu0 %v4686
  %5706 = vmatprep.subr.mxu0 %v4694
  %5707 = vmatpush1.msra.mxu0 %v4693
  %5708 = vmatprep.subr.mxu0 %v4701
  %5709 = vmatpush1.msra.mxu0 %v4700
  %5710 = vmatprep.subr.mxu0 %v4708
  %5711 = vmatpush1.msra.mxu0 %v4707
  %5712 = vmatprep.subr.mxu0 %v4715
  %5713 = vmatpush1.msra.mxu0 %v4714
  %5714 = vmatprep.subr.mxu0 %v4722
  %5715 = vmatpush1.msra.mxu0 %v4721
  %5716 = vmatprep.subr.mxu0 %v4729
  %5717 = vmatpush1.msra.mxu0 %v4728
  %5718 = vmatprep.mubr.f32.mxu0 %v3387
  %5719 = vmatmul.mubr.f32.gmra.mrb[0].mxu0 %v3386
  %v5720 = vpop.f32.mrb[0].mxu0
  %v5721 = vadd.f32 %v5650, %v5720
  %v5722 = vpop.f32.mrb[0].mxu0
  %v5723 = vadd.f32 %v5652, %v5722
  %5724 = vdwg.mxu0
  %5725 = vmatprep.subr.mxu0 %v4736
  %5726 = vmatpush1.msra.mxu0 %v4735
  %5727 = vmatprep.subr.mxu0 %v4743
  %5728 = vmatpush1.msra.mxu0 %v4742
  %5729 = vmatprep.subr.mxu0 %v4750
  %5730 = vmatpush1.msra.mxu0 %v4749
  %5731 = vmatprep.subr.mxu0 %v4757
  %5732 = vmatpush1.msra.mxu0 %v4756
  %5733 = vmatprep.subr.mxu0 0.0
  %5734 = vmatpush1.msra.mxu0 0.0
  %5735 = vmatprep.subr.mxu0 0.0
  %5736 = vmatpush1.msra.mxu0 0.0
  %5737 = vmatprep.subr.mxu0 0.0
  %5738 = vmatpush1.msra.mxu0 0.0
  %5739 = vmatprep.subr.mxu0 0.0
  %5740 = vmatpush1.msra.mxu0 0.0
  %5741 = vmatprep.subr.mxu0 0.0
  %5742 = vmatpush1.msra.mxu0 0.0
  %5743 = vmatprep.subr.mxu0 0.0
  %5744 = vmatpush1.msra.mxu0 0.0
  %5745 = vmatprep.subr.mxu0 0.0
  %5746 = vmatpush1.msra.mxu0 0.0
  %5747 = vmatprep.subr.mxu0 0.0
  %5748 = vmatpush1.msra.mxu0 0.0
  %5749 = vmatprep.subr.mxu0 0.0
  %5750 = vmatpush1.msra.mxu0 0.0
  %5751 = vmatprep.subr.mxu0 0.0
  %5752 = vmatpush1.msra.mxu0 0.0
  %5753 = vmatprep.subr.mxu0 0.0
  %5754 = vmatpush1.msra.mxu0 0.0
  %5755 = vmatprep.subr.mxu0 0.0
  %5756 = vmatpush1.msra.mxu0 0.0
  %5757 = vmatprep.subr.mxu0 0.0
  %5758 = vmatpush1.msra.mxu0 0.0
  %5759 = vmatprep.subr.mxu0 0.0
  %5760 = vmatpush1.msra.mxu0 0.0
  %5761 = vmatprep.subr.mxu0 0.0
  %5762 = vmatpush1.msra.mxu0 0.0
  %5763 = vmatprep.subr.mxu0 0.0
  %5764 = vmatpush1.msra.mxu0 0.0
  %5765 = vmatprep.subr.mxu0 0.0
  %5766 = vmatpush1.msra.mxu0 0.0
  %5767 = vmatprep.subr.mxu0 0.0
  %5768 = vmatpush1.msra.mxu0 0.0
  %5769 = vmatprep.subr.mxu0 0.0
  %5770 = vmatpush1.msra.mxu0 0.0
  %5771 = vmatprep.subr.mxu0 0.0
  %5772 = vmatpush1.msra.mxu0 0.0
  %5773 = vmatprep.subr.mxu0 0.0
  %5774 = vmatpush1.msra.mxu0 0.0
  %5775 = vmatprep.subr.mxu0 0.0
  %5776 = vmatpush1.msra.mxu0 0.0
  %5777 = vmatprep.subr.mxu0 0.0
  %5778 = vmatpush1.msra.mxu0 0.0
  %5779 = vmatprep.subr.mxu0 0.0
  %5780 = vmatpush1.msra.mxu0 0.0
  %5781 = vmatprep.subr.mxu0 0.0
  %5782 = vmatpush1.msra.mxu0 0.0
  %5783 = vmatprep.subr.mxu0 0.0
  %5784 = vmatpush1.msra.mxu0 0.0
  %5785 = vmatprep.subr.mxu0 0.0
  %5786 = vmatpush1.msra.mxu0 0.0
  %5787 = vmatprep.subr.mxu0 0.0
  %5788 = vmatpush1.msra.mxu0 0.0
  %5789 = vmatprep.mubr.f32.mxu0 0.0
  %5790 = vmatmul.mubr.f32.gmra.mrb[0].mxu0 %v4800
  %v5791 = vpop.f32.mrb[0].mxu0
  %v5792 = vadd.f32 %v5721, %v5791
  %v5793 = vpop.f32.mrb[0].mxu0
  %v5794 = vadd.f32 %v5723, %v5793
  %5795 = vdwg.mxu0
  %5796 = vmatprep.subr.mxu0 %v3394
  %5797 = vmatpush1.msra.mxu0 %v3393
  %5798 = vmatprep.subr.mxu0 %v3401
  %5799 = vmatpush1.msra.mxu0 %v3400
  %5800 = vmatprep.subr.mxu0 %v3408
  %5801 = vmatpush1.msra.mxu0 %v3407
  %5802 = vmatprep.subr.mxu0 %v3415
  %5803 = vmatpush1.msra.mxu0 %v3414
  %5804 = vmatprep.subr.mxu0 %v3422
  %5805 = vmatpush1.msra.mxu0 %v3421
  %5806 = vmatprep.subr.mxu0 %v3429
  %5807 = vmatpush1.msra.mxu0 %v3428
  %5808 = vmatprep.subr.mxu0 %v3436
  %5809 = vmatpush1.msra.mxu0 %v3435
  %5810 = vmatprep.subr.mxu0 %v3443
  %5811 = vmatpush1.msra.mxu0 %v3442
  %5812 = vmatprep.subr.mxu0 %v3450
  %5813 = vmatpush1.msra.mxu0 %v3449
  %5814 = vmatprep.subr.mxu0 %v3457
  %5815 = vmatpush1.msra.mxu0 %v3456
  %5816 = vmatprep.subr.mxu0 %v3464
  %5817 = vmatpush1.msra.mxu0 %v3463
  %5818 = vmatprep.subr.mxu0 %v3471
  %5819 = vmatpush1.msra.mxu0 %v3470
  %5820 = vmatprep.subr.mxu0 %v3478
  %5821 = vmatpush1.msra.mxu0 %v3477
  %5822 = vmatprep.subr.mxu0 %v3485
  %5823 = vmatpush1.msra.mxu0 %v3484
  %5824 = vmatprep.subr.mxu0 %v3492
  %5825 = vmatpush1.msra.mxu0 %v3491
  %5826 = vmatprep.subr.mxu0 %v3499
  %5827 = vmatpush1.msra.mxu0 %v3498
  %5828 = vmatprep.subr.mxu0 %v3506
  %5829 = vmatpush1.msra.mxu0 %v3505
  %5830 = vmatprep.subr.mxu0 %v3513
  %5831 = vmatpush1.msra.mxu0 %v3512
  %5832 = vmatprep.subr.mxu0 %v3520
  %5833 = vmatpush1.msra.mxu0 %v3519
  %5834 = vmatprep.subr.mxu0 %v3527
  %5835 = vmatpush1.msra.mxu0 %v3526
  %5836 = vmatprep.subr.mxu0 %v3534
  %5837 = vmatpush1.msra.mxu0 %v3533
  %5838 = vmatprep.subr.mxu0 %v3541
  %5839 = vmatpush1.msra.mxu0 %v3540
  %5840 = vmatprep.subr.mxu0 %v3548
  %5841 = vmatpush1.msra.mxu0 %v3547
  %5842 = vmatprep.subr.mxu0 %v3555
  %5843 = vmatpush1.msra.mxu0 %v3554
  %5844 = vmatprep.subr.mxu0 %v3562
  %5845 = vmatpush1.msra.mxu0 %v3561
  %5846 = vmatprep.subr.mxu0 %v3569
  %5847 = vmatpush1.msra.mxu0 %v3568
  %5848 = vmatprep.subr.mxu0 %v3576
  %5849 = vmatpush1.msra.mxu0 %v3575
  %5850 = vmatprep.subr.mxu0 %v3583
  %5851 = vmatpush1.msra.mxu0 %v3582
  %5852 = vmatprep.subr.mxu0 %v3590
  %5853 = vmatpush1.msra.mxu0 %v3589
  %5854 = vmatprep.subr.mxu0 %v3597
  %5855 = vmatpush1.msra.mxu0 %v3596
  %5856 = vmatprep.subr.mxu0 %v3604
  %5857 = vmatpush1.msra.mxu0 %v3603
  %5858 = vmatprep.subr.mxu0 %v3611
  %5859 = vmatpush1.msra.mxu0 %v3610
  %5860 = vmatprep.mubr.f32.mxu0 %v3377
  %5861 = vmatmul.mubr.f32.gmra.mrb[0].mxu0 %v3376
  %v5862 = vpop.f32.mrb[0].mxu0
  %v5863 = vadd.f32 %v4782, %v5862
  %v5864 = vpop.f32.mrb[0].mxu0
  %v5865 = vadd.f32 %v4786, %v5864
  %5866 = vdwg.mxu0
  %5867 = vmatprep.subr.mxu0 %v3618
  %5868 = vmatpush1.msra.mxu0 %v3617
  %5869 = vmatprep.subr.mxu0 %v3625
  %5870 = vmatpush1.msra.mxu0 %v3624
  %5871 = vmatprep.subr.mxu0 %v3632
  %5872 = vmatpush1.msra.mxu0 %v3631
  %5873 = vmatprep.subr.mxu0 %v3639
  %5874 = vmatpush1.msra.mxu0 %v3638
  %5875 = vmatprep.subr.mxu0 %v3646
  %5876 = vmatpush1.msra.mxu0 %v3645
  %5877 = vmatprep.subr.mxu0 %v3653
  %5878 = vmatpush1.msra.mxu0 %v3652
  %5879 = vmatprep.subr.mxu0 %v3660
  %5880 = vmatpush1.msra.mxu0 %v3659
  %5881 = vmatprep.subr.mxu0 %v3667
  %5882 = vmatpush1.msra.mxu0 %v3666
  %5883 = vmatprep.subr.mxu0 %v3674
  %5884 = vmatpush1.msra.mxu0 %v3673
  %5885 = vmatprep.subr.mxu0 %v3681
  %5886 = vmatpush1.msra.mxu0 %v3680
  %5887 = vmatprep.subr.mxu0 %v3688
  %5888 = vmatpush1.msra.mxu0 %v3687
  %5889 = vmatprep.subr.mxu0 %v3695
  %5890 = vmatpush1.msra.mxu0 %v3694
  %5891 = vmatprep.subr.mxu0 %v3702
  %5892 = vmatpush1.msra.mxu0 %v3701
  %5893 = vmatprep.subr.mxu0 %v3709
  %5894 = vmatpush1.msra.mxu0 %v3708
  %5895 = vmatprep.subr.mxu0 %v3716
  %5896 = vmatpush1.msra.mxu0 %v3715
  %5897 = vmatprep.subr.mxu0 %v3723
  %5898 = vmatpush1.msra.mxu0 %v3722
  %5899 = vmatprep.subr.mxu0 %v3730
  %5900 = vmatpush1.msra.mxu0 %v3729
  %5901 = vmatprep.subr.mxu0 %v3737
  %5902 = vmatpush1.msra.mxu0 %v3736
  %5903 = vmatprep.subr.mxu0 %v3744
  %5904 = vmatpush1.msra.mxu0 %v3743
  %5905 = vmatprep.subr.mxu0 %v3751
  %5906 = vmatpush1.msra.mxu0 %v3750
  %5907 = vmatprep.subr.mxu0 %v3758
  %5908 = vmatpush1.msra.mxu0 %v3757
  %5909 = vmatprep.subr.mxu0 %v3765
  %5910 = vmatpush1.msra.mxu0 %v3764
  %5911 = vmatprep.subr.mxu0 %v3772
  %5912 = vmatpush1.msra.mxu0 %v3771
  %5913 = vmatprep.subr.mxu0 %v3779
  %5914 = vmatpush1.msra.mxu0 %v3778
  %5915 = vmatprep.subr.mxu0 %v3786
  %5916 = vmatpush1.msra.mxu0 %v3785
  %5917 = vmatprep.subr.mxu0 %v3793
  %5918 = vmatpush1.msra.mxu0 %v3792
  %5919 = vmatprep.subr.mxu0 %v3800
  %5920 = vmatpush1.msra.mxu0 %v3799
  %5921 = vmatprep.subr.mxu0 %v3807
  %5922 = vmatpush1.msra.mxu0 %v3806
  %5923 = vmatprep.subr.mxu0 %v3814
  %5924 = vmatpush1.msra.mxu0 %v3813
  %5925 = vmatprep.subr.mxu0 %v3821
  %5926 = vmatpush1.msra.mxu0 %v3820
  %5927 = vmatprep.subr.mxu0 %v3828
  %5928 = vmatpush1.msra.mxu0 %v3827
  %5929 = vmatprep.subr.mxu0 %v3835
  %5930 = vmatpush1.msra.mxu0 %v3834
  %5931 = vmatprep.mubr.f32.mxu0 %v3379
  %5932 = vmatmul.mubr.f32.gmra.mrb[0].mxu0 %v3378
  %v5933 = vpop.f32.mrb[0].mxu0
  %v5934 = vadd.f32 %v5863, %v5933
  %v5935 = vpop.f32.mrb[0].mxu0
  %v5936 = vadd.f32 %v5865, %v5935
  %5937 = vdwg.mxu0
  %5938 = vmatprep.subr.mxu0 %v3842
  %5939 = vmatpush1.msra.mxu0 %v3841
  %5940 = vmatprep.subr.mxu0 %v3849
  %5941 = vmatpush1.msra.mxu0 %v3848
  %5942 = vmatprep.subr.mxu0 %v3856
  %5943 = vmatpush1.msra.mxu0 %v3855
  %5944 = vmatprep.subr.mxu0 %v3863
  %5945 = vmatpush1.msra.mxu0 %v3862
  %5946 = vmatprep.subr.mxu0 %v3870
  %5947 = vmatpush1.msra.mxu0 %v3869
  %5948 = vmatprep.subr.mxu0 %v3877
  %5949 = vmatpush1.msra.mxu0 %v3876
  %5950 = vmatprep.subr.mxu0 %v3884
  %5951 = vmatpush1.msra.mxu0 %v3883
  %5952 = vmatprep.subr.mxu0 %v3891
  %5953 = vmatpush1.msra.mxu0 %v3890
  %5954 = vmatprep.subr.mxu0 %v3898
  %5955 = vmatpush1.msra.mxu0 %v3897
  %5956 = vmatprep.subr.mxu0 %v3905
  %5957 = vmatpush1.msra.mxu0 %v3904
  %5958 = vmatprep.subr.mxu0 %v3912
  %5959 = vmatpush1.msra.mxu0 %v3911
  %5960 = vmatprep.subr.mxu0 %v3919
  %5961 = vmatpush1.msra.mxu0 %v3918
  %5962 = vmatprep.subr.mxu0 %v3926
  %5963 = vmatpush1.msra.mxu0 %v3925
  %5964 = vmatprep.subr.mxu0 %v3933
  %5965 = vmatpush1.msra.mxu0 %v3932
  %5966 = vmatprep.subr.mxu0 %v3940
  %5967 = vmatpush1.msra.mxu0 %v3939
  %5968 = vmatprep.subr.mxu0 %v3947
  %5969 = vmatpush1.msra.mxu0 %v3946
  %5970 = vmatprep.subr.mxu0 %v3954
  %5971 = vmatpush1.msra.mxu0 %v3953
  %5972 = vmatprep.subr.mxu0 %v3961
  %5973 = vmatpush1.msra.mxu0 %v3960
  %5974 = vmatprep.subr.mxu0 %v3968
  %5975 = vmatpush1.msra.mxu0 %v3967
  %5976 = vmatprep.subr.mxu0 %v3975
  %5977 = vmatpush1.msra.mxu0 %v3974
  %5978 = vmatprep.subr.mxu0 %v3982
  %5979 = vmatpush1.msra.mxu0 %v3981
  %5980 = vmatprep.subr.mxu0 %v3989
  %5981 = vmatpush1.msra.mxu0 %v3988
  %5982 = vmatprep.subr.mxu0 %v3996
  %5983 = vmatpush1.msra.mxu0 %v3995
  %5984 = vmatprep.subr.mxu0 %v4003
  %5985 = vmatpush1.msra.mxu0 %v4002
  %5986 = vmatprep.subr.mxu0 %v4010
  %5987 = vmatpush1.msra.mxu0 %v4009
  %5988 = vmatprep.subr.mxu0 %v4017
  %5989 = vmatpush1.msra.mxu0 %v4016
  %5990 = vmatprep.subr.mxu0 %v4024
  %5991 = vmatpush1.msra.mxu0 %v4023
  %5992 = vmatprep.subr.mxu0 %v4031
  %5993 = vmatpush1.msra.mxu0 %v4030
  %5994 = vmatprep.subr.mxu0 %v4038
  %5995 = vmatpush1.msra.mxu0 %v4037
  %5996 = vmatprep.subr.mxu0 %v4045
  %5997 = vmatpush1.msra.mxu0 %v4044
  %5998 = vmatprep.subr.mxu0 %v4052
  %5999 = vmatpush1.msra.mxu0 %v4051
  %6000 = vmatprep.subr.mxu0 %v4059
  %6001 = vmatpush1.msra.mxu0 %v4058
  %6002 = vmatprep.mubr.f32.mxu0 %v3381
  %6003 = vmatmul.mubr.f32.gmra.mrb[0].mxu0 %v3380
  %v6004 = vpop.f32.mrb[0].mxu0
  %v6005 = vadd.f32 %v5934, %v6004
  %v6006 = vpop.f32.mrb[0].mxu0
  %v6007 = vadd.f32 %v5936, %v6006
  %6008 = vdwg.mxu0
  %6009 = vmatprep.subr.mxu0 %v4066
  %6010 = vmatpush1.msra.mxu0 %v4065
  %6011 = vmatprep.subr.mxu0 %v4073
  %6012 = vmatpush1.msra.mxu0 %v4072
  %6013 = vmatprep.subr.mxu0 %v4080
  %6014 = vmatpush1.msra.mxu0 %v4079
  %6015 = vmatprep.subr.mxu0 %v4087
  %6016 = vmatpush1.msra.mxu0 %v4086
  %6017 = vmatprep.subr.mxu0 %v4094
  %6018 = vmatpush1.msra.mxu0 %v4093
  %6019 = vmatprep.subr.mxu0 %v4101
  %6020 = vmatpush1.msra.mxu0 %v4100
  %6021 = vmatprep.subr.mxu0 %v4108
  %6022 = vmatpush1.msra.mxu0 %v4107
  %6023 = vmatprep.subr.mxu0 %v4115
  %6024 = vmatpush1.msra.mxu0 %v4114
  %6025 = vmatprep.subr.mxu0 %v4122
  %6026 = vmatpush1.msra.mxu0 %v4121
  %6027 = vmatprep.subr.mxu0 %v4129
  %6028 = vmatpush1.msra.mxu0 %v4128
  %6029 = vmatprep.subr.mxu0 %v4136
  %6030 = vmatpush1.msra.mxu0 %v4135
  %6031 = vmatprep.subr.mxu0 %v4143
  %6032 = vmatpush1.msra.mxu0 %v4142
  %6033 = vmatprep.subr.mxu0 %v4150
  %6034 = vmatpush1.msra.mxu0 %v4149
  %6035 = vmatprep.subr.mxu0 %v4157
  %6036 = vmatpush1.msra.mxu0 %v4156
  %6037 = vmatprep.subr.mxu0 %v4164
  %6038 = vmatpush1.msra.mxu0 %v4163
  %6039 = vmatprep.subr.mxu0 %v4171
  %6040 = vmatpush1.msra.mxu0 %v4170
  %6041 = vmatprep.subr.mxu0 %v4178
  %6042 = vmatpush1.msra.mxu0 %v4177
  %6043 = vmatprep.subr.mxu0 %v4185
  %6044 = vmatpush1.msra.mxu0 %v4184
  %6045 = vmatprep.subr.mxu0 %v4192
  %6046 = vmatpush1.msra.mxu0 %v4191
  %6047 = vmatprep.subr.mxu0 %v4199
  %6048 = vmatpush1.msra.mxu0 %v4198
  %6049 = vmatprep.subr.mxu0 %v4206
  %6050 = vmatpush1.msra.mxu0 %v4205
  %6051 = vmatprep.subr.mxu0 %v4213
  %6052 = vmatpush1.msra.mxu0 %v4212
  %6053 = vmatprep.subr.mxu0 %v4220
  %6054 = vmatpush1.msra.mxu0 %v4219
  %6055 = vmatprep.subr.mxu0 %v4227
  %6056 = vmatpush1.msra.mxu0 %v4226
  %6057 = vmatprep.subr.mxu0 %v4234
  %6058 = vmatpush1.msra.mxu0 %v4233
  %6059 = vmatprep.subr.mxu0 %v4241
  %6060 = vmatpush1.msra.mxu0 %v4240
  %6061 = vmatprep.subr.mxu0 %v4248
  %6062 = vmatpush1.msra.mxu0 %v4247
  %6063 = vmatprep.subr.mxu0 %v4255
  %6064 = vmatpush1.msra.mxu0 %v4254
  %6065 = vmatprep.subr.mxu0 %v4262
  %6066 = vmatpush1.msra.mxu0 %v4261
  %6067 = vmatprep.subr.mxu0 %v4269
  %6068 = vmatpush1.msra.mxu0 %v4268
  %6069 = vmatprep.subr.mxu0 %v4276
  %6070 = vmatpush1.msra.mxu0 %v4275
  %6071 = vmatprep.subr.mxu0 %v4283
  %6072 = vmatpush1.msra.mxu0 %v4282
  %6073 = vmatprep.mubr.f32.mxu0 %v3383
  %6074 = vmatmul.mubr.f32.gmra.mrb[0].mxu0 %v3382
  %v6075 = vpop.f32.mrb[0].mxu0
  %v6076 = vadd.f32 %v6005, %v6075
  %v6077 = vpop.f32.mrb[0].mxu0
  %v6078 = vadd.f32 %v6007, %v6077
  %6079 = vdwg.mxu0
  %6080 = vmatprep.subr.mxu0 %v4290
  %6081 = vmatpush1.msra.mxu0 %v4289
  %6082 = vmatprep.subr.mxu0 %v4297
  %6083 = vmatpush1.msra.mxu0 %v4296
  %6084 = vmatprep.subr.mxu0 %v4304
  %6085 = vmatpush1.msra.mxu0 %v4303
  %6086 = vmatprep.subr.mxu0 %v4311
  %6087 = vmatpush1.msra.mxu0 %v4310
  %6088 = vmatprep.subr.mxu0 %v4318
  %6089 = vmatpush1.msra.mxu0 %v4317
  %6090 = vmatprep.subr.mxu0 %v4325
  %6091 = vmatpush1.msra.mxu0 %v4324
  %6092 = vmatprep.subr.mxu0 %v4332
  %6093 = vmatpush1.msra.mxu0 %v4331
  %6094 = vmatprep.subr.mxu0 %v4339
  %6095 = vmatpush1.msra.mxu0 %v4338
  %6096 = vmatprep.subr.mxu0 %v4346
  %6097 = vmatpush1.msra.mxu0 %v4345
  %6098 = vmatprep.subr.mxu0 %v4353
  %6099 = vmatpush1.msra.mxu0 %v4352
  %6100 = vmatprep.subr.mxu0 %v4360
  %6101 = vmatpush1.msra.mxu0 %v4359
  %6102 = vmatprep.subr.mxu0 %v4367
  %6103 = vmatpush1.msra.mxu0 %v4366
  %6104 = vmatprep.subr.mxu0 %v4374
  %6105 = vmatpush1.msra.mxu0 %v4373
  %6106 = vmatprep.subr.mxu0 %v4381
  %6107 = vmatpush1.msra.mxu0 %v4380
  %6108 = vmatprep.subr.mxu0 %v4388
  %6109 = vmatpush1.msra.mxu0 %v4387
  %6110 = vmatprep.subr.mxu0 %v4395
  %6111 = vmatpush1.msra.mxu0 %v4394
  %6112 = vmatprep.subr.mxu0 %v4402
  %6113 = vmatpush1.msra.mxu0 %v4401
  %6114 = vmatprep.subr.mxu0 %v4409
  %6115 = vmatpush1.msra.mxu0 %v4408
  %6116 = vmatprep.subr.mxu0 %v4416
  %6117 = vmatpush1.msra.mxu0 %v4415
  %6118 = vmatprep.subr.mxu0 %v4423
  %6119 = vmatpush1.msra.mxu0 %v4422
  %6120 = vmatprep.subr.mxu0 %v4430
  %6121 = vmatpush1.msra.mxu0 %v4429
  %6122 = vmatprep.subr.mxu0 %v4437
  %6123 = vmatpush1.msra.mxu0 %v4436
  %6124 = vmatprep.subr.mxu0 %v4444
  %6125 = vmatpush1.msra.mxu0 %v4443
  %6126 = vmatprep.subr.mxu0 %v4451
  %6127 = vmatpush1.msra.mxu0 %v4450
  %6128 = vmatprep.subr.mxu0 %v4458
  %6129 = vmatpush1.msra.mxu0 %v4457
  %6130 = vmatprep.subr.mxu0 %v4465
  %6131 = vmatpush1.msra.mxu0 %v4464
  %6132 = vmatprep.subr.mxu0 %v4472
  %6133 = vmatpush1.msra.mxu0 %v4471
  %6134 = vmatprep.subr.mxu0 %v4479
  %6135 = vmatpush1.msra.mxu0 %v4478
  %6136 = vmatprep.subr.mxu0 %v4486
  %6137 = vmatpush1.msra.mxu0 %v4485
  %6138 = vmatprep.subr.mxu0 %v4493
  %6139 = vmatpush1.msra.mxu0 %v4492
  %6140 = vmatprep.subr.mxu0 %v4500
  %6141 = vmatpush1.msra.mxu0 %v4499
  %6142 = vmatprep.subr.mxu0 %v4507
  %6143 = vmatpush1.msra.mxu0 %v4506
  %6144 = vmatprep.mubr.f32.mxu0 %v3385
  %6145 = vmatmul.mubr.f32.gmra.mrb[0].mxu0 %v3384
  %v6146 = vpop.f32.mrb[0].mxu0
  %v6147 = vadd.f32 %v6076, %v6146
  %v6148 = vpop.f32.mrb[0].mxu0
  %v6149 = vadd.f32 %v6078, %v6148
  %6150 = vdwg.mxu0
  %6151 = vmatprep.subr.mxu0 %v4514
  %6152 = vmatpush1.msra.mxu0 %v4513
  %6153 = vmatprep.subr.mxu0 %v4521
  %6154 = vmatpush1.msra.mxu0 %v4520
  %6155 = vmatprep.subr.mxu0 %v4528
  %6156 = vmatpush1.msra.mxu0 %v4527
  %6157 = vmatprep.subr.mxu0 %v4535
  %6158 = vmatpush1.msra.mxu0 %v4534
  %6159 = vmatprep.subr.mxu0 %v4542
  %6160 = vmatpush1.msra.mxu0 %v4541
  %6161 = vmatprep.subr.mxu0 %v4549
  %6162 = vmatpush1.msra.mxu0 %v4548
  %6163 = vmatprep.subr.mxu0 %v4556
  %6164 = vmatpush1.msra.mxu0 %v4555
  %6165 = vmatprep.subr.mxu0 %v4563
  %6166 = vmatpush1.msra.mxu0 %v4562
  %6167 = vmatprep.subr.mxu0 %v4570
  %6168 = vmatpush1.msra.mxu0 %v4569
  %6169 = vmatprep.subr.mxu0 %v4577
  %6170 = vmatpush1.msra.mxu0 %v4576
  %6171 = vmatprep.subr.mxu0 %v4584
  %6172 = vmatpush1.msra.mxu0 %v4583
  %6173 = vmatprep.subr.mxu0 %v4591
  %6174 = vmatpush1.msra.mxu0 %v4590
  %6175 = vmatprep.subr.mxu0 %v4598
  %6176 = vmatpush1.msra.mxu0 %v4597
  %6177 = vmatprep.subr.mxu0 %v4605
  %6178 = vmatpush1.msra.mxu0 %v4604
  %6179 = vmatprep.subr.mxu0 %v4612
  %6180 = vmatpush1.msra.mxu0 %v4611
  %6181 = vmatprep.subr.mxu0 %v4619
  %6182 = vmatpush1.msra.mxu0 %v4618
  %6183 = vmatprep.subr.mxu0 %v4626
  %6184 = vmatpush1.msra.mxu0 %v4625
  %6185 = vmatprep.subr.mxu0 %v4633
  %6186 = vmatpush1.msra.mxu0 %v4632
  %6187 = vmatprep.subr.mxu0 %v4640
  %6188 = vmatpush1.msra.mxu0 %v4639
  %6189 = vmatprep.subr.mxu0 %v4647
  %6190 = vmatpush1.msra.mxu0 %v4646
  %6191 = vmatprep.subr.mxu0 %v4654
  %6192 = vmatpush1.msra.mxu0 %v4653
  %6193 = vmatprep.subr.mxu0 %v4661
  %6194 = vmatpush1.msra.mxu0 %v4660
  %6195 = vmatprep.subr.mxu0 %v4668
  %6196 = vmatpush1.msra.mxu0 %v4667
  %6197 = vmatprep.subr.mxu0 %v4675
  %6198 = vmatpush1.msra.mxu0 %v4674
  %6199 = vmatprep.subr.mxu0 %v4682
  %6200 = vmatpush1.msra.mxu0 %v4681
  %6201 = vmatprep.subr.mxu0 %v4689
  %6202 = vmatpush1.msra.mxu0 %v4688
  %6203 = vmatprep.subr.mxu0 %v4696
  %6204 = vmatpush1.msra.mxu0 %v4695
  %6205 = vmatprep.subr.mxu0 %v4703
  %6206 = vmatpush1.msra.mxu0 %v4702
  %6207 = vmatprep.subr.mxu0 %v4710
  %6208 = vmatpush1.msra.mxu0 %v4709
  %6209 = vmatprep.subr.mxu0 %v4717
  %6210 = vmatpush1.msra.mxu0 %v4716
  %6211 = vmatprep.subr.mxu0 %v4724
  %6212 = vmatpush1.msra.mxu0 %v4723
  %6213 = vmatprep.subr.mxu0 %v4731
  %6214 = vmatpush1.msra.mxu0 %v4730
  %6215 = vmatprep.mubr.f32.mxu0 %v3387
  %6216 = vmatmul.mubr.f32.gmra.mrb[0].mxu0 %v3386
  %v6217 = vpop.f32.mrb[0].mxu0
  %v6218 = vadd.f32 %v6147, %v6217
  %v6219 = vpop.f32.mrb[0].mxu0
  %v6220 = vadd.f32 %v6149, %v6219
  %6221 = vdwg.mxu0
  %6222 = vmatprep.subr.mxu0 %v4738
  %6223 = vmatpush1.msra.mxu0 %v4737
  %6224 = vmatprep.subr.mxu0 %v4745
  %6225 = vmatpush1.msra.mxu0 %v4744
  %6226 = vmatprep.subr.mxu0 %v4752
  %6227 = vmatpush1.msra.mxu0 %v4751
  %6228 = vmatprep.subr.mxu0 %v4759
  %6229 = vmatpush1.msra.mxu0 %v4758
  %6230 = vmatprep.subr.mxu0 0.0
  %6231 = vmatpush1.msra.mxu0 0.0
  %6232 = vmatprep.subr.mxu0 0.0
  %6233 = vmatpush1.msra.mxu0 0.0
  %6234 = vmatprep.subr.mxu0 0.0
  %6235 = vmatpush1.msra.mxu0 0.0
  %6236 = vmatprep.subr.mxu0 0.0
  %6237 = vmatpush1.msra.mxu0 0.0
  %6238 = vmatprep.subr.mxu0 0.0
  %6239 = vmatpush1.msra.mxu0 0.0
  %6240 = vmatprep.subr.mxu0 0.0
  %6241 = vmatpush1.msra.mxu0 0.0
  %6242 = vmatprep.subr.mxu0 0.0
  %6243 = vmatpush1.msra.mxu0 0.0
  %6244 = vmatprep.subr.mxu0 0.0
  %6245 = vmatpush1.msra.mxu0 0.0
  %6246 = vmatprep.subr.mxu0 0.0
  %6247 = vmatpush1.msra.mxu0 0.0
  %6248 = vmatprep.subr.mxu0 0.0
  %6249 = vmatpush1.msra.mxu0 0.0
  %6250 = vmatprep.subr.mxu0 0.0
  %6251 = vmatpush1.msra.mxu0 0.0
  %6252 = vmatprep.subr.mxu0 0.0
  %6253 = vmatpush1.msra.mxu0 0.0
  %6254 = vmatprep.subr.mxu0 0.0
  %6255 = vmatpush1.msra.mxu0 0.0
  %6256 = vmatprep.subr.mxu0 0.0
  %6257 = vmatpush1.msra.mxu0 0.0
  %6258 = vmatprep.subr.mxu0 0.0
  %6259 = vmatpush1.msra.mxu0 0.0
  %6260 = vmatprep.subr.mxu0 0.0
  %6261 = vmatpush1.msra.mxu0 0.0
  %6262 = vmatprep.subr.mxu0 0.0
  %6263 = vmatpush1.msra.mxu0 0.0
  %6264 = vmatprep.subr.mxu0 0.0
  %6265 = vmatpush1.msra.mxu0 0.0
  %6266 = vmatprep.subr.mxu0 0.0
  %6267 = vmatpush1.msra.mxu0 0.0
  %6268 = vmatprep.subr.mxu0 0.0
  %6269 = vmatpush1.msra.mxu0 0.0
  %6270 = vmatprep.subr.mxu0 0.0
  %6271 = vmatpush1.msra.mxu0 0.0
  %6272 = vmatprep.subr.mxu0 0.0
  %6273 = vmatpush1.msra.mxu0 0.0
  %6274 = vmatprep.subr.mxu0 0.0
  %6275 = vmatpush1.msra.mxu0 0.0
  %6276 = vmatprep.subr.mxu0 0.0
  %6277 = vmatpush1.msra.mxu0 0.0
  %6278 = vmatprep.subr.mxu0 0.0
  %6279 = vmatpush1.msra.mxu0 0.0
  %6280 = vmatprep.subr.mxu0 0.0
  %6281 = vmatpush1.msra.mxu0 0.0
  %6282 = vmatprep.subr.mxu0 0.0
  %6283 = vmatpush1.msra.mxu0 0.0
  %6284 = vmatprep.subr.mxu0 0.0
  %6285 = vmatpush1.msra.mxu0 0.0
  %6286 = vmatprep.mubr.f32.mxu0 0.0
  %6287 = vmatmul.mubr.f32.gmra.mrb[0].mxu0 %v4800
  %v6288 = vpop.f32.mrb[0].mxu0
  %v6289 = vadd.f32 %v6218, %v6288
  %v6290 = vpop.f32.mrb[0].mxu0
  %v6291 = vadd.f32 %v6220, %v6290
  %6292 = vdwg.mxu0
  %6293 = vmatprep.subr.mxu0 0.0
  %6294 = vmatpush1.msra.mxu0 %v3395
  %6295 = vmatprep.subr.mxu0 0.0
  %6296 = vmatpush1.msra.mxu0 %v3402
  %6297 = vmatprep.subr.mxu0 0.0
  %6298 = vmatpush1.msra.mxu0 %v3409
  %6299 = vmatprep.subr.mxu0 0.0
  %6300 = vmatpush1.msra.mxu0 %v3416
  %6301 = vmatprep.subr.mxu0 0.0
  %6302 = vmatpush1.msra.mxu0 %v3423
  %6303 = vmatprep.subr.mxu0 0.0
  %6304 = vmatpush1.msra.mxu0 %v3430
  %6305 = vmatprep.subr.mxu0 0.0
  %6306 = vmatpush1.msra.mxu0 %v3437
  %6307 = vmatprep.subr.mxu0 0.0
  %6308 = vmatpush1.msra.mxu0 %v3444
  %6309 = vmatprep.subr.mxu0 0.0
  %6310 = vmatpush1.msra.mxu0 %v3451
  %6311 = vmatprep.subr.mxu0 0.0
  %6312 = vmatpush1.msra.mxu0 %v3458
  %6313 = vmatprep.subr.mxu0 0.0
  %6314 = vmatpush1.msra.mxu0 %v3465
  %6315 = vmatprep.subr.mxu0 0.0
  %6316 = vmatpush1.msra.mxu0 %v3472
  %6317 = vmatprep.subr.mxu0 0.0
  %6318 = vmatpush1.msra.mxu0 %v3479
  %6319 = vmatprep.subr.mxu0 0.0
  %6320 = vmatpush1.msra.mxu0 %v3486
  %6321 = vmatprep.subr.mxu0 0.0
  %6322 = vmatpush1.msra.mxu0 %v3493
  %6323 = vmatprep.subr.mxu0 0.0
  %6324 = vmatpush1.msra.mxu0 %v3500
  %6325 = vmatprep.subr.mxu0 0.0
  %6326 = vmatpush1.msra.mxu0 %v3507
  %6327 = vmatprep.subr.mxu0 0.0
  %6328 = vmatpush1.msra.mxu0 %v3514
  %6329 = vmatprep.subr.mxu0 0.0
  %6330 = vmatpush1.msra.mxu0 %v3521
  %6331 = vmatprep.subr.mxu0 0.0
  %6332 = vmatpush1.msra.mxu0 %v3528
  %6333 = vmatprep.subr.mxu0 0.0
  %6334 = vmatpush1.msra.mxu0 %v3535
  %6335 = vmatprep.subr.mxu0 0.0
  %6336 = vmatpush1.msra.mxu0 %v3542
  %6337 = vmatprep.subr.mxu0 0.0
  %6338 = vmatpush1.msra.mxu0 %v3549
  %6339 = vmatprep.subr.mxu0 0.0
  %6340 = vmatpush1.msra.mxu0 %v3556
  %6341 = vmatprep.subr.mxu0 0.0
  %6342 = vmatpush1.msra.mxu0 %v3563
  %6343 = vmatprep.subr.mxu0 0.0
  %6344 = vmatpush1.msra.mxu0 %v3570
  %6345 = vmatprep.subr.mxu0 0.0
  %6346 = vmatpush1.msra.mxu0 %v3577
  %6347 = vmatprep.subr.mxu0 0.0
  %6348 = vmatpush1.msra.mxu0 %v3584
  %6349 = vmatprep.subr.mxu0 0.0
  %6350 = vmatpush1.msra.mxu0 %v3591
  %6351 = vmatprep.subr.mxu0 0.0
  %6352 = vmatpush1.msra.mxu0 %v3598
  %6353 = vmatprep.subr.mxu0 0.0
  %6354 = vmatpush1.msra.mxu0 %v3605
  %6355 = vmatprep.subr.mxu0 0.0
  %6356 = vmatpush1.msra.mxu0 %v3612
  %6357 = vmatprep.mubr.f32.mxu0 %v3377
  %6358 = vmatmul.mubr.f32.gmra.mrb[0].mxu0 %v3376
  %v6359 = vpop.f32.mrb[0].mxu0
  %v6360 = vadd.f32 %v4790, %v6359
  %v6361 = vpop.f32.mrb[0].mxu0
  %6362 = vdwg.mxu0
  %6363 = vmatprep.subr.mxu0 0.0
  %6364 = vmatpush1.msra.mxu0 %v3619
  %6365 = vmatprep.subr.mxu0 0.0
  %6366 = vmatpush1.msra.mxu0 %v3626
  %6367 = vmatprep.subr.mxu0 0.0
  %6368 = vmatpush1.msra.mxu0 %v3633
  %6369 = vmatprep.subr.mxu0 0.0
  %6370 = vmatpush1.msra.mxu0 %v3640
  %6371 = vmatprep.subr.mxu0 0.0
  %6372 = vmatpush1.msra.mxu0 %v3647
  %6373 = vmatprep.subr.mxu0 0.0
  %6374 = vmatpush1.msra.mxu0 %v3654
  %6375 = vmatprep.subr.mxu0 0.0
  %6376 = vmatpush1.msra.mxu0 %v3661
  %6377 = vmatprep.subr.mxu0 0.0
  %6378 = vmatpush1.msra.mxu0 %v3668
  %6379 = vmatprep.subr.mxu0 0.0
  %6380 = vmatpush1.msra.mxu0 %v3675
  %6381 = vmatprep.subr.mxu0 0.0
  %6382 = vmatpush1.msra.mxu0 %v3682
  %6383 = vmatprep.subr.mxu0 0.0
  %6384 = vmatpush1.msra.mxu0 %v3689
  %6385 = vmatprep.subr.mxu0 0.0
  %6386 = vmatpush1.msra.mxu0 %v3696
  %6387 = vmatprep.subr.mxu0 0.0
  %6388 = vmatpush1.msra.mxu0 %v3703
  %6389 = vmatprep.subr.mxu0 0.0
  %6390 = vmatpush1.msra.mxu0 %v3710
  %6391 = vmatprep.subr.mxu0 0.0
  %6392 = vmatpush1.msra.mxu0 %v3717
  %6393 = vmatprep.subr.mxu0 0.0
  %6394 = vmatpush1.msra.mxu0 %v3724
  %6395 = vmatprep.subr.mxu0 0.0
  %6396 = vmatpush1.msra.mxu0 %v3731
  %6397 = vmatprep.subr.mxu0 0.0
  %6398 = vmatpush1.msra.mxu0 %v3738
  %6399 = vmatprep.subr.mxu0 0.0
  %6400 = vmatpush1.msra.mxu0 %v3745
  %6401 = vmatprep.subr.mxu0 0.0
  %6402 = vmatpush1.msra.mxu0 %v3752
  %6403 = vmatprep.subr.mxu0 0.0
  %6404 = vmatpush1.msra.mxu0 %v3759
  %6405 = vmatprep.subr.mxu0 0.0
  %6406 = vmatpush1.msra.mxu0 %v3766
  %6407 = vmatprep.subr.mxu0 0.0
  %6408 = vmatpush1.msra.mxu0 %v3773
  %6409 = vmatprep.subr.mxu0 0.0
  %6410 = vmatpush1.msra.mxu0 %v3780
  %6411 = vmatprep.subr.mxu0 0.0
  %6412 = vmatpush1.msra.mxu0 %v3787
  %6413 = vmatprep.subr.mxu0 0.0
  %6414 = vmatpush1.msra.mxu0 %v3794
  %6415 = vmatprep.subr.mxu0 0.0
  %6416 = vmatpush1.msra.mxu0 %v3801
  %6417 = vmatprep.subr.mxu0 0.0
  %6418 = vmatpush1.msra.mxu0 %v3808
  %6419 = vmatprep.subr.mxu0 0.0
  %6420 = vmatpush1.msra.mxu0 %v3815
  %6421 = vmatprep.subr.mxu0 0.0
  %6422 = vmatpush1.msra.mxu0 %v3822
  %6423 = vmatprep.subr.mxu0 0.0
  %6424 = vmatpush1.msra.mxu0 %v3829
  %6425 = vmatprep.subr.mxu0 0.0
  %6426 = vmatpush1.msra.mxu0 %v3836
  %6427 = vmatprep.mubr.f32.mxu0 %v3379
  %6428 = vmatmul.mubr.f32.gmra.mrb[0].mxu0 %v3378
  %v6429 = vpop.f32.mrb[0].mxu0
  %v6430 = vadd.f32 %v6360, %v6429
  %v6431 = vpop.f32.mrb[0].mxu0
  %6432 = vdwg.mxu0
  %6433 = vmatprep.subr.mxu0 0.0
  %6434 = vmatpush1.msra.mxu0 %v3843
  %6435 = vmatprep.subr.mxu0 0.0
  %6436 = vmatpush1.msra.mxu0 %v3850
  %6437 = vmatprep.subr.mxu0 0.0
  %6438 = vmatpush1.msra.mxu0 %v3857
  %6439 = vmatprep.subr.mxu0 0.0
  %6440 = vmatpush1.msra.mxu0 %v3864
  %6441 = vmatprep.subr.mxu0 0.0
  %6442 = vmatpush1.msra.mxu0 %v3871
  %6443 = vmatprep.subr.mxu0 0.0
  %6444 = vmatpush1.msra.mxu0 %v3878
  %6445 = vmatprep.subr.mxu0 0.0
  %6446 = vmatpush1.msra.mxu0 %v3885
  %6447 = vmatprep.subr.mxu0 0.0
  %6448 = vmatpush1.msra.mxu0 %v3892
  %6449 = vmatprep.subr.mxu0 0.0
  %6450 = vmatpush1.msra.mxu0 %v3899
  %6451 = vmatprep.subr.mxu0 0.0
  %6452 = vmatpush1.msra.mxu0 %v3906
  %6453 = vmatprep.subr.mxu0 0.0
  %6454 = vmatpush1.msra.mxu0 %v3913
  %6455 = vmatprep.subr.mxu0 0.0
  %6456 = vmatpush1.msra.mxu0 %v3920
  %6457 = vmatprep.subr.mxu0 0.0
  %6458 = vmatpush1.msra.mxu0 %v3927
  %6459 = vmatprep.subr.mxu0 0.0
  %6460 = vmatpush1.msra.mxu0 %v3934
  %6461 = vmatprep.subr.mxu0 0.0
  %6462 = vmatpush1.msra.mxu0 %v3941
  %6463 = vmatprep.subr.mxu0 0.0
  %6464 = vmatpush1.msra.mxu0 %v3948
  %6465 = vmatprep.subr.mxu0 0.0
  %6466 = vmatpush1.msra.mxu0 %v3955
  %6467 = vmatprep.subr.mxu0 0.0
  %6468 = vmatpush1.msra.mxu0 %v3962
  %6469 = vmatprep.subr.mxu0 0.0
  %6470 = vmatpush1.msra.mxu0 %v3969
  %6471 = vmatprep.subr.mxu0 0.0
  %6472 = vmatpush1.msra.mxu0 %v3976
  %6473 = vmatprep.subr.mxu0 0.0
  %6474 = vmatpush1.msra.mxu0 %v3983
  %6475 = vmatprep.subr.mxu0 0.0
  %6476 = vmatpush1.msra.mxu0 %v3990
  %6477 = vmatprep.subr.mxu0 0.0
  %6478 = vmatpush1.msra.mxu0 %v3997
  %6479 = vmatprep.subr.mxu0 0.0
  %6480 = vmatpush1.msra.mxu0 %v4004
  %6481 = vmatprep.subr.mxu0 0.0
  %6482 = vmatpush1.msra.mxu0 %v4011
  %6483 = vmatprep.subr.mxu0 0.0
  %6484 = vmatpush1.msra.mxu0 %v4018
  %6485 = vmatprep.subr.mxu0 0.0
  %6486 = vmatpush1.msra.mxu0 %v4025
  %6487 = vmatprep.subr.mxu0 0.0
  %6488 = vmatpush1.msra.mxu0 %v4032
  %6489 = vmatprep.subr.mxu0 0.0
  %6490 = vmatpush1.msra.mxu0 %v4039
  %6491 = vmatprep.subr.mxu0 0.0
  %6492 = vmatpush1.msra.mxu0 %v4046
  %6493 = vmatprep.subr.mxu0 0.0
  %6494 = vmatpush1.msra.mxu0 %v4053
  %6495 = vmatprep.subr.mxu0 0.0
  %6496 = vmatpush1.msra.mxu0 %v4060
  %6497 = vmatprep.mubr.f32.mxu0 %v3381
  %6498 = vmatmul.mubr.f32.gmra.mrb[0].mxu0 %v3380
  %v6499 = vpop.f32.mrb[0].mxu0
  %v6500 = vadd.f32 %v6430, %v6499
  %v6501 = vpop.f32.mrb[0].mxu0
  %6502 = vdwg.mxu0
  %6503 = vmatprep.subr.mxu0 0.0
  %6504 = vmatpush1.msra.mxu0 %v4067
  %6505 = vmatprep.subr.mxu0 0.0
  %6506 = vmatpush1.msra.mxu0 %v4074
  %6507 = vmatprep.subr.mxu0 0.0
  %6508 = vmatpush1.msra.mxu0 %v4081
  %6509 = vmatprep.subr.mxu0 0.0
  %6510 = vmatpush1.msra.mxu0 %v4088
  %6511 = vmatprep.subr.mxu0 0.0
  %6512 = vmatpush1.msra.mxu0 %v4095
  %6513 = vmatprep.subr.mxu0 0.0
  %6514 = vmatpush1.msra.mxu0 %v4102
  %6515 = vmatprep.subr.mxu0 0.0
  %6516 = vmatpush1.msra.mxu0 %v4109
  %6517 = vmatprep.subr.mxu0 0.0
  %6518 = vmatpush1.msra.mxu0 %v4116
  %6519 = vmatprep.subr.mxu0 0.0
  %6520 = vmatpush1.msra.mxu0 %v4123
  %6521 = vmatprep.subr.mxu0 0.0
  %6522 = vmatpush1.msra.mxu0 %v4130
  %6523 = vmatprep.subr.mxu0 0.0
  %6524 = vmatpush1.msra.mxu0 %v4137
  %6525 = vmatprep.subr.mxu0 0.0
  %6526 = vmatpush1.msra.mxu0 %v4144
  %6527 = vmatprep.subr.mxu0 0.0
  %6528 = vmatpush1.msra.mxu0 %v4151
  %6529 = vmatprep.subr.mxu0 0.0
  %6530 = vmatpush1.msra.mxu0 %v4158
  %6531 = vmatprep.subr.mxu0 0.0
  %6532 = vmatpush1.msra.mxu0 %v4165
  %6533 = vmatprep.subr.mxu0 0.0
  %6534 = vmatpush1.msra.mxu0 %v4172
  %6535 = vmatprep.subr.mxu0 0.0
  %6536 = vmatpush1.msra.mxu0 %v4179
  %6537 = vmatprep.subr.mxu0 0.0
  %6538 = vmatpush1.msra.mxu0 %v4186
  %6539 = vmatprep.subr.mxu0 0.0
  %6540 = vmatpush1.msra.mxu0 %v4193
  %6541 = vmatprep.subr.mxu0 0.0
  %6542 = vmatpush1.msra.mxu0 %v4200
  %6543 = vmatprep.subr.mxu0 0.0
  %6544 = vmatpush1.msra.mxu0 %v4207
  %6545 = vmatprep.subr.mxu0 0.0
  %6546 = vmatpush1.msra.mxu0 %v4214
  %6547 = vmatprep.subr.mxu0 0.0
  %6548 = vmatpush1.msra.mxu0 %v4221
  %6549 = vmatprep.subr.mxu0 0.0
  %6550 = vmatpush1.msra.mxu0 %v4228
  %6551 = vmatprep.subr.mxu0 0.0
  %6552 = vmatpush1.msra.mxu0 %v4235
  %6553 = vmatprep.subr.mxu0 0.0
  %6554 = vmatpush1.msra.mxu0 %v4242
  %6555 = vmatprep.subr.mxu0 0.0
  %6556 = vmatpush1.msra.mxu0 %v4249
  %6557 = vmatprep.subr.mxu0 0.0
  %6558 = vmatpush1.msra.mxu0 %v4256
  %6559 = vmatprep.subr.mxu0 0.0
  %6560 = vmatpush1.msra.mxu0 %v4263
  %6561 = vmatprep.subr.mxu0 0.0
  %6562 = vmatpush1.msra.mxu0 %v4270
  %6563 = vmatprep.subr.mxu0 0.0
  %6564 = vmatpush1.msra.mxu0 %v4277
  %6565 = vmatprep.subr.mxu0 0.0
  %6566 = vmatpush1.msra.mxu0 %v4284
  %6567 = vmatprep.mubr.f32.mxu0 %v3383
  %6568 = vmatmul.mubr.f32.gmra.mrb[0].mxu0 %v3382
  %v6569 = vpop.f32.mrb[0].mxu0
  %v6570 = vadd.f32 %v6500, %v6569
  %v6571 = vpop.f32.mrb[0].mxu0
  %6572 = vdwg.mxu0
  %6573 = vmatprep.subr.mxu0 0.0
  %6574 = vmatpush1.msra.mxu0 %v4291
  %6575 = vmatprep.subr.mxu0 0.0
  %6576 = vmatpush1.msra.mxu0 %v4298
  %6577 = vmatprep.subr.mxu0 0.0
  %6578 = vmatpush1.msra.mxu0 %v4305
  %6579 = vmatprep.subr.mxu0 0.0
  %6580 = vmatpush1.msra.mxu0 %v4312
  %6581 = vmatprep.subr.mxu0 0.0
  %6582 = vmatpush1.msra.mxu0 %v4319
  %6583 = vmatprep.subr.mxu0 0.0
  %6584 = vmatpush1.msra.mxu0 %v4326
  %6585 = vmatprep.subr.mxu0 0.0
  %6586 = vmatpush1.msra.mxu0 %v4333
  %6587 = vmatprep.subr.mxu0 0.0
  %6588 = vmatpush1.msra.mxu0 %v4340
  %6589 = vmatprep.subr.mxu0 0.0
  %6590 = vmatpush1.msra.mxu0 %v4347
  %6591 = vmatprep.subr.mxu0 0.0
  %6592 = vmatpush1.msra.mxu0 %v4354
  %6593 = vmatprep.subr.mxu0 0.0
  %6594 = vmatpush1.msra.mxu0 %v4361
  %6595 = vmatprep.subr.mxu0 0.0
  %6596 = vmatpush1.msra.mxu0 %v4368
  %6597 = vmatprep.subr.mxu0 0.0
  %6598 = vmatpush1.msra.mxu0 %v4375
  %6599 = vmatprep.subr.mxu0 0.0
  %6600 = vmatpush1.msra.mxu0 %v4382
  %6601 = vmatprep.subr.mxu0 0.0
  %6602 = vmatpush1.msra.mxu0 %v4389
  %6603 = vmatprep.subr.mxu0 0.0
  %6604 = vmatpush1.msra.mxu0 %v4396
  %6605 = vmatprep.subr.mxu0 0.0
  %6606 = vmatpush1.msra.mxu0 %v4403
  %6607 = vmatprep.subr.mxu0 0.0
  %6608 = vmatpush1.msra.mxu0 %v4410
  %6609 = vmatprep.subr.mxu0 0.0
  %6610 = vmatpush1.msra.mxu0 %v4417
  %6611 = vmatprep.subr.mxu0 0.0
  %6612 = vmatpush1.msra.mxu0 %v4424
  %6613 = vmatprep.subr.mxu0 0.0
  %6614 = vmatpush1.msra.mxu0 %v4431
  %6615 = vmatprep.subr.mxu0 0.0
  %6616 = vmatpush1.msra.mxu0 %v4438
  %6617 = vmatprep.subr.mxu0 0.0
  %6618 = vmatpush1.msra.mxu0 %v4445
  %6619 = vmatprep.subr.mxu0 0.0
  %6620 = vmatpush1.msra.mxu0 %v4452
  %6621 = vmatprep.subr.mxu0 0.0
  %6622 = vmatpush1.msra.mxu0 %v4459
  %6623 = vmatprep.subr.mxu0 0.0
  %6624 = vmatpush1.msra.mxu0 %v4466
  %6625 = vmatprep.subr.mxu0 0.0
  %6626 = vmatpush1.msra.mxu0 %v4473
  %6627 = vmatprep.subr.mxu0 0.0
  %6628 = vmatpush1.msra.mxu0 %v4480
  %6629 = vmatprep.subr.mxu0 0.0
  %6630 = vmatpush1.msra.mxu0 %v4487
  %6631 = vmatprep.subr.mxu0 0.0
  %6632 = vmatpush1.msra.mxu0 %v4494
  %6633 = vmatprep.subr.mxu0 0.0
  %6634 = vmatpush1.msra.mxu0 %v4501
  %6635 = vmatprep.subr.mxu0 0.0
  %6636 = vmatpush1.msra.mxu0 %v4508
  %6637 = vmatprep.mubr.f32.mxu0 %v3385
  %6638 = vmatmul.mubr.f32.gmra.mrb[0].mxu0 %v3384
  %v6639 = vpop.f32.mrb[0].mxu0
  %v6640 = vadd.f32 %v6570, %v6639
  %v6641 = vpop.f32.mrb[0].mxu0
  %6642 = vdwg.mxu0
  %6643 = vmatprep.subr.mxu0 0.0
  %6644 = vmatpush1.msra.mxu0 %v4515
  %6645 = vmatprep.subr.mxu0 0.0
  %6646 = vmatpush1.msra.mxu0 %v4522
  %6647 = vmatprep.subr.mxu0 0.0
  %6648 = vmatpush1.msra.mxu0 %v4529
  %6649 = vmatprep.subr.mxu0 0.0
  %6650 = vmatpush1.msra.mxu0 %v4536
  %6651 = vmatprep.subr.mxu0 0.0
  %6652 = vmatpush1.msra.mxu0 %v4543
  %6653 = vmatprep.subr.mxu0 0.0
  %6654 = vmatpush1.msra.mxu0 %v4550
  %6655 = vmatprep.subr.mxu0 0.0
  %6656 = vmatpush1.msra.mxu0 %v4557
  %6657 = vmatprep.subr.mxu0 0.0
  %6658 = vmatpush1.msra.mxu0 %v4564
  %6659 = vmatprep.subr.mxu0 0.0
  %6660 = vmatpush1.msra.mxu0 %v4571
  %6661 = vmatprep.subr.mxu0 0.0
  %6662 = vmatpush1.msra.mxu0 %v4578
  %6663 = vmatprep.subr.mxu0 0.0
  %6664 = vmatpush1.msra.mxu0 %v4585
  %6665 = vmatprep.subr.mxu0 0.0
  %6666 = vmatpush1.msra.mxu0 %v4592
  %6667 = vmatprep.subr.mxu0 0.0
  %6668 = vmatpush1.msra.mxu0 %v4599
  %6669 = vmatprep.subr.mxu0 0.0
  %6670 = vmatpush1.msra.mxu0 %v4606
  %6671 = vmatprep.subr.mxu0 0.0
  %6672 = vmatpush1.msra.mxu0 %v4613
  %6673 = vmatprep.subr.mxu0 0.0
  %6674 = vmatpush1.msra.mxu0 %v4620
  %6675 = vmatprep.subr.mxu0 0.0
  %6676 = vmatpush1.msra.mxu0 %v4627
  %6677 = vmatprep.subr.mxu0 0.0
  %6678 = vmatpush1.msra.mxu0 %v4634
  %6679 = vmatprep.subr.mxu0 0.0
  %6680 = vmatpush1.msra.mxu0 %v4641
  %6681 = vmatprep.subr.mxu0 0.0
  %6682 = vmatpush1.msra.mxu0 %v4648
  %6683 = vmatprep.subr.mxu0 0.0
  %6684 = vmatpush1.msra.mxu0 %v4655
  %6685 = vmatprep.subr.mxu0 0.0
  %6686 = vmatpush1.msra.mxu0 %v4662
  %6687 = vmatprep.subr.mxu0 0.0
  %6688 = vmatpush1.msra.mxu0 %v4669
  %6689 = vmatprep.subr.mxu0 0.0
  %6690 = vmatpush1.msra.mxu0 %v4676
  %6691 = vmatprep.subr.mxu0 0.0
  %6692 = vmatpush1.msra.mxu0 %v4683
  %6693 = vmatprep.subr.mxu0 0.0
  %6694 = vmatpush1.msra.mxu0 %v4690
  %6695 = vmatprep.subr.mxu0 0.0
  %6696 = vmatpush1.msra.mxu0 %v4697
  %6697 = vmatprep.subr.mxu0 0.0
  %6698 = vmatpush1.msra.mxu0 %v4704
  %6699 = vmatprep.subr.mxu0 0.0
  %6700 = vmatpush1.msra.mxu0 %v4711
  %6701 = vmatprep.subr.mxu0 0.0
  %6702 = vmatpush1.msra.mxu0 %v4718
  %6703 = vmatprep.subr.mxu0 0.0
  %6704 = vmatpush1.msra.mxu0 %v4725
  %6705 = vmatprep.subr.mxu0 0.0
  %6706 = vmatpush1.msra.mxu0 %v4732
  %6707 = vmatprep.mubr.f32.mxu0 %v3387
  %6708 = vmatmul.mubr.f32.gmra.mrb[0].mxu0 %v3386
  %v6709 = vpop.f32.mrb[0].mxu0
  %v6710 = vadd.f32 %v6640, %v6709
  %v6711 = vpop.f32.mrb[0].mxu0
  %6712 = vdwg.mxu0
  %6713 = vmatprep.subr.mxu0 0.0
  %6714 = vmatpush1.msra.mxu0 %v4739
  %6715 = vmatprep.subr.mxu0 0.0
  %6716 = vmatpush1.msra.mxu0 %v4746
  %6717 = vmatprep.subr.mxu0 0.0
  %6718 = vmatpush1.msra.mxu0 %v4753
  %6719 = vmatprep.subr.mxu0 0.0
  %6720 = vmatpush1.msra.mxu0 %v4760
  %6721 = vmatprep.subr.mxu0 0.0
  %6722 = vmatpush1.msra.mxu0 0.0
  %6723 = vmatprep.subr.mxu0 0.0
  %6724 = vmatpush1.msra.mxu0 0.0
  %6725 = vmatprep.subr.mxu0 0.0
  %6726 = vmatpush1.msra.mxu0 0.0
  %6727 = vmatprep.subr.mxu0 0.0
  %6728 = vmatpush1.msra.mxu0 0.0
  %6729 = vmatprep.subr.mxu0 0.0
  %6730 = vmatpush1.msra.mxu0 0.0
  %6731 = vmatprep.subr.mxu0 0.0
  %6732 = vmatpush1.msra.mxu0 0.0
  %6733 = vmatprep.subr.mxu0 0.0
  %6734 = vmatpush1.msra.mxu0 0.0
  %6735 = vmatprep.subr.mxu0 0.0
  %6736 = vmatpush1.msra.mxu0 0.0
  %6737 = vmatprep.subr.mxu0 0.0
  %6738 = vmatpush1.msra.mxu0 0.0
  %6739 = vmatprep.subr.mxu0 0.0
  %6740 = vmatpush1.msra.mxu0 0.0
  %6741 = vmatprep.subr.mxu0 0.0
  %6742 = vmatpush1.msra.mxu0 0.0
  %6743 = vmatprep.subr.mxu0 0.0
  %6744 = vmatpush1.msra.mxu0 0.0
  %6745 = vmatprep.subr.mxu0 0.0
  %6746 = vmatpush1.msra.mxu0 0.0
  %6747 = vmatprep.subr.mxu0 0.0
  %6748 = vmatpush1.msra.mxu0 0.0
  %6749 = vmatprep.subr.mxu0 0.0
  %6750 = vmatpush1.msra.mxu0 0.0
  %6751 = vmatprep.subr.mxu0 0.0
  %6752 = vmatpush1.msra.mxu0 0.0
  %6753 = vmatprep.subr.mxu0 0.0
  %6754 = vmatpush1.msra.mxu0 0.0
  %6755 = vmatprep.subr.mxu0 0.0
  %6756 = vmatpush1.msra.mxu0 0.0
  %6757 = vmatprep.subr.mxu0 0.0
  %6758 = vmatpush1.msra.mxu0 0.0
  %6759 = vmatprep.subr.mxu0 0.0
  %6760 = vmatpush1.msra.mxu0 0.0
  %6761 = vmatprep.subr.mxu0 0.0
  %6762 = vmatpush1.msra.mxu0 0.0
  %6763 = vmatprep.subr.mxu0 0.0
  %6764 = vmatpush1.msra.mxu0 0.0
  %6765 = vmatprep.subr.mxu0 0.0
  %6766 = vmatpush1.msra.mxu0 0.0
  %6767 = vmatprep.subr.mxu0 0.0
  %6768 = vmatpush1.msra.mxu0 0.0
  %6769 = vmatprep.subr.mxu0 0.0
  %6770 = vmatpush1.msra.mxu0 0.0
  %6771 = vmatprep.subr.mxu0 0.0
  %6772 = vmatpush1.msra.mxu0 0.0
  %6773 = vmatprep.subr.mxu0 0.0
  %6774 = vmatpush1.msra.mxu0 0.0
  %6775 = vmatprep.subr.mxu0 0.0
  %6776 = vmatpush1.msra.mxu0 0.0
  %6777 = vmatprep.mubr.f32.mxu0 0.0
  %6778 = vmatmul.mubr.f32.gmra.mrb[0].mxu0 %v4800
  %v6779 = vpop.f32.mrb[0].mxu0
  %v6780 = vadd.f32 %v6710, %v6779
  %v6781 = vpop.f32.mrb[0].mxu0
  %6782 = vdwg.mxu0
  %v6783 = vmax.f32 %v5295, 0.0
  %v6784 = vmax.f32 %v5297, 0.0
  %v6785 = vmax.f32 %v5792, 0.0
  %v6786 = vmax.f32 %v5794, 0.0
  %v6787 = vmax.f32 %v6289, 0.0
  %v6788 = vmax.f32 %v6291, 0.0
  %v6789 = vmax.f32 %v6780, 0.0
  %v6790 = vld [vmem:[%s5] sm:$0xff]
  %v6791 = vld [vmem:[%s5 + $0x8] sm:$0xff]
  %v6792 = vld [vmem:[%s5 + $0x10] sm:$0xff]
  %v6793 = vld [vmem:[%s5 + $0x18] sm:$0xff]
  %v6794 = vld [vmem:[%s5 + $0x20] sm:$0xff]
  %v6795 = vld [vmem:[%s5 + $0x28] sm:$0xff]
  %v6796 = vld [vmem:[%s5 + $0x30] sm:$0xff]
  %v6797 = vld [vmem:[%s5 + $0x38] sm:$0xff]
  %v6798 = vld [vmem:[%s5 + $0x40] sm:$0xff]
  %v6799 = vld [vmem:[%s5 + $0x48] sm:$0xff]
  %v6800 = vld [vmem:[%s5 + $0x50] sm:$0xff]
  %v6801 = vld [vmem:[%s5 + $0x58] sm:$0xff]
  %v6802 = vld [vmem:[%s5 + $0x60] sm:$0xff]
  %v6803 = vld [vmem:[%s5 + $0x68] sm:$0xff]
  %v6804 = vld [vmem:[%s5 + $0x70] sm:$0xff]
  %v6805 = vld [vmem:[%s5 + $0x78] sm:$0xff]
  %v6806 = vld [vmem:[%s5 + $0x80] sm:$0xff]
  %v6807 = vld [vmem:[%s5 + $0x88] sm:$0xff]
  %v6808 = vld [vmem:[%s5 + $0x90] sm:$0xff]
  %v6809 = vld [vmem:[%s5 + $0x98] sm:$0xff]
  %v6810 = vld [vmem:[%s5 + $0xa0] sm:$0xff]
  %v6811 = vld [vmem:[%s5 + $0xa8] sm:$0xff]
  %v6812 = vld [vmem:[%s5 + $0xb0] sm:$0xff]
  %v6813 = vld [vmem:[%s5 + $0xb8] sm:$0xff]
  %v6814 = vld [vmem:[%s5 + $0xc0] sm:$0xff]
  %v6815 = vld [vmem:[%s5 + $0xc8] sm:$0xff]
  %v6816 = vld [vmem:[%s5 + $0xd0] sm:$0xff]
  %v6817 = vld [vmem:[%s5 + $0xd8] sm:$0xff]
  %v6818 = vld [vmem:[%s5 + $0xe0] sm:$0xff]
  %v6819 = vld [vmem:[%s5 + $0xe8] sm:$0xff]
  %v6820 = vld [vmem:[%s5 + $0xf0] sm:$0xff]
  %v6821 = vld [vmem:[%s5 + $0xf8] sm:$0xff]
  %v6822 = vld [vmem:[%s5 + $0x100] sm:$0xff]
  %v6823 = vld [vmem:[%s5 + $0x108] sm:$0xff]
  %v6824 = vld [vmem:[%s5 + $0x110] sm:$0xff]
  %v6825 = vld [vmem:[%s5 + $0x118] sm:$0xff]
  %v6826 = vld [vmem:[%s5 + $0x120] sm:$0xff]
  %v6827 = vld [vmem:[%s5 + $0x128] sm:$0xff]
  %v6828 = vld [vmem:[%s5 + $0x130] sm:$0xff]
  %v6829 = vld [vmem:[%s5 + $0x138] sm:$0xff]
  %v6830 = vld [vmem:[%s5 + $0x140] sm:$0xff]
  %v6831 = vld [vmem:[%s5 + $0x148] sm:$0xff]
  %v6832 = vld [vmem:[%s5 + $0x150] sm:$0xff]
  %v6833 = vld [vmem:[%s5 + $0x158] sm:$0xff]
  %v6834 = vld [vmem:[%s5 + $0x160] sm:$0xff]
  %v6835 = vld [vmem:[%s5 + $0x168] sm:$0xff]
  %v6836 = vld [vmem:[%s5 + $0x170] sm:$0xff]
  %v6837 = vld [vmem:[%s5 + $0x178] sm:$0xff]
  %v6838 = vld [vmem:[%s5 + $0x180] sm:$0xff]
  %v6839 = vld [vmem:[%s5 + $0x188] sm:$0xff]
  %v6840 = vld [vmem:[%s5 + $0x190] sm:$0xff]
  %v6841 = vld [vmem:[%s5 + $0x198] sm:$0xff]
  %v6842 = vld [vmem:[%s5 + $0x1a0] sm:$0xff]
  %v6843 = vld [vmem:[%s5 + $0x1a8] sm:$0xff]
  %v6844 = vld [vmem:[%s5 + $0x1b0] sm:$0xff]
  %v6845 = vld [vmem:[%s5 + $0x1b8] sm:$0xff]
  %v6846 = vld [vmem:[%s5 + $0x1c0] sm:$0xff]
  %v6847 = vld [vmem:[%s5 + $0x1c8] sm:$0xff]
  %v6848 = vld [vmem:[%s5 + $0x1d0] sm:$0xff]
  %v6849 = vld [vmem:[%s5 + $0x1d8] sm:$0xff]
  %v6850 = vld [vmem:[%s5 + $0x1e0] sm:$0xff]
  %v6851 = vld [vmem:[%s5 + $0x1e8] sm:$0xff]
  %v6852 = vld [vmem:[%s5 + $0x1f0] sm:$0xff]
  %v6853 = vld [vmem:[%s5 + $0x1f8] sm:$0xff]
  %v6854 = vld [vmem:[%s5 + $0x200] sm:$0xff]
  %v6855 = vld [vmem:[%s5 + $0x208] sm:$0xff]
  %v6856 = vld [vmem:[%s5 + $0x210] sm:$0xff]
  %v6857 = vld [vmem:[%s5 + $0x218] sm:$0xff]
  %v6858 = vld [vmem:[%s5 + $0x220] sm:$0xff]
  %v6859 = vld [vmem:[%s5 + $0x228] sm:$0xff]
  %v6860 = vld [vmem:[%s5 + $0x230] sm:$0xff]
  %v6861 = vld [vmem:[%s5 + $0x238] sm:$0xff]
  %v6862 = vld [vmem:[%s5 + $0x240] sm:$0xff]
  %v6863 = vld [vmem:[%s5 + $0x248] sm:$0xff]
  %v6864 = vld [vmem:[%s5 + $0x250] sm:$0xff]
  %v6865 = vld [vmem:[%s5 + $0x258] sm:$0xff]
  %v6866 = vld [vmem:[%s5 + $0x260] sm:$0xff]
  %v6867 = vld [vmem:[%s5 + $0x268] sm:$0xff]
  %v6868 = vld [vmem:[%s5 + $0x270] sm:$0xff]
  %v6869 = vld [vmem:[%s5 + $0x278] sm:$0xff]
  %v6870 = vld [vmem:[%s5 + $0x280] sm:$0xff]
  %v6871 = vld [vmem:[%s5 + $0x288] sm:$0xff]
  %v6872 = vld [vmem:[%s5 + $0x290] sm:$0xff]
  %v6873 = vld [vmem:[%s5 + $0x298] sm:$0xff]
  %v6874 = vld [vmem:[%s5 + $0x2a0] sm:$0xff]
  %v6875 = vld [vmem:[%s5 + $0x2a8] sm:$0xff]
  %v6876 = vld [vmem:[%s5 + $0x2b0] sm:$0xff]
  %v6877 = vld [vmem:[%s5 + $0x2b8] sm:$0xff]
  %v6878 = vld [vmem:[%s5 + $0x2c0] sm:$0xff]
  %v6879 = vld [vmem:[%s5 + $0x2c8] sm:$0xff]
  %v6880 = vld [vmem:[%s5 + $0x2d0] sm:$0xff]
  %v6881 = vld [vmem:[%s5 + $0x2d8] sm:$0xff]
  %v6882 = vld [vmem:[%s5 + $0x2e0] sm:$0xff]
  %v6883 = vld [vmem:[%s5 + $0x2e8] sm:$0xff]
  %v6884 = vld [vmem:[%s5 + $0x2f0] sm:$0xff]
  %v6885 = vld [vmem:[%s5 + $0x2f8] sm:$0xff]
  %v6886 = vld [vmem:[%s5 + $0x300] sm:$0xff]
  %v6887 = vld [vmem:[%s5 + $0x308] sm:$0xff]
  %v6888 = vld [vmem:[%s5 + $0x310] sm:$0xff]
  %v6889 = vld [vmem:[%s5 + $0x318] sm:$0xff]
  %v6890 = vld [vmem:[%s5 + $0x320] sm:$0xff]
  %v6891 = vld [vmem:[%s5 + $0x328] sm:$0xff]
  %v6892 = vld [vmem:[%s5 + $0x330] sm:$0xff]
  %v6893 = vld [vmem:[%s5 + $0x338] sm:$0xff]
  %v6894 = vld [vmem:[%s5 + $0x340] sm:$0xff]
  %v6895 = vld [vmem:[%s5 + $0x348] sm:$0xff]
  %v6896 = vld [vmem:[%s5 + $0x350] sm:$0xff]
  %v6897 = vld [vmem:[%s5 + $0x358] sm:$0xff]
  %v6898 = vld [vmem:[%s5 + $0x360] sm:$0xff]
  %v6899 = vld [vmem:[%s5 + $0x368] sm:$0xff]
  %v6900 = vld [vmem:[%s5 + $0x370] sm:$0xff]
  %v6901 = vld [vmem:[%s5 + $0x378] sm:$0xff]
  %v6902 = vld [vmem:[%s5 + $0x380] sm:$0xff]
  %v6903 = vld [vmem:[%s5 + $0x388] sm:$0xff]
  %v6904 = vld [vmem:[%s5 + $0x390] sm:$0xff]
  %v6905 = vld [vmem:[%s5 + $0x398] sm:$0xff]
  %v6906 = vld [vmem:[%s5 + $0x3a0] sm:$0xff]
  %v6907 = vld [vmem:[%s5 + $0x3a8] sm:$0xff]
  %v6908 = vld [vmem:[%s5 + $0x3b0] sm:$0xff]
  %v6909 = vld [vmem:[%s5 + $0x3b8] sm:$0xff]
  %v6910 = vld [vmem:[%s5 + $0x3c0] sm:$0xff]
  %v6911 = vld [vmem:[%s5 + $0x3c8] sm:$0xff]
  %v6912 = vld [vmem:[%s5 + $0x3d0] sm:$0xff]
  %v6913 = vld [vmem:[%s5 + $0x3d8] sm:$0xff]
  %v6914 = vld [vmem:[%s5 + $0x3e0] sm:$0xff]
  %v6915 = vld [vmem:[%s5 + $0x3e8] sm:$0xff]
  %v6916 = vld [vmem:[%s5 + $0x3f0] sm:$0xff]
  %v6917 = vld [vmem:[%s5 + $0x3f8] sm:$0xff]
  %v6918 = vld [vmem:[%s5 + $0x400] sm:$0xff]
  %v6919 = vld [vmem:[%s5 + $0x408] sm:$0xff]
  %v6920 = vld [vmem:[%s5 + $0x410] sm:$0xff]
  %v6921 = vld [vmem:[%s5 + $0x418] sm:$0xff]
  %v6922 = vld [vmem:[%s5 + $0x420] sm:$0xff]
  %v6923 = vld [vmem:[%s5 + $0x428] sm:$0xff]
  %v6924 = vld [vmem:[%s5 + $0x430] sm:$0xff]
  %v6925 = vld [vmem:[%s5 + $0x438] sm:$0xff]
  %v6926 = vld [vmem:[%s5 + $0x440] sm:$0xff]
  %v6927 = vld [vmem:[%s5 + $0x448] sm:$0xff]
  %v6928 = vld [vmem:[%s5 + $0x450] sm:$0xff]
  %v6929 = vld [vmem:[%s5 + $0x458] sm:$0xff]
  %v6930 = vld [vmem:[%s5 + $0x460] sm:$0xff]
  %v6931 = vld [vmem:[%s5 + $0x468] sm:$0xff]
  %v6932 = vld [vmem:[%s5 + $0x470] sm:$0xff]
  %v6933 = vld [vmem:[%s5 + $0x478] sm:$0xff]
  %v6934 = vld [vmem:[%s5 + $0x480] sm:$0xff]
  %v6935 = vld [vmem:[%s5 + $0x488] sm:$0xff]
  %v6936 = vld [vmem:[%s5 + $0x490] sm:$0xff]
  %v6937 = vld [vmem:[%s5 + $0x498] sm:$0xff]
  %v6938 = vld [vmem:[%s5 + $0x4a0] sm:$0xff]
  %v6939 = vld [vmem:[%s5 + $0x4a8] sm:$0xff]
  %v6940 = vld [vmem:[%s5 + $0x4b0] sm:$0xff]
  %v6941 = vld [vmem:[%s5 + $0x4b8] sm:$0xff]
  %v6942 = vld [vmem:[%s5 + $0x4c0] sm:$0xff]
  %v6943 = vld [vmem:[%s5 + $0x4c8] sm:$0xff]
  %v6944 = vld [vmem:[%s5 + $0x4d0] sm:$0xff]
  %v6945 = vld [vmem:[%s5 + $0x4d8] sm:$0xff]
  %v6946 = vld [vmem:[%s5 + $0x4e0] sm:$0xff]
  %v6947 = vld [vmem:[%s5 + $0x4e8] sm:$0xff]
  %v6948 = vld [vmem:[%s5 + $0x4f0] sm:$0xff]
  %v6949 = vld [vmem:[%s5 + $0x4f8] sm:$0xff]
  %v6950 = vld [vmem:[%s5 + $0x500] sm:$0xff]
  %v6951 = vld [vmem:[%s5 + $0x508] sm:$0xff]
  %v6952 = vld [vmem:[%s5 + $0x510] sm:$0xff]
  %v6953 = vld [vmem:[%s5 + $0x518] sm:$0xff]
  %v6954 = vld [vmem:[%s5 + $0x520] sm:$0xff]
  %v6955 = vld [vmem:[%s5 + $0x528] sm:$0xff]
  %v6956 = vld [vmem:[%s5 + $0x530] sm:$0xff]
  %v6957 = vld [vmem:[%s5 + $0x538] sm:$0xff]
  %v6958 = vld [vmem:[%s5 + $0x540] sm:$0xff]
  %v6959 = vld [vmem:[%s5 + $0x548] sm:$0xff]
  %v6960 = vld [vmem:[%s5 + $0x550] sm:$0xff]
  %v6961 = vld [vmem:[%s5 + $0x558] sm:$0xff]
  %v6962 = vld [vmem:[%s5 + $0x560] sm:$0xff]
  %v6963 = vld [vmem:[%s5 + $0x568] sm:$0xff]
  %v6964 = vld [vmem:[%s5 + $0x570] sm:$0xff]
  %v6965 = vld [vmem:[%s5 + $0x578] sm:$0xff]
  %v6966 = vld [vmem:[%s5 + $0x580] sm:$0xff]
  %v6967 = vld [vmem:[%s5 + $0x588] sm:$0xff]
  %v6968 = vld [vmem:[%s5 + $0x590] sm:$0xff]
  %v6969 = vld [vmem:[%s5 + $0x598] sm:$0xff]
  %v6970 = vld [vmem:[%s5 + $0x5a0] sm:$0xff]
  %v6971 = vld [vmem:[%s5 + $0x5a8] sm:$0xff]
  %v6972 = vld [vmem:[%s5 + $0x5b0] sm:$0xff]
  %v6973 = vld [vmem:[%s5 + $0x5b8] sm:$0xff]
  %v6974 = vld [vmem:[%s5 + $0x5c0] sm:$0xff]
  %v6975 = vld [vmem:[%s5 + $0x5c8] sm:$0xff]
  %v6976 = vld [vmem:[%s5 + $0x5d0] sm:$0xff]
  %v6977 = vld [vmem:[%s5 + $0x5d8] sm:$0xff]
  %v6978 = vld [vmem:[%s5 + $0x5e0] sm:$0xff]
  %v6979 = vld [vmem:[%s5 + $0x5e8] sm:$0xff]
  %v6980 = vld [vmem:[%s5 + $0x5f0] sm:$0xff]
  %v6981 = vld [vmem:[%s5 + $0x5f8] sm:$0xff]
  %v6982 = vld [vmem:[%s5 + $0x600] sm:$0xff]
  %v6983 = vld [vmem:[%s5 + $0x608] sm:$0xff]
  %v6984 = vld [vmem:[%s5 + $0x610] sm:$0xff]
  %v6985 = vld [vmem:[%s5 + $0x618] sm:$0xff]
  %v6986 = vld [vmem:[%s5 + $0x620] sm:$0xff]
  %v6987 = vld [vmem:[%s5 + $0x628] sm:$0xff]
  %v6988 = vld [vmem:[%s5 + $0x630] sm:$0xff]
  %v6989 = vld [vmem:[%s5 + $0x638] sm:$0xff]
  %v6990 = vld [vmem:[%s5 + $0x640] sm:$0xff]
  %v6991 = vld [vmem:[%s5 + $0x648] sm:$0xff]
  %v6992 = vld [vmem:[%s5 + $0x650] sm:$0xff]
  %v6993 = vld [vmem:[%s5 + $0x658] sm:$0xff]
  %v6994 = vld [vmem:[%s5 + $0x660] sm:$0xff]
  %v6995 = vld [vmem:[%s5 + $0x668] sm:$0xff]
  %v6996 = vld [vmem:[%s5 + $0x670] sm:$0xff]
  %v6997 = vld [vmem:[%s5 + $0x678] sm:$0xff]
  %v6998 = vld [vmem:[%s5 + $0x680] sm:$0xff]
  %v6999 = vld [vmem:[%s5 + $0x688] sm:$0xff]
  %v7000 = vld [vmem:[%s5 + $0x690] sm:$0xff]
  %v7001 = vld [vmem:[%s5 + $0x698] sm:$0xff]
  %v7002 = vld [vmem:[%s5 + $0x6a0] sm:$0xff]
  %v7003 = vld [vmem:[%s5 + $0x6a8] sm:$0xff]
  %v7004 = vld [vmem:[%s5 + $0x6b0] sm:$0xff]
  %v7005 = vld [vmem:[%s5 + $0x6b8] sm:$0xff]
  %v7006 = vld [vmem:[%s5 + $0x6c0] sm:$0xff]
  %v7007 = vld [vmem:[%s5 + $0x6c8] sm:$0xff]
  %v7008 = vld [vmem:[%s5 + $0x6d0] sm:$0xff]
  %v7009 = vld [vmem:[%s5 + $0x6d8] sm:$0xff]
  %v7010 = vld [vmem:[%s5 + $0x6e0] sm:$0xff]
  %v7011 = vld [vmem:[%s5 + $0x6e8] sm:$0xff]
  %v7012 = vld [vmem:[%s5 + $0x6f0] sm:$0xff]
  %v7013 = vld [vmem:[%s5 + $0x6f8] sm:$0xff]
  %v7014 = vld [vmem:[%s5 + $0x700] sm:$0xff]
  %v7015 = vld [vmem:[%s5 + $0x708] sm:$0xff]
  %v7016 = vld [vmem:[%s5 + $0x710] sm:$0xff]
  %v7017 = vld [vmem:[%s5 + $0x718] sm:$0xff]
  %v7018 = vld [vmem:[%s5 + $0x720] sm:$0xff]
  %v7019 = vld [vmem:[%s5 + $0x728] sm:$0xff]
  %v7020 = vld [vmem:[%s5 + $0x730] sm:$0xff]
  %v7021 = vld [vmem:[%s5 + $0x738] sm:$0xff]
  %v7022 = vld [vmem:[%s5 + $0x740] sm:$0xff]
  %v7023 = vld [vmem:[%s5 + $0x748] sm:$0xff]
  %v7024 = vld [vmem:[%s5 + $0x750] sm:$0xff]
  %v7025 = vld [vmem:[%s5 + $0x758] sm:$0xff]
  %v7026 = vld [vmem:[%s5 + $0x760] sm:$0xff]
  %v7027 = vld [vmem:[%s5 + $0x768] sm:$0xff]
  %v7028 = vld [vmem:[%s5 + $0x770] sm:$0xff]
  %v7029 = vld [vmem:[%s5 + $0x778] sm:$0xff]
  %v7030 = vld [vmem:[%s5 + $0x780] sm:$0xff]
  %v7031 = vld [vmem:[%s5 + $0x788] sm:$0xff]
  %v7032 = vld [vmem:[%s5 + $0x790] sm:$0xff]
  %v7033 = vld [vmem:[%s5 + $0x798] sm:$0xff]
  %v7034 = vld [vmem:[%s5 + $0x7a0] sm:$0xff]
  %v7035 = vld [vmem:[%s5 + $0x7a8] sm:$0xff]
  %v7036 = vld [vmem:[%s5 + $0x7b0] sm:$0xff]
  %v7037 = vld [vmem:[%s5 + $0x7b8] sm:$0xff]
  %v7038 = vld [vmem:[%s5 + $0x7c0] sm:$0xff]
  %v7039 = vld [vmem:[%s5 + $0x7c8] sm:$0xff]
  %v7040 = vld [vmem:[%s5 + $0x7d0] sm:$0xff]
  %v7041 = vld [vmem:[%s5 + $0x7d8] sm:$0xff]
  %v7042 = vld [vmem:[%s5 + $0x7e0] sm:$0xff]
  %v7043 = vld [vmem:[%s5 + $0x7e8] sm:$0xff]
  %v7044 = vld [vmem:[%s5 + $0x7f0] sm:$0xff]
  %v7045 = vld [vmem:[%s5 + $0x7f8] sm:$0xff]
  %v7046 = vld [vmem:[%s5 + $0x800] sm:$0xff]
  %v7047 = vld [vmem:[%s5 + $0x808] sm:$0xff]
  %v7048 = vld [vmem:[%s5 + $0x810] sm:$0xff]
  %v7049 = vld [vmem:[%s5 + $0x818] sm:$0xff]
  %v7050 = vld [vmem:[%s5 + $0x820] sm:$0xff]
  %v7051 = vld [vmem:[%s5 + $0x828] sm:$0xff]
  %v7052 = vld [vmem:[%s5 + $0x830] sm:$0xff]
  %v7053 = vld [vmem:[%s5 + $0x838] sm:$0xff]
  %v7054 = vld [vmem:[%s5 + $0x840] sm:$0xff]
  %v7055 = vld [vmem:[%s5 + $0x848] sm:$0xff]
  %v7056 = vld [vmem:[%s5 + $0x850] sm:$0xff]
  %v7057 = vld [vmem:[%s5 + $0x858] sm:$0xff]
  %v7058 = vld [vmem:[%s5 + $0x860] sm:$0xff]
  %v7059 = vld [vmem:[%s5 + $0x868] sm:$0xff]
  %v7060 = vld [vmem:[%s5 + $0x870] sm:$0xff]
  %v7061 = vld [vmem:[%s5 + $0x878] sm:$0xff]
  %v7062 = vld [vmem:[%s5 + $0x880] sm:$0xff]
  %v7063 = vld [vmem:[%s5 + $0x888] sm:$0xff]
  %v7064 = vld [vmem:[%s5 + $0x890] sm:$0xff]
  %v7065 = vld [vmem:[%s5 + $0x898] sm:$0xff]
  %v7066 = vld [vmem:[%s5 + $0x8a0] sm:$0xff]
  %v7067 = vld [vmem:[%s5 + $0x8a8] sm:$0xff]
  %v7068 = vld [vmem:[%s5 + $0x8b0] sm:$0xff]
  %v7069 = vld [vmem:[%s5 + $0x8b8] sm:$0xff]
  %v7070 = vld [vmem:[%s5 + $0x8c0] sm:$0xff]
  %v7071 = vld [vmem:[%s5 + $0x8c8] sm:$0xff]
  %v7072 = vld [vmem:[%s5 + $0x8d0] sm:$0xff]
  %v7073 = vld [vmem:[%s5 + $0x8d8] sm:$0xff]
  %v7074 = vld [vmem:[%s5 + $0x8e0] sm:$0xff]
  %v7075 = vld [vmem:[%s5 + $0x8e8] sm:$0xff]
  %v7076 = vld [vmem:[%s5 + $0x8f0] sm:$0xff]
  %v7077 = vld [vmem:[%s5 + $0x8f8] sm:$0xff]
  %v7078 = vld [vmem:[%s5 + $0x900] sm:$0xff]
  %v7079 = vld [vmem:[%s5 + $0x908] sm:$0xff]
  %v7080 = vld [vmem:[%s5 + $0x910] sm:$0xff]
  %v7081 = vld [vmem:[%s5 + $0x918] sm:$0xff]
  %v7082 = vld [vmem:[%s5 + $0x920] sm:$0xff]
  %v7083 = vld [vmem:[%s5 + $0x928] sm:$0xff]
  %v7084 = vld [vmem:[%s6] sm:$0x7]
  %v7086 = vlaneseq
  %v7087 = vshrl.u32 %v7086, 7
  %v7088 = vsub.s32 0, %v7087
  %v7089 = vrot.slane %v7084, %v7088
  %v7090 = vlaneseq
  %v7091 = vshrl.u32 %v7090, 7
  %v7092 = vsub.s32 1, %v7091
  %v7093 = vrot.slane %v7084, %v7092
  %v7094 = vlaneseq
  %v7095 = vshrl.u32 %v7094, 7
  %v7096 = vsub.s32 2, %v7095
  %v7097 = vrot.slane %v7084, %v7096
  %v7102 = vsel %vm1388, %v6789, 0
  %7104 = vmatprep.subr.mxu0 %v6791
  %7105 = vmatpush1.msra.mxu0 %v6790
  %7106 = vmatprep.subr.mxu0 %v6794
  %7107 = vmatpush1.msra.mxu0 %v6793
  %7108 = vmatprep.subr.mxu0 %v6797
  %7109 = vmatpush1.msra.mxu0 %v6796
  %7110 = vmatprep.subr.mxu0 %v6800
  %7111 = vmatpush1.msra.mxu0 %v6799
  %7112 = vmatprep.subr.mxu0 %v6803
  %7113 = vmatpush1.msra.mxu0 %v6802
  %7114 = vmatprep.subr.mxu0 %v6806
  %7115 = vmatpush1.msra.mxu0 %v6805
  %7116 = vmatprep.subr.mxu0 %v6809
  %7117 = vmatpush1.msra.mxu0 %v6808
  %7118 = vmatprep.subr.mxu0 %v6812
  %7119 = vmatpush1.msra.mxu0 %v6811
  %7120 = vmatprep.subr.mxu0 %v6815
  %7121 = vmatpush1.msra.mxu0 %v6814
  %7122 = vmatprep.subr.mxu0 %v6818
  %7123 = vmatpush1.msra.mxu0 %v6817
  %7124 = vmatprep.subr.mxu0 %v6821
  %7125 = vmatpush1.msra.mxu0 %v6820
  %7126 = vmatprep.subr.mxu0 %v6824
  %7127 = vmatpush1.msra.mxu0 %v6823
  %7128 = vmatprep.subr.mxu0 %v6827
  %7129 = vmatpush1.msra.mxu0 %v6826
  %7130 = vmatprep.subr.mxu0 %v6830
  %7131 = vmatpush1.msra.mxu0 %v6829
  %7132 = vmatprep.subr.mxu0 %v6833
  %7133 = vmatpush1.msra.mxu0 %v6832
  %7134 = vmatprep.subr.mxu0 %v6836
  %7135 = vmatpush1.msra.mxu0 %v6835
  %7136 = vmatprep.subr.mxu0 %v6839
  %7137 = vmatpush1.msra.mxu0 %v6838
  %7138 = vmatprep.subr.mxu0 %v6842
  %7139 = vmatpush1.msra.mxu0 %v6841
  %7140 = vmatprep.subr.mxu0 %v6845
  %7141 = vmatpush1.msra.mxu0 %v6844
  %7142 = vmatprep.subr.mxu0 %v6848
  %7143 = vmatpush1.msra.mxu0 %v6847
  %7144 = vmatprep.subr.mxu0 %v6851
  %7145 = vmatpush1.msra.mxu0 %v6850
  %7146 = vmatprep.subr.mxu0 %v6854
  %7147 = vmatpush1.msra.mxu0 %v6853
  %7148 = vmatprep.subr.mxu0 %v6857
  %7149 = vmatpush1.msra.mxu0 %v6856
  %7150 = vmatprep.subr.mxu0 %v6860
  %7151 = vmatpush1.msra.mxu0 %v6859
  %7152 = vmatprep.subr.mxu0 %v6863
  %7153 = vmatpush1.msra.mxu0 %v6862
  %7154 = vmatprep.subr.mxu0 %v6866
  %7155 = vmatpush1.msra.mxu0 %v6865
  %7156 = vmatprep.subr.mxu0 %v6869
  %7157 = vmatpush1.msra.mxu0 %v6868
  %7158 = vmatprep.subr.mxu0 %v6872
  %7159 = vmatpush1.msra.mxu0 %v6871
  %7160 = vmatprep.subr.mxu0 %v6875
  %7161 = vmatpush1.msra.mxu0 %v6874
  %7162 = vmatprep.subr.mxu0 %v6878
  %7163 = vmatpush1.msra.mxu0 %v6877
  %7164 = vmatprep.subr.mxu0 %v6881
  %7165 = vmatpush1.msra.mxu0 %v6880
  %7166 = vmatprep.subr.mxu0 %v6884
  %7167 = vmatpush1.msra.mxu0 %v6883
  %7168 = vmatprep.mubr.f32.mxu0 %v6784
  %7169 = vmatmul.mubr.f32.gmra.mrb[0].mxu0 %v6783
  %v7170 = vpop.f32.mrb[0].mxu0
  %v7171 = vadd.f32 %v7089, %v7170
  %v7172 = vpop.f32.mrb[0].mxu0
  %v7173 = vadd.f32 %v7093, %v7172
  %7174 = vdwg.mxu0
  %7175 = vmatprep.subr.mxu0 %v6887
  %7176 = vmatpush1.msra.mxu0 %v6886
  %7177 = vmatprep.subr.mxu0 %v6890
  %7178 = vmatpush1.msra.mxu0 %v6889
  %7179 = vmatprep.subr.mxu0 %v6893
  %7180 = vmatpush1.msra.mxu0 %v6892
  %7181 = vmatprep.subr.mxu0 %v6896
  %7182 = vmatpush1.msra.mxu0 %v6895
  %7183 = vmatprep.subr.mxu0 %v6899
  %7184 = vmatpush1.msra.mxu0 %v6898
  %7185 = vmatprep.subr.mxu0 %v6902
  %7186 = vmatpush1.msra.mxu0 %v6901
  %7187 = vmatprep.subr.mxu0 %v6905
  %7188 = vmatpush1.msra.mxu0 %v6904
  %7189 = vmatprep.subr.mxu0 %v6908
  %7190 = vmatpush1.msra.mxu0 %v6907
  %7191 = vmatprep.subr.mxu0 %v6911
  %7192 = vmatpush1.msra.mxu0 %v6910
  %7193 = vmatprep.subr.mxu0 %v6914
  %7194 = vmatpush1.msra.mxu0 %v6913
  %7195 = vmatprep.subr.mxu0 %v6917
  %7196 = vmatpush1.msra.mxu0 %v6916
  %7197 = vmatprep.subr.mxu0 %v6920
  %7198 = vmatpush1.msra.mxu0 %v6919
  %7199 = vmatprep.subr.mxu0 %v6923
  %7200 = vmatpush1.msra.mxu0 %v6922
  %7201 = vmatprep.subr.mxu0 %v6926
  %7202 = vmatpush1.msra.mxu0 %v6925
  %7203 = vmatprep.subr.mxu0 %v6929
  %7204 = vmatpush1.msra.mxu0 %v6928
  %7205 = vmatprep.subr.mxu0 %v6932
  %7206 = vmatpush1.msra.mxu0 %v6931
  %7207 = vmatprep.subr.mxu0 %v6935
  %7208 = vmatpush1.msra.mxu0 %v6934
  %7209 = vmatprep.subr.mxu0 %v6938
  %7210 = vmatpush1.msra.mxu0 %v6937
  %7211 = vmatprep.subr.mxu0 %v6941
  %7212 = vmatpush1.msra.mxu0 %v6940
  %7213 = vmatprep.subr.mxu0 %v6944
  %7214 = vmatpush1.msra.mxu0 %v6943
  %7215 = vmatprep.subr.mxu0 %v6947
  %7216 = vmatpush1.msra.mxu0 %v6946
  %7217 = vmatprep.subr.mxu0 %v6950
  %7218 = vmatpush1.msra.mxu0 %v6949
  %7219 = vmatprep.subr.mxu0 %v6953
  %7220 = vmatpush1.msra.mxu0 %v6952
  %7221 = vmatprep.subr.mxu0 %v6956
  %7222 = vmatpush1.msra.mxu0 %v6955
  %7223 = vmatprep.subr.mxu0 %v6959
  %7224 = vmatpush1.msra.mxu0 %v6958
  %7225 = vmatprep.subr.mxu0 %v6962
  %7226 = vmatpush1.msra.mxu0 %v6961
  %7227 = vmatprep.subr.mxu0 %v6965
  %7228 = vmatpush1.msra.mxu0 %v6964
  %7229 = vmatprep.subr.mxu0 %v6968
  %7230 = vmatpush1.msra.mxu0 %v6967
  %7231 = vmatprep.subr.mxu0 %v6971
  %7232 = vmatpush1.msra.mxu0 %v6970
  %7233 = vmatprep.subr.mxu0 %v6974
  %7234 = vmatpush1.msra.mxu0 %v6973
  %7235 = vmatprep.subr.mxu0 %v6977
  %7236 = vmatpush1.msra.mxu0 %v6976
  %7237 = vmatprep.subr.mxu0 %v6980
  %7238 = vmatpush1.msra.mxu0 %v6979
  %7239 = vmatprep.mubr.f32.mxu0 %v6786
  %7240 = vmatmul.mubr.f32.gmra.mrb[0].mxu0 %v6785
  %v7241 = vpop.f32.mrb[0].mxu0
  %v7242 = vadd.f32 %v7171, %v7241
  %v7243 = vpop.f32.mrb[0].mxu0
  %v7244 = vadd.f32 %v7173, %v7243
  %7245 = vdwg.mxu0
  %7246 = vmatprep.subr.mxu0 %v6983
  %7247 = vmatpush1.msra.mxu0 %v6982
  %7248 = vmatprep.subr.mxu0 %v6986
  %7249 = vmatpush1.msra.mxu0 %v6985
  %7250 = vmatprep.subr.mxu0 %v6989
  %7251 = vmatpush1.msra.mxu0 %v6988
  %7252 = vmatprep.subr.mxu0 %v6992
  %7253 = vmatpush1.msra.mxu0 %v6991
  %7254 = vmatprep.subr.mxu0 %v6995
  %7255 = vmatpush1.msra.mxu0 %v6994
  %7256 = vmatprep.subr.mxu0 %v6998
  %7257 = vmatpush1.msra.mxu0 %v6997
  %7258 = vmatprep.subr.mxu0 %v7001
  %7259 = vmatpush1.msra.mxu0 %v7000
  %7260 = vmatprep.subr.mxu0 %v7004
  %7261 = vmatpush1.msra.mxu0 %v7003
  %7262 = vmatprep.subr.mxu0 %v7007
  %7263 = vmatpush1.msra.mxu0 %v7006
  %7264 = vmatprep.subr.mxu0 %v7010
  %7265 = vmatpush1.msra.mxu0 %v7009
  %7266 = vmatprep.subr.mxu0 %v7013
  %7267 = vmatpush1.msra.mxu0 %v7012
  %7268 = vmatprep.subr.mxu0 %v7016
  %7269 = vmatpush1.msra.mxu0 %v7015
  %7270 = vmatprep.subr.mxu0 %v7019
  %7271 = vmatpush1.msra.mxu0 %v7018
  %7272 = vmatprep.subr.mxu0 %v7022
  %7273 = vmatpush1.msra.mxu0 %v7021
  %7274 = vmatprep.subr.mxu0 %v7025
  %7275 = vmatpush1.msra.mxu0 %v7024
  %7276 = vmatprep.subr.mxu0 %v7028
  %7277 = vmatpush1.msra.mxu0 %v7027
  %7278 = vmatprep.subr.mxu0 %v7031
  %7279 = vmatpush1.msra.mxu0 %v7030
  %7280 = vmatprep.subr.mxu0 %v7034
  %7281 = vmatpush1.msra.mxu0 %v7033
  %7282 = vmatprep.subr.mxu0 %v7037
  %7283 = vmatpush1.msra.mxu0 %v7036
  %7284 = vmatprep.subr.mxu0 %v7040
  %7285 = vmatpush1.msra.mxu0 %v7039
  %7286 = vmatprep.subr.mxu0 %v7043
  %7287 = vmatpush1.msra.mxu0 %v7042
  %7288 = vmatprep.subr.mxu0 %v7046
  %7289 = vmatpush1.msra.mxu0 %v7045
  %7290 = vmatprep.subr.mxu0 %v7049
  %7291 = vmatpush1.msra.mxu0 %v7048
  %7292 = vmatprep.subr.mxu0 %v7052
  %7293 = vmatpush1.msra.mxu0 %v7051
  %7294 = vmatprep.subr.mxu0 %v7055
  %7295 = vmatpush1.msra.mxu0 %v7054
  %7296 = vmatprep.subr.mxu0 %v7058
  %7297 = vmatpush1.msra.mxu0 %v7057
  %7298 = vmatprep.subr.mxu0 %v7061
  %7299 = vmatpush1.msra.mxu0 %v7060
  %7300 = vmatprep.subr.mxu0 %v7064
  %7301 = vmatpush1.msra.mxu0 %v7063
  %7302 = vmatprep.subr.mxu0 %v7067
  %7303 = vmatpush1.msra.mxu0 %v7066
  %7304 = vmatprep.subr.mxu0 %v7070
  %7305 = vmatpush1.msra.mxu0 %v7069
  %7306 = vmatprep.subr.mxu0 %v7073
  %7307 = vmatpush1.msra.mxu0 %v7072
  %7308 = vmatprep.subr.mxu0 %v7076
  %7309 = vmatpush1.msra.mxu0 %v7075
  %7310 = vmatprep.mubr.f32.mxu0 %v6788
  %7311 = vmatmul.mubr.f32.gmra.mrb[0].mxu0 %v6787
  %v7312 = vpop.f32.mrb[0].mxu0
  %v7313 = vadd.f32 %v7242, %v7312
  %v7314 = vpop.f32.mrb[0].mxu0
  %v7315 = vadd.f32 %v7244, %v7314
  %7316 = vdwg.mxu0
  %7317 = vmatprep.subr.mxu0 %v7079
  %7318 = vmatpush1.msra.mxu0 %v7078
  %7319 = vmatprep.subr.mxu0 %v7082
  %7320 = vmatpush1.msra.mxu0 %v7081
  %7321 = vmatprep.subr.mxu0 0.0
  %7322 = vmatpush1.msra.mxu0 0.0
  %7323 = vmatprep.subr.mxu0 0.0
  %7324 = vmatpush1.msra.mxu0 0.0
  %7325 = vmatprep.subr.mxu0 0.0
  %7326 = vmatpush1.msra.mxu0 0.0
  %7327 = vmatprep.subr.mxu0 0.0
  %7328 = vmatpush1.msra.mxu0 0.0
  %7329 = vmatprep.subr.mxu0 0.0
  %7330 = vmatpush1.msra.mxu0 0.0
  %7331 = vmatprep.subr.mxu0 0.0
  %7332 = vmatpush1.msra.mxu0 0.0
  %7333 = vmatprep.subr.mxu0 0.0
  %7334 = vmatpush1.msra.mxu0 0.0
  %7335 = vmatprep.subr.mxu0 0.0
  %7336 = vmatpush1.msra.mxu0 0.0
  %7337 = vmatprep.subr.mxu0 0.0
  %7338 = vmatpush1.msra.mxu0 0.0
  %7339 = vmatprep.subr.mxu0 0.0
  %7340 = vmatpush1.msra.mxu0 0.0
  %7341 = vmatprep.subr.mxu0 0.0
  %7342 = vmatpush1.msra.mxu0 0.0
  %7343 = vmatprep.subr.mxu0 0.0
  %7344 = vmatpush1.msra.mxu0 0.0
  %7345 = vmatprep.subr.mxu0 0.0
  %7346 = vmatpush1.msra.mxu0 0.0
  %7347 = vmatprep.subr.mxu0 0.0
  %7348 = vmatpush1.msra.mxu0 0.0
  %7349 = vmatprep.subr.mxu0 0.0
  %7350 = vmatpush1.msra.mxu0 0.0
  %7351 = vmatprep.subr.mxu0 0.0
  %7352 = vmatpush1.msra.mxu0 0.0
  %7353 = vmatprep.subr.mxu0 0.0
  %7354 = vmatpush1.msra.mxu0 0.0
  %7355 = vmatprep.subr.mxu0 0.0
  %7356 = vmatpush1.msra.mxu0 0.0
  %7357 = vmatprep.subr.mxu0 0.0
  %7358 = vmatpush1.msra.mxu0 0.0
  %7359 = vmatprep.subr.mxu0 0.0
  %7360 = vmatpush1.msra.mxu0 0.0
  %7361 = vmatprep.subr.mxu0 0.0
  %7362 = vmatpush1.msra.mxu0 0.0
  %7363 = vmatprep.subr.mxu0 0.0
  %7364 = vmatpush1.msra.mxu0 0.0
  %7365 = vmatprep.subr.mxu0 0.0
  %7366 = vmatpush1.msra.mxu0 0.0
  %7367 = vmatprep.subr.mxu0 0.0
  %7368 = vmatpush1.msra.mxu0 0.0
  %7369 = vmatprep.subr.mxu0 0.0
  %7370 = vmatpush1.msra.mxu0 0.0
  %7371 = vmatprep.subr.mxu0 0.0
  %7372 = vmatpush1.msra.mxu0 0.0
  %7373 = vmatprep.subr.mxu0 0.0
  %7374 = vmatpush1.msra.mxu0 0.0
  %7375 = vmatprep.subr.mxu0 0.0
  %7376 = vmatpush1.msra.mxu0 0.0
  %7377 = vmatprep.subr.mxu0 0.0
  %7378 = vmatpush1.msra.mxu0 0.0
  %7379 = vmatprep.subr.mxu0 0.0
  %7380 = vmatpush1.msra.mxu0 0.0
  %7381 = vmatprep.mubr.f32.mxu0 0.0
  %7382 = vmatmul.mubr.f32.gmra.mrb[0].mxu0 %v7102
  %v7383 = vpop.f32.mrb[0].mxu0
  %v7384 = vadd.f32 %v7313, %v7383
  %v7385 = vpop.f32.mrb[0].mxu0
  %v7386 = vadd.f32 %v7315, %v7385
  %7387 = vdwg.mxu0
  %7388 = vmatprep.subr.mxu0 0.0
  %7389 = vmatpush1.msra.mxu0 %v6792
  %7390 = vmatprep.subr.mxu0 0.0
  %7391 = vmatpush1.msra.mxu0 %v6795
  %7392 = vmatprep.subr.mxu0 0.0
  %7393 = vmatpush1.msra.mxu0 %v6798
  %7394 = vmatprep.subr.mxu0 0.0
  %7395 = vmatpush1.msra.mxu0 %v6801
  %7396 = vmatprep.subr.mxu0 0.0
  %7397 = vmatpush1.msra.mxu0 %v6804
  %7398 = vmatprep.subr.mxu0 0.0
  %7399 = vmatpush1.msra.mxu0 %v6807
  %7400 = vmatprep.subr.mxu0 0.0
  %7401 = vmatpush1.msra.mxu0 %v6810
  %7402 = vmatprep.subr.mxu0 0.0
  %7403 = vmatpush1.msra.mxu0 %v6813
  %7404 = vmatprep.subr.mxu0 0.0
  %7405 = vmatpush1.msra.mxu0 %v6816
  %7406 = vmatprep.subr.mxu0 0.0
  %7407 = vmatpush1.msra.mxu0 %v6819
  %7408 = vmatprep.subr.mxu0 0.0
  %7409 = vmatpush1.msra.mxu0 %v6822
  %7410 = vmatprep.subr.mxu0 0.0
  %7411 = vmatpush1.msra.mxu0 %v6825
  %7412 = vmatprep.subr.mxu0 0.0
  %7413 = vmatpush1.msra.mxu0 %v6828
  %7414 = vmatprep.subr.mxu0 0.0
  %7415 = vmatpush1.msra.mxu0 %v6831
  %7416 = vmatprep.subr.mxu0 0.0
  %7417 = vmatpush1.msra.mxu0 %v6834
  %7418 = vmatprep.subr.mxu0 0.0
  %7419 = vmatpush1.msra.mxu0 %v6837
  %7420 = vmatprep.subr.mxu0 0.0
  %7421 = vmatpush1.msra.mxu0 %v6840
  %7422 = vmatprep.subr.mxu0 0.0
  %7423 = vmatpush1.msra.mxu0 %v6843
  %7424 = vmatprep.subr.mxu0 0.0
  %7425 = vmatpush1.msra.mxu0 %v6846
  %7426 = vmatprep.subr.mxu0 0.0
  %7427 = vmatpush1.msra.mxu0 %v6849
  %7428 = vmatprep.subr.mxu0 0.0
  %7429 = vmatpush1.msra.mxu0 %v6852
  %7430 = vmatprep.subr.mxu0 0.0
  %7431 = vmatpush1.msra.mxu0 %v6855
  %7432 = vmatprep.subr.mxu0 0.0
  %7433 = vmatpush1.msra.mxu0 %v6858
  %7434 = vmatprep.subr.mxu0 0.0
  %7435 = vmatpush1.msra.mxu0 %v6861
  %7436 = vmatprep.subr.mxu0 0.0
  %7437 = vmatpush1.msra.mxu0 %v6864
  %7438 = vmatprep.subr.mxu0 0.0
  %7439 = vmatpush1.msra.mxu0 %v6867
  %7440 = vmatprep.subr.mxu0 0.0
  %7441 = vmatpush1.msra.mxu0 %v6870
  %7442 = vmatprep.subr.mxu0 0.0
  %7443 = vmatpush1.msra.mxu0 %v6873
  %7444 = vmatprep.subr.mxu0 0.0
  %7445 = vmatpush1.msra.mxu0 %v6876
  %7446 = vmatprep.subr.mxu0 0.0
  %7447 = vmatpush1.msra.mxu0 %v6879
  %7448 = vmatprep.subr.mxu0 0.0
  %7449 = vmatpush1.msra.mxu0 %v6882
  %7450 = vmatprep.subr.mxu0 0.0
  %7451 = vmatpush1.msra.mxu0 %v6885
  %7452 = vmatprep.mubr.f32.mxu0 %v6784
  %7453 = vmatmul.mubr.f32.gmra.mrb[0].mxu0 %v6783
  %v7454 = vpop.f32.mrb[0].mxu0
  %v7455 = vadd.f32 %v7097, %v7454
  %v7456 = vpop.f32.mrb[0].mxu0
  %7457 = vdwg.mxu0
  %7458 = vmatprep.subr.mxu0 0.0
  %7459 = vmatpush1.msra.mxu0 %v6888
  %7460 = vmatprep.subr.mxu0 0.0
  %7461 = vmatpush1.msra.mxu0 %v6891
  %7462 = vmatprep.subr.mxu0 0.0
  %7463 = vmatpush1.msra.mxu0 %v6894
  %7464 = vmatprep.subr.mxu0 0.0
  %7465 = vmatpush1.msra.mxu0 %v6897
  %7466 = vmatprep.subr.mxu0 0.0
  %7467 = vmatpush1.msra.mxu0 %v6900
  %7468 = vmatprep.subr.mxu0 0.0
  %7469 = vmatpush1.msra.mxu0 %v6903
  %7470 = vmatprep.subr.mxu0 0.0
  %7471 = vmatpush1.msra.mxu0 %v6906
  %7472 = vmatprep.subr.mxu0 0.0
  %7473 = vmatpush1.msra.mxu0 %v6909
  %7474 = vmatprep.subr.mxu0 0.0
  %7475 = vmatpush1.msra.mxu0 %v6912
  %7476 = vmatprep.subr.mxu0 0.0
  %7477 = vmatpush1.msra.mxu0 %v6915
  %7478 = vmatprep.subr.mxu0 0.0
  %7479 = vmatpush1.msra.mxu0 %v6918
  %7480 = vmatprep.subr.mxu0 0.0
  %7481 = vmatpush1.msra.mxu0 %v6921
  %7482 = vmatprep.subr.mxu0 0.0
  %7483 = vmatpush1.msra.mxu0 %v6924
  %7484 = vmatprep.subr.mxu0 0.0
  %7485 = vmatpush1.msra.mxu0 %v6927
  %7486 = vmatprep.subr.mxu0 0.0
  %7487 = vmatpush1.msra.mxu0 %v6930
  %7488 = vmatprep.subr.mxu0 0.0
  %7489 = vmatpush1.msra.mxu0 %v6933
  %7490 = vmatprep.subr.mxu0 0.0
  %7491 = vmatpush1.msra.mxu0 %v6936
  %7492 = vmatprep.subr.mxu0 0.0
  %7493 = vmatpush1.msra.mxu0 %v6939
  %7494 = vmatprep.subr.mxu0 0.0
  %7495 = vmatpush1.msra.mxu0 %v6942
  %7496 = vmatprep.subr.mxu0 0.0
  %7497 = vmatpush1.msra.mxu0 %v6945
  %7498 = vmatprep.subr.mxu0 0.0
  %7499 = vmatpush1.msra.mxu0 %v6948
  %7500 = vmatprep.subr.mxu0 0.0
  %7501 = vmatpush1.msra.mxu0 %v6951
  %7502 = vmatprep.subr.mxu0 0.0
  %7503 = vmatpush1.msra.mxu0 %v6954
  %7504 = vmatprep.subr.mxu0 0.0
  %7505 = vmatpush1.msra.mxu0 %v6957
  %7506 = vmatprep.subr.mxu0 0.0
  %7507 = vmatpush1.msra.mxu0 %v6960
  %7508 = vmatprep.subr.mxu0 0.0
  %7509 = vmatpush1.msra.mxu0 %v6963
  %7510 = vmatprep.subr.mxu0 0.0
  %7511 = vmatpush1.msra.mxu0 %v6966
  %7512 = vmatprep.subr.mxu0 0.0
  %7513 = vmatpush1.msra.mxu0 %v6969
  %7514 = vmatprep.subr.mxu0 0.0
  %7515 = vmatpush1.msra.mxu0 %v6972
  %7516 = vmatprep.subr.mxu0 0.0
  %7517 = vmatpush1.msra.mxu0 %v6975
  %7518 = vmatprep.subr.mxu0 0.0
  %7519 = vmatpush1.msra.mxu0 %v6978
  %7520 = vmatprep.subr.mxu0 0.0
  %7521 = vmatpush1.msra.mxu0 %v6981
  %7522 = vmatprep.mubr.f32.mxu0 %v6786
  %7523 = vmatmul.mubr.f32.gmra.mrb[0].mxu0 %v6785
  %v7524 = vpop.f32.mrb[0].mxu0
  %v7525 = vadd.f32 %v7455, %v7524
  %v7526 = vpop.f32.mrb[0].mxu0
  %7527 = vdwg.mxu0
  %7528 = vmatprep.subr.mxu0 0.0
  %7529 = vmatpush1.msra.mxu0 %v6984
  %7530 = vmatprep.subr.mxu0 0.0
  %7531 = vmatpush1.msra.mxu0 %v6987
  %7532 = vmatprep.subr.mxu0 0.0
  %7533 = vmatpush1.msra.mxu0 %v6990
  %7534 = vmatprep.subr.mxu0 0.0
  %7535 = vmatpush1.msra.mxu0 %v6993
  %7536 = vmatprep.subr.mxu0 0.0
  %7537 = vmatpush1.msra.mxu0 %v6996
  %7538 = vmatprep.subr.mxu0 0.0
  %7539 = vmatpush1.msra.mxu0 %v6999
  %7540 = vmatprep.subr.mxu0 0.0
  %7541 = vmatpush1.msra.mxu0 %v7002
  %7542 = vmatprep.subr.mxu0 0.0
  %7543 = vmatpush1.msra.mxu0 %v7005
  %7544 = vmatprep.subr.mxu0 0.0
  %7545 = vmatpush1.msra.mxu0 %v7008
  %7546 = vmatprep.subr.mxu0 0.0
  %7547 = vmatpush1.msra.mxu0 %v7011
  %7548 = vmatprep.subr.mxu0 0.0
  %7549 = vmatpush1.msra.mxu0 %v7014
  %7550 = vmatprep.subr.mxu0 0.0
  %7551 = vmatpush1.msra.mxu0 %v7017
  %7552 = vmatprep.subr.mxu0 0.0
  %7553 = vmatpush1.msra.mxu0 %v7020
  %7554 = vmatprep.subr.mxu0 0.0
  %7555 = vmatpush1.msra.mxu0 %v7023
  %7556 = vmatprep.subr.mxu0 0.0
  %7557 = vmatpush1.msra.mxu0 %v7026
  %7558 = vmatprep.subr.mxu0 0.0
  %7559 = vmatpush1.msra.mxu0 %v7029
  %7560 = vmatprep.subr.mxu0 0.0
  %7561 = vmatpush1.msra.mxu0 %v7032
  %7562 = vmatprep.subr.mxu0 0.0
  %7563 = vmatpush1.msra.mxu0 %v7035
  %7564 = vmatprep.subr.mxu0 0.0
  %7565 = vmatpush1.msra.mxu0 %v7038
  %7566 = vmatprep.subr.mxu0 0.0
  %7567 = vmatpush1.msra.mxu0 %v7041
  %7568 = vmatprep.subr.mxu0 0.0
  %7569 = vmatpush1.msra.mxu0 %v7044
  %7570 = vmatprep.subr.mxu0 0.0
  %7571 = vmatpush1.msra.mxu0 %v7047
  %7572 = vmatprep.subr.mxu0 0.0
  %7573 = vmatpush1.msra.mxu0 %v7050
  %7574 = vmatprep.subr.mxu0 0.0
  %7575 = vmatpush1.msra.mxu0 %v7053
  %7576 = vmatprep.subr.mxu0 0.0
  %7577 = vmatpush1.msra.mxu0 %v7056
  %7578 = vmatprep.subr.mxu0 0.0
  %7579 = vmatpush1.msra.mxu0 %v7059
  %7580 = vmatprep.subr.mxu0 0.0
  %7581 = vmatpush1.msra.mxu0 %v7062
  %7582 = vmatprep.subr.mxu0 0.0
  %7583 = vmatpush1.msra.mxu0 %v7065
  %7584 = vmatprep.subr.mxu0 0.0
  %7585 = vmatpush1.msra.mxu0 %v7068
  %7586 = vmatprep.subr.mxu0 0.0
  %7587 = vmatpush1.msra.mxu0 %v7071
  %7588 = vmatprep.subr.mxu0 0.0
  %7589 = vmatpush1.msra.mxu0 %v7074
  %7590 = vmatprep.subr.mxu0 0.0
  %7591 = vmatpush1.msra.mxu0 %v7077
  %7592 = vmatprep.mubr.f32.mxu0 %v6788
  %7593 = vmatmul.mubr.f32.gmra.mrb[0].mxu0 %v6787
  %v7594 = vpop.f32.mrb[0].mxu0
  %v7595 = vadd.f32 %v7525, %v7594
  %v7596 = vpop.f32.mrb[0].mxu0
  %7597 = vdwg.mxu0
  %7598 = vmatprep.subr.mxu0 0.0
  %7599 = vmatpush1.msra.mxu0 %v7080
  %7600 = vmatprep.subr.mxu0 0.0
  %7601 = vmatpush1.msra.mxu0 %v7083
  %7602 = vmatprep.subr.mxu0 0.0
  %7603 = vmatpush1.msra.mxu0 0.0
  %7604 = vmatprep.subr.mxu0 0.0
  %7605 = vmatpush1.msra.mxu0 0.0
  %7606 = vmatprep.subr.mxu0 0.0
  %7607 = vmatpush1.msra.mxu0 0.0
  %7608 = vmatprep.subr.mxu0 0.0
  %7609 = vmatpush1.msra.mxu0 0.0
  %7610 = vmatprep.subr.mxu0 0.0
  %7611 = vmatpush1.msra.mxu0 0.0
  %7612 = vmatprep.subr.mxu0 0.0
  %7613 = vmatpush1.msra.mxu0 0.0
  %7614 = vmatprep.subr.mxu0 0.0
  %7615 = vmatpush1.msra.mxu0 0.0
  %7616 = vmatprep.subr.mxu0 0.0
  %7617 = vmatpush1.msra.mxu0 0.0
  %7618 = vmatprep.subr.mxu0 0.0
  %7619 = vmatpush1.msra.mxu0 0.0
  %7620 = vmatprep.subr.mxu0 0.0
  %7621 = vmatpush1.msra.mxu0 0.0
  %7622 = vmatprep.subr.mxu0 0.0
  %7623 = vmatpush1.msra.mxu0 0.0
  %7624 = vmatprep.subr.mxu0 0.0
  %7625 = vmatpush1.msra.mxu0 0.0
  %7626 = vmatprep.subr.mxu0 0.0
  %7627 = vmatpush1.msra.mxu0 0.0
  %7628 = vmatprep.subr.mxu0 0.0
  %7629 = vmatpush1.msra.mxu0 0.0
  %7630 = vmatprep.subr.mxu0 0.0
  %7631 = vmatpush1.msra.mxu0 0.0
  %7632 = vmatprep.subr.mxu0 0.0
  %7633 = vmatpush1.msra.mxu0 0.0
  %7634 = vmatprep.subr.mxu0 0.0
  %7635 = vmatpush1.msra.mxu0 0.0
  %7636 = vmatprep.subr.mxu0 0.0
  %7637 = vmatpush1.msra.mxu0 0.0
  %7638 = vmatprep.subr.mxu0 0.0
  %7639 = vmatpush1.msra.mxu0 0.0
  %7640 = vmatprep.subr.mxu0 0.0
  %7641 = vmatpush1.msra.mxu0 0.0
  %7642 = vmatprep.subr.mxu0 0.0
  %7643 = vmatpush1.msra.mxu0 0.0
  %7644 = vmatprep.subr.mxu0 0.0
  %7645 = vmatpush1.msra.mxu0 0.0
  %7646 = vmatprep.subr.mxu0 0.0
  %7647 = vmatpush1.msra.mxu0 0.0
  %7648 = vmatprep.subr.mxu0 0.0
  %7649 = vmatpush1.msra.mxu0 0.0
  %7650 = vmatprep.subr.mxu0 0.0
  %7651 = vmatpush1.msra.mxu0 0.0
  %7652 = vmatprep.subr.mxu0 0.0
  %7653 = vmatpush1.msra.mxu0 0.0
  %7654 = vmatprep.subr.mxu0 0.0
  %7655 = vmatpush1.msra.mxu0 0.0
  %7656 = vmatprep.subr.mxu0 0.0
  %7657 = vmatpush1.msra.mxu0 0.0
  %7658 = vmatprep.subr.mxu0 0.0
  %7659 = vmatpush1.msra.mxu0 0.0
  %7660 = vmatprep.subr.mxu0 0.0
  %7661 = vmatpush1.msra.mxu0 0.0
  %7662 = vmatprep.mubr.f32.mxu0 0.0
  %7663 = vmatmul.mubr.f32.gmra.mrb[0].mxu0 %v7102
  %v7664 = vpop.f32.mrb[0].mxu0
  %v7665 = vadd.f32 %v7595, %v7664
  %v7666 = vpop.f32.mrb[0].mxu0
  %7667 = vdwg.mxu0
  %v7668 = vmax.f32 %v7384, 0.0
  %v7669 = vmax.f32 %v7386, 0.0
  %v7670 = vmax.f32 %v7665, 0.0
  %v7671 = vld [vmem:[%s7] sm:$0xff]
  %v7672 = vld [vmem:[%s7 + $0x8] sm:$0xff]
  %v7673 = vld [vmem:[%s7 + $0x10] sm:$0xff]
  %v7674 = vld [vmem:[%s7 + $0x18] sm:$0xff]
  %v7675 = vld [vmem:[%s7 + $0x20] sm:$0xff]
  %v7676 = vld [vmem:[%s7 + $0x28] sm:$0xff]
  %v7677 = vld [vmem:[%s7 + $0x30] sm:$0xff]
  %v7678 = vld [vmem:[%s7 + $0x38] sm:$0xff]
  %v7679 = vld [vmem:[%s7 + $0x40] sm:$0xff]
  %v7680 = vld [vmem:[%s7 + $0x48] sm:$0xff]
  %v7681 = vld [vmem:[%s7 + $0x50] sm:$0xff]
  %v7682 = vld [vmem:[%s7 + $0x58] sm:$0xff]
  %v7683 = vld [vmem:[%s7 + $0x60] sm:$0xff]
  %v7684 = vld [vmem:[%s7 + $0x68] sm:$0xff]
  %v7685 = vld [vmem:[%s7 + $0x70] sm:$0xff]
  %v7686 = vld [vmem:[%s7 + $0x78] sm:$0xff]
  %v7687 = vld [vmem:[%s7 + $0x80] sm:$0xff]
  %v7688 = vld [vmem:[%s7 + $0x88] sm:$0xff]
  %v7689 = vld [vmem:[%s7 + $0x90] sm:$0xff]
  %v7690 = vld [vmem:[%s7 + $0x98] sm:$0xff]
  %v7691 = vld [vmem:[%s7 + $0xa0] sm:$0xff]
  %v7692 = vld [vmem:[%s7 + $0xa8] sm:$0xff]
  %v7693 = vld [vmem:[%s7 + $0xb0] sm:$0xff]
  %v7694 = vld [vmem:[%s7 + $0xb8] sm:$0xff]
  %v7695 = vld [vmem:[%s7 + $0xc0] sm:$0xff]
  %v7696 = vld [vmem:[%s7 + $0xc8] sm:$0xff]
  %v7697 = vld [vmem:[%s7 + $0xd0] sm:$0xff]
  %v7698 = vld [vmem:[%s7 + $0xd8] sm:$0xff]
  %v7699 = vld [vmem:[%s7 + $0xe0] sm:$0xff]
  %v7700 = vld [vmem:[%s7 + $0xe8] sm:$0xff]
  %v7701 = vld [vmem:[%s7 + $0xf0] sm:$0xff]
  %v7702 = vld [vmem:[%s7 + $0xf8] sm:$0xff]
  %v7703 = vld [vmem:[%s7 + $0x100] sm:$0xff]
  %v7704 = vld [vmem:[%s7 + $0x108] sm:$0xff]
  %v7705 = vld [vmem:[%s7 + $0x110] sm:$0xff]
  %v7706 = vld [vmem:[%s7 + $0x118] sm:$0xff]
  %v7707 = vld [vmem:[%s8] sm:$0x1]
  %v7709 = vlaneseq
  %v7710 = vshrl.u32 %v7709, 7
  %v7711 = vsub.s32 0, %v7710
  %v7712 = vrot.slane %v7707, %v7711
  %v7715 = vsel %vm4798, %v7670, 0
  %7717 = vmatprep.subr.mxu0 0.0
  %7718 = vmatpush1.msra.mxu0 %v7671
  %7719 = vmatprep.subr.mxu0 0.0
  %7720 = vmatpush1.msra.mxu0 %v7672
  %7721 = vmatprep.subr.mxu0 0.0
  %7722 = vmatpush1.msra.mxu0 %v7673
  %7723 = vmatprep.subr.mxu0 0.0
  %7724 = vmatpush1.msra.mxu0 %v7674
  %7725 = vmatprep.subr.mxu0 0.0
  %7726 = vmatpush1.msra.mxu0 %v7675
  %7727 = vmatprep.subr.mxu0 0.0
  %7728 = vmatpush1.msra.mxu0 %v7676
  %7729 = vmatprep.subr.mxu0 0.0
  %7730 = vmatpush1.msra.mxu0 %v7677
  %7731 = vmatprep.subr.mxu0 0.0
  %7732 = vmatpush1.msra.mxu0 %v7678
  %7733 = vmatprep.subr.mxu0 0.0
  %7734 = vmatpush1.msra.mxu0 %v7679
  %7735 = vmatprep.subr.mxu0 0.0
  %7736 = vmatpush1.msra.mxu0 %v7680
  %7737 = vmatprep.subr.mxu0 0.0
  %7738 = vmatpush1.msra.mxu0 %v7681
  %7739 = vmatprep.subr.mxu0 0.0
  %7740 = vmatpush1.msra.mxu0 %v7682
  %7741 = vmatprep.subr.mxu0 0.0
  %7742 = vmatpush1.msra.mxu0 %v7683
  %7743 = vmatprep.subr.mxu0 0.0
  %7744 = vmatpush1.msra.mxu0 %v7684
  %7745 = vmatprep.subr.mxu0 0.0
  %7746 = vmatpush1.msra.mxu0 %v7685
  %7747 = vmatprep.subr.mxu0 0.0
  %7748 = vmatpush1.msra.mxu0 %v7686
  %7749 = vmatprep.subr.mxu0 0.0
  %7750 = vmatpush1.msra.mxu0 %v7687
  %7751 = vmatprep.subr.mxu0 0.0
  %7752 = vmatpush1.msra.mxu0 %v7688
  %7753 = vmatprep.subr.mxu0 0.0
  %7754 = vmatpush1.msra.mxu0 %v7689
  %7755 = vmatprep.subr.mxu0 0.0
  %7756 = vmatpush1.msra.mxu0 %v7690
  %7757 = vmatprep.subr.mxu0 0.0
  %7758 = vmatpush1.msra.mxu0 %v7691
  %7759 = vmatprep.subr.mxu0 0.0
  %7760 = vmatpush1.msra.mxu0 %v7692
  %7761 = vmatprep.subr.mxu0 0.0
  %7762 = vmatpush1.msra.mxu0 %v7693
  %7763 = vmatprep.subr.mxu0 0.0
  %7764 = vmatpush1.msra.mxu0 %v7694
  %7765 = vmatprep.subr.mxu0 0.0
  %7766 = vmatpush1.msra.mxu0 %v7695
  %7767 = vmatprep.subr.mxu0 0.0
  %7768 = vmatpush1.msra.mxu0 %v7696
  %7769 = vmatprep.subr.mxu0 0.0
  %7770 = vmatpush1.msra.mxu0 %v7697
  %7771 = vmatprep.subr.mxu0 0.0
  %7772 = vmatpush1.msra.mxu0 %v7698
  %7773 = vmatprep.subr.mxu0 0.0
  %7774 = vmatpush1.msra.mxu0 %v7699
  %7775 = vmatprep.subr.mxu0 0.0
  %7776 = vmatpush1.msra.mxu0 %v7700
  %7777 = vmatprep.subr.mxu0 0.0
  %7778 = vmatpush1.msra.mxu0 %v7701
  %7779 = vmatprep.subr.mxu0 0.0
  %7780 = vmatpush1.msra.mxu0 %v7702
  %7781 = vmatprep.mubr.f32.mxu0 %v7669
  %7782 = vmatmul.mubr.f32.gmra.mrb[0].mxu0 %v7668
  %v7783 = vpop.f32.mrb[0].mxu0
  %v7784 = vadd.f32 %v7712, %v7783
  %v7785 = vpop.f32.mrb[0].mxu0
  %7786 = vdwg.mxu0
  %7787 = vmatprep.subr.mxu0 0.0
  %7788 = vmatpush1.msra.mxu0 %v7703
  %7789 = vmatprep.subr.mxu0 0.0
  %7790 = vmatpush1.msra.mxu0 %v7704
  %7791 = vmatprep.subr.mxu0 0.0
  %7792 = vmatpush1.msra.mxu0 %v7705
  %7793 = vmatprep.subr.mxu0 0.0
  %7794 = vmatpush1.msra.mxu0 %v7706
  %7795 = vmatprep.subr.mxu0 0.0
  %7796 = vmatpush1.msra.mxu0 0.0
  %7797 = vmatprep.subr.mxu0 0.0
  %7798 = vmatpush1.msra.mxu0 0.0
  %7799 = vmatprep.subr.mxu0 0.0
  %7800 = vmatpush1.msra.mxu0 0.0
  %7801 = vmatprep.subr.mxu0 0.0
  %7802 = vmatpush1.msra.mxu0 0.0
  %7803 = vmatprep.subr.mxu0 0.0
  %7804 = vmatpush1.msra.mxu0 0.0
  %7805 = vmatprep.subr.mxu0 0.0
  %7806 = vmatpush1.msra.mxu0 0.0
  %7807 = vmatprep.subr.mxu0 0.0
  %7808 = vmatpush1.msra.mxu0 0.0
  %7809 = vmatprep.subr.mxu0 0.0
  %7810 = vmatpush1.msra.mxu0 0.0
  %7811 = vmatprep.subr.mxu0 0.0
  %7812 = vmatpush1.msra.mxu0 0.0
  %7813 = vmatprep.subr.mxu0 0.0
  %7814 = vmatpush1.msra.mxu0 0.0
  %7815 = vmatprep.subr.mxu0 0.0
  %7816 = vmatpush1.msra.mxu0 0.0
  %7817 = vmatprep.subr.mxu0 0.0
  %7818 = vmatpush1.msra.mxu0 0.0
  %7819 = vmatprep.subr.mxu0 0.0
  %7820 = vmatpush1.msra.mxu0 0.0
  %7821 = vmatprep.subr.mxu0 0.0
  %7822 = vmatpush1.msra.mxu0 0.0
  %7823 = vmatprep.subr.mxu0 0.0
  %7824 = vmatpush1.msra.mxu0 0.0
  %7825 = vmatprep.subr.mxu0 0.0
  %7826 = vmatpush1.msra.mxu0 0.0
  %7827 = vmatprep.subr.mxu0 0.0
  %7828 = vmatpush1.msra.mxu0 0.0
  %7829 = vmatprep.subr.mxu0 0.0
  %7830 = vmatpush1.msra.mxu0 0.0
  %7831 = vmatprep.subr.mxu0 0.0
  %7832 = vmatpush1.msra.mxu0 0.0
  %7833 = vmatprep.subr.mxu0 0.0
  %7834 = vmatpush1.msra.mxu0 0.0
  %7835 = vmatprep.subr.mxu0 0.0
  %7836 = vmatpush1.msra.mxu0 0.0
  %7837 = vmatprep.subr.mxu0 0.0
  %7838 = vmatpush1.msra.mxu0 0.0
  %7839 = vmatprep.subr.mxu0 0.0
  %7840 = vmatpush1.msra.mxu0 0.0
  %7841 = vmatprep.subr.mxu0 0.0
  %7842 = vmatpush1.msra.mxu0 0.0
  %7843 = vmatprep.subr.mxu0 0.0
  %7844 = vmatpush1.msra.mxu0 0.0
  %7845 = vmatprep.subr.mxu0 0.0
  %7846 = vmatpush1.msra.mxu0 0.0
  %7847 = vmatprep.subr.mxu0 0.0
  %7848 = vmatpush1.msra.mxu0 0.0
  %7849 = vmatprep.subr.mxu0 0.0
  %7850 = vmatpush1.msra.mxu0 0.0
  %7851 = vmatprep.mubr.f32.mxu0 0.0
  %7852 = vmatmul.mubr.f32.gmra.mrb[0].mxu0 %v7715
  %v7853 = vpop.f32.mrb[0].mxu0
  %v7854 = vadd.f32 %v7784, %v7853
  %v7855 = vpop.f32.mrb[0].mxu0
  %7856 = vdwg.mxu0
  %v7857 = vmax.f32 %v7854, 0.0
  %v7858 = vld [vmem:[%s9] sm:$0xff]
  %v7859 = vld [vmem:[%s9 + $0x8] sm:$0xff]
  %v7860 = vld [vmem:[%s9 + $0x10] sm:$0xff]
  %v7861 = vld [vmem:[%s9 + $0x18] sm:$0xff]
  %v7862 = vld [vmem:[%s9 + $0x20] sm:$0xff]
  %v7863 = vld [vmem:[%s9 + $0x28] sm:$0xff]
  %v7864 = vld [vmem:[%s9 + $0x30] sm:$0xff]
  %v7865 = vld [vmem:[%s9 + $0x38] sm:$0xff]
  %v7866 = vld [vmem:[%s10] sm:$0x1]
  %v7868 = vlaneseq
  %v7869 = vshrl.u32 %v7868, 7
  %v7870 = vsub.s32 0, %v7869
  %v7871 = vrot.slane %v7866, %v7870
  %vm7873 = vcmask 523264
  %v7875 = vsel %vm7873, %v7857, 0
  %7877 = vmatprep.subr.mxu0 0.0
  %7878 = vmatpush1.msra.mxu0 %v7858
  %7879 = vmatprep.subr.mxu0 0.0
  %7880 = vmatpush1.msra.mxu0 %v7859
  %7881 = vmatprep.subr.mxu0 0.0
  %7882 = vmatpush1.msra.mxu0 %v7860
  %7883 = vmatprep.subr.mxu0 0.0
  %7884 = vmatpush1.msra.mxu0 %v7861
  %7885 = vmatprep.subr.mxu0 0.0
  %7886 = vmatpush1.msra.mxu0 %v7862
  %7887 = vmatprep.subr.mxu0 0.0
  %7888 = vmatpush1.msra.mxu0 %v7863
  %7889 = vmatprep.subr.mxu0 0.0
  %7890 = vmatpush1.msra.mxu0 %v7864
  %7891 = vmatprep.subr.mxu0 0.0
  %7892 = vmatpush1.msra.mxu0 %v7865
  %7893 = vmatprep.subr.mxu0 0.0
  %7894 = vmatpush1.msra.mxu0 0.0
  %7895 = vmatprep.subr.mxu0 0.0
  %7896 = vmatpush1.msra.mxu0 0.0
  %7897 = vmatprep.subr.mxu0 0.0
  %7898 = vmatpush1.msra.mxu0 0.0
  %7899 = vmatprep.subr.mxu0 0.0
  %7900 = vmatpush1.msra.mxu0 0.0
  %7901 = vmatprep.subr.mxu0 0.0
  %7902 = vmatpush1.msra.mxu0 0.0
  %7903 = vmatprep.subr.mxu0 0.0
  %7904 = vmatpush1.msra.mxu0 0.0
  %7905 = vmatprep.subr.mxu0 0.0
  %7906 = vmatpush1.msra.mxu0 0.0
  %7907 = vmatprep.subr.mxu0 0.0
  %7908 = vmatpush1.msra.mxu0 0.0
  %7909 = vmatprep.subr.mxu0 0.0
  %7910 = vmatpush1.msra.mxu0 0.0
  %7911 = vmatprep.subr.mxu0 0.0
  %7912 = vmatpush1.msra.mxu0 0.0
  %7913 = vmatprep.subr.mxu0 0.0
  %7914 = vmatpush1.msra.mxu0 0.0
  %7915 = vmatprep.subr.mxu0 0.0
  %7916 = vmatpush1.msra.mxu0 0.0
  %7917 = vmatprep.subr.mxu0 0.0
  %7918 = vmatpush1.msra.mxu0 0.0
  %7919 = vmatprep.subr.mxu0 0.0
  %7920 = vmatpush1.msra.mxu0 0.0
  %7921 = vmatprep.subr.mxu0 0.0
  %7922 = vmatpush1.msra.mxu0 0.0
  %7923 = vmatprep.subr.mxu0 0.0
  %7924 = vmatpush1.msra.mxu0 0.0
  %7925 = vmatprep.subr.mxu0 0.0
  %7926 = vmatpush1.msra.mxu0 0.0
  %7927 = vmatprep.subr.mxu0 0.0
  %7928 = vmatpush1.msra.mxu0 0.0
  %7929 = vmatprep.subr.mxu0 0.0
  %7930 = vmatpush1.msra.mxu0 0.0
  %7931 = vmatprep.subr.mxu0 0.0
  %7932 = vmatpush1.msra.mxu0 0.0
  %7933 = vmatprep.subr.mxu0 0.0
  %7934 = vmatpush1.msra.mxu0 0.0
  %7935 = vmatprep.subr.mxu0 0.0
  %7936 = vmatpush1.msra.mxu0 0.0
  %7937 = vmatprep.subr.mxu0 0.0
  %7938 = vmatpush1.msra.mxu0 0.0
  %7939 = vmatprep.subr.mxu0 0.0
  %7940 = vmatpush1.msra.mxu0 0.0
  %7941 = vmatprep.mubr.f32.mxu0 0.0
  %7942 = vmatmul.mubr.f32.gmra.mrb[0].mxu0 %v7875
  %v7943 = vpop.f32.mrb[0].mxu0
  %v7944 = vadd.f32 %v7871, %v7943
  %v7945 = vpop.f32.mrb[0].mxu0
  %7946 = vdwg.mxu0
  %7947 = vst [vmem:[%s11] sm:$0xff] %v7944
  // Predicated region
  $region46: #{fine_tuned_autoencoder_forward.1} parent=0 // pred_check
    _
  $region47: #{fine_tuned_autoencoder_forward.1} parent=0 // pred_check_branch
    %7949 = sbr.rel (0) target = $region49
  $region48: #{fine_tuned_autoencoder_forward.1} parent=0 // pred_region
    _
  $region49: #{fine_tuned_autoencoder_forward.1} parent=0 // pred_fallthru
    _
  // Predicated region
  $region50: #{fine_tuned_autoencoder_forward.1} parent=0 // pred_check
    _
  $region51: #{fine_tuned_autoencoder_forward.1} parent=0 // pred_check_branch
    %7951 = sbr.rel (0) target = $region53
  $region52: #{fine_tuned_autoencoder_forward.1} parent=0 // pred_region
    _
  $region53: #{fine_tuned_autoencoder_forward.1} parent=0 // pred_fallthru
    _

</llo_original>
